<compile_context>
chip_gen: v7x
topology: tpu7x:2x2x1
jax: 0.10.0
libtpu: 0.0.40
codegen_flags: <defaults>
</compile_context>

<pallas_src>
import functools

import jax
import jax.numpy as jnp
from jax import lax
from jax.experimental import pallas as pl
from jax.experimental.pallas import tpu as pltpu


_BN_EPS = 1e-5
_TILE_BUDGET = 32 * 1024 * 1024          # conservative per-kernel VMEM working-set budget
_MM_TM = (2048, 1024, 512, 256, 128, 64, 32, 16, 8)


# ----------------------------- small helpers ---------------------------------

def _round_up(x, m):
    return ((x + m - 1) // m) * m


def _pick_tile(extent, candidates):
    for t in candidates:
        if extent % t == 0:
            return t
    return None


_VMEM_LIMIT_CACHE = [None]


def _vmem_limit():
    """Scoped-VMEM limit derived per generation (96 MiB on 128-MiB chips,
    known-good 48 MiB on v7x / unknown chips)."""
    if _VMEM_LIMIT_CACHE[0] is None:
        limit = 48 * 1024 * 1024
        try:
            info = pltpu.get_tpu_info()
            phys = getattr(info, "vmem_capacity_bytes", None)
            if phys and int(phys) >= 96 * 1024 * 1024:
                limit = min(int(phys) - 32 * 1024 * 1024, 96 * 1024 * 1024)
        except Exception:
            pass
        _VMEM_LIMIT_CACHE[0] = limit
    return _VMEM_LIMIT_CACHE[0]


def _mosaic_params(dims):
    return pltpu.CompilerParams(dimension_semantics=dims,
                                vmem_limit_bytes=_vmem_limit())


# --------------------------- fused 1x1 matmul kernel --------------------------

def _mm_res_kernel(scale_ref, shift_ref, a_ref, b_ref, bias_ref, o_ref, *st,
                   act, sigmoid, want_stats, has_affine, tm, valid_m):
    """out = act(A*scale+shift) @ B + bias (+sigmoid); B resident, 1-D grid over
    M tiles; optional per-tile (2, C) [sum; sumsq] partial BN statistics."""
    a = a_ref[...]
    if has_affine:
        a = a.astype(jnp.float32) * scale_ref[...] + shift_ref[...]
    if act == "leaky":
        a = jnp.where(a > 0, a, 0.2 * a)
    elif act == "relu":
        a = jnp.maximum(a, 0.0)
    y = jnp.dot(a.astype(jnp.bfloat16), b_ref[...],
                preferred_element_type=jnp.float32) + bias_ref[...]
    if sigmoid:
        e = jnp.exp(-jnp.abs(y))
        r = pl.reciprocal(1.0 + e)
        y = jnp.where(y >= 0, r, 1.0 - r)
    o_ref[...] = y.astype(o_ref.dtype)
    if want_stats:
        (st_ref,) = st
        ys = y
        if valid_m % tm != 0:                    # mask padded rows out of the stats
            row = pl.program_id(0) * tm + lax.broadcasted_iota(jnp.int32, y.shape, 0)
            ys = jnp.where(row < valid_m, y, 0.0)
        st_ref[...] = jnp.concatenate(
            [jnp.sum(ys, axis=0, keepdims=True),
             jnp.sum(ys * ys, axis=0, keepdims=True)], axis=0)


def _mm_tiled_kernel(scale_ref, shift_ref, a_ref, b_ref, bias_ref, o_ref, acc_ref,
                     *, act, sigmoid, has_affine):
    """Fallback K/N-tiled matmul (very large layers only)."""
    k = pl.program_id(2)

    @pl.when(k == 0)
    def _():
        acc_ref[...] = jnp.zeros_like(acc_ref)

    a = a_ref[...]
    if has_affine:
        a = a.astype(jnp.float32) * scale_ref[...] + shift_ref[...]
    if act == "leaky":
        a = jnp.where(a > 0, a, 0.2 * a)
    elif act == "relu":
        a = jnp.maximum(a, 0.0)
    acc_ref[...] += jnp.dot(a.astype(jnp.bfloat16), b_ref[...],
                            preferred_element_type=jnp.float32)

    @pl.when(k == pl.num_programs(2) - 1)
    def _():
        y = acc_ref[...] + bias_ref[...]
        if sigmoid:
            e = jnp.exp(-jnp.abs(y))
            r = pl.reciprocal(1.0 + e)
            y = jnp.where(y >= 0, r, 1.0 - r)
        o_ref[...] = y.astype(o_ref.dtype)


def _resident_tm(m, k, c, out_bytes, budget=_TILE_BUDGET):
    b_bytes = 2 * k * c * 2                       # resident B (bf16, double-buffered)
    cap = None
    for tm in _MM_TM:
        need = b_bytes + 2 * tm * k * 2 + 2 * tm * c * out_bytes + tm * c * 4
        if need <= budget:
            cap = tm
            break
    if cap is None:
        return None
    for tm in _MM_TM:
        if tm <= cap and tm <= m and m % tm == 0:
            return tm
    for tm in _MM_TM:
        if tm <= cap and tm <= m:
            return tm
    return min(cap, _MM_TM[-1])


def fused_matmul(a, b, scale=None, shift=None, bias=None, act="none",
                 sigmoid=False, want_stats=False, out_dtype=jnp.bfloat16,
                 pad_cols_to=None):
    m, kdim = a.shape
    c0 = b.shape[1]
    if pad_cols_to is not None and c0 < pad_cols_to:      # lane-dense output
        b = jnp.pad(b, ((0, 0), (0, pad_cols_to - c0)))
        if bias is not None:
            bias = jnp.pad(bias, (0, pad_cols_to - c0))
    c = b.shape[1]

    has_affine = scale is not None
    if scale is None:
        scale = jnp.ones((kdim,), jnp.float32)
        shift = jnp.zeros((kdim,), jnp.float32)
    if bias is None:
        bias = jnp.zeros((c,), jnp.float32)
    scale = scale.reshape(1, kdim).astype(jnp.float32)
    shift = shift.reshape(1, kdim).astype(jnp.float32)
    bias = bias.reshape(1, c).astype(jnp.float32)
    a = a.astype(jnp.bfloat16)
    b = b.astype(jnp.bfloat16)
    out_bytes = jnp.dtype(out_dtype).itemsize

    tm = _resident_tm(m, kdim, c, out_bytes)
    if tm is not None:
        mp = _round_up(m, tm)
        if mp != m:
            a = jnp.pad(a, ((0, mp - m), (0, 0)))
        nmt = mp // tm
        out_shape = [jax.ShapeDtypeStruct((mp, c), out_dtype)]
        out_specs = [pl.BlockSpec((tm, c), lambda i: (i, 0))]
        if want_stats:
            out_shape.append(jax.ShapeDtypeStruct((nmt, 2, c), jnp.float32))
            out_specs.append(pl.BlockSpec((None, 2, c), lambda i: (i, 0, 0)))
        kernel = functools.partial(_mm_res_kernel, act=act, sigmoid=sigmoid,
                                   want_stats=want_stats, has_affine=has_affine,
                                   tm=tm, valid_m=m)
        res = pl.pallas_call(
            kernel,
            out_shape=tuple(out_shape),
            grid=(nmt,),
            in_specs=[
                pl.BlockSpec((1, kdim), lambda i: (0, 0)),    # scale
                pl.BlockSpec((1, kdim), lambda i: (0, 0)),    # shift
                pl.BlockSpec((tm, kdim), lambda i: (i, 0)),   # A
                pl.BlockSpec((kdim, c), lambda i: (0, 0)),    # B (resident)
                pl.BlockSpec((1, c), lambda i: (0, 0)),       # bias
            ],
            out_specs=tuple(out_specs),
            compiler_params=_mosaic_params(("parallel",)),
        )(scale, shift, a, b, bias)
        o = res[0]
        if mp != m:
            o = o[:m]
        if want_stats:
            st = res[1]
            return o, st[:, 0, :].sum(axis=0), st[:, 1, :].sum(axis=0)
        return o

    # ---- fallback: K/N-tiled (only for layers whose B cannot live in VMEM) ----
    tmf = _pick_tile(m, (512, 256, 128, 64, 32, 16)) or 128
    mp = _round_up(m, tmf)
    if mp != m:
        a = jnp.pad(a, ((0, mp - m), (0, 0)))
    tk = _pick_tile(kdim, (512, 256, 128)) or kdim
    tn = _pick_tile(c, (512, 256, 128)) or c
    kernel = functools.partial(_mm_tiled_kernel, act=act, sigmoid=sigmoid,
                               has_affine=has_affine)
    o = pl.pallas_call(
        kernel,
        out_shape=jax.ShapeDtypeStruct((mp, c), out_dtype),
        grid=(c // tn, mp // tmf, kdim // tk),
        in_specs=[
            pl.BlockSpec((1, tk), lambda j, i, k: (0, k)),
            pl.BlockSpec((1, tk), lambda j, i, k: (0, k)),
            pl.BlockSpec((tmf, tk), lambda j, i, k: (i, k)),
            pl.BlockSpec((tk, tn), lambda j, i, k: (k, j)),
            pl.BlockSpec((1, tn), lambda j, i, k: (0, j)),
        ],
        out_specs=pl.BlockSpec((tmf, tn), lambda j, i, k: (i, j)),
        scratch_shapes=[pltpu.VMEM((tmf, tn), jnp.float32)],
        compiler_params=_mosaic_params(("parallel", "parallel", "arbitrary")),
    )(scale, shift, a, b, bias)
    if mp != m:
        o = o[:m]
    if want_stats:
        s, q = column_stats(o)
        return o, s, q
    return o


# ----------------------- standalone column stats (fallback) -------------------

def _stats_kernel(x_ref, s_ref, q_ref):
    @pl.when(pl.program_id(0) == 0)
    def _():
        s_ref[...] = jnp.zeros_like(s_ref)
        q_ref[...] = jnp.zeros_like(q_ref)
    x = x_ref[...].astype(jnp.float32)
    s_ref[...] += jnp.sum(x, axis=0, keepdims=True)
    q_ref[...] += jnp.sum(x * x, axis=0, keepdims=True)


def column_stats(x2d):
    m, c = x2d.shape
    tm = _pick_tile(m, (1024, 512, 256, 128, 64, 32, 16, 8))
    mp = m
    if tm is None:
        tm = 128
        mp = _round_up(m, tm)
        x2d = jnp.pad(x2d, ((0, mp - m), (0, 0)))
    s, q = pl.pallas_call(
        _stats_kernel,
        out_shape=(jax.ShapeDtypeStruct((1, c), jnp.float32),
                   jax.ShapeDtypeStruct((1, c), jnp.float32)),
        grid=(mp // tm,),
        in_specs=[pl.BlockSpec((tm, c), lambda i: (i, 0))],
        out_specs=(pl.BlockSpec((1, c), lambda i: (0, 0)),
                   pl.BlockSpec((1, c), lambda i: (0, 0))),
        compiler_params=_mosaic_params(("arbitrary",)),
    )(x2d)
    return s[0], q[0]


def bn_scale_shift(s, q, count, gamma, beta, eps=_BN_EPS):
    """Fold training-mode BatchNorm into a per-channel (scale, shift)."""
    # TODO(synk): single-pass E[x^2]-E[x]^2 can cancel for large-mean channels;
    # a shifted / Welford accumulation would be more robust.
    mean = s / count
    var = jnp.maximum(q / count - mean * mean, 0.0)
    scale = gamma * lax.rsqrt(var + eps)
    return scale, beta - mean * scale


# ------------------ in-kernel tap-gather conv kernels (no patch matrix) -------

def _enc_conv_kernel(x_ref, w_ref, o_ref, st_ref, *, t_rows, ow):
    """4x4/s2 conv as a 2x2 valid conv over space-to-depth parity planes.
    x_ref: (t_rows+1, ow+1, 4*Cin) activated strip; w_ref: (16*Cin, Cout);
    o_ref: (t_rows, ow, Cout); st_ref: (2, Cout) [sum; sumsq] partial BN stats."""
    cout = o_ref.shape[-1]
    wmat = w_ref[...]

    def body(t, carry):
        s, q = carry
        a = jnp.concatenate(
            [x_ref[t + dr, dc:dc + ow, :] for dr in range(2) for dc in range(2)],
            axis=-1)
        y = jnp.dot(a, wmat, preferred_element_type=jnp.float32)
        o_ref[t] = y.astype(o_ref.dtype)
        s = s + jnp.sum(y, axis=0, keepdims=True)
        q = q + jnp.sum(y * y, axis=0, keepdims=True)
        return s, q

    init = (jnp.zeros((1, cout), jnp.float32), jnp.zeros((1, cout), jnp.float32))
    s, q = lax.fori_loop(0, t_rows, body, init)
    st_ref[...] = jnp.concatenate([s, q], axis=0)


def _dec_convT_kernel(x_ref, w_ref, o_ref, st_ref, *, t_rows, ww):
    """Stride-2 ConvTranspose(4x4) as a 4-phase sub-pixel conv.
    x_ref: (t_rows+2, ww+2, Cin) activated, zero-padded strip;
    w_ref: (4, 4*Cin, Cout) per-phase weights; o_ref: (t_rows, 2, ww, 2*Cout)
    (a free reshape away from the interleaved output); st_ref: (2, Cout)."""
    cout = o_ref.shape[-1] // 2
    wph = [w_ref[i] for i in range(4)]

    def body(t, carry):
        s, q = carry
        for py in range(2):
            cols = []
            for px in range(2):
                a = jnp.concatenate(
                    [x_ref[t + py + dy, px + dx:px + dx + ww, :]
                     for dy in range(2) for dx in range(2)], axis=-1)
                y = jnp.dot(a, wph[2 * py + px], preferred_element_type=jnp.float32)
                s = s + jnp.sum(y, axis=0, keepdims=True)
                q = q + jnp.sum(y * y, axis=0, keepdims=True)
                cols.append(y)
            o_ref[t, py] = jnp.concatenate(cols, axis=-1).astype(o_ref.dtype)
        return s, q

    init = (jnp.zeros((1, cout), jnp.float32), jnp.zeros((1, cout), jnp.float32))
    s, q = lax.fori_loop(0, t_rows, body, init)
    st_ref[...] = jnp.concatenate([s, q], axis=0)


def _strip_rows(total_rows, row_bytes, fixed_bytes, halo, budget=_TILE_BUDGET):
    for t in range(total_rows, 0, -1):
        if total_rows % t:
            continue
        if fixed_bytes + 2 * (t + halo) * row_bytes <= budget:
            return t
    return None


# --------------------------- weight re-pack helpers ---------------------------

def conv1x1_mat(w):          # Conv2d (Cout, Cin, 1, 1) -> (Cin, Cout)
    return jnp.transpose(w[:, :, 0, 0], (1, 0))


def convT1x1_mat(w):         # ConvTranspose2d (Cin, Cout, 1, 1) -> (Cin, Cout)
    return w[:, :, 0, 0]


def enc_tap_weight(w):       # Conv2d (Cout, Cin, 4, 4) -> (16*Cin, Cout), rows (a,b,py,px,ci)
    rows = []
    for a in range(2):
        for b in range(2):
            for py in range(2):
                for px in range(2):
                    rows.append(jnp.transpose(w[:, :, 2 * a + py, 2 * b + px], (1, 0)))
    return jnp.concatenate(rows, axis=0)


def dec_phase_weight(w):     # ConvT2d (Cin, Cout, 4, 4) -> (4, 4*Cin, Cout)
    kidx = ((3, 1), (2, 0))
    phases = []
    for py in range(2):
        for px in range(2):
            taps = [w[:, :, kidx[py][dy], kidx[px][dx]]
                    for dy in range(2) for dx in range(2)]
            phases.append(jnp.concatenate(taps, axis=0))
    return jnp.stack(phases, axis=0)


# fallback-path helpers (only traced if a layer is too large for VMEM residency)

def conv4x4_mat(w):
    return jnp.transpose(w, (2, 3, 1, 0)).reshape(-1, w.shape[0])


def convT4x4_phase_mat(w):
    kidx = ((3, 1), (2, 0))
    rows = []
    for dy in range(2):
        for dx in range(2):
            cols = [w[:, :, kidx[py][dy], kidx[px][dx]]
                    for py in range(2) for px in range(2)]
            rows.append(jnp.concatenate(cols, axis=1))
    return jnp.concatenate(rows, axis=0)


def conv_patches(x, kh, kw, stride, pad):
    n, h, w, c = x.shape
    xp = jnp.pad(x, ((0, 0), (pad, pad), (pad, pad), (0, 0)))
    oh = (h + 2 * pad - kh) // stride + 1
    ow = (w + 2 * pad - kw) // stride + 1
    cols = []
    for ky in range(kh):
        for kx in range(kw):
            cols.append(xp[:, ky:ky + stride * oh:stride,
                           kx:kx + stride * ow:stride, :])
    a = jnp.concatenate(cols, axis=-1)
    return a.reshape(n * oh * ow, kh * kw * c), (n, oh, ow)


def assemble_phases(y, n, h, w, cout):
    yr = y.reshape(n, h + 1, w + 1, 2, 2, cout)
    o00 = yr[:, :h, :w, 0, 0, :]
    o01 = yr[:, :h, 1:, 0, 1, :]
    o10 = yr[:, 1:, :w, 1, 0, :]
    o11 = yr[:, 1:, 1:, 1, 1, :]
    even = jnp.stack([o00, o01], axis=3)
    odd = jnp.stack([o10, o11], axis=3)
    out = jnp.stack([even, odd], axis=2)
    return out.reshape(n, 2 * h, 2 * w, cout)


# ---------------------------- conv wrapper functions ---------------------------

def conv4x4_down(x, w, scale, shift):
    """LeakyReLU(x*scale+shift) -> Conv2d(4x4, s2, p1, no bias).  Returns the
    raw conv output (bf16) plus per-channel sum / sumsq for the deferred BN."""
    n, h, wd, cin = x.shape
    cout = w.shape[0]
    oh, ow = h // 2, wd // 2

    # deferred BN affine + LeakyReLU applied once per source element; XLA fuses
    # this into the pad / space-to-depth / strip gather (zeros padded AFTER act)
    xa = x.astype(jnp.float32) * scale + shift
    xa = jnp.where(xa > 0, xa, 0.2 * xa).astype(jnp.bfloat16)
    xp = jnp.pad(xa, ((0, 0), (1, 1), (1, 1), (0, 0)))
    p = xp.reshape(n, oh + 1, 2, ow + 1, 2, cin)
    p = p.transpose(0, 1, 3, 2, 4, 5).reshape(n, oh + 1, ow + 1, 4 * cin)

    w_bytes = 16 * cin * cout * 2 * 2
    row_bytes = (ow + 1) * 4 * cin * 2 + ow * cout * 8 + ow * 16 * cin * 2
    t = None
    if w_bytes <= _TILE_BUDGET // 2:
        t = _strip_rows(oh, row_bytes, w_bytes + (1 << 20), halo=1)
    if t is None:
        # TODO(synk): very large layer - falls back to the HBM patch-matrix path.
        patches, _ = conv_patches(xa, 4, 4, 2, 1)
        z = fused_matmul(patches, conv4x4_mat(w))
        s, q = column_stats(z)
        return z.reshape(n, oh, ow, cout), s, q

    nb = oh // t
    strips = p[:, None] if nb == 1 else jnp.stack(
        [p[:, i * t:i * t + t + 1] for i in range(nb)], axis=1)
    wmat = enc_tap_weight(w).astype(jnp.bfloat16)

    out, st = pl.pallas_call(
        functools.partial(_enc_conv_kernel, t_rows=t, ow=ow),
        out_shape=(jax.ShapeDtypeStruct((n, oh, ow, cout), jnp.bfloat16),
                   jax.ShapeDtypeStruct((n, nb, 2, cout), jnp.float32)),
        grid=(n, nb),
        in_specs=[
            pl.BlockSpec((None, None, t + 1, ow + 1, 4 * cin),
                         lambda b, i: (b, i, 0, 0, 0)),
            pl.BlockSpec((16 * cin, cout), lambda b, i: (0, 0)),
        ],
        out_specs=(
            pl.BlockSpec((None, t, ow, cout), lambda b, i: (b, i, 0, 0)),
            pl.BlockSpec((None, None, 2, cout), lambda b, i: (b, i, 0, 0)),
        ),
        compiler_params=_mosaic_params(("parallel", "parallel")),
    )(strips, wmat)
    s = st[:, :, 0, :].sum(axis=(0, 1))
    q = st[:, :, 1, :].sum(axis=(0, 1))
    return out, s, q


def convT4x4_up(x, w, scale, shift):
    """ReLU(x*scale+shift) -> ConvTranspose2d(4x4, s2, p1, no bias), as a
    4-phase sub-pixel conv with in-kernel taps and fused BN statistics."""
    n, hh, ww, cin = x.shape
    cout = w.shape[1]

    xa = x.astype(jnp.float32) * scale + shift
    xa = jnp.maximum(xa, 0.0).astype(jnp.bfloat16)
    xp = jnp.pad(xa, ((0, 0), (1, 1), (1, 1), (0, 0)))

    w_bytes = 16 * cin * cout * 2 * 2
    row_bytes = (ww + 2) * cin * 2 + 2 * ww * cout * 8 + ww * 4 * cin * 2
    t = None
    if w_bytes <= _TILE_BUDGET // 2:
        t = _strip_rows(hh, row_bytes, w_bytes + (1 << 20), halo=2)
    if t is None:
        # TODO(synk): very large layer - falls back to the HBM patch-matrix path.
        patches, _ = conv_patches(xa, 2, 2, 1, 1)
        yph = fused_matmul(patches, convT4x4_phase_mat(w))
        dec = assemble_phases(yph, n, hh, ww, cout)
        s, q = column_stats(dec.reshape(-1, cout))
        return dec, s, q

    nb = hh // t
    strips = xp[:, None] if nb == 1 else jnp.stack(
        [xp[:, i * t:i * t + t + 2] for i in range(nb)], axis=1)
    wmat = dec_phase_weight(w).astype(jnp.bfloat16)

    out6, st = pl.pallas_call(
        functools.partial(_dec_convT_kernel, t_rows=t, ww=ww),
        out_shape=(jax.ShapeDtypeStruct((n, hh, 2, ww, 2 * cout), jnp.bfloat16),
                   jax.ShapeDtypeStruct((n, nb, 2, cout), jnp.float32)),
        grid=(n, nb),
        in_specs=[
            pl.BlockSpec((None, None, t + 2, ww + 2, cin),
                         lambda b, i: (b, i, 0, 0, 0)),
            pl.BlockSpec((4, 4 * cin, cout), lambda b, i: (0, 0, 0)),
        ],
        out_specs=(
            pl.BlockSpec((None, t, 2, ww, 2 * cout), lambda b, i: (b, i, 0, 0, 0)),
            pl.BlockSpec((None, None, 2, cout), lambda b, i: (b, i, 0, 0)),
        ),
        compiler_params=_mosaic_params(("parallel", "parallel")),
    )(strips, wmat)
    dec = out6.reshape(n, 2 * hh, 2 * ww, cout)       # free (row-major) reshape
    s = st[:, :, 0, :].sum(axis=(0, 1))
    q = st[:, :, 1, :].sum(axis=(0, 1))
    return dec, s, q


# ------------------------------ parameter init --------------------------------

def init_params(key, input_nc, output_nc, num_downs, ngf):
    def nrm(k, shape):
        return 0.05 * jax.random.normal(k, shape, jnp.float32)

    nc_in = ngf * (2 ** num_downs)
    keys = iter(jax.random.split(key, 6 + 2 * num_downs))
    params = {
        "outer_down_w": nrm(next(keys), (ngf, input_nc, 1, 1)),
        "outer_up_w": nrm(next(keys), (2 * ngf, output_nc, 1, 1)),
        "outer_up_b": nrm(next(keys), (output_nc,)),
        "inner_down_w": nrm(next(keys), (nc_in, nc_in, 1, 1)),
        "inner_up_w": nrm(next(keys), (nc_in, nc_in, 1, 1)),
        "inner_up_b": nrm(next(keys), (nc_in,)),
        "inner_up_gamma": jnp.ones((nc_in,), jnp.float32),
        "inner_up_beta": jnp.zeros((nc_in,), jnp.float32),
        "mid": [],
    }
    for k in range(1, num_downs + 1):
        outer = ngf * 2 ** (k - 1)
        inner = ngf * 2 ** k
        params["mid"].append({
            "down_w": nrm(next(keys), (inner, outer, 4, 4)),
            "down_gamma": jnp.ones((inner,), jnp.float32),
            "down_beta": jnp.zeros((inner,), jnp.float32),
            "up_w": nrm(next(keys), (2 * inner, outer, 4, 4)),
            "up_gamma": jnp.ones((outer,), jnp.float32),
            "up_beta": jnp.zeros((outer,), jnp.float32),
        })
    return params


# ------------------------------- forward pass ----------------------------------

def unet_forward_nhwc(params, x, num_downs, ngf):
    n, h, w, cin = x.shape
    flat = lambda t: t.reshape(-1, t.shape[-1])
    ones = lambda c: jnp.ones((c,), jnp.float32)
    zeros = lambda c: jnp.zeros((c,), jnp.float32)
    x = x.astype(jnp.bfloat16)

    # outermost down: Conv1x1(input_nc -> ngf), no act / bias / norm
    y = fused_matmul(flat(x), conv1x1_mat(params["outer_down_w"]))
    y = y.reshape(n, h, w, ngf)
    skip_d, skip_s, skip_t = [y], [ones(ngf)], [zeros(ngf)]
    cur, cur_s, cur_t = y, ones(ngf), zeros(ngf)

    # encoder: LeakyReLU -> Conv4x4/s2 -> BN (folded into the next consumer)
    for k in range(1, num_downs + 1):
        blk = params["mid"][k - 1]
        z, s, q = conv4x4_down(cur, blk["down_w"], cur_s, cur_t)
        nn_, oh, ow = z.shape[0], z.shape[1], z.shape[2]
        cur_s, cur_t = bn_scale_shift(s, q, nn_ * oh * ow,
                                      blk["down_gamma"], blk["down_beta"])
        cur = z
        skip_d.append(cur); skip_s.append(cur_s); skip_t.append(cur_t)

    # innermost (keep_size): LeakyReLU -> Conv1x1 -> ReLU -> ConvT1x1(+b) -> BN
    nc = ngf * (2 ** num_downs)
    z = fused_matmul(flat(cur), conv1x1_mat(params["inner_down_w"]),
                     cur_s, cur_t, act="leaky")
    z, s, q = fused_matmul(z, convT1x1_mat(params["inner_up_w"]),
                           bias=params["inner_up_b"], act="relu", want_stats=True)
    in_s, in_t = bn_scale_shift(s, q, z.shape[0],
                                params["inner_up_gamma"], params["inner_up_beta"])
    cur = jnp.concatenate([cur, z.reshape(cur.shape[:3] + (nc,))], axis=-1)
    cur_s = jnp.concatenate([cur_s, in_s])
    cur_t = jnp.concatenate([cur_t, in_t])

    # decoder: ReLU -> ConvT4x4/s2 (fused stats) -> BN (deferred)
    # TODO(synk): skip/dec could be fed as two separate K-segments to avoid the
    # channel concat in HBM; XLA currently fuses it into the next strip gather.
    for k in range(num_downs, 0, -1):
        blk = params["mid"][k - 1]
        dec, s, q = convT4x4_up(cur, blk["up_w"], cur_s, cur_t)
        d_s, d_t = bn_scale_shift(s, q,
                                  dec.shape[0] * dec.shape[1] * dec.shape[2],
                                  blk["up_gamma"], blk["up_beta"])
        cur = jnp.concatenate([skip_d[k - 1], dec], axis=-1)
        cur_s = jnp.concatenate([skip_s[k - 1], d_s])
        cur_t = jnp.concatenate([skip_t[k - 1], d_t])

    # outermost up: ReLU -> ConvT1x1(+bias) -> Sigmoid (lane-dense f32 output)
    out_nc = params["outer_up_w"].shape[1]
    out = fused_matmul(flat(cur), convT1x1_mat(params["outer_up_w"]),
                       cur_s, cur_t, bias=params["outer_up_b"],
                       act="relu", sigmoid=True, out_dtype=jnp.float32,
                       pad_cols_to=128)
    out = out[:, :out_nc]
    return out.reshape(n, h, w, out_nc)


def custom_unet_generator(params, x_nchw, num_downs):
    ngf = params["outer_down_w"].shape[0]
    x = jnp.transpose(x_nchw, (0, 2, 3, 1)).astype(jnp.float32)
    y = unet_forward_nhwc(params, x, num_downs, ngf)
    return jnp.transpose(y, (0, 3, 1, 2))


# ------------------------- pure-JAX reference (check) --------------------------

def _ref_conv(x, w, b, stride, pad):
    wj = jnp.transpose(w, (2, 3, 1, 0))
    y = lax.conv_general_dilated(x, wj, (stride, stride), [(pad, pad), (pad, pad)],
                                 dimension_numbers=("NHWC", "HWIO", "NHWC"),
                                 precision=lax.Precision.HIGHEST)
    return y if b is None else y + b


def _ref_convT(x, w, b, stride, pad):
    kh = w.shape[2]
    wj = jnp.transpose(w[:, :, ::-1, ::-1], (2, 3, 0, 1))
    p = kh - 1 - pad
    y = lax.conv_general_dilated(x, wj, (1, 1), [(p, p), (p, p)],
                                 lhs_dilation=(stride, stride),
                                 dimension_numbers=("NHWC", "HWIO", "NHWC"),
                                 precision=lax.Precision.HIGHEST)
    return y if b is None else y + b


def ref_forward_nchw(params, x_nchw, num_downs):
    lrelu = lambda t: jnp.where(t > 0, t, 0.2 * t)
    relu = lambda t: jnp.maximum(t, 0.0)

    def bn(t, g, b):
        m = jnp.mean(t, axis=(0, 1, 2))
        v = jnp.mean((t - m) ** 2, axis=(0, 1, 2))
        return g * (t - m) / jnp.sqrt(v + 1e-5) + b

    x = jnp.transpose(x_nchw, (0, 2, 3, 1)).astype(jnp.float32)
    p = params
    y = _ref_conv(x, p["outer_down_w"], None, 1, 0)
    skips = [y]
    for k in range(1, num_downs + 1):
        blk = p["mid"][k - 1]
        y = bn(_ref_conv(lrelu(y), blk["down_w"], None, 2, 1),
               blk["down_gamma"], blk["down_beta"])
        skips.append(y)
    z = _ref_conv(lrelu(y), p["inner_down_w"], None, 1, 0)
    z = _ref_convT(relu(z), p["inner_up_w"], p["inner_up_b"], 1, 0)
    z = bn(z, p["inner_up_gamma"], p["inner_up_beta"])
    y = jnp.concatenate([y, z], axis=-1)
    for k in range(num_downs, 0, -1):
        blk = p["mid"][k - 1]
        z = bn(_ref_convT(relu(y), blk["up_w"], None, 2, 1),
               blk["up_gamma"], blk["up_beta"])
        y = jnp.concatenate([skips[k - 1], z], axis=-1)
    z = _ref_convT(relu(y), p["outer_up_w"], p["outer_up_b"], 1, 0)
    return jnp.transpose(jax.nn.sigmoid(z), (0, 3, 1, 2))


# ------------------------------------ main -------------------------------------

if __name__ == "__main__":
    input_nc, output_nc, num_downs, ngf = 4, 3, 2, 8
    N, H, W = 2, 16, 16          # H, W divisible by 2**num_downs

    key = jax.random.PRNGKey(0)
    kp, kx = jax.random.split(key)
    params = init_params(kp, input_nc, output_nc, num_downs, ngf)
    x = jax.random.normal(kx, (N, input_nc, H, W), jnp.float32)

    fwd = jax.jit(functools.partial(custom_unet_generator, num_downs=num_downs))
    out = jax.block_until_ready(fwd(params, x))

    ref = ref_forward_nchw(params, x, num_downs)
    assert out.shape == (N, output_nc, H, W)
    assert bool(jnp.all(jnp.isfinite(out)))
    max_err = float(jnp.max(jnp.abs(out - ref)))
    # bf16 matmuls / bf16 activations vs the f32 reference
    assert max_err < 1e-1, f"max abs error vs reference: {max_err}"

    # TODO(synk): use_dropout=True and last_act='tanh' variants are not part of
    # the default constructor and are omitted.
    print("KERNEL_OK")
</pallas_src>

<mosaic_0001>
module attributes {stable_mosaic.version = 11 : i64} {
  func.func @_mm_res_kernel(%arg0: i32, %arg1: memref<1x4xf32, #tpu.memory_space<vmem>>, %arg2: memref<1x4xf32, #tpu.memory_space<vmem>>, %arg3: memref<512x4xbf16, #tpu.memory_space<vmem>>, %arg4: memref<4x8xbf16, #tpu.memory_space<vmem>>, %arg5: memref<1x8xf32, #tpu.memory_space<vmem>>, %arg6: memref<512x8xbf16, #tpu.memory_space<vmem>>) attributes {dimension_semantics = [#tpu.dimension_semantics<parallel>], iteration_bounds = array<i64: 1>, scalar_prefetch = 0 : i64, scratch_operands = 0 : i64, tpu.core_type = #tpu.core_type<tc>, window_params = [{pipeline_mode = #tpu.pipeline_mode<synchronous>, transform_indices = @transform_0, window_bounds = array<i64: 1, 4>}, {pipeline_mode = #tpu.pipeline_mode<synchronous>, transform_indices = @transform_1, window_bounds = array<i64: 1, 4>}, {transform_indices = @transform_2, window_bounds = array<i64: 512, 4>}, {pipeline_mode = #tpu.pipeline_mode<synchronous>, transform_indices = @transform_3, window_bounds = array<i64: 4, 8>}, {pipeline_mode = #tpu.pipeline_mode<synchronous>, transform_indices = @transform_4, window_bounds = array<i64: 1, 8>}, {transform_indices = @transform_5, window_bounds = array<i64: 512, 8>}]} {
    %c0 = arith.constant 0 : index
    %c0_0 = arith.constant 0 : index
    %0 = vector.load %arg3[%c0, %c0_0] : memref<512x4xbf16, #tpu.memory_space<vmem>>, vector<512x4xbf16>
    %c0_1 = arith.constant 0 : index
    %c0_2 = arith.constant 0 : index
    %1 = vector.load %arg4[%c0_1, %c0_2] : memref<4x8xbf16, #tpu.memory_space<vmem>>, vector<4x8xbf16>
    %cst = arith.constant dense<0.000000e+00> : vector<512x8xf32>
    %2 = tpu.matmul %0, %1, %cst {dimension_numbers = #tpu.dot_dimension_numbers<[1], [0], [0], [1], [0, 0, 1, 1], [], []>} : vector<512x4xbf16>, vector<4x8xbf16>, vector<512x8xf32> -> vector<512x8xf32>
    %c0_3 = arith.constant 0 : index
    %c0_4 = arith.constant 0 : index
    %3 = vector.load %arg5[%c0_3, %c0_4] : memref<1x8xf32, #tpu.memory_space<vmem>>, vector<1x8xf32>
    %4 = vector.broadcast %3 : vector<1x8xf32> to vector<512x8xf32>
    %5 = arith.addf %2, %4 : vector<512x8xf32>
    %6 = arith.truncf %5 : vector<512x8xf32> to vector<512x8xbf16>
    %c0_5 = arith.constant 0 : index
    %c0_6 = arith.constant 0 : index
    %7 = vector.load %arg6[%c0_5, %c0_6] : memref<512x8xbf16, #tpu.memory_space<vmem>>, vector<512x8xbf16>
    tpu.vector_store %arg6[%c0_5, %c0_6], %6 {strides = array<i32>} : memref<512x8xbf16, #tpu.memory_space<vmem>>, vector<512x8xbf16>,
    return
  }
  func.func @transform_0(%arg0: i32) -> (i32, i32) {
    %c0_i32 = arith.constant 0 : i32
    %c0_i32_0 = arith.constant 0 : i32
    %c0_i32_1 = arith.constant 0 : i32
    return %c0_i32, %c0_i32_0 : i32, i32
  }
  func.func @transform_1(%arg0: i32) -> (i32, i32) {
    %c0_i32 = arith.constant 0 : i32
    %c0_i32_0 = arith.constant 0 : i32
    %c0_i32_1 = arith.constant 0 : i32
    return %c0_i32, %c0_i32_0 : i32, i32
  }
  func.func @transform_2(%arg0: i32) -> (i32, i32) {
    %c0_i32 = arith.constant 0 : i32
    %c0_i32_0 = arith.constant 0 : i32
    return %arg0, %c0_i32 : i32, i32
  }
  func.func @transform_3(%arg0: i32) -> (i32, i32) {
    %c0_i32 = arith.constant 0 : i32
    %c0_i32_0 = arith.constant 0 : i32
    %c0_i32_1 = arith.constant 0 : i32
    return %c0_i32, %c0_i32_0 : i32, i32
  }
  func.func @transform_4(%arg0: i32) -> (i32, i32) {
    %c0_i32 = arith.constant 0 : i32
    %c0_i32_0 = arith.constant 0 : i32
    %c0_i32_1 = arith.constant 0 : i32
    return %c0_i32, %c0_i32_0 : i32, i32
  }
  func.func @transform_5(%arg0: i32) -> (i32, i32) {
    %c0_i32 = arith.constant 0 : i32
    %c0_i32_0 = arith.constant 0 : i32
    return %arg0, %c0_i32 : i32, i32
  }
}

module attributes {stable_mosaic.version = 11 : i64} {
  func.func @_enc_conv_kernel(%arg0: i32, %arg1: i32, %arg2: memref<1x1x9x9x32xbf16, #tpu.memory_space<vmem>>, %arg3: memref<128x16xbf16, #tpu.memory_space<vmem>>, %arg4: memref<1x8x8x16xbf16, #tpu.memory_space<vmem>>, %arg5: memref<1x1x2x16xf32, #tpu.memory_space<vmem>>) attributes {dimension_semantics = [#tpu.dimension_semantics<parallel>, #tpu.dimension_semantics<parallel>], iteration_bounds = array<i64: 2, 1>, scalar_prefetch = 0 : i64, scratch_operands = 0 : i64, tpu.core_type = #tpu.core_type<tc>, window_params = [{transform_indices = @transform_0, window_bounds = array<i64: 1, 1, 9, 9, 32>}, {pipeline_mode = #tpu.pipeline_mode<synchronous>, transform_indices = @transform_1, window_bounds = array<i64: 128, 16>}, {transform_indices = @transform_2, window_bounds = array<i64: 1, 8, 8, 16>}, {transform_indices = @transform_3, window_bounds = array<i64: 1, 1, 2, 16>}]} {
    %c0 = arith.constant 0 : index
    %c0_0 = arith.constant 0 : index
    %0 = vector.load %arg3[%c0, %c0_0] : memref<128x16xbf16, #tpu.memory_space<vmem>>, vector<128x16xbf16>
    %cst = arith.constant 0.000000e+00 : f32
    %1 = vector.broadcast %cst : f32 to vector<1x16xf32>
    %cst_1 = arith.constant 0.000000e+00 : f32
    %2 = vector.broadcast %cst_1 : f32 to vector<1x16xf32>
    %c0_i32 = arith.constant 0 : i32
    %c8_i32 = arith.constant 8 : i32
    %3 = arith.addi %c0_i32, %c8_i32 : i32
    %c1_i32 = arith.constant 1 : i32
    %4:2 = scf.for %arg6 = %c0_i32 to %3 step %c1_i32 iter_args(%arg7 = %1, %arg8 = %2) -> (vector<1x16xf32>, vector<1x16xf32>)  : i32 {
      %c0_i32_7 = arith.constant 0 : i32
      %9 = arith.addi %arg6, %c0_i32_7 : i32
      %c0_8 = arith.constant 0 : index
      %c0_9 = arith.constant 0 : index
      %10 = arith.index_cast %9 : i32 to index
      %c0_10 = arith.constant 0 : index
      %c0_11 = arith.constant 0 : index
      %11 = vector.load %arg2[%c0_8, %c0_9, %10, %c0_10, %c0_11] : memref<1x1x9x9x32xbf16, #tpu.memory_space<vmem>>, vector<1x1x1x8x32xbf16>
      %12 = vector.shape_cast %11 : vector<1x1x1x8x32xbf16> to vector<8x32xbf16>
      %c0_i32_12 = arith.constant 0 : i32
      %13 = arith.addi %arg6, %c0_i32_12 : i32
      %c0_13 = arith.constant 0 : index
      %c0_14 = arith.constant 0 : index
      %14 = arith.index_cast %13 : i32 to index
      %c1 = arith.constant 1 : index
      %c0_15 = arith.constant 0 : index
      %15 = vector.load %arg2[%c0_13, %c0_14, %14, %c1, %c0_15] : memref<1x1x9x9x32xbf16, #tpu.memory_space<vmem>>, vector<1x1x1x8x32xbf16>
      %16 = vector.shape_cast %15 : vector<1x1x1x8x32xbf16> to vector<8x32xbf16>
      %c1_i32_16 = arith.constant 1 : i32
      %17 = arith.addi %arg6, %c1_i32_16 : i32
      %c0_17 = arith.constant 0 : index
      %c0_18 = arith.constant 0 : index
      %18 = arith.index_cast %17 : i32 to index
      %c0_19 = arith.constant 0 : index
      %c0_20 = arith.constant 0 : index
      %19 = vector.load %arg2[%c0_17, %c0_18, %18, %c0_19, %c0_20] : memref<1x1x9x9x32xbf16, #tpu.memory_space<vmem>>, vector<1x1x1x8x32xbf16>
      %20 = vector.shape_cast %19 : vector<1x1x1x8x32xbf16> to vector<8x32xbf16>
      %c1_i32_21 = arith.constant 1 : i32
      %21 = arith.addi %arg6, %c1_i32_21 : i32
      %c0_22 = arith.constant 0 : index
      %c0_23 = arith.constant 0 : index
      %22 = arith.index_cast %21 : i32 to index
      %c1_24 = arith.constant 1 : index
      %c0_25 = arith.constant 0 : index
      %23 = vector.load %arg2[%c0_22, %c0_23, %22, %c1_24, %c0_25] : memref<1x1x9x9x32xbf16, #tpu.memory_space<vmem>>, vector<1x1x1x8x32xbf16>
      %24 = vector.shape_cast %23 : vector<1x1x1x8x32xbf16> to vector<8x32xbf16>
      %25 = tpu.concatenate %12, %16, %20, %24 in 1 : vector<8x32xbf16>, vector<8x32xbf16>, vector<8x32xbf16>, vector<8x32xbf16> -> vector<8x128xbf16>
      %cst_26 = arith.constant dense<0.000000e+00> : vector<8x16xf32>
      %26 = tpu.matmul %25, %0, %cst_26 {dimension_numbers = #tpu.dot_dimension_numbers<[1], [0], [0], [1], [0, 0, 1, 1], [], []>} : vector<8x128xbf16>, vector<128x16xbf16>, vector<8x16xf32> -> vector<8x16xf32>
      %27 = arith.truncf %26 : vector<8x16xf32> to vector<8x16xbf16>
      %c0_27 = arith.constant 0 : index
      %28 = arith.index_cast %arg6 : i32 to index
      %c0_28 = arith.constant 0 : index
      %c0_29 = arith.constant 0 : index
      %29 = vector.load %arg4[%c0_27, %28, %c0_28, %c0_29] : memref<1x8x8x16xbf16, #tpu.memory_space<vmem>>, vector<1x1x8x16xbf16>
      %30 = vector.shape_cast %29 : vector<1x1x8x16xbf16> to vector<8x16xbf16>
      %31 = vector.shape_cast %27 : vector<8x16xbf16> to vector<1x1x8x16xbf16>
      tpu.vector_store %arg4[%c0_27, %28, %c0_28, %c0_29], %31 {strides = array<i32>} : memref<1x8x8x16xbf16, #tpu.memory_space<vmem>>, vector<1x1x8x16xbf16>,
      %cst_30 = arith.constant dense<0.000000e+00> : vector<16xf32>
      %32 = vector.multi_reduction <add>, %26, %cst_30 [0] : vector<8x16xf32> to vector<16xf32>
      %33 = vector.shape_cast %32 : vector<16xf32> to vector<1x16xf32>
      %34 = arith.addf %arg7, %33 : vector<1x16xf32>
      %35 = arith.mulf %26, %26 : vector<8x16xf32>
      %cst_31 = arith.constant dense<0.000000e+00> : vector<16xf32>
      %36 = vector.multi_reduction <add>, %35, %cst_31 [0] : vector<8x16xf32> to vector<16xf32>
      %37 = vector.shape_cast %36 : vector<16xf32> to vector<1x16xf32>
      %38 = arith.addf %arg8, %37 : vector<1x16xf32>
      scf.yield %34, %38 : vector<1x16xf32>, vector<1x16xf32>
    }
    %c8_i32_2 = arith.constant 8 : i32
    %5 = tpu.concatenate %4#0, %4#1 in 0 : vector<1x16xf32>, vector<1x16xf32> -> vector<2x16xf32>
    %c0_3 = arith.constant 0 : index
    %c0_4 = arith.constant 0 : index
    %c0_5 = arith.constant 0 : index
    %c0_6 = arith.constant 0 : index
    %6 = vector.load %arg5[%c0_3, %c0_4, %c0_5, %c0_6] : memref<1x1x2x16xf32, #tpu.memory_space<vmem>>, vector<1x1x2x16xf32>
    %7 = vector.shape_cast %6 : vector<1x1x2x16xf32> to vector<2x16xf32>
    %8 = vector.shape_cast %5 : vector<2x16xf32> to vector<1x1x2x16xf32>
    tpu.vector_store %arg5[%c0_3, %c0_4, %c0_5, %c0_6], %8 {strides = array<i32>} : memref<1x1x2x16xf32, #tpu.memory_space<vmem>>, vector<1x1x2x16xf32>,
    return
  }
  func.func @transform_0(%arg0: i32, %arg1: i32) -> (i32, i32, i32, i32, i32) {
    %c0_i32 = arith.constant 0 : i32
    %c0_i32_0 = arith.constant 0 : i32
    %c0_i32_1 = arith.constant 0 : i32
    %c0_i32_2 = arith.constant 0 : i32
    return %arg0, %arg1, %c0_i32, %c0_i32_0, %c0_i32_1 : i32, i32, i32, i32, i32
  }
  func.func @transform_1(%arg0: i32, %arg1: i32) -> (i32, i32) {
    %c0_i32 = arith.constant 0 : i32
    %c0_i32_0 = arith.constant 0 : i32
    %c0_i32_1 = arith.constant 0 : i32
    return %c0_i32, %c0_i32_0 : i32, i32
  }
  func.func @transform_2(%arg0: i32, %arg1: i32) -> (i32, i32, i32, i32) {
    %c0_i32 = arith.constant 0 : i32
    %c0_i32_0 = arith.constant 0 : i32
    %c0_i32_1 = arith.constant 0 : i32
    return %arg0, %arg1, %c0_i32, %c0_i32_0 : i32, i32, i32, i32
  }
  func.func @transform_3(%arg0: i32, %arg1: i32) -> (i32, i32, i32, i32) {
    %c0_i32 = arith.constant 0 : i32
    %c0_i32_0 = arith.constant 0 : i32
    %c0_i32_1 = arith.constant 0 : i32
    return %arg0, %arg1, %c0_i32, %c0_i32_0 : i32, i32, i32, i32
  }
}

module attributes {stable_mosaic.version = 11 : i64} {
  func.func @_mm_res_kernel(%arg0: i32, %arg1: memref<1x32xf32, #tpu.memory_space<vmem>>, %arg2: memref<1x32xf32, #tpu.memory_space<vmem>>, %arg3: memref<32x32xbf16, #tpu.memory_space<vmem>>, %arg4: memref<32x32xbf16, #tpu.memory_space<vmem>>, %arg5: memref<1x32xf32, #tpu.memory_space<vmem>>, %arg6: memref<32x32xbf16, #tpu.memory_space<vmem>>) attributes {dimension_semantics = [#tpu.dimension_semantics<parallel>], iteration_bounds = array<i64: 1>, scalar_prefetch = 0 : i64, scratch_operands = 0 : i64, tpu.core_type = #tpu.core_type<tc>, window_params = [{pipeline_mode = #tpu.pipeline_mode<synchronous>, transform_indices = @transform_0, window_bounds = array<i64: 1, 32>}, {pipeline_mode = #tpu.pipeline_mode<synchronous>, transform_indices = @transform_1, window_bounds = array<i64: 1, 32>}, {transform_indices = @transform_2, window_bounds = array<i64: 32, 32>}, {pipeline_mode = #tpu.pipeline_mode<synchronous>, transform_indices = @transform_3, window_bounds = array<i64: 32, 32>}, {pipeline_mode = #tpu.pipeline_mode<synchronous>, transform_indices = @transform_4, window_bounds = array<i64: 1, 32>}, {transform_indices = @transform_5, window_bounds = array<i64: 32, 32>}]} {
    %c0 = arith.constant 0 : index
    %c0_0 = arith.constant 0 : index
    %0 = vector.load %arg3[%c0, %c0_0] : memref<32x32xbf16, #tpu.memory_space<vmem>>, vector<32x32xbf16>
    %1 = arith.extf %0 : vector<32x32xbf16> to vector<32x32xf32>
    %c0_1 = arith.constant 0 : index
    %c0_2 = arith.constant 0 : index
    %2 = vector.load %arg1[%c0_1, %c0_2] : memref<1x32xf32, #tpu.memory_space<vmem>>, vector<1x32xf32>
    %3 = vector.broadcast %2 : vector<1x32xf32> to vector<32x32xf32>
    %4 = arith.mulf %1, %3 : vector<32x32xf32>
    %c0_3 = arith.constant 0 : index
    %c0_4 = arith.constant 0 : index
    %5 = vector.load %arg2[%c0_3, %c0_4] : memref<1x32xf32, #tpu.memory_space<vmem>>, vector<1x32xf32>
    %6 = vector.broadcast %5 : vector<1x32xf32> to vector<32x32xf32>
    %7 = arith.addf %4, %6 : vector<32x32xf32>
    %cst = arith.constant 0.000000e+00 : f32
    %8 = vector.broadcast %cst : f32 to vector<32x32xf32>
    %9 = arith.cmpf ogt, %7, %8 : vector<32x32xf32>
    %cst_5 = arith.constant 2.000000e-01 : f32
    %10 = vector.broadcast %cst_5 : f32 to vector<32x32xf32>
    %11 = arith.mulf %10, %7 : vector<32x32xf32>
    %12 = arith.select %9, %7, %11 : vector<32x32xi1>, vector<32x32xf32>
    %13 = arith.truncf %12 : vector<32x32xf32> to vector<32x32xbf16>
    %c0_6 = arith.constant 0 : index
    %c0_7 = arith.constant 0 : index
    %14 = vector.load %arg4[%c0_6, %c0_7] : memref<32x32xbf16, #tpu.memory_space<vmem>>, vector<32x32xbf16>
    %cst_8 = arith.constant dense<0.000000e+00> : vector<32x32xf32>
    %15 = tpu.matmul %13, %14, %cst_8 {dimension_numbers = #tpu.dot_dimension_numbers<[1], [0], [0], [1], [0, 0, 1, 1], [], []>} : vector<32x32xbf16>, vector<32x32xbf16>, vector<32x32xf32> -> vector<32x32xf32>
    %c0_9 = arith.constant 0 : index
    %c0_10 = arith.constant 0 : index
    %16 = vector.load %arg5[%c0_9, %c0_10] : memref<1x32xf32, #tpu.memory_space<vmem>>, vector<1x32xf32>
    %17 = vector.broadcast %16 : vector<1x32xf32> to vector<32x32xf32>
    %18 = arith.addf %15, %17 : vector<32x32xf32>
    %19 = arith.truncf %18 : vector<32x32xf32> to vector<32x32xbf16>
    %c0_11 = arith.constant 0 : index
    %c0_12 = arith.constant 0 : index
    %20 = vector.load %arg6[%c0_11, %c0_12] : memref<32x32xbf16, #tpu.memory_space<vmem>>, vector<32x32xbf16>
    tpu.vector_store %arg6[%c0_11, %c0_12], %19 {strides = array<i32>} : memref<32x32xbf16, #tpu.memory_space<vmem>>, vector<32x32xbf16>,
    return
  }
  func.func @transform_0(%arg0: i32) -> (i32, i32) {
    %c0_i32 = arith.constant 0 : i32
    %c0_i32_0 = arith.constant 0 : i32
    %c0_i32_1 = arith.constant 0 : i32
    return %c0_i32, %c0_i32_0 : i32, i32
  }
  func.func @transform_1(%arg0: i32) -> (i32, i32) {
    %c0_i32 = arith.constant 0 : i32
    %c0_i32_0 = arith.constant 0 : i32
    %c0_i32_1 = arith.constant 0 : i32
    return %c0_i32, %c0_i32_0 : i32, i32
  }
  func.func @transform_2(%arg0: i32) -> (i32, i32) {
    %c0_i32 = arith.constant 0 : i32
    %c0_i32_0 = arith.constant 0 : i32
    return %arg0, %c0_i32 : i32, i32
  }
  func.func @transform_3(%arg0: i32) -> (i32, i32) {
    %c0_i32 = arith.constant 0 : i32
    %c0_i32_0 = arith.constant 0 : i32
    %c0_i32_1 = arith.constant 0 : i32
    return %c0_i32, %c0_i32_0 : i32, i32
  }
  func.func @transform_4(%arg0: i32) -> (i32, i32) {
    %c0_i32 = arith.constant 0 : i32
    %c0_i32_0 = arith.constant 0 : i32
    %c0_i32_1 = arith.constant 0 : i32
    return %c0_i32, %c0_i32_0 : i32, i32
  }
  func.func @transform_5(%arg0: i32) -> (i32, i32) {
    %c0_i32 = arith.constant 0 : i32
    %c0_i32_0 = arith.constant 0 : i32
    return %arg0, %c0_i32 : i32, i32
  }
}

module attributes {stable_mosaic.version = 11 : i64} {
  func.func @_enc_conv_kernel(%arg0: i32, %arg1: i32, %arg2: memref<1x1x5x5x64xbf16, #tpu.memory_space<vmem>>, %arg3: memref<256x32xbf16, #tpu.memory_space<vmem>>, %arg4: memref<1x4x4x32xbf16, #tpu.memory_space<vmem>>, %arg5: memref<1x1x2x32xf32, #tpu.memory_space<vmem>>) attributes {dimension_semantics = [#tpu.dimension_semantics<parallel>, #tpu.dimension_semantics<parallel>], iteration_bounds = array<i64: 2, 1>, scalar_prefetch = 0 : i64, scratch_operands = 0 : i64, tpu.core_type = #tpu.core_type<tc>, window_params = [{transform_indices = @transform_0, window_bounds = array<i64: 1, 1, 5, 5, 64>}, {pipeline_mode = #tpu.pipeline_mode<synchronous>, transform_indices = @transform_1, window_bounds = array<i64: 256, 32>}, {transform_indices = @transform_2, window_bounds = array<i64: 1, 4, 4, 32>}, {transform_indices = @transform_3, window_bounds = array<i64: 1, 1, 2, 32>}]} {
    %c0 = arith.constant 0 : index
    %c0_0 = arith.constant 0 : index
    %0 = vector.load %arg3[%c0, %c0_0] : memref<256x32xbf16, #tpu.memory_space<vmem>>, vector<256x32xbf16>
    %cst = arith.constant 0.000000e+00 : f32
    %1 = vector.broadcast %cst : f32 to vector<1x32xf32>
    %cst_1 = arith.constant 0.000000e+00 : f32
    %2 = vector.broadcast %cst_1 : f32 to vector<1x32xf32>
    %c0_i32 = arith.constant 0 : i32
    %c4_i32 = arith.constant 4 : i32
    %3 = arith.addi %c0_i32, %c4_i32 : i32
    %c1_i32 = arith.constant 1 : i32
    %4:2 = scf.for %arg6 = %c0_i32 to %3 step %c1_i32 iter_args(%arg7 = %1, %arg8 = %2) -> (vector<1x32xf32>, vector<1x32xf32>)  : i32 {
      %c0_i32_7 = arith.constant 0 : i32
      %9 = arith.addi %arg6, %c0_i32_7 : i32
      %c0_8 = arith.constant 0 : index
      %c0_9 = arith.constant 0 : index
      %10 = arith.index_cast %9 : i32 to index
      %c0_10 = arith.constant 0 : index
      %c0_11 = arith.constant 0 : index
      %11 = vector.load %arg2[%c0_8, %c0_9, %10, %c0_10, %c0_11] : memref<1x1x5x5x64xbf16, #tpu.memory_space<vmem>>, vector<1x1x1x4x64xbf16>
      %12 = vector.shape_cast %11 : vector<1x1x1x4x64xbf16> to vector<4x64xbf16>
      %c0_i32_12 = arith.constant 0 : i32
      %13 = arith.addi %arg6, %c0_i32_12 : i32
      %c0_13 = arith.constant 0 : index
      %c0_14 = arith.constant 0 : index
      %14 = arith.index_cast %13 : i32 to index
      %c1 = arith.constant 1 : index
      %c0_15 = arith.constant 0 : index
      %15 = vector.load %arg2[%c0_13, %c0_14, %14, %c1, %c0_15] : memref<1x1x5x5x64xbf16, #tpu.memory_space<vmem>>, vector<1x1x1x4x64xbf16>
      %16 = vector.shape_cast %15 : vector<1x1x1x4x64xbf16> to vector<4x64xbf16>
      %c1_i32_16 = arith.constant 1 : i32
      %17 = arith.addi %arg6, %c1_i32_16 : i32
      %c0_17 = arith.constant 0 : index
      %c0_18 = arith.constant 0 : index
      %18 = arith.index_cast %17 : i32 to index
      %c0_19 = arith.constant 0 : index
      %c0_20 = arith.constant 0 : index
      %19 = vector.load %arg2[%c0_17, %c0_18, %18, %c0_19, %c0_20] : memref<1x1x5x5x64xbf16, #tpu.memory_space<vmem>>, vector<1x1x1x4x64xbf16>
      %20 = vector.shape_cast %19 : vector<1x1x1x4x64xbf16> to vector<4x64xbf16>
      %c1_i32_21 = arith.constant 1 : i32
      %21 = arith.addi %arg6, %c1_i32_21 : i32
      %c0_22 = arith.constant 0 : index
      %c0_23 = arith.constant 0 : index
      %22 = arith.index_cast %21 : i32 to index
      %c1_24 = arith.constant 1 : index
      %c0_25 = arith.constant 0 : index
      %23 = vector.load %arg2[%c0_22, %c0_23, %22, %c1_24, %c0_25] : memref<1x1x5x5x64xbf16, #tpu.memory_space<vmem>>, vector<1x1x1x4x64xbf16>
      %24 = vector.shape_cast %23 : vector<1x1x1x4x64xbf16> to vector<4x64xbf16>
      %25 = tpu.concatenate %12, %16, %20, %24 in 1 : vector<4x64xbf16>, vector<4x64xbf16>, vector<4x64xbf16>, vector<4x64xbf16> -> vector<4x256xbf16>
      %cst_26 = arith.constant dense<0.000000e+00> : vector<4x32xf32>
      %26 = tpu.matmul %25, %0, %cst_26 {dimension_numbers = #tpu.dot_dimension_numbers<[1], [0], [0], [1], [0, 0, 1, 1], [], []>} : vector<4x256xbf16>, vector<256x32xbf16>, vector<4x32xf32> -> vector<4x32xf32>
      %27 = arith.truncf %26 : vector<4x32xf32> to vector<4x32xbf16>
      %c0_27 = arith.constant 0 : index
      %28 = arith.index_cast %arg6 : i32 to index
      %c0_28 = arith.constant 0 : index
      %c0_29 = arith.constant 0 : index
      %29 = vector.load %arg4[%c0_27, %28, %c0_28, %c0_29] : memref<1x4x4x32xbf16, #tpu.memory_space<vmem>>, vector<1x1x4x32xbf16>
      %30 = vector.shape_cast %29 : vector<1x1x4x32xbf16> to vector<4x32xbf16>
      %31 = vector.shape_cast %27 : vector<4x32xbf16> to vector<1x1x4x32xbf16>
      tpu.vector_store %arg4[%c0_27, %28, %c0_28, %c0_29], %31 {strides = array<i32>} : memref<1x4x4x32xbf16, #tpu.memory_space<vmem>>, vector<1x1x4x32xbf16>,
      %cst_30 = arith.constant dense<0.000000e+00> : vector<32xf32>
      %32 = vector.multi_reduction <add>, %26, %cst_30 [0] : vector<4x32xf32> to vector<32xf32>
      %33 = vector.shape_cast %32 : vector<32xf32> to vector<1x32xf32>
      %34 = arith.addf %arg7, %33 : vector<1x32xf32>
      %35 = arith.mulf %26, %26 : vector<4x32xf32>
      %cst_31 = arith.constant dense<0.000000e+00> : vector<32xf32>
      %36 = vector.multi_reduction <add>, %35, %cst_31 [0] : vector<4x32xf32> to vector<32xf32>
      %37 = vector.shape_cast %36 : vector<32xf32> to vector<1x32xf32>
      %38 = arith.addf %arg8, %37 : vector<1x32xf32>
      scf.yield %34, %38 : vector<1x32xf32>, vector<1x32xf32>
    }
    %c4_i32_2 = arith.constant 4 : i32
    %5 = tpu.concatenate %4#0, %4#1 in 0 : vector<1x32xf32>, vector<1x32xf32> -> vector<2x32xf32>
    %c0_3 = arith.constant 0 : index
    %c0_4 = arith.constant 0 : index
    %c0_5 = arith.constant 0 : index
    %c0_6 = arith.constant 0 : index
    %6 = vector.load %arg5[%c0_3, %c0_4, %c0_5, %c0_6] : memref<1x1x2x32xf32, #tpu.memory_space<vmem>>, vector<1x1x2x32xf32>
    %7 = vector.shape_cast %6 : vector<1x1x2x32xf32> to vector<2x32xf32>
    %8 = vector.shape_cast %5 : vector<2x32xf32> to vector<1x1x2x32xf32>
    tpu.vector_store %arg5[%c0_3, %c0_4, %c0_5, %c0_6], %8 {strides = array<i32>} : memref<1x1x2x32xf32, #tpu.memory_space<vmem>>, vector<1x1x2x32xf32>,
    return
  }
  func.func @transform_0(%arg0: i32, %arg1: i32) -> (i32, i32, i32, i32, i32) {
    %c0_i32 = arith.constant 0 : i32
    %c0_i32_0 = arith.constant 0 : i32
    %c0_i32_1 = arith.constant 0 : i32
    %c0_i32_2 = arith.constant 0 : i32
    return %arg0, %arg1, %c0_i32, %c0_i32_0, %c0_i32_1 : i32, i32, i32, i32, i32
  }
  func.func @transform_1(%arg0: i32, %arg1: i32) -> (i32, i32) {
    %c0_i32 = arith.constant 0 : i32
    %c0_i32_0 = arith.constant 0 : i32
    %c0_i32_1 = arith.constant 0 : i32
    return %c0_i32, %c0_i32_0 : i32, i32
  }
  func.func @transform_2(%arg0: i32, %arg1: i32) -> (i32, i32, i32, i32) {
    %c0_i32 = arith.constant 0 : i32
    %c0_i32_0 = arith.constant 0 : i32
    %c0_i32_1 = arith.constant 0 : i32
    return %arg0, %arg1, %c0_i32, %c0_i32_0 : i32, i32, i32, i32
  }
  func.func @transform_3(%arg0: i32, %arg1: i32) -> (i32, i32, i32, i32) {
    %c0_i32 = arith.constant 0 : i32
    %c0_i32_0 = arith.constant 0 : i32
    %c0_i32_1 = arith.constant 0 : i32
    return %arg0, %arg1, %c0_i32, %c0_i32_0 : i32, i32, i32, i32
  }
}

module attributes {stable_mosaic.version = 11 : i64} {
  func.func @_mm_res_kernel(%arg0: i32, %arg1: memref<1x32xf32, #tpu.memory_space<vmem>>, %arg2: memref<1x32xf32, #tpu.memory_space<vmem>>, %arg3: memref<32x32xbf16, #tpu.memory_space<vmem>>, %arg4: memref<32x32xbf16, #tpu.memory_space<vmem>>, %arg5: memref<1x32xf32, #tpu.memory_space<vmem>>, %arg6: memref<32x32xbf16, #tpu.memory_space<vmem>>, %arg7: memref<1x2x32xf32, #tpu.memory_space<vmem>>) attributes {dimension_semantics = [#tpu.dimension_semantics<parallel>], iteration_bounds = array<i64: 1>, scalar_prefetch = 0 : i64, scratch_operands = 0 : i64, tpu.core_type = #tpu.core_type<tc>, window_params = [{pipeline_mode = #tpu.pipeline_mode<synchronous>, transform_indices = @transform_0, window_bounds = array<i64: 1, 32>}, {pipeline_mode = #tpu.pipeline_mode<synchronous>, transform_indices = @transform_1, window_bounds = array<i64: 1, 32>}, {transform_indices = @transform_2, window_bounds = array<i64: 32, 32>}, {pipeline_mode = #tpu.pipeline_mode<synchronous>, transform_indices = @transform_3, window_bounds = array<i64: 32, 32>}, {pipeline_mode = #tpu.pipeline_mode<synchronous>, transform_indices = @transform_4, window_bounds = array<i64: 1, 32>}, {transform_indices = @transform_5, window_bounds = array<i64: 32, 32>}, {transform_indices = @transform_6, window_bounds = array<i64: 1, 2, 32>}]} {
    %c0 = arith.constant 0 : index
    %c0_0 = arith.constant 0 : index
    %0 = vector.load %arg3[%c0, %c0_0] : memref<32x32xbf16, #tpu.memory_space<vmem>>, vector<32x32xbf16>
    %cst = arith.constant 0.000000e+00 : bf16
    %1 = vector.broadcast %cst : bf16 to vector<32x32xbf16>
    %2 = arith.maximumf %0, %1 : vector<32x32xbf16>
    %c0_1 = arith.constant 0 : index
    %c0_2 = arith.constant 0 : index
    %3 = vector.load %arg4[%c0_1, %c0_2] : memref<32x32xbf16, #tpu.memory_space<vmem>>, vector<32x32xbf16>
    %cst_3 = arith.constant dense<0.000000e+00> : vector<32x32xf32>
    %4 = tpu.matmul %2, %3, %cst_3 {dimension_numbers = #tpu.dot_dimension_numbers<[1], [0], [0], [1], [0, 0, 1, 1], [], []>} : vector<32x32xbf16>, vector<32x32xbf16>, vector<32x32xf32> -> vector<32x32xf32>
    %c0_4 = arith.constant 0 : index
    %c0_5 = arith.constant 0 : index
    %5 = vector.load %arg5[%c0_4, %c0_5] : memref<1x32xf32, #tpu.memory_space<vmem>>, vector<1x32xf32>
    %6 = vector.broadcast %5 : vector<1x32xf32> to vector<32x32xf32>
    %7 = arith.addf %4, %6 : vector<32x32xf32>
    %8 = arith.truncf %7 : vector<32x32xf32> to vector<32x32xbf16>
    %c0_6 = arith.constant 0 : index
    %c0_7 = arith.constant 0 : index
    %9 = vector.load %arg6[%c0_6, %c0_7] : memref<32x32xbf16, #tpu.memory_space<vmem>>, vector<32x32xbf16>
    tpu.vector_store %arg6[%c0_6, %c0_7], %8 {strides = array<i32>} : memref<32x32xbf16, #tpu.memory_space<vmem>>, vector<32x32xbf16>,
    %cst_8 = arith.constant dense<0.000000e+00> : vector<32xf32>
    %10 = vector.multi_reduction <add>, %7, %cst_8 [0] : vector<32x32xf32> to vector<32xf32>
    %11 = vector.shape_cast %10 : vector<32xf32> to vector<1x32xf32>
    %12 = arith.mulf %7, %7 : vector<32x32xf32>
    %cst_9 = arith.constant dense<0.000000e+00> : vector<32xf32>
    %13 = vector.multi_reduction <add>, %12, %cst_9 [0] : vector<32x32xf32> to vector<32xf32>
    %14 = vector.shape_cast %13 : vector<32xf32> to vector<1x32xf32>
    %15 = tpu.concatenate %11, %14 in 0 : vector<1x32xf32>, vector<1x32xf32> -> vector<2x32xf32>
    %c0_10 = arith.constant 0 : index
    %c0_11 = arith.constant 0 : index
    %c0_12 = arith.constant 0 : index
    %16 = vector.load %arg7[%c0_10, %c0_11, %c0_12] : memref<1x2x32xf32, #tpu.memory_space<vmem>>, vector<1x2x32xf32>
    %17 = vector.shape_cast %16 : vector<1x2x32xf32> to vector<2x32xf32>
    %18 = vector.shape_cast %15 : vector<2x32xf32> to vector<1x2x32xf32>
    tpu.vector_store %arg7[%c0_10, %c0_11, %c0_12], %18 {strides = array<i32>} : memref<1x2x32xf32, #tpu.memory_space<vmem>>, vector<1x2x32xf32>,
    return
  }
  func.func @transform_0(%arg0: i32) -> (i32, i32) {
    %c0_i32 = arith.constant 0 : i32
    %c0_i32_0 = arith.constant 0 : i32
    %c0_i32_1 = arith.constant 0 : i32
    return %c0_i32, %c0_i32_0 : i32, i32
  }
  func.func @transform_1(%arg0: i32) -> (i32, i32) {
    %c0_i32 = arith.constant 0 : i32
    %c0_i32_0 = arith.constant 0 : i32
    %c0_i32_1 = arith.constant 0 : i32
    return %c0_i32, %c0_i32_0 : i32, i32
  }
  func.func @transform_2(%arg0: i32) -> (i32, i32) {
    %c0_i32 = arith.constant 0 : i32
    %c0_i32_0 = arith.constant 0 : i32
    return %arg0, %c0_i32 : i32, i32
  }
  func.func @transform_3(%arg0: i32) -> (i32, i32) {
    %c0_i32 = arith.constant 0 : i32
    %c0_i32_0 = arith.constant 0 : i32
    %c0_i32_1 = arith.constant 0 : i32
    return %c0_i32, %c0_i32_0 : i32, i32
  }
  func.func @transform_4(%arg0: i32) -> (i32, i32) {
    %c0_i32 = arith.constant 0 : i32
    %c0_i32_0 = arith.constant 0 : i32
    %c0_i32_1 = arith.constant 0 : i32
    return %c0_i32, %c0_i32_0 : i32, i32
  }
  func.func @transform_5(%arg0: i32) -> (i32, i32) {
    %c0_i32 = arith.constant 0 : i32
    %c0_i32_0 = arith.constant 0 : i32
    return %arg0, %c0_i32 : i32, i32
  }
  func.func @transform_6(%arg0: i32) -> (i32, i32, i32) {
    %c0_i32 = arith.constant 0 : i32
    %c0_i32_0 = arith.constant 0 : i32
    %c0_i32_1 = arith.constant 0 : i32
    return %arg0, %c0_i32, %c0_i32_0 : i32, i32, i32
  }
}

module attributes {stable_mosaic.version = 11 : i64} {
  func.func @_dec_convT_kernel(%arg0: i32, %arg1: i32, %arg2: memref<1x1x6x6x64xbf16, #tpu.memory_space<vmem>>, %arg3: memref<4x256x16xbf16, #tpu.memory_space<vmem>>, %arg4: memref<1x4x2x4x32xbf16, #tpu.memory_space<vmem>>, %arg5: memref<1x1x2x16xf32, #tpu.memory_space<vmem>>) attributes {dimension_semantics = [#tpu.dimension_semantics<parallel>, #tpu.dimension_semantics<parallel>], iteration_bounds = array<i64: 2, 1>, scalar_prefetch = 0 : i64, scratch_operands = 0 : i64, tpu.core_type = #tpu.core_type<tc>, window_params = [{transform_indices = @transform_0, window_bounds = array<i64: 1, 1, 6, 6, 64>}, {pipeline_mode = #tpu.pipeline_mode<synchronous>, transform_indices = @transform_1, window_bounds = array<i64: 4, 256, 16>}, {transform_indices = @transform_2, window_bounds = array<i64: 1, 4, 2, 4, 32>}, {transform_indices = @transform_3, window_bounds = array<i64: 1, 1, 2, 16>}]} {
    %c0 = arith.constant 0 : index
    %c0_0 = arith.constant 0 : index
    %c0_1 = arith.constant 0 : index
    %0 = vector.load %arg3[%c0, %c0_0, %c0_1] : memref<4x256x16xbf16, #tpu.memory_space<vmem>>, vector<1x256x16xbf16>
    %1 = vector.shape_cast %0 : vector<1x256x16xbf16> to vector<256x16xbf16>
    %c1 = arith.constant 1 : index
    %c0_2 = arith.constant 0 : index
    %c0_3 = arith.constant 0 : index
    %2 = vector.load %arg3[%c1, %c0_2, %c0_3] : memref<4x256x16xbf16, #tpu.memory_space<vmem>>, vector<1x256x16xbf16>
    %3 = vector.shape_cast %2 : vector<1x256x16xbf16> to vector<256x16xbf16>
    %c2 = arith.constant 2 : index
    %c0_4 = arith.constant 0 : index
    %c0_5 = arith.constant 0 : index
    %4 = vector.load %arg3[%c2, %c0_4, %c0_5] : memref<4x256x16xbf16, #tpu.memory_space<vmem>>, vector<1x256x16xbf16>
    %5 = vector.shape_cast %4 : vector<1x256x16xbf16> to vector<256x16xbf16>
    %c3 = arith.constant 3 : index
    %c0_6 = arith.constant 0 : index
    %c0_7 = arith.constant 0 : index
    %6 = vector.load %arg3[%c3, %c0_6, %c0_7] : memref<4x256x16xbf16, #tpu.memory_space<vmem>>, vector<1x256x16xbf16>
    %7 = vector.shape_cast %6 : vector<1x256x16xbf16> to vector<256x16xbf16>
    %cst = arith.constant 0.000000e+00 : f32
    %8 = vector.broadcast %cst : f32 to vector<1x16xf32>
    %cst_8 = arith.constant 0.000000e+00 : f32
    %9 = vector.broadcast %cst_8 : f32 to vector<1x16xf32>
    %c0_i32 = arith.constant 0 : i32
    %c4_i32 = arith.constant 4 : i32
    %10 = arith.addi %c0_i32, %c4_i32 : i32
    %c1_i32 = arith.constant 1 : i32
    %11:2 = scf.for %arg6 = %c0_i32 to %10 step %c1_i32 iter_args(%arg7 = %8, %arg8 = %9) -> (vector<1x16xf32>, vector<1x16xf32>)  : i32 {
      %c0_i32_14 = arith.constant 0 : i32
      %16 = arith.addi %arg6, %c0_i32_14 : i32
      %c0_i32_15 = arith.constant 0 : i32
      %17 = arith.addi %16, %c0_i32_15 : i32
      %c0_16 = arith.constant 0 : index
      %c0_17 = arith.constant 0 : index
      %18 = arith.index_cast %17 : i32 to index
      %c0_18 = arith.constant 0 : index
      %c0_19 = arith.constant 0 : index
      %19 = vector.load %arg2[%c0_16, %c0_17, %18, %c0_18, %c0_19] : memref<1x1x6x6x64xbf16, #tpu.memory_space<vmem>>, vector<1x1x1x4x64xbf16>
      %20 = vector.shape_cast %19 : vector<1x1x1x4x64xbf16> to vector<4x64xbf16>
      %c0_i32_20 = arith.constant 0 : i32
      %21 = arith.addi %arg6, %c0_i32_20 : i32
      %c0_i32_21 = arith.constant 0 : i32
      %22 = arith.addi %21, %c0_i32_21 : i32
      %c0_22 = arith.constant 0 : index
      %c0_23 = arith.constant 0 : index
      %23 = arith.index_cast %22 : i32 to index
      %c1_24 = arith.constant 1 : index
      %c0_25 = arith.constant 0 : index
      %24 = vector.load %arg2[%c0_22, %c0_23, %23, %c1_24, %c0_25] : memref<1x1x6x6x64xbf16, #tpu.memory_space<vmem>>, vector<1x1x1x4x64xbf16>
      %25 = vector.shape_cast %24 : vector<1x1x1x4x64xbf16> to vector<4x64xbf16>
      %c0_i32_26 = arith.constant 0 : i32
      %26 = arith.addi %arg6, %c0_i32_26 : i32
      %c1_i32_27 = arith.constant 1 : i32
      %27 = arith.addi %26, %c1_i32_27 : i32
      %c0_28 = arith.constant 0 : index
      %c0_29 = arith.constant 0 : index
      %28 = arith.index_cast %27 : i32 to index
      %c0_30 = arith.constant 0 : index
      %c0_31 = arith.constant 0 : index
      %29 = vector.load %arg2[%c0_28, %c0_29, %28, %c0_30, %c0_31] : memref<1x1x6x6x64xbf16, #tpu.memory_space<vmem>>, vector<1x1x1x4x64xbf16>
      %30 = vector.shape_cast %29 : vector<1x1x1x4x64xbf16> to vector<4x64xbf16>
      %c0_i32_32 = arith.constant 0 : i32
      %31 = arith.addi %arg6, %c0_i32_32 : i32
      %c1_i32_33 = arith.constant 1 : i32
      %32 = arith.addi %31, %c1_i32_33 : i32
      %c0_34 = arith.constant 0 : index
      %c0_35 = arith.constant 0 : index
      %33 = arith.index_cast %32 : i32 to index
      %c1_36 = arith.constant 1 : index
      %c0_37 = arith.constant 0 : index
      %34 = vector.load %arg2[%c0_34, %c0_35, %33, %c1_36, %c0_37] : memref<1x1x6x6x64xbf16, #tpu.memory_space<vmem>>, vector<1x1x1x4x64xbf16>
      %35 = vector.shape_cast %34 : vector<1x1x1x4x64xbf16> to vector<4x64xbf16>
      %36 = tpu.concatenate %20, %25, %30, %35 in 1 : vector<4x64xbf16>, vector<4x64xbf16>, vector<4x64xbf16>, vector<4x64xbf16> -> vector<4x256xbf16>
      %cst_38 = arith.constant dense<0.000000e+00> : vector<4x16xf32>
      %37 = tpu.matmul %36, %1, %cst_38 {dimension_numbers = #tpu.dot_dimension_numbers<[1], [0], [0], [1], [0, 0, 1, 1], [], []>} : vector<4x256xbf16>, vector<256x16xbf16>, vector<4x16xf32> -> vector<4x16xf32>
      %cst_39 = arith.constant dense<0.000000e+00> : vector<16xf32>
      %38 = vector.multi_reduction <add>, %37, %cst_39 [0] : vector<4x16xf32> to vector<16xf32>
      %39 = vector.shape_cast %38 : vector<16xf32> to vector<1x16xf32>
      %40 = arith.addf %arg7, %39 : vector<1x16xf32>
      %41 = arith.mulf %37, %37 : vector<4x16xf32>
      %cst_40 = arith.constant dense<0.000000e+00> : vector<16xf32>
      %42 = vector.multi_reduction <add>, %41, %cst_40 [0] : vector<4x16xf32> to vector<16xf32>
      %43 = vector.shape_cast %42 : vector<16xf32> to vector<1x16xf32>
      %44 = arith.addf %arg8, %43 : vector<1x16xf32>
      %c0_i32_41 = arith.constant 0 : i32
      %45 = arith.addi %arg6, %c0_i32_41 : i32
      %c0_i32_42 = arith.constant 0 : i32
      %46 = arith.addi %45, %c0_i32_42 : i32
      %c0_43 = arith.constant 0 : index
      %c0_44 = arith.constant 0 : index
      %47 = arith.index_cast %46 : i32 to index
      %c1_45 = arith.constant 1 : index
      %c0_46 = arith.constant 0 : index
      %48 = vector.load %arg2[%c0_43, %c0_44, %47, %c1_45, %c0_46] : memref<1x1x6x6x64xbf16, #tpu.memory_space<vmem>>, vector<1x1x1x4x64xbf16>
      %49 = vector.shape_cast %48 : vector<1x1x1x4x64xbf16> to vector<4x64xbf16>
      %c0_i32_47 = arith.constant 0 : i32
      %50 = arith.addi %arg6, %c0_i32_47 : i32
      %c0_i32_48 = arith.constant 0 : i32
      %51 = arith.addi %50, %c0_i32_48 : i32
      %c0_49 = arith.constant 0 : index
      %c0_50 = arith.constant 0 : index
      %52 = arith.index_cast %51 : i32 to index
      %c2_51 = arith.constant 2 : index
      %c0_52 = arith.constant 0 : index
      %53 = vector.load %arg2[%c0_49, %c0_50, %52, %c2_51, %c0_52] : memref<1x1x6x6x64xbf16, #tpu.memory_space<vmem>>, vector<1x1x1x4x64xbf16>
      %54 = vector.shape_cast %53 : vector<1x1x1x4x64xbf16> to vector<4x64xbf16>
      %c0_i32_53 = arith.constant 0 : i32
      %55 = arith.addi %arg6, %c0_i32_53 : i32
      %c1_i32_54 = arith.constant 1 : i32
      %56 = arith.addi %55, %c1_i32_54 : i32
      %c0_55 = arith.constant 0 : index
      %c0_56 = arith.constant 0 : index
      %57 = arith.index_cast %56 : i32 to index
      %c1_57 = arith.constant 1 : index
      %c0_58 = arith.constant 0 : index
      %58 = vector.load %arg2[%c0_55, %c0_56, %57, %c1_57, %c0_58] : memref<1x1x6x6x64xbf16, #tpu.memory_space<vmem>>, vector<1x1x1x4x64xbf16>
      %59 = vector.shape_cast %58 : vector<1x1x1x4x64xbf16> to vector<4x64xbf16>
      %c0_i32_59 = arith.constant 0 : i32
      %60 = arith.addi %arg6, %c0_i32_59 : i32
      %c1_i32_60 = arith.constant 1 : i32
      %61 = arith.addi %60, %c1_i32_60 : i32
      %c0_61 = arith.constant 0 : index
      %c0_62 = arith.constant 0 : index
      %62 = arith.index_cast %61 : i32 to index
      %c2_63 = arith.constant 2 : index
      %c0_64 = arith.constant 0 : index
      %63 = vector.load %arg2[%c0_61, %c0_62, %62, %c2_63, %c0_64] : memref<1x1x6x6x64xbf16, #tpu.memory_space<vmem>>, vector<1x1x1x4x64xbf16>
      %64 = vector.shape_cast %63 : vector<1x1x1x4x64xbf16> to vector<4x64xbf16>
      %65 = tpu.concatenate %49, %54, %59, %64 in 1 : vector<4x64xbf16>, vector<4x64xbf16>, vector<4x64xbf16>, vector<4x64xbf16> -> vector<4x256xbf16>
      %cst_65 = arith.constant dense<0.000000e+00> : vector<4x16xf32>
      %66 = tpu.matmul %65, %3, %cst_65 {dimension_numbers = #tpu.dot_dimension_numbers<[1], [0], [0], [1], [0, 0, 1, 1], [], []>} : vector<4x256xbf16>, vector<256x16xbf16>, vector<4x16xf32> -> vector<4x16xf32>
      %cst_66 = arith.constant dense<0.000000e+00> : vector<16xf32>
      %67 = vector.multi_reduction <add>, %66, %cst_66 [0] : vector<4x16xf32> to vector<16xf32>
      %68 = vector.shape_cast %67 : vector<16xf32> to vector<1x16xf32>
      %69 = arith.addf %40, %68 : vector<1x16xf32>
      %70 = arith.mulf %66, %66 : vector<4x16xf32>
      %cst_67 = arith.constant dense<0.000000e+00> : vector<16xf32>
      %71 = vector.multi_reduction <add>, %70, %cst_67 [0] : vector<4x16xf32> to vector<16xf32>
      %72 = vector.shape_cast %71 : vector<16xf32> to vector<1x16xf32>
      %73 = arith.addf %44, %72 : vector<1x16xf32>
      %74 = tpu.concatenate %37, %66 in 1 : vector<4x16xf32>, vector<4x16xf32> -> vector<4x32xf32>
      %75 = arith.truncf %74 : vector<4x32xf32> to vector<4x32xbf16>
      %c0_68 = arith.constant 0 : index
      %76 = arith.index_cast %arg6 : i32 to index
      %c0_69 = arith.constant 0 : index
      %c0_70 = arith.constant 0 : index
      %c0_71 = arith.constant 0 : index
      %77 = vector.load %arg4[%c0_68, %76, %c0_69, %c0_70, %c0_71] : memref<1x4x2x4x32xbf16, #tpu.memory_space<vmem>>, vector<1x1x1x4x32xbf16>
      %78 = vector.shape_cast %77 : vector<1x1x1x4x32xbf16> to vector<4x32xbf16>
      %79 = vector.shape_cast %75 : vector<4x32xbf16> to vector<1x1x1x4x32xbf16>
      tpu.vector_store %arg4[%c0_68, %76, %c0_69, %c0_70, %c0_71], %79 {strides = array<i32>} : memref<1x4x2x4x32xbf16, #tpu.memory_space<vmem>>, vector<1x1x1x4x32xbf16>,
      %c1_i32_72 = arith.constant 1 : i32
      %80 = arith.addi %arg6, %c1_i32_72 : i32
      %c0_i32_73 = arith.constant 0 : i32
      %81 = arith.addi %80, %c0_i32_73 : i32
      %c0_74 = arith.constant 0 : index
      %c0_75 = arith.constant 0 : index
      %82 = arith.index_cast %81 : i32 to index
      %c0_76 = arith.constant 0 : index
      %c0_77 = arith.constant 0 : index
      %83 = vector.load %arg2[%c0_74, %c0_75, %82, %c0_76, %c0_77] : memref<1x1x6x6x64xbf16, #tpu.memory_space<vmem>>, vector<1x1x1x4x64xbf16>
      %84 = vector.shape_cast %83 : vector<1x1x1x4x64xbf16> to vector<4x64xbf16>
      %c1_i32_78 = arith.constant 1 : i32
      %85 = arith.addi %arg6, %c1_i32_78 : i32
      %c0_i32_79 = arith.constant 0 : i32
      %86 = arith.addi %85, %c0_i32_79 : i32
      %c0_80 = arith.constant 0 : index
      %c0_81 = arith.constant 0 : index
      %87 = arith.index_cast %86 : i32 to index
      %c1_82 = arith.constant 1 : index
      %c0_83 = arith.constant 0 : index
      %88 = vector.load %arg2[%c0_80, %c0_81, %87, %c1_82, %c0_83] : memref<1x1x6x6x64xbf16, #tpu.memory_space<vmem>>, vector<1x1x1x4x64xbf16>
      %89 = vector.shape_cast %88 : vector<1x1x1x4x64xbf16> to vector<4x64xbf16>
      %c1_i32_84 = arith.constant 1 : i32
      %90 = arith.addi %arg6, %c1_i32_84 : i32
      %c1_i32_85 = arith.constant 1 : i32
      %91 = arith.addi %90, %c1_i32_85 : i32
      %c0_86 = arith.constant 0 : index
      %c0_87 = arith.constant 0 : index
      %92 = arith.index_cast %91 : i32 to index
      %c0_88 = arith.constant 0 : index
      %c0_89 = arith.constant 0 : index
      %93 = vector.load %arg2[%c0_86, %c0_87, %92, %c0_88, %c0_89] : memref<1x1x6x6x64xbf16, #tpu.memory_space<vmem>>, vector<1x1x1x4x64xbf16>
      %94 = vector.shape_cast %93 : vector<1x1x1x4x64xbf16> to vector<4x64xbf16>
      %c1_i32_90 = arith.constant 1 : i32
      %95 = arith.addi %arg6, %c1_i32_90 : i32
      %c1_i32_91 = arith.constant 1 : i32
      %96 = arith.addi %95, %c1_i32_91 : i32
      %c0_92 = arith.constant 0 : index
      %c0_93 = arith.constant 0 : index
      %97 = arith.index_cast %96 : i32 to index
      %c1_94 = arith.constant 1 : index
      %c0_95 = arith.constant 0 : index
      %98 = vector.load %arg2[%c0_92, %c0_93, %97, %c1_94, %c0_95] : memref<1x1x6x6x64xbf16, #tpu.memory_space<vmem>>, vector<1x1x1x4x64xbf16>
      %99 = vector.shape_cast %98 : vector<1x1x1x4x64xbf16> to vector<4x64xbf16>
      %100 = tpu.concatenate %84, %89, %94, %99 in 1 : vector<4x64xbf16>, vector<4x64xbf16>, vector<4x64xbf16>, vector<4x64xbf16> -> vector<4x256xbf16>
      %cst_96 = arith.constant dense<0.000000e+00> : vector<4x16xf32>
      %101 = tpu.matmul %100, %5, %cst_96 {dimension_numbers = #tpu.dot_dimension_numbers<[1], [0], [0], [1], [0, 0, 1, 1], [], []>} : vector<4x256xbf16>, vector<256x16xbf16>, vector<4x16xf32> -> vector<4x16xf32>
      %cst_97 = arith.constant dense<0.000000e+00> : vector<16xf32>
      %102 = vector.multi_reduction <add>, %101, %cst_97 [0] : vector<4x16xf32> to vector<16xf32>
      %103 = vector.shape_cast %102 : vector<16xf32> to vector<1x16xf32>
      %104 = arith.addf %69, %103 : vector<1x16xf32>
      %105 = arith.mulf %101, %101 : vector<4x16xf32>
      %cst_98 = arith.constant dense<0.000000e+00> : vector<16xf32>
      %106 = vector.multi_reduction <add>, %105, %cst_98 [0] : vector<4x16xf32> to vector<16xf32>
      %107 = vector.shape_cast %106 : vector<16xf32> to vector<1x16xf32>
      %108 = arith.addf %73, %107 : vector<1x16xf32>
      %c1_i32_99 = arith.constant 1 : i32
      %109 = arith.addi %arg6, %c1_i32_99 : i32
      %c0_i32_100 = arith.constant 0 : i32
      %110 = arith.addi %109, %c0_i32_100 : i32
      %c0_101 = arith.constant 0 : index
      %c0_102 = arith.constant 0 : index
      %111 = arith.index_cast %110 : i32 to index
      %c1_103 = arith.constant 1 : index
      %c0_104 = arith.constant 0 : index
      %112 = vector.load %arg2[%c0_101, %c0_102, %111, %c1_103, %c0_104] : memref<1x1x6x6x64xbf16, #tpu.memory_space<vmem>>, vector<1x1x1x4x64xbf16>
      %113 = vector.shape_cast %112 : vector<1x1x1x4x64xbf16> to vector<4x64xbf16>
      %c1_i32_105 = arith.constant 1 : i32
      %114 = arith.addi %arg6, %c1_i32_105 : i32
      %c0_i32_106 = arith.constant 0 : i32
      %115 = arith.addi %114, %c0_i32_106 : i32
      %c0_107 = arith.constant 0 : index
      %c0_108 = arith.constant 0 : index
      %116 = arith.index_cast %115 : i32 to index
      %c2_109 = arith.constant 2 : index
      %c0_110 = arith.constant 0 : index
      %117 = vector.load %arg2[%c0_107, %c0_108, %116, %c2_109, %c0_110] : memref<1x1x6x6x64xbf16, #tpu.memory_space<vmem>>, vector<1x1x1x4x64xbf16>
      %118 = vector.shape_cast %117 : vector<1x1x1x4x64xbf16> to vector<4x64xbf16>
      %c1_i32_111 = arith.constant 1 : i32
      %119 = arith.addi %arg6, %c1_i32_111 : i32
      %c1_i32_112 = arith.constant 1 : i32
      %120 = arith.addi %119, %c1_i32_112 : i32
      %c0_113 = arith.constant 0 : index
      %c0_114 = arith.constant 0 : index
      %121 = arith.index_cast %120 : i32 to index
      %c1_115 = arith.constant 1 : index
      %c0_116 = arith.constant 0 : index
      %122 = vector.load %arg2[%c0_113, %c0_114, %121, %c1_115, %c0_116] : memref<1x1x6x6x64xbf16, #tpu.memory_space<vmem>>, vector<1x1x1x4x64xbf16>
      %123 = vector.shape_cast %122 : vector<1x1x1x4x64xbf16> to vector<4x64xbf16>
      %c1_i32_117 = arith.constant 1 : i32
      %124 = arith.addi %arg6, %c1_i32_117 : i32
      %c1_i32_118 = arith.constant 1 : i32
      %125 = arith.addi %124, %c1_i32_118 : i32
      %c0_119 = arith.constant 0 : index
      %c0_120 = arith.constant 0 : index
      %126 = arith.index_cast %125 : i32 to index
      %c2_121 = arith.constant 2 : index
      %c0_122 = arith.constant 0 : index
      %127 = vector.load %arg2[%c0_119, %c0_120, %126, %c2_121, %c0_122] : memref<1x1x6x6x64xbf16, #tpu.memory_space<vmem>>, vector<1x1x1x4x64xbf16>
      %128 = vector.shape_cast %127 : vector<1x1x1x4x64xbf16> to vector<4x64xbf16>
      %129 = tpu.concatenate %113, %118, %123, %128 in 1 : vector<4x64xbf16>, vector<4x64xbf16>, vector<4x64xbf16>, vector<4x64xbf16> -> vector<4x256xbf16>
      %cst_123 = arith.constant dense<0.000000e+00> : vector<4x16xf32>
      %130 = tpu.matmul %129, %7, %cst_123 {dimension_numbers = #tpu.dot_dimension_numbers<[1], [0], [0], [1], [0, 0, 1, 1], [], []>} : vector<4x256xbf16>, vector<256x16xbf16>, vector<4x16xf32> -> vector<4x16xf32>
      %cst_124 = arith.constant dense<0.000000e+00> : vector<16xf32>
      %131 = vector.multi_reduction <add>, %130, %cst_124 [0] : vector<4x16xf32> to vector<16xf32>
      %132 = vector.shape_cast %131 : vector<16xf32> to vector<1x16xf32>
      %133 = arith.addf %104, %132 : vector<1x16xf32>
      %134 = arith.mulf %130, %130 : vector<4x16xf32>
      %cst_125 = arith.constant dense<0.000000e+00> : vector<16xf32>
      %135 = vector.multi_reduction <add>, %134, %cst_125 [0] : vector<4x16xf32> to vector<16xf32>
      %136 = vector.shape_cast %135 : vector<16xf32> to vector<1x16xf32>
      %137 = arith.addf %108, %136 : vector<1x16xf32>
      %138 = tpu.concatenate %101, %130 in 1 : vector<4x16xf32>, vector<4x16xf32> -> vector<4x32xf32>
      %139 = arith.truncf %138 : vector<4x32xf32> to vector<4x32xbf16>
      %c0_126 = arith.constant 0 : index
      %140 = arith.index_cast %arg6 : i32 to index
      %c1_127 = arith.constant 1 : index
      %c0_128 = arith.constant 0 : index
      %c0_129 = arith.constant 0 : index
      %141 = vector.load %arg4[%c0_126, %140, %c1_127, %c0_128, %c0_129] : memref<1x4x2x4x32xbf16, #tpu.memory_space<vmem>>, vector<1x1x1x4x32xbf16>
      %142 = vector.shape_cast %141 : vector<1x1x1x4x32xbf16> to vector<4x32xbf16>
      %143 = vector.shape_cast %139 : vector<4x32xbf16> to vector<1x1x1x4x32xbf16>
      tpu.vector_store %arg4[%c0_126, %140, %c1_127, %c0_128, %c0_129], %143 {strides = array<i32>} : memref<1x4x2x4x32xbf16, #tpu.memory_space<vmem>>, vector<1x1x1x4x32xbf16>,
      scf.yield %133, %137 : vector<1x16xf32>, vector<1x16xf32>
    }
    %c4_i32_9 = arith.constant 4 : i32
    %12 = tpu.concatenate %11#0, %11#1 in 0 : vector<1x16xf32>, vector<1x16xf32> -> vector<2x16xf32>
    %c0_10 = arith.constant 0 : index
    %c0_11 = arith.constant 0 : index
    %c0_12 = arith.constant 0 : index
    %c0_13 = arith.constant 0 : index
    %13 = vector.load %arg5[%c0_10, %c0_11, %c0_12, %c0_13] : memref<1x1x2x16xf32, #tpu.memory_space<vmem>>, vector<1x1x2x16xf32>
    %14 = vector.shape_cast %13 : vector<1x1x2x16xf32> to vector<2x16xf32>
    %15 = vector.shape_cast %12 : vector<2x16xf32> to vector<1x1x2x16xf32>
    tpu.vector_store %arg5[%c0_10, %c0_11, %c0_12, %c0_13], %15 {strides = array<i32>} : memref<1x1x2x16xf32, #tpu.memory_space<vmem>>, vector<1x1x2x16xf32>,
    return
  }
  func.func @transform_0(%arg0: i32, %arg1: i32) -> (i32, i32, i32, i32, i32) {
    %c0_i32 = arith.constant 0 : i32
    %c0_i32_0 = arith.constant 0 : i32
    %c0_i32_1 = arith.constant 0 : i32
    %c0_i32_2 = arith.constant 0 : i32
    return %arg0, %arg1, %c0_i32, %c0_i32_0, %c0_i32_1 : i32, i32, i32, i32, i32
  }
  func.func @transform_1(%arg0: i32, %arg1: i32) -> (i32, i32, i32) {
    %c0_i32 = arith.constant 0 : i32
    %c0_i32_0 = arith.constant 0 : i32
    %c0_i32_1 = arith.constant 0 : i32
    %c0_i32_2 = arith.constant 0 : i32
    return %c0_i32, %c0_i32_0, %c0_i32_1 : i32, i32, i32
  }
  func.func @transform_2(%arg0: i32, %arg1: i32) -> (i32, i32, i32, i32, i32) {
    %c0_i32 = arith.constant 0 : i32
    %c0_i32_0 = arith.constant 0 : i32
    %c0_i32_1 = arith.constant 0 : i32
    %c0_i32_2 = arith.constant 0 : i32
    return %arg0, %arg1, %c0_i32, %c0_i32_0, %c0_i32_1 : i32, i32, i32, i32, i32
  }
  func.func @transform_3(%arg0: i32, %arg1: i32) -> (i32, i32, i32, i32) {
    %c0_i32 = arith.constant 0 : i32
    %c0_i32_0 = arith.constant 0 : i32
    %c0_i32_1 = arith.constant 0 : i32
    return %arg0, %arg1, %c0_i32, %c0_i32_0 : i32, i32, i32, i32
  }
}

module attributes {stable_mosaic.version = 11 : i64} {
  func.func @_dec_convT_kernel(%arg0: i32, %arg1: i32, %arg2: memref<1x1x10x10x32xbf16, #tpu.memory_space<vmem>>, %arg3: memref<4x128x8xbf16, #tpu.memory_space<vmem>>, %arg4: memref<1x8x2x8x16xbf16, #tpu.memory_space<vmem>>, %arg5: memref<1x1x2x8xf32, #tpu.memory_space<vmem>>) attributes {dimension_semantics = [#tpu.dimension_semantics<parallel>, #tpu.dimension_semantics<parallel>], iteration_bounds = array<i64: 2, 1>, scalar_prefetch = 0 : i64, scratch_operands = 0 : i64, tpu.core_type = #tpu.core_type<tc>, window_params = [{transform_indices = @transform_0, window_bounds = array<i64: 1, 1, 10, 10, 32>}, {pipeline_mode = #tpu.pipeline_mode<synchronous>, transform_indices = @transform_1, window_bounds = array<i64: 4, 128, 8>}, {transform_indices = @transform_2, window_bounds = array<i64: 1, 8, 2, 8, 16>}, {transform_indices = @transform_3, window_bounds = array<i64: 1, 1, 2, 8>}]} {
    %c0 = arith.constant 0 : index
    %c0_0 = arith.constant 0 : index
    %c0_1 = arith.constant 0 : index
    %0 = vector.load %arg3[%c0, %c0_0, %c0_1] : memref<4x128x8xbf16, #tpu.memory_space<vmem>>, vector<1x128x8xbf16>
    %1 = vector.shape_cast %0 : vector<1x128x8xbf16> to vector<128x8xbf16>
    %c1 = arith.constant 1 : index
    %c0_2 = arith.constant 0 : index
    %c0_3 = arith.constant 0 : index
    %2 = vector.load %arg3[%c1, %c0_2, %c0_3] : memref<4x128x8xbf16, #tpu.memory_space<vmem>>, vector<1x128x8xbf16>
    %3 = vector.shape_cast %2 : vector<1x128x8xbf16> to vector<128x8xbf16>
    %c2 = arith.constant 2 : index
    %c0_4 = arith.constant 0 : index
    %c0_5 = arith.constant 0 : index
    %4 = vector.load %arg3[%c2, %c0_4, %c0_5] : memref<4x128x8xbf16, #tpu.memory_space<vmem>>, vector<1x128x8xbf16>
    %5 = vector.shape_cast %4 : vector<1x128x8xbf16> to vector<128x8xbf16>
    %c3 = arith.constant 3 : index
    %c0_6 = arith.constant 0 : index
    %c0_7 = arith.constant 0 : index
    %6 = vector.load %arg3[%c3, %c0_6, %c0_7] : memref<4x128x8xbf16, #tpu.memory_space<vmem>>, vector<1x128x8xbf16>
    %7 = vector.shape_cast %6 : vector<1x128x8xbf16> to vector<128x8xbf16>
    %cst = arith.constant 0.000000e+00 : f32
    %8 = vector.broadcast %cst : f32 to vector<1x8xf32>
    %cst_8 = arith.constant 0.000000e+00 : f32
    %9 = vector.broadcast %cst_8 : f32 to vector<1x8xf32>
    %c0_i32 = arith.constant 0 : i32
    %c8_i32 = arith.constant 8 : i32
    %10 = arith.addi %c0_i32, %c8_i32 : i32
    %c1_i32 = arith.constant 1 : i32
    %11:2 = scf.for %arg6 = %c0_i32 to %10 step %c1_i32 iter_args(%arg7 = %8, %arg8 = %9) -> (vector<1x8xf32>, vector<1x8xf32>)  : i32 {
      %c0_i32_14 = arith.constant 0 : i32
      %16 = arith.addi %arg6, %c0_i32_14 : i32
      %c0_i32_15 = arith.constant 0 : i32
      %17 = arith.addi %16, %c0_i32_15 : i32
      %c0_16 = arith.constant 0 : index
      %c0_17 = arith.constant 0 : index
      %18 = arith.index_cast %17 : i32 to index
      %c0_18 = arith.constant 0 : index
      %c0_19 = arith.constant 0 : index
      %19 = vector.load %arg2[%c0_16, %c0_17, %18, %c0_18, %c0_19] : memref<1x1x10x10x32xbf16, #tpu.memory_space<vmem>>, vector<1x1x1x8x32xbf16>
      %20 = vector.shape_cast %19 : vector<1x1x1x8x32xbf16> to vector<8x32xbf16>
      %c0_i32_20 = arith.constant 0 : i32
      %21 = arith.addi %arg6, %c0_i32_20 : i32
      %c0_i32_21 = arith.constant 0 : i32
      %22 = arith.addi %21, %c0_i32_21 : i32
      %c0_22 = arith.constant 0 : index
      %c0_23 = arith.constant 0 : index
      %23 = arith.index_cast %22 : i32 to index
      %c1_24 = arith.constant 1 : index
      %c0_25 = arith.constant 0 : index
      %24 = vector.load %arg2[%c0_22, %c0_23, %23, %c1_24, %c0_25] : memref<1x1x10x10x32xbf16, #tpu.memory_space<vmem>>, vector<1x1x1x8x32xbf16>
      %25 = vector.shape_cast %24 : vector<1x1x1x8x32xbf16> to vector<8x32xbf16>
      %c0_i32_26 = arith.constant 0 : i32
      %26 = arith.addi %arg6, %c0_i32_26 : i32
      %c1_i32_27 = arith.constant 1 : i32
      %27 = arith.addi %26, %c1_i32_27 : i32
      %c0_28 = arith.constant 0 : index
      %c0_29 = arith.constant 0 : index
      %28 = arith.index_cast %27 : i32 to index
      %c0_30 = arith.constant 0 : index
      %c0_31 = arith.constant 0 : index
      %29 = vector.load %arg2[%c0_28, %c0_29, %28, %c0_30, %c0_31] : memref<1x1x10x10x32xbf16, #tpu.memory_space<vmem>>, vector<1x1x1x8x32xbf16>
      %30 = vector.shape_cast %29 : vector<1x1x1x8x32xbf16> to vector<8x32xbf16>
      %c0_i32_32 = arith.constant 0 : i32
      %31 = arith.addi %arg6, %c0_i32_32 : i32
      %c1_i32_33 = arith.constant 1 : i32
      %32 = arith.addi %31, %c1_i32_33 : i32
      %c0_34 = arith.constant 0 : index
      %c0_35 = arith.constant 0 : index
      %33 = arith.index_cast %32 : i32 to index
      %c1_36 = arith.constant 1 : index
      %c0_37 = arith.constant 0 : index
      %34 = vector.load %arg2[%c0_34, %c0_35, %33, %c1_36, %c0_37] : memref<1x1x10x10x32xbf16, #tpu.memory_space<vmem>>, vector<1x1x1x8x32xbf16>
      %35 = vector.shape_cast %34 : vector<1x1x1x8x32xbf16> to vector<8x32xbf16>
      %36 = tpu.concatenate %20, %25, %30, %35 in 1 : vector<8x32xbf16>, vector<8x32xbf16>, vector<8x32xbf16>, vector<8x32xbf16> -> vector<8x128xbf16>
      %cst_38 = arith.constant dense<0.000000e+00> : vector<8x8xf32>
      %37 = tpu.matmul %36, %1, %cst_38 {dimension_numbers = #tpu.dot_dimension_numbers<[1], [0], [0], [1], [0, 0, 1, 1], [], []>} : vector<8x128xbf16>, vector<128x8xbf16>, vector<8x8xf32> -> vector<8x8xf32>
      %cst_39 = arith.constant dense<0.000000e+00> : vector<8xf32>
      %38 = vector.multi_reduction <add>, %37, %cst_39 [0] : vector<8x8xf32> to vector<8xf32>
      %39 = vector.shape_cast %38 : vector<8xf32> to vector<1x8xf32>
      %40 = arith.addf %arg7, %39 : vector<1x8xf32>
      %41 = arith.mulf %37, %37 : vector<8x8xf32>
      %cst_40 = arith.constant dense<0.000000e+00> : vector<8xf32>
      %42 = vector.multi_reduction <add>, %41, %cst_40 [0] : vector<8x8xf32> to vector<8xf32>
      %43 = vector.shape_cast %42 : vector<8xf32> to vector<1x8xf32>
      %44 = arith.addf %arg8, %43 : vector<1x8xf32>
      %c0_i32_41 = arith.constant 0 : i32
      %45 = arith.addi %arg6, %c0_i32_41 : i32
      %c0_i32_42 = arith.constant 0 : i32
      %46 = arith.addi %45, %c0_i32_42 : i32
      %c0_43 = arith.constant 0 : index
      %c0_44 = arith.constant 0 : index
      %47 = arith.index_cast %46 : i32 to index
      %c1_45 = arith.constant 1 : index
      %c0_46 = arith.constant 0 : index
      %48 = vector.load %arg2[%c0_43, %c0_44, %47, %c1_45, %c0_46] : memref<1x1x10x10x32xbf16, #tpu.memory_space<vmem>>, vector<1x1x1x8x32xbf16>
      %49 = vector.shape_cast %48 : vector<1x1x1x8x32xbf16> to vector<8x32xbf16>
      %c0_i32_47 = arith.constant 0 : i32
      %50 = arith.addi %arg6, %c0_i32_47 : i32
      %c0_i32_48 = arith.constant 0 : i32
      %51 = arith.addi %50, %c0_i32_48 : i32
      %c0_49 = arith.constant 0 : index
      %c0_50 = arith.constant 0 : index
      %52 = arith.index_cast %51 : i32 to index
      %c2_51 = arith.constant 2 : index
      %c0_52 = arith.constant 0 : index
      %53 = vector.load %arg2[%c0_49, %c0_50, %52, %c2_51, %c0_52] : memref<1x1x10x10x32xbf16, #tpu.memory_space<vmem>>, vector<1x1x1x8x32xbf16>
      %54 = vector.shape_cast %53 : vector<1x1x1x8x32xbf16> to vector<8x32xbf16>
      %c0_i32_53 = arith.constant 0 : i32
      %55 = arith.addi %arg6, %c0_i32_53 : i32
      %c1_i32_54 = arith.constant 1 : i32
      %56 = arith.addi %55, %c1_i32_54 : i32
      %c0_55 = arith.constant 0 : index
      %c0_56 = arith.constant 0 : index
      %57 = arith.index_cast %56 : i32 to index
      %c1_57 = arith.constant 1 : index
      %c0_58 = arith.constant 0 : index
      %58 = vector.load %arg2[%c0_55, %c0_56, %57, %c1_57, %c0_58] : memref<1x1x10x10x32xbf16, #tpu.memory_space<vmem>>, vector<1x1x1x8x32xbf16>
      %59 = vector.shape_cast %58 : vector<1x1x1x8x32xbf16> to vector<8x32xbf16>
      %c0_i32_59 = arith.constant 0 : i32
      %60 = arith.addi %arg6, %c0_i32_59 : i32
      %c1_i32_60 = arith.constant 1 : i32
      %61 = arith.addi %60, %c1_i32_60 : i32
      %c0_61 = arith.constant 0 : index
      %c0_62 = arith.constant 0 : index
      %62 = arith.index_cast %61 : i32 to index
      %c2_63 = arith.constant 2 : index
      %c0_64 = arith.constant 0 : index
      %63 = vector.load %arg2[%c0_61, %c0_62, %62, %c2_63, %c0_64] : memref<1x1x10x10x32xbf16, #tpu.memory_space<vmem>>, vector<1x1x1x8x32xbf16>
      %64 = vector.shape_cast %63 : vector<1x1x1x8x32xbf16> to vector<8x32xbf16>
      %65 = tpu.concatenate %49, %54, %59, %64 in 1 : vector<8x32xbf16>, vector<8x32xbf16>, vector<8x32xbf16>, vector<8x32xbf16> -> vector<8x128xbf16>
      %cst_65 = arith.constant dense<0.000000e+00> : vector<8x8xf32>
      %66 = tpu.matmul %65, %3, %cst_65 {dimension_numbers = #tpu.dot_dimension_numbers<[1], [0], [0], [1], [0, 0, 1, 1], [], []>} : vector<8x128xbf16>, vector<128x8xbf16>, vector<8x8xf32> -> vector<8x8xf32>
      %cst_66 = arith.constant dense<0.000000e+00> : vector<8xf32>
      %67 = vector.multi_reduction <add>, %66, %cst_66 [0] : vector<8x8xf32> to vector<8xf32>
      %68 = vector.shape_cast %67 : vector<8xf32> to vector<1x8xf32>
      %69 = arith.addf %40, %68 : vector<1x8xf32>
      %70 = arith.mulf %66, %66 : vector<8x8xf32>
      %cst_67 = arith.constant dense<0.000000e+00> : vector<8xf32>
      %71 = vector.multi_reduction <add>, %70, %cst_67 [0] : vector<8x8xf32> to vector<8xf32>
      %72 = vector.shape_cast %71 : vector<8xf32> to vector<1x8xf32>
      %73 = arith.addf %44, %72 : vector<1x8xf32>
      %74 = tpu.concatenate %37, %66 in 1 : vector<8x8xf32>, vector<8x8xf32> -> vector<8x16xf32>
      %75 = arith.truncf %74 : vector<8x16xf32> to vector<8x16xbf16>
      %c0_68 = arith.constant 0 : index
      %76 = arith.index_cast %arg6 : i32 to index
      %c0_69 = arith.constant 0 : index
      %c0_70 = arith.constant 0 : index
      %c0_71 = arith.constant 0 : index
      %77 = vector.load %arg4[%c0_68, %76, %c0_69, %c0_70, %c0_71] : memref<1x8x2x8x16xbf16, #tpu.memory_space<vmem>>, vector<1x1x1x8x16xbf16>
      %78 = vector.shape_cast %77 : vector<1x1x1x8x16xbf16> to vector<8x16xbf16>
      %79 = vector.shape_cast %75 : vector<8x16xbf16> to vector<1x1x1x8x16xbf16>
      tpu.vector_store %arg4[%c0_68, %76, %c0_69, %c0_70, %c0_71], %79 {strides = array<i32>} : memref<1x8x2x8x16xbf16, #tpu.memory_space<vmem>>, vector<1x1x1x8x16xbf16>,
      %c1_i32_72 = arith.constant 1 : i32
      %80 = arith.addi %arg6, %c1_i32_72 : i32
      %c0_i32_73 = arith.constant 0 : i32
      %81 = arith.addi %80, %c0_i32_73 : i32
      %c0_74 = arith.constant 0 : index
      %c0_75 = arith.constant 0 : index
      %82 = arith.index_cast %81 : i32 to index
      %c0_76 = arith.constant 0 : index
      %c0_77 = arith.constant 0 : index
      %83 = vector.load %arg2[%c0_74, %c0_75, %82, %c0_76, %c0_77] : memref<1x1x10x10x32xbf16, #tpu.memory_space<vmem>>, vector<1x1x1x8x32xbf16>
      %84 = vector.shape_cast %83 : vector<1x1x1x8x32xbf16> to vector<8x32xbf16>
      %c1_i32_78 = arith.constant 1 : i32
      %85 = arith.addi %arg6, %c1_i32_78 : i32
      %c0_i32_79 = arith.constant 0 : i32
      %86 = arith.addi %85, %c0_i32_79 : i32
      %c0_80 = arith.constant 0 : index
      %c0_81 = arith.constant 0 : index
      %87 = arith.index_cast %86 : i32 to index
      %c1_82 = arith.constant 1 : index
      %c0_83 = arith.constant 0 : index
      %88 = vector.load %arg2[%c0_80, %c0_81, %87, %c1_82, %c0_83] : memref<1x1x10x10x32xbf16, #tpu.memory_space<vmem>>, vector<1x1x1x8x32xbf16>
      %89 = vector.shape_cast %88 : vector<1x1x1x8x32xbf16> to vector<8x32xbf16>
      %c1_i32_84 = arith.constant 1 : i32
      %90 = arith.addi %arg6, %c1_i32_84 : i32
      %c1_i32_85 = arith.constant 1 : i32
      %91 = arith.addi %90, %c1_i32_85 : i32
      %c0_86 = arith.constant 0 : index
      %c0_87 = arith.constant 0 : index
      %92 = arith.index_cast %91 : i32 to index
      %c0_88 = arith.constant 0 : index
      %c0_89 = arith.constant 0 : index
      %93 = vector.load %arg2[%c0_86, %c0_87, %92, %c0_88, %c0_89] : memref<1x1x10x10x32xbf16, #tpu.memory_space<vmem>>, vector<1x1x1x8x32xbf16>
      %94 = vector.shape_cast %93 : vector<1x1x1x8x32xbf16> to vector<8x32xbf16>
      %c1_i32_90 = arith.constant 1 : i32
      %95 = arith.addi %arg6, %c1_i32_90 : i32
      %c1_i32_91 = arith.constant 1 : i32
      %96 = arith.addi %95, %c1_i32_91 : i32
      %c0_92 = arith.constant 0 : index
      %c0_93 = arith.constant 0 : index
      %97 = arith.index_cast %96 : i32 to index
      %c1_94 = arith.constant 1 : index
      %c0_95 = arith.constant 0 : index
      %98 = vector.load %arg2[%c0_92, %c0_93, %97, %c1_94, %c0_95] : memref<1x1x10x10x32xbf16, #tpu.memory_space<vmem>>, vector<1x1x1x8x32xbf16>
      %99 = vector.shape_cast %98 : vector<1x1x1x8x32xbf16> to vector<8x32xbf16>
      %100 = tpu.concatenate %84, %89, %94, %99 in 1 : vector<8x32xbf16>, vector<8x32xbf16>, vector<8x32xbf16>, vector<8x32xbf16> -> vector<8x128xbf16>
      %cst_96 = arith.constant dense<0.000000e+00> : vector<8x8xf32>
      %101 = tpu.matmul %100, %5, %cst_96 {dimension_numbers = #tpu.dot_dimension_numbers<[1], [0], [0], [1], [0, 0, 1, 1], [], []>} : vector<8x128xbf16>, vector<128x8xbf16>, vector<8x8xf32> -> vector<8x8xf32>
      %cst_97 = arith.constant dense<0.000000e+00> : vector<8xf32>
      %102 = vector.multi_reduction <add>, %101, %cst_97 [0] : vector<8x8xf32> to vector<8xf32>
      %103 = vector.shape_cast %102 : vector<8xf32> to vector<1x8xf32>
      %104 = arith.addf %69, %103 : vector<1x8xf32>
      %105 = arith.mulf %101, %101 : vector<8x8xf32>
      %cst_98 = arith.constant dense<0.000000e+00> : vector<8xf32>
      %106 = vector.multi_reduction <add>, %105, %cst_98 [0] : vector<8x8xf32> to vector<8xf32>
      %107 = vector.shape_cast %106 : vector<8xf32> to vector<1x8xf32>
      %108 = arith.addf %73, %107 : vector<1x8xf32>
      %c1_i32_99 = arith.constant 1 : i32
      %109 = arith.addi %arg6, %c1_i32_99 : i32
      %c0_i32_100 = arith.constant 0 : i32
      %110 = arith.addi %109, %c0_i32_100 : i32
      %c0_101 = arith.constant 0 : index
      %c0_102 = arith.constant 0 : index
      %111 = arith.index_cast %110 : i32 to index
      %c1_103 = arith.constant 1 : index
      %c0_104 = arith.constant 0 : index
      %112 = vector.load %arg2[%c0_101, %c0_102, %111, %c1_103, %c0_104] : memref<1x1x10x10x32xbf16, #tpu.memory_space<vmem>>, vector<1x1x1x8x32xbf16>
      %113 = vector.shape_cast %112 : vector<1x1x1x8x32xbf16> to vector<8x32xbf16>
      %c1_i32_105 = arith.constant 1 : i32
      %114 = arith.addi %arg6, %c1_i32_105 : i32
      %c0_i32_106 = arith.constant 0 : i32
      %115 = arith.addi %114, %c0_i32_106 : i32
      %c0_107 = arith.constant 0 : index
      %c0_108 = arith.constant 0 : index
      %116 = arith.index_cast %115 : i32 to index
      %c2_109 = arith.constant 2 : index
      %c0_110 = arith.constant 0 : index
      %117 = vector.load %arg2[%c0_107, %c0_108, %116, %c2_109, %c0_110] : memref<1x1x10x10x32xbf16, #tpu.memory_space<vmem>>, vector<1x1x1x8x32xbf16>
      %118 = vector.shape_cast %117 : vector<1x1x1x8x32xbf16> to vector<8x32xbf16>
      %c1_i32_111 = arith.constant 1 : i32
      %119 = arith.addi %arg6, %c1_i32_111 : i32
      %c1_i32_112 = arith.constant 1 : i32
      %120 = arith.addi %119, %c1_i32_112 : i32
      %c0_113 = arith.constant 0 : index
      %c0_114 = arith.constant 0 : index
      %121 = arith.index_cast %120 : i32 to index
      %c1_115 = arith.constant 1 : index
      %c0_116 = arith.constant 0 : index
      %122 = vector.load %arg2[%c0_113, %c0_114, %121, %c1_115, %c0_116] : memref<1x1x10x10x32xbf16, #tpu.memory_space<vmem>>, vector<1x1x1x8x32xbf16>
      %123 = vector.shape_cast %122 : vector<1x1x1x8x32xbf16> to vector<8x32xbf16>
      %c1_i32_117 = arith.constant 1 : i32
      %124 = arith.addi %arg6, %c1_i32_117 : i32
      %c1_i32_118 = arith.constant 1 : i32
      %125 = arith.addi %124, %c1_i32_118 : i32
      %c0_119 = arith.constant 0 : index
      %c0_120 = arith.constant 0 : index
      %126 = arith.index_cast %125 : i32 to index
      %c2_121 = arith.constant 2 : index
      %c0_122 = arith.constant 0 : index
      %127 = vector.load %arg2[%c0_119, %c0_120, %126, %c2_121, %c0_122] : memref<1x1x10x10x32xbf16, #tpu.memory_space<vmem>>, vector<1x1x1x8x32xbf16>
      %128 = vector.shape_cast %127 : vector<1x1x1x8x32xbf16> to vector<8x32xbf16>
      %129 = tpu.concatenate %113, %118, %123, %128 in 1 : vector<8x32xbf16>, vector<8x32xbf16>, vector<8x32xbf16>, vector<8x32xbf16> -> vector<8x128xbf16>
      %cst_123 = arith.constant dense<0.000000e+00> : vector<8x8xf32>
      %130 = tpu.matmul %129, %7, %cst_123 {dimension_numbers = #tpu.dot_dimension_numbers<[1], [0], [0], [1], [0, 0, 1, 1], [], []>} : vector<8x128xbf16>, vector<128x8xbf16>, vector<8x8xf32> -> vector<8x8xf32>
      %cst_124 = arith.constant dense<0.000000e+00> : vector<8xf32>
      %131 = vector.multi_reduction <add>, %130, %cst_124 [0] : vector<8x8xf32> to vector<8xf32>
      %132 = vector.shape_cast %131 : vector<8xf32> to vector<1x8xf32>
      %133 = arith.addf %104, %132 : vector<1x8xf32>
      %134 = arith.mulf %130, %130 : vector<8x8xf32>
      %cst_125 = arith.constant dense<0.000000e+00> : vector<8xf32>
      %135 = vector.multi_reduction <add>, %134, %cst_125 [0] : vector<8x8xf32> to vector<8xf32>
      %136 = vector.shape_cast %135 : vector<8xf32> to vector<1x8xf32>
      %137 = arith.addf %108, %136 : vector<1x8xf32>
      %138 = tpu.concatenate %101, %130 in 1 : vector<8x8xf32>, vector<8x8xf32> -> vector<8x16xf32>
      %139 = arith.truncf %138 : vector<8x16xf32> to vector<8x16xbf16>
      %c0_126 = arith.constant 0 : index
      %140 = arith.index_cast %arg6 : i32 to index
      %c1_127 = arith.constant 1 : index
      %c0_128 = arith.constant 0 : index
      %c0_129 = arith.constant 0 : index
      %141 = vector.load %arg4[%c0_126, %140, %c1_127, %c0_128, %c0_129] : memref<1x8x2x8x16xbf16, #tpu.memory_space<vmem>>, vector<1x1x1x8x16xbf16>
      %142 = vector.shape_cast %141 : vector<1x1x1x8x16xbf16> to vector<8x16xbf16>
      %143 = vector.shape_cast %139 : vector<8x16xbf16> to vector<1x1x1x8x16xbf16>
      tpu.vector_store %arg4[%c0_126, %140, %c1_127, %c0_128, %c0_129], %143 {strides = array<i32>} : memref<1x8x2x8x16xbf16, #tpu.memory_space<vmem>>, vector<1x1x1x8x16xbf16>,
      scf.yield %133, %137 : vector<1x8xf32>, vector<1x8xf32>
    }
    %c8_i32_9 = arith.constant 8 : i32
    %12 = tpu.concatenate %11#0, %11#1 in 0 : vector<1x8xf32>, vector<1x8xf32> -> vector<2x8xf32>
    %c0_10 = arith.constant 0 : index
    %c0_11 = arith.constant 0 : index
    %c0_12 = arith.constant 0 : index
    %c0_13 = arith.constant 0 : index
    %13 = vector.load %arg5[%c0_10, %c0_11, %c0_12, %c0_13] : memref<1x1x2x8xf32, #tpu.memory_space<vmem>>, vector<1x1x2x8xf32>
    %14 = vector.shape_cast %13 : vector<1x1x2x8xf32> to vector<2x8xf32>
    %15 = vector.shape_cast %12 : vector<2x8xf32> to vector<1x1x2x8xf32>
    tpu.vector_store %arg5[%c0_10, %c0_11, %c0_12, %c0_13], %15 {strides = array<i32>} : memref<1x1x2x8xf32, #tpu.memory_space<vmem>>, vector<1x1x2x8xf32>,
    return
  }
  func.func @transform_0(%arg0: i32, %arg1: i32) -> (i32, i32, i32, i32, i32) {
    %c0_i32 = arith.constant 0 : i32
    %c0_i32_0 = arith.constant 0 : i32
    %c0_i32_1 = arith.constant 0 : i32
    %c0_i32_2 = arith.constant 0 : i32
    return %arg0, %arg1, %c0_i32, %c0_i32_0, %c0_i32_1 : i32, i32, i32, i32, i32
  }
  func.func @transform_1(%arg0: i32, %arg1: i32) -> (i32, i32, i32) {
    %c0_i32 = arith.constant 0 : i32
    %c0_i32_0 = arith.constant 0 : i32
    %c0_i32_1 = arith.constant 0 : i32
    %c0_i32_2 = arith.constant 0 : i32
    return %c0_i32, %c0_i32_0, %c0_i32_1 : i32, i32, i32
  }
  func.func @transform_2(%arg0: i32, %arg1: i32) -> (i32, i32, i32, i32, i32) {
    %c0_i32 = arith.constant 0 : i32
    %c0_i32_0 = arith.constant 0 : i32
    %c0_i32_1 = arith.constant 0 : i32
    %c0_i32_2 = arith.constant 0 : i32
    return %arg0, %arg1, %c0_i32, %c0_i32_0, %c0_i32_1 : i32, i32, i32, i32, i32
  }
  func.func @transform_3(%arg0: i32, %arg1: i32) -> (i32, i32, i32, i32) {
    %c0_i32 = arith.constant 0 : i32
    %c0_i32_0 = arith.constant 0 : i32
    %c0_i32_1 = arith.constant 0 : i32
    return %arg0, %arg1, %c0_i32, %c0_i32_0 : i32, i32, i32, i32
  }
}

module attributes {stable_mosaic.version = 11 : i64} {
  func.func @_mm_res_kernel(%arg0: i32, %arg1: memref<1x16xf32, #tpu.memory_space<vmem>>, %arg2: memref<1x16xf32, #tpu.memory_space<vmem>>, %arg3: memref<512x16xbf16, #tpu.memory_space<vmem>>, %arg4: memref<16x128xbf16, #tpu.memory_space<vmem>>, %arg5: memref<1x128xf32, #tpu.memory_space<vmem>>, %arg6: memref<512x128xf32, #tpu.memory_space<vmem>>) attributes {dimension_semantics = [#tpu.dimension_semantics<parallel>], iteration_bounds = array<i64: 1>, scalar_prefetch = 0 : i64, scratch_operands = 0 : i64, tpu.core_type = #tpu.core_type<tc>, window_params = [{pipeline_mode = #tpu.pipeline_mode<synchronous>, transform_indices = @transform_0, window_bounds = array<i64: 1, 16>}, {pipeline_mode = #tpu.pipeline_mode<synchronous>, transform_indices = @transform_1, window_bounds = array<i64: 1, 16>}, {transform_indices = @transform_2, window_bounds = array<i64: 512, 16>}, {pipeline_mode = #tpu.pipeline_mode<synchronous>, transform_indices = @transform_3, window_bounds = array<i64: 16, 128>}, {pipeline_mode = #tpu.pipeline_mode<synchronous>, transform_indices = @transform_4, window_bounds = array<i64: 1, 128>}, {transform_indices = @transform_5, window_bounds = array<i64: 512, 128>}]} {
    %c0 = arith.constant 0 : index
    %c0_0 = arith.constant 0 : index
    %0 = vector.load %arg3[%c0, %c0_0] : memref<512x16xbf16, #tpu.memory_space<vmem>>, vector<512x16xbf16>
    %1 = arith.extf %0 : vector<512x16xbf16> to vector<512x16xf32>
    %c0_1 = arith.constant 0 : index
    %c0_2 = arith.constant 0 : index
    %2 = vector.load %arg1[%c0_1, %c0_2] : memref<1x16xf32, #tpu.memory_space<vmem>>, vector<1x16xf32>
    %3 = vector.broadcast %2 : vector<1x16xf32> to vector<512x16xf32>
    %4 = arith.mulf %1, %3 : vector<512x16xf32>
    %c0_3 = arith.constant 0 : index
    %c0_4 = arith.constant 0 : index
    %5 = vector.load %arg2[%c0_3, %c0_4] : memref<1x16xf32, #tpu.memory_space<vmem>>, vector<1x16xf32>
    %6 = vector.broadcast %5 : vector<1x16xf32> to vector<512x16xf32>
    %7 = arith.addf %4, %6 : vector<512x16xf32>
    %cst = arith.constant 0.000000e+00 : f32
    %8 = vector.broadcast %cst : f32 to vector<512x16xf32>
    %9 = arith.maximumf %7, %8 : vector<512x16xf32>
    %10 = arith.truncf %9 : vector<512x16xf32> to vector<512x16xbf16>
    %c0_5 = arith.constant 0 : index
    %c0_6 = arith.constant 0 : index
    %11 = vector.load %arg4[%c0_5, %c0_6] : memref<16x128xbf16, #tpu.memory_space<vmem>>, vector<16x128xbf16>
    %cst_7 = arith.constant dense<0.000000e+00> : vector<512x128xf32>
    %12 = tpu.matmul %10, %11, %cst_7 {dimension_numbers = #tpu.dot_dimension_numbers<[1], [0], [0], [1], [0, 0, 1, 1], [], []>} : vector<512x16xbf16>, vector<16x128xbf16>, vector<512x128xf32> -> vector<512x128xf32>
    %c0_8 = arith.constant 0 : index
    %c0_9 = arith.constant 0 : index
    %13 = vector.load %arg5[%c0_8, %c0_9] : memref<1x128xf32, #tpu.memory_space<vmem>>, vector<1x128xf32>
    %14 = vector.broadcast %13 : vector<1x128xf32> to vector<512x128xf32>
    %15 = arith.addf %12, %14 : vector<512x128xf32>
    %16 = math.absf %15 : vector<512x128xf32>
    %cst_10 = arith.constant 0.000000e+00 : f32
    %17 = vector.broadcast %cst_10 : f32 to vector<512x128xf32>
    %18 = arith.subf %17, %16 : vector<512x128xf32>
    %19 = math.exp %18 : vector<512x128xf32>
    %cst_11 = arith.constant 1.000000e+00 : f32
    %20 = vector.broadcast %cst_11 : f32 to vector<512x128xf32>
    %21 = arith.addf %20, %19 : vector<512x128xf32>
    %22 = tpu.reciprocal %21 : vector<512x128xf32> -> vector<512x128xf32>
    %cst_12 = arith.constant 0.000000e+00 : f32
    %23 = vector.broadcast %cst_12 : f32 to vector<512x128xf32>
    %24 = arith.cmpf oge, %15, %23 : vector<512x128xf32>
    %cst_13 = arith.constant 1.000000e+00 : f32
    %25 = vector.broadcast %cst_13 : f32 to vector<512x128xf32>
    %26 = arith.subf %25, %22 : vector<512x128xf32>
    %27 = arith.select %24, %22, %26 : vector<512x128xi1>, vector<512x128xf32>
    %c0_14 = arith.constant 0 : index
    %c0_15 = arith.constant 0 : index
    %28 = vector.load %arg6[%c0_14, %c0_15] : memref<512x128xf32, #tpu.memory_space<vmem>>, vector<512x128xf32>
    tpu.vector_store %arg6[%c0_14, %c0_15], %27 {strides = array<i32>} : memref<512x128xf32, #tpu.memory_space<vmem>>, vector<512x128xf32>,
    return
  }
  func.func @transform_0(%arg0: i32) -> (i32, i32) {
    %c0_i32 = arith.constant 0 : i32
    %c0_i32_0 = arith.constant 0 : i32
    %c0_i32_1 = arith.constant 0 : i32
    return %c0_i32, %c0_i32_0 : i32, i32
  }
  func.func @transform_1(%arg0: i32) -> (i32, i32) {
    %c0_i32 = arith.constant 0 : i32
    %c0_i32_0 = arith.constant 0 : i32
    %c0_i32_1 = arith.constant 0 : i32
    return %c0_i32, %c0_i32_0 : i32, i32
  }
  func.func @transform_2(%arg0: i32) -> (i32, i32) {
    %c0_i32 = arith.constant 0 : i32
    %c0_i32_0 = arith.constant 0 : i32
    return %arg0, %c0_i32 : i32, i32
  }
  func.func @transform_3(%arg0: i32) -> (i32, i32) {
    %c0_i32 = arith.constant 0 : i32
    %c0_i32_0 = arith.constant 0 : i32
    %c0_i32_1 = arith.constant 0 : i32
    return %c0_i32, %c0_i32_0 : i32, i32
  }
  func.func @transform_4(%arg0: i32) -> (i32, i32) {
    %c0_i32 = arith.constant 0 : i32
    %c0_i32_0 = arith.constant 0 : i32
    %c0_i32_1 = arith.constant 0 : i32
    return %c0_i32, %c0_i32_0 : i32, i32
  }
  func.func @transform_5(%arg0: i32) -> (i32, i32) {
    %c0_i32 = arith.constant 0 : i32
    %c0_i32_0 = arith.constant 0 : i32
    return %arg0, %c0_i32 : i32, i32
  }
}

</mosaic_0001>

<llo_original>
// kernel: custom_unet_generator.8
$region0: #{custom_unet_generator.8}
  #allocation0 [shape = 'u32[]', space=smem, size = 0x4, offset = 0x4, fixed_abs, tag = 'smem constant byte address 0x4 - core index']
  #allocation1 [shape = 'u32[144,128]{1,0:T(1,128)}', space=vmem, size = 0x12000, scoped, tag = 'internal scratch']
  %s0 = inlined_call_operand.vmem [shape: f32[1,4], index: 0, kind: input, shape index: {}]
  %s1 = inlined_call_operand.vmem [shape: f32[1,4], index: 1, kind: input, shape index: {}]
  %s2 = inlined_call_operand.vmem [shape: bf16[512,4], index: 2, kind: input, shape index: {}]
  %s3 = inlined_call_operand.vmem [shape: bf16[4,8], index: 3, kind: input, shape index: {}]
  %s4 = inlined_call_operand.vmem [shape: f32[1,8], index: 4, kind: input, shape index: {}]
  %s5 = inlined_call_operand.vmem [shape: bf16[512,8], index: 5, kind: output, shape index: {}]
  %s6 = sld [smem:[#allocation0]]
  $region30: #{custom_unet_generator.8} parent=0
    _
  %s8 = ssub.s32 1, %s6
  %s9 = scalar_select 0, %s8, %s6
  // Predicated region
  $region2: #{custom_unet_generator.8} parent=0 // pred_check
    _
  $region3: #{custom_unet_generator.8} parent=0 // pred_check_branch
    %11 = sbr.rel (0) target = $region5
  $region4: #{custom_unet_generator.8} parent=0 // pred_region
    _
  $region5: #{custom_unet_generator.8} parent=0 // pred_fallthru
    _
  // Predicated region
  $region6: #{custom_unet_generator.8} parent=0 // pred_check
    _
  $region7: #{custom_unet_generator.8} parent=0 // pred_check_branch
    %13 = sbr.rel (0) target = $region9
  $region8: #{custom_unet_generator.8} parent=0 // pred_region
    _
  $region9: #{custom_unet_generator.8} parent=0 // pred_fallthru
    _
  // Predicated region
  $region10: #{custom_unet_generator.8} parent=0 // pred_check
    _
  $region11: #{custom_unet_generator.8} parent=0 // pred_check_branch
    %15 = sbr.rel (0) target = $region13
  $region12: #{custom_unet_generator.8} parent=0 // pred_region
    _
  $region13: #{custom_unet_generator.8} parent=0 // pred_fallthru
    _
  // Predicated region
  $region14: #{custom_unet_generator.8} parent=0 // pred_check
    _
  $region15: #{custom_unet_generator.8} parent=0 // pred_check_branch
    %17 = sbr.rel (0) target = $region17
  $region16: #{custom_unet_generator.8} parent=0 // pred_region
    _
  $region17: #{custom_unet_generator.8} parent=0 // pred_fallthru
    _
  // Predicated region
  $region18: #{custom_unet_generator.8} parent=0 // pred_check
    _
  $region19: #{custom_unet_generator.8} parent=0 // pred_check_branch
    %19 = sbr.rel (0) target = $region21
  $region20: #{custom_unet_generator.8} parent=0 // pred_region
    _
  $region21: #{custom_unet_generator.8} parent=0 // pred_fallthru
    _
  %v21 = vld [vmem:[%s2] sm:$0xf]
  %v22 = vld [vmem:[%s2 + $0x4] sm:$0xf]
  %v23 = vld [vmem:[%s2 + $0x8] sm:$0xf]
  %v24 = vld [vmem:[%s2 + $0xc] sm:$0xf]
  %v25 = vld [vmem:[%s2 + $0x10] sm:$0xf]
  %v26 = vld [vmem:[%s2 + $0x14] sm:$0xf]
  %v27 = vld [vmem:[%s2 + $0x18] sm:$0xf]
  %v28 = vld [vmem:[%s2 + $0x1c] sm:$0xf]
  %v29 = vld [vmem:[%s2 + $0x20] sm:$0xf]
  %v30 = vld [vmem:[%s2 + $0x24] sm:$0xf]
  %v31 = vld [vmem:[%s2 + $0x28] sm:$0xf]
  %v32 = vld [vmem:[%s2 + $0x2c] sm:$0xf]
  %v33 = vld [vmem:[%s2 + $0x30] sm:$0xf]
  %v34 = vld [vmem:[%s2 + $0x34] sm:$0xf]
  %v35 = vld [vmem:[%s2 + $0x38] sm:$0xf]
  %v36 = vld [vmem:[%s2 + $0x3c] sm:$0xf]
  %v37 = vld [vmem:[%s2 + $0x40] sm:$0xf]
  %v38 = vld [vmem:[%s2 + $0x44] sm:$0xf]
  %v39 = vld [vmem:[%s2 + $0x48] sm:$0xf]
  %v40 = vld [vmem:[%s2 + $0x4c] sm:$0xf]
  %v41 = vld [vmem:[%s2 + $0x50] sm:$0xf]
  %v42 = vld [vmem:[%s2 + $0x54] sm:$0xf]
  %v43 = vld [vmem:[%s2 + $0x58] sm:$0xf]
  %v44 = vld [vmem:[%s2 + $0x5c] sm:$0xf]
  %v45 = vld [vmem:[%s2 + $0x60] sm:$0xf]
  %v46 = vld [vmem:[%s2 + $0x64] sm:$0xf]
  %v47 = vld [vmem:[%s2 + $0x68] sm:$0xf]
  %v48 = vld [vmem:[%s2 + $0x6c] sm:$0xf]
  %v49 = vld [vmem:[%s2 + $0x70] sm:$0xf]
  %v50 = vld [vmem:[%s2 + $0x74] sm:$0xf]
  %v51 = vld [vmem:[%s2 + $0x78] sm:$0xf]
  %v52 = vld [vmem:[%s2 + $0x7c] sm:$0xf]
  %v53 = vld [vmem:[%s2 + $0x80] sm:$0xf]
  %v54 = vld [vmem:[%s2 + $0x84] sm:$0xf]
  %v55 = vld [vmem:[%s2 + $0x88] sm:$0xf]
  %v56 = vld [vmem:[%s2 + $0x8c] sm:$0xf]
  %v57 = vld [vmem:[%s2 + $0x90] sm:$0xf]
  %v58 = vld [vmem:[%s2 + $0x94] sm:$0xf]
  %v59 = vld [vmem:[%s2 + $0x98] sm:$0xf]
  %v60 = vld [vmem:[%s2 + $0x9c] sm:$0xf]
  %v61 = vld [vmem:[%s2 + $0xa0] sm:$0xf]
  %v62 = vld [vmem:[%s2 + $0xa4] sm:$0xf]
  %v63 = vld [vmem:[%s2 + $0xa8] sm:$0xf]
  %v64 = vld [vmem:[%s2 + $0xac] sm:$0xf]
  %v65 = vld [vmem:[%s2 + $0xb0] sm:$0xf]
  %v66 = vld [vmem:[%s2 + $0xb4] sm:$0xf]
  %v67 = vld [vmem:[%s2 + $0xb8] sm:$0xf]
  %v68 = vld [vmem:[%s2 + $0xbc] sm:$0xf]
  %v69 = vld [vmem:[%s2 + $0xc0] sm:$0xf]
  %v70 = vld [vmem:[%s2 + $0xc4] sm:$0xf]
  %v71 = vld [vmem:[%s2 + $0xc8] sm:$0xf]
  %v72 = vld [vmem:[%s2 + $0xcc] sm:$0xf]
  %v73 = vld [vmem:[%s2 + $0xd0] sm:$0xf]
  %v74 = vld [vmem:[%s2 + $0xd4] sm:$0xf]
  %v75 = vld [vmem:[%s2 + $0xd8] sm:$0xf]
  %v76 = vld [vmem:[%s2 + $0xdc] sm:$0xf]
  %v77 = vld [vmem:[%s2 + $0xe0] sm:$0xf]
  %v78 = vld [vmem:[%s2 + $0xe4] sm:$0xf]
  %v79 = vld [vmem:[%s2 + $0xe8] sm:$0xf]
  %v80 = vld [vmem:[%s2 + $0xec] sm:$0xf]
  %v81 = vld [vmem:[%s2 + $0xf0] sm:$0xf]
  %v82 = vld [vmem:[%s2 + $0xf4] sm:$0xf]
  %v83 = vld [vmem:[%s2 + $0xf8] sm:$0xf]
  %v84 = vld [vmem:[%s2 + $0xfc] sm:$0xf]
  %v85 = vld [vmem:[%s3] sm:$0x3]
  %v86 = vld [vmem:[%s4] sm:$0x1]
  %v88 = vlaneseq
  %v89 = vshrl.u32 %v88, 7
  %v90 = vsub.s32 0, %v89
  %v91 = vrot.slane %v86, %v90
  %v157 = vunpack.c.l.b16 %v21
  %v158 = vunpack.c.l.b16 %v22
  %v159 = vunpack.c.l.b16 %v23
  %v160 = vunpack.c.l.b16 %v24
  %v161 = vunpack.c.l.b16 %v25
  %v162 = vunpack.c.l.b16 %v26
  %v163 = vunpack.c.l.b16 %v27
  %v164 = vunpack.c.l.b16 %v28
  %v165 = vunpack.c.l.b16 %v29
  %v166 = vunpack.c.l.b16 %v30
  %v167 = vunpack.c.l.b16 %v31
  %v168 = vunpack.c.l.b16 %v32
  %v169 = vunpack.c.l.b16 %v33
  %v170 = vunpack.c.l.b16 %v34
  %v171 = vunpack.c.l.b16 %v35
  %v172 = vunpack.c.l.b16 %v36
  %v173 = vunpack.c.l.b16 %v37
  %v174 = vunpack.c.l.b16 %v38
  %v175 = vunpack.c.l.b16 %v39
  %v176 = vunpack.c.l.b16 %v40
  %v177 = vunpack.c.l.b16 %v41
  %v178 = vunpack.c.l.b16 %v42
  %v179 = vunpack.c.l.b16 %v43
  %v180 = vunpack.c.l.b16 %v44
  %v181 = vunpack.c.l.b16 %v45
  %v182 = vunpack.c.l.b16 %v46
  %v183 = vunpack.c.l.b16 %v47
  %v184 = vunpack.c.l.b16 %v48
  %v185 = vunpack.c.l.b16 %v49
  %v186 = vunpack.c.l.b16 %v50
  %v187 = vunpack.c.l.b16 %v51
  %v188 = vunpack.c.l.b16 %v52
  %v189 = vunpack.c.l.b16 %v53
  %v190 = vunpack.c.l.b16 %v54
  %v191 = vunpack.c.l.b16 %v55
  %v192 = vunpack.c.l.b16 %v56
  %v193 = vunpack.c.l.b16 %v57
  %v194 = vunpack.c.l.b16 %v58
  %v195 = vunpack.c.l.b16 %v59
  %v196 = vunpack.c.l.b16 %v60
  %v197 = vunpack.c.l.b16 %v61
  %v198 = vunpack.c.l.b16 %v62
  %v199 = vunpack.c.l.b16 %v63
  %v200 = vunpack.c.l.b16 %v64
  %v201 = vunpack.c.l.b16 %v65
  %v202 = vunpack.c.l.b16 %v66
  %v203 = vunpack.c.l.b16 %v67
  %v204 = vunpack.c.l.b16 %v68
  %v205 = vunpack.c.l.b16 %v69
  %v206 = vunpack.c.l.b16 %v70
  %v207 = vunpack.c.l.b16 %v71
  %v208 = vunpack.c.l.b16 %v72
  %v209 = vunpack.c.l.b16 %v73
  %v210 = vunpack.c.l.b16 %v74
  %v211 = vunpack.c.l.b16 %v75
  %v212 = vunpack.c.l.b16 %v76
  %v213 = vunpack.c.l.b16 %v77
  %v214 = vunpack.c.l.b16 %v78
  %v215 = vunpack.c.l.b16 %v79
  %v216 = vunpack.c.l.b16 %v80
  %v217 = vunpack.c.l.b16 %v81
  %v218 = vunpack.c.l.b16 %v82
  %v219 = vunpack.c.l.b16 %v83
  %v220 = vunpack.c.l.b16 %v84
  %v221 = vpack.c.b16 %v158, %v157
  %v222 = vpack.c.b16 %v160, %v159
  %v223 = vpack.c.b16 %v162, %v161
  %v224 = vpack.c.b16 %v164, %v163
  %v225 = vpack.c.b16 %v166, %v165
  %v226 = vpack.c.b16 %v168, %v167
  %v227 = vpack.c.b16 %v170, %v169
  %v228 = vpack.c.b16 %v172, %v171
  %v229 = vpack.c.b16 %v174, %v173
  %v230 = vpack.c.b16 %v176, %v175
  %v231 = vpack.c.b16 %v178, %v177
  %v232 = vpack.c.b16 %v180, %v179
  %v233 = vpack.c.b16 %v182, %v181
  %v234 = vpack.c.b16 %v184, %v183
  %v235 = vpack.c.b16 %v186, %v185
  %v236 = vpack.c.b16 %v188, %v187
  %v237 = vpack.c.b16 %v190, %v189
  %v238 = vpack.c.b16 %v192, %v191
  %v239 = vpack.c.b16 %v194, %v193
  %v240 = vpack.c.b16 %v196, %v195
  %v241 = vpack.c.b16 %v198, %v197
  %v242 = vpack.c.b16 %v200, %v199
  %v243 = vpack.c.b16 %v202, %v201
  %v244 = vpack.c.b16 %v204, %v203
  %v245 = vpack.c.b16 %v206, %v205
  %v246 = vpack.c.b16 %v208, %v207
  %v247 = vpack.c.b16 %v210, %v209
  %v248 = vpack.c.b16 %v212, %v211
  %v249 = vpack.c.b16 %v214, %v213
  %v250 = vpack.c.b16 %v216, %v215
  %v251 = vpack.c.b16 %v218, %v217
  %v252 = vpack.c.b16 %v220, %v219
  %vm253 = vcmask 31744
  %v255 = vsel %vm253, %v221, 0
  %v258 = vsel %vm253, %v222, 0
  %v261 = vsel %vm253, %v223, 0
  %v264 = vsel %vm253, %v224, 0
  %v267 = vsel %vm253, %v225, 0
  %v270 = vsel %vm253, %v226, 0
  %v273 = vsel %vm253, %v227, 0
  %v276 = vsel %vm253, %v228, 0
  %v279 = vsel %vm253, %v229, 0
  %v282 = vsel %vm253, %v230, 0
  %v285 = vsel %vm253, %v231, 0
  %v288 = vsel %vm253, %v232, 0
  %v291 = vsel %vm253, %v233, 0
  %v294 = vsel %vm253, %v234, 0
  %v297 = vsel %vm253, %v235, 0
  %v300 = vsel %vm253, %v236, 0
  %v303 = vsel %vm253, %v237, 0
  %v306 = vsel %vm253, %v238, 0
  %v309 = vsel %vm253, %v239, 0
  %v312 = vsel %vm253, %v240, 0
  %v315 = vsel %vm253, %v241, 0
  %v318 = vsel %vm253, %v242, 0
  %v321 = vsel %vm253, %v243, 0
  %v324 = vsel %vm253, %v244, 0
  %v327 = vsel %vm253, %v245, 0
  %v330 = vsel %vm253, %v246, 0
  %v333 = vsel %vm253, %v247, 0
  %v336 = vsel %vm253, %v248, 0
  %v339 = vsel %vm253, %v249, 0
  %v342 = vsel %vm253, %v250, 0
  %v345 = vsel %vm253, %v251, 0
  %v348 = vsel %vm253, %v252, 0
  %vm350 = vcmask 1041408
  %v352 = vsel %vm350, %v85, 0
  %354 = vmatprep.subr.bf16.mxu0 0
  %355 = vmatpush1.bf16.msra.mxu0 %v352
  %356 = vmatprep.subr.bf16.mxu0 0
  %357 = vmatpush1.bf16.msra.mxu0 0
  %358 = vmatprep.subr.bf16.mxu0 0
  %359 = vmatpush1.bf16.msra.mxu0 0
  %360 = vmatprep.subr.bf16.mxu0 0
  %361 = vmatpush1.bf16.msra.mxu0 0
  %362 = vmatprep.subr.bf16.mxu0 0
  %363 = vmatpush1.bf16.msra.mxu0 0
  %364 = vmatprep.subr.bf16.mxu0 0
  %365 = vmatpush1.bf16.msra.mxu0 0
  %366 = vmatprep.subr.bf16.mxu0 0
  %367 = vmatpush1.bf16.msra.mxu0 0
  %368 = vmatprep.subr.bf16.mxu0 0
  %369 = vmatpush1.bf16.msra.mxu0 0
  %370 = vmatprep.subr.bf16.mxu0 0
  %371 = vmatpush1.bf16.msra.mxu0 0
  %372 = vmatprep.subr.bf16.mxu0 0
  %373 = vmatpush1.bf16.msra.mxu0 0
  %374 = vmatprep.subr.bf16.mxu0 0
  %375 = vmatpush1.bf16.msra.mxu0 0
  %376 = vmatprep.subr.bf16.mxu0 0
  %377 = vmatpush1.bf16.msra.mxu0 0
  %378 = vmatprep.subr.bf16.mxu0 0
  %379 = vmatpush1.bf16.msra.mxu0 0
  %380 = vmatprep.subr.bf16.mxu0 0
  %381 = vmatpush1.bf16.msra.mxu0 0
  %382 = vmatprep.subr.bf16.mxu0 0
  %383 = vmatpush1.bf16.msra.mxu0 0
  %384 = vmatprep.subr.bf16.mxu0 0
  %385 = vmatpush1.bf16.msra.mxu0 0
  %386 = vmatprep.mubr.bf16.mxu0 0
  %387 = vmatmul.mubr.bf16.gmra.mrb[0].mxu0 %v255
  %v388 = vpop.f32.mrb[0].mxu0
  %v389 = vadd.f32 %v91, %v388
  %v390 = vpop.f32.mrb[0].mxu0
  %v391 = vpop.f32.mrb[0].mxu0
  %v392 = vadd.f32 %v91, %v391
  %v393 = vpop.f32.mrb[0].mxu0
  %394 = vmatprep.mubr.bf16.mxu0 0
  %395 = vmatmul.mubr.bf16.gmra.mrb[0].mxu0 %v258
  %v396 = vpop.f32.mrb[0].mxu0
  %v397 = vadd.f32 %v91, %v396
  %v398 = vpop.f32.mrb[0].mxu0
  %v399 = vpop.f32.mrb[0].mxu0
  %v400 = vadd.f32 %v91, %v399
  %v401 = vpop.f32.mrb[0].mxu0
  %402 = vmatprep.mubr.bf16.mxu0 0
  %403 = vmatmul.mubr.bf16.gmra.mrb[0].mxu0 %v261
  %v404 = vpop.f32.mrb[0].mxu0
  %v405 = vadd.f32 %v91, %v404
  %v406 = vpop.f32.mrb[0].mxu0
  %v407 = vpop.f32.mrb[0].mxu0
  %v408 = vadd.f32 %v91, %v407
  %v409 = vpop.f32.mrb[0].mxu0
  %410 = vmatprep.mubr.bf16.mxu0 0
  %411 = vmatmul.mubr.bf16.gmra.mrb[0].mxu0 %v264
  %v412 = vpop.f32.mrb[0].mxu0
  %v413 = vadd.f32 %v91, %v412
  %v414 = vpop.f32.mrb[0].mxu0
  %v415 = vpop.f32.mrb[0].mxu0
  %v416 = vadd.f32 %v91, %v415
  %v417 = vpop.f32.mrb[0].mxu0
  %418 = vmatprep.mubr.bf16.mxu0 0
  %419 = vmatmul.mubr.bf16.gmra.mrb[0].mxu0 %v267
  %v420 = vpop.f32.mrb[0].mxu0
  %v421 = vadd.f32 %v91, %v420
  %v422 = vpop.f32.mrb[0].mxu0
  %v423 = vpop.f32.mrb[0].mxu0
  %v424 = vadd.f32 %v91, %v423
  %v425 = vpop.f32.mrb[0].mxu0
  %426 = vmatprep.mubr.bf16.mxu0 0
  %427 = vmatmul.mubr.bf16.gmra.mrb[0].mxu0 %v270
  %v428 = vpop.f32.mrb[0].mxu0
  %v429 = vadd.f32 %v91, %v428
  %v430 = vpop.f32.mrb[0].mxu0
  %v431 = vpop.f32.mrb[0].mxu0
  %v432 = vadd.f32 %v91, %v431
  %v433 = vpop.f32.mrb[0].mxu0
  %434 = vmatprep.mubr.bf16.mxu0 0
  %435 = vmatmul.mubr.bf16.gmra.mrb[0].mxu0 %v273
  %v436 = vpop.f32.mrb[0].mxu0
  %v437 = vadd.f32 %v91, %v436
  %v438 = vpop.f32.mrb[0].mxu0
  %v439 = vpop.f32.mrb[0].mxu0
  %v440 = vadd.f32 %v91, %v439
  %v441 = vpop.f32.mrb[0].mxu0
  %442 = vmatprep.mubr.bf16.mxu0 0
  %443 = vmatmul.mubr.bf16.gmra.mrb[0].mxu0 %v276
  %v444 = vpop.f32.mrb[0].mxu0
  %v445 = vadd.f32 %v91, %v444
  %v446 = vpop.f32.mrb[0].mxu0
  %v447 = vpop.f32.mrb[0].mxu0
  %v448 = vadd.f32 %v91, %v447
  %v449 = vpop.f32.mrb[0].mxu0
  %450 = vmatprep.mubr.bf16.mxu0 0
  %451 = vmatmul.mubr.bf16.gmra.mrb[0].mxu0 %v279
  %v452 = vpop.f32.mrb[0].mxu0
  %v453 = vadd.f32 %v91, %v452
  %v454 = vpop.f32.mrb[0].mxu0
  %v455 = vpop.f32.mrb[0].mxu0
  %v456 = vadd.f32 %v91, %v455
  %v457 = vpop.f32.mrb[0].mxu0
  %458 = vmatprep.mubr.bf16.mxu0 0
  %459 = vmatmul.mubr.bf16.gmra.mrb[0].mxu0 %v282
  %v460 = vpop.f32.mrb[0].mxu0
  %v461 = vadd.f32 %v91, %v460
  %v462 = vpop.f32.mrb[0].mxu0
  %v463 = vpop.f32.mrb[0].mxu0
  %v464 = vadd.f32 %v91, %v463
  %v465 = vpop.f32.mrb[0].mxu0
  %466 = vmatprep.mubr.bf16.mxu0 0
  %467 = vmatmul.mubr.bf16.gmra.mrb[0].mxu0 %v285
  %v468 = vpop.f32.mrb[0].mxu0
  %v469 = vadd.f32 %v91, %v468
  %v470 = vpop.f32.mrb[0].mxu0
  %v471 = vpop.f32.mrb[0].mxu0
  %v472 = vadd.f32 %v91, %v471
  %v473 = vpop.f32.mrb[0].mxu0
  %474 = vmatprep.mubr.bf16.mxu0 0
  %475 = vmatmul.mubr.bf16.gmra.mrb[0].mxu0 %v288
  %v476 = vpop.f32.mrb[0].mxu0
  %v477 = vadd.f32 %v91, %v476
  %v478 = vpop.f32.mrb[0].mxu0
  %v479 = vpop.f32.mrb[0].mxu0
  %v480 = vadd.f32 %v91, %v479
  %v481 = vpop.f32.mrb[0].mxu0
  %482 = vmatprep.mubr.bf16.mxu0 0
  %483 = vmatmul.mubr.bf16.gmra.mrb[0].mxu0 %v291
  %v484 = vpop.f32.mrb[0].mxu0
  %v485 = vadd.f32 %v91, %v484
  %v486 = vpop.f32.mrb[0].mxu0
  %v487 = vpop.f32.mrb[0].mxu0
  %v488 = vadd.f32 %v91, %v487
  %v489 = vpop.f32.mrb[0].mxu0
  %490 = vmatprep.mubr.bf16.mxu0 0
  %491 = vmatmul.mubr.bf16.gmra.mrb[0].mxu0 %v294
  %v492 = vpop.f32.mrb[0].mxu0
  %v493 = vadd.f32 %v91, %v492
  %v494 = vpop.f32.mrb[0].mxu0
  %v495 = vpop.f32.mrb[0].mxu0
  %v496 = vadd.f32 %v91, %v495
  %v497 = vpop.f32.mrb[0].mxu0
  %498 = vmatprep.mubr.bf16.mxu0 0
  %499 = vmatmul.mubr.bf16.gmra.mrb[0].mxu0 %v297
  %v500 = vpop.f32.mrb[0].mxu0
  %v501 = vadd.f32 %v91, %v500
  %v502 = vpop.f32.mrb[0].mxu0
  %v503 = vpop.f32.mrb[0].mxu0
  %v504 = vadd.f32 %v91, %v503
  %v505 = vpop.f32.mrb[0].mxu0
  %506 = vmatprep.mubr.bf16.mxu0 0
  %507 = vmatmul.mubr.bf16.gmra.mrb[0].mxu0 %v300
  %v508 = vpop.f32.mrb[0].mxu0
  %v509 = vadd.f32 %v91, %v508
  %v510 = vpop.f32.mrb[0].mxu0
  %v511 = vpop.f32.mrb[0].mxu0
  %v512 = vadd.f32 %v91, %v511
  %v513 = vpop.f32.mrb[0].mxu0
  %514 = vmatprep.mubr.bf16.mxu0 0
  %515 = vmatmul.mubr.bf16.gmra.mrb[0].mxu0 %v303
  %v516 = vpop.f32.mrb[0].mxu0
  %v517 = vadd.f32 %v91, %v516
  %v518 = vpop.f32.mrb[0].mxu0
  %v519 = vpop.f32.mrb[0].mxu0
  %v520 = vadd.f32 %v91, %v519
  %v521 = vpop.f32.mrb[0].mxu0
  %522 = vmatprep.mubr.bf16.mxu0 0
  %523 = vmatmul.mubr.bf16.gmra.mrb[0].mxu0 %v306
  %v524 = vpop.f32.mrb[0].mxu0
  %v525 = vadd.f32 %v91, %v524
  %v526 = vpop.f32.mrb[0].mxu0
  %v527 = vpop.f32.mrb[0].mxu0
  %v528 = vadd.f32 %v91, %v527
  %v529 = vpop.f32.mrb[0].mxu0
  %530 = vmatprep.mubr.bf16.mxu0 0
  %531 = vmatmul.mubr.bf16.gmra.mrb[0].mxu0 %v309
  %v532 = vpop.f32.mrb[0].mxu0
  %v533 = vadd.f32 %v91, %v532
  %v534 = vpop.f32.mrb[0].mxu0
  %v535 = vpop.f32.mrb[0].mxu0
  %v536 = vadd.f32 %v91, %v535
  %v537 = vpop.f32.mrb[0].mxu0
  %538 = vmatprep.mubr.bf16.mxu0 0
  %539 = vmatmul.mubr.bf16.gmra.mrb[0].mxu0 %v312
  %v540 = vpop.f32.mrb[0].mxu0
  %v541 = vadd.f32 %v91, %v540
  %v542 = vpop.f32.mrb[0].mxu0
  %v543 = vpop.f32.mrb[0].mxu0
  %v544 = vadd.f32 %v91, %v543
  %v545 = vpop.f32.mrb[0].mxu0
  %546 = vmatprep.mubr.bf16.mxu0 0
  %547 = vmatmul.mubr.bf16.gmra.mrb[0].mxu0 %v315
  %v548 = vpop.f32.mrb[0].mxu0
  %v549 = vadd.f32 %v91, %v548
  %v550 = vpop.f32.mrb[0].mxu0
  %v551 = vpop.f32.mrb[0].mxu0
  %v552 = vadd.f32 %v91, %v551
  %v553 = vpop.f32.mrb[0].mxu0
  %554 = vmatprep.mubr.bf16.mxu0 0
  %555 = vmatmul.mubr.bf16.gmra.mrb[0].mxu0 %v318
  %v556 = vpop.f32.mrb[0].mxu0
  %v557 = vadd.f32 %v91, %v556
  %v558 = vpop.f32.mrb[0].mxu0
  %v559 = vpop.f32.mrb[0].mxu0
  %v560 = vadd.f32 %v91, %v559
  %v561 = vpop.f32.mrb[0].mxu0
  %562 = vmatprep.mubr.bf16.mxu0 0
  %563 = vmatmul.mubr.bf16.gmra.mrb[0].mxu0 %v321
  %v564 = vpop.f32.mrb[0].mxu0
  %v565 = vadd.f32 %v91, %v564
  %v566 = vpop.f32.mrb[0].mxu0
  %v567 = vpop.f32.mrb[0].mxu0
  %v568 = vadd.f32 %v91, %v567
  %v569 = vpop.f32.mrb[0].mxu0
  %570 = vmatprep.mubr.bf16.mxu0 0
  %571 = vmatmul.mubr.bf16.gmra.mrb[0].mxu0 %v324
  %v572 = vpop.f32.mrb[0].mxu0
  %v573 = vadd.f32 %v91, %v572
  %v574 = vpop.f32.mrb[0].mxu0
  %v575 = vpop.f32.mrb[0].mxu0
  %v576 = vadd.f32 %v91, %v575
  %v577 = vpop.f32.mrb[0].mxu0
  %578 = vmatprep.mubr.bf16.mxu0 0
  %579 = vmatmul.mubr.bf16.gmra.mrb[0].mxu0 %v327
  %v580 = vpop.f32.mrb[0].mxu0
  %v581 = vadd.f32 %v91, %v580
  %v582 = vpop.f32.mrb[0].mxu0
  %v583 = vpop.f32.mrb[0].mxu0
  %v584 = vadd.f32 %v91, %v583
  %v585 = vpop.f32.mrb[0].mxu0
  %586 = vmatprep.mubr.bf16.mxu0 0
  %587 = vmatmul.mubr.bf16.gmra.mrb[0].mxu0 %v330
  %v588 = vpop.f32.mrb[0].mxu0
  %v589 = vadd.f32 %v91, %v588
  %v590 = vpop.f32.mrb[0].mxu0
  %v591 = vpop.f32.mrb[0].mxu0
  %v592 = vadd.f32 %v91, %v591
  %v593 = vpop.f32.mrb[0].mxu0
  %594 = vmatprep.mubr.bf16.mxu0 0
  %595 = vmatmul.mubr.bf16.gmra.mrb[0].mxu0 %v333
  %v596 = vpop.f32.mrb[0].mxu0
  %v597 = vadd.f32 %v91, %v596
  %v598 = vpop.f32.mrb[0].mxu0
  %v599 = vpop.f32.mrb[0].mxu0
  %v600 = vadd.f32 %v91, %v599
  %v601 = vpop.f32.mrb[0].mxu0
  %602 = vmatprep.mubr.bf16.mxu0 0
  %603 = vmatmul.mubr.bf16.gmra.mrb[0].mxu0 %v336
  %v604 = vpop.f32.mrb[0].mxu0
  %v605 = vadd.f32 %v91, %v604
  %v606 = vpop.f32.mrb[0].mxu0
  %v607 = vpop.f32.mrb[0].mxu0
  %v608 = vadd.f32 %v91, %v607
  %v609 = vpop.f32.mrb[0].mxu0
  %610 = vmatprep.mubr.bf16.mxu0 0
  %611 = vmatmul.mubr.bf16.gmra.mrb[0].mxu0 %v339
  %v612 = vpop.f32.mrb[0].mxu0
  %v613 = vadd.f32 %v91, %v612
  %v614 = vpop.f32.mrb[0].mxu0
  %v615 = vpop.f32.mrb[0].mxu0
  %v616 = vadd.f32 %v91, %v615
  %v617 = vpop.f32.mrb[0].mxu0
  %618 = vmatprep.mubr.bf16.mxu0 0
  %619 = vmatmul.mubr.bf16.gmra.mrb[0].mxu0 %v342
  %v620 = vpop.f32.mrb[0].mxu0
  %v621 = vadd.f32 %v91, %v620
  %v622 = vpop.f32.mrb[0].mxu0
  %v623 = vpop.f32.mrb[0].mxu0
  %v624 = vadd.f32 %v91, %v623
  %v625 = vpop.f32.mrb[0].mxu0
  %626 = vmatprep.mubr.bf16.mxu0 0
  %627 = vmatmul.mubr.bf16.gmra.mrb[0].mxu0 %v345
  %v628 = vpop.f32.mrb[0].mxu0
  %v629 = vadd.f32 %v91, %v628
  %v630 = vpop.f32.mrb[0].mxu0
  %v631 = vpop.f32.mrb[0].mxu0
  %v632 = vadd.f32 %v91, %v631
  %v633 = vpop.f32.mrb[0].mxu0
  %634 = vmatprep.mubr.bf16.mxu0 0
  %635 = vmatmul.mubr.bf16.gmra.mrb[0].mxu0 %v348
  %v636 = vpop.f32.mrb[0].mxu0
  %v637 = vadd.f32 %v91, %v636
  %v638 = vpop.f32.mrb[0].mxu0
  %v639 = vpop.f32.mrb[0].mxu0
  %v640 = vadd.f32 %v91, %v639
  %v641 = vpop.f32.mrb[0].mxu0
  %642 = vdwg.mxu0
  %v643 = vpack.c.bf16 %v392, %v389
  %v644 = vpack.c.bf16 %v400, %v397
  %v645 = vpack.c.bf16 %v408, %v405
  %v646 = vpack.c.bf16 %v416, %v413
  %v647 = vpack.c.bf16 %v424, %v421
  %v648 = vpack.c.bf16 %v432, %v429
  %v649 = vpack.c.bf16 %v440, %v437
  %v650 = vpack.c.bf16 %v448, %v445
  %v651 = vpack.c.bf16 %v456, %v453
  %v652 = vpack.c.bf16 %v464, %v461
  %v653 = vpack.c.bf16 %v472, %v469
  %v654 = vpack.c.bf16 %v480, %v477
  %v655 = vpack.c.bf16 %v488, %v485
  %v656 = vpack.c.bf16 %v496, %v493
  %v657 = vpack.c.bf16 %v504, %v501
  %v658 = vpack.c.bf16 %v512, %v509
  %v659 = vpack.c.bf16 %v520, %v517
  %v660 = vpack.c.bf16 %v528, %v525
  %v661 = vpack.c.bf16 %v536, %v533
  %v662 = vpack.c.bf16 %v544, %v541
  %v663 = vpack.c.bf16 %v552, %v549
  %v664 = vpack.c.bf16 %v560, %v557
  %v665 = vpack.c.bf16 %v568, %v565
  %v666 = vpack.c.bf16 %v576, %v573
  %v667 = vpack.c.bf16 %v584, %v581
  %v668 = vpack.c.bf16 %v592, %v589
  %v669 = vpack.c.bf16 %v600, %v597
  %v670 = vpack.c.bf16 %v608, %v605
  %v671 = vpack.c.bf16 %v616, %v613
  %v672 = vpack.c.bf16 %v624, %v621
  %v673 = vpack.c.bf16 %v632, %v629
  %v674 = vpack.c.bf16 %v640, %v637
  %v707 = vunpack.c.l.b16 %v643
  %v708 = vunpack.c.h.b16 %v643
  %v709 = vunpack.c.l.b16 %v644
  %v710 = vunpack.c.h.b16 %v644
  %v711 = vunpack.c.l.b16 %v645
  %v712 = vunpack.c.h.b16 %v645
  %v713 = vunpack.c.l.b16 %v646
  %v714 = vunpack.c.h.b16 %v646
  %v715 = vunpack.c.l.b16 %v647
  %v716 = vunpack.c.h.b16 %v647
  %v717 = vunpack.c.l.b16 %v648
  %v718 = vunpack.c.h.b16 %v648
  %v719 = vunpack.c.l.b16 %v649
  %v720 = vunpack.c.h.b16 %v649
  %v721 = vunpack.c.l.b16 %v650
  %v722 = vunpack.c.h.b16 %v650
  %v723 = vunpack.c.l.b16 %v651
  %v724 = vunpack.c.h.b16 %v651
  %v725 = vunpack.c.l.b16 %v652
  %v726 = vunpack.c.h.b16 %v652
  %v727 = vunpack.c.l.b16 %v653
  %v728 = vunpack.c.h.b16 %v653
  %v729 = vunpack.c.l.b16 %v654
  %v730 = vunpack.c.h.b16 %v654
  %v731 = vunpack.c.l.b16 %v655
  %v732 = vunpack.c.h.b16 %v655
  %v733 = vunpack.c.l.b16 %v656
  %v734 = vunpack.c.h.b16 %v656
  %v735 = vunpack.c.l.b16 %v657
  %v736 = vunpack.c.h.b16 %v657
  %v737 = vunpack.c.l.b16 %v658
  %v738 = vunpack.c.h.b16 %v658
  %v739 = vunpack.c.l.b16 %v659
  %v740 = vunpack.c.h.b16 %v659
  %v741 = vunpack.c.l.b16 %v660
  %v742 = vunpack.c.h.b16 %v660
  %v743 = vunpack.c.l.b16 %v661
  %v744 = vunpack.c.h.b16 %v661
  %v745 = vunpack.c.l.b16 %v662
  %v746 = vunpack.c.h.b16 %v662
  %v747 = vunpack.c.l.b16 %v663
  %v748 = vunpack.c.h.b16 %v663
  %v749 = vunpack.c.l.b16 %v664
  %v750 = vunpack.c.h.b16 %v664
  %v751 = vunpack.c.l.b16 %v665
  %v752 = vunpack.c.h.b16 %v665
  %v753 = vunpack.c.l.b16 %v666
  %v754 = vunpack.c.h.b16 %v666
  %v755 = vunpack.c.l.b16 %v667
  %v756 = vunpack.c.h.b16 %v667
  %v757 = vunpack.c.l.b16 %v668
  %v758 = vunpack.c.h.b16 %v668
  %v759 = vunpack.c.l.b16 %v669
  %v760 = vunpack.c.h.b16 %v669
  %v761 = vunpack.c.l.b16 %v670
  %v762 = vunpack.c.h.b16 %v670
  %v763 = vunpack.c.l.b16 %v671
  %v764 = vunpack.c.h.b16 %v671
  %v765 = vunpack.c.l.b16 %v672
  %v766 = vunpack.c.h.b16 %v672
  %v767 = vunpack.c.l.b16 %v673
  %v768 = vunpack.c.h.b16 %v673
  %v769 = vunpack.c.l.b16 %v674
  %v770 = vunpack.c.h.b16 %v674
  %v771 = vpack.c.b16 %v707, %v707
  %v772 = vpack.c.b16 %v708, %v708
  %v773 = vpack.c.b16 %v709, %v709
  %v774 = vpack.c.b16 %v710, %v710
  %v775 = vpack.c.b16 %v711, %v711
  %v776 = vpack.c.b16 %v712, %v712
  %v777 = vpack.c.b16 %v713, %v713
  %v778 = vpack.c.b16 %v714, %v714
  %v779 = vpack.c.b16 %v715, %v715
  %v780 = vpack.c.b16 %v716, %v716
  %v781 = vpack.c.b16 %v717, %v717
  %v782 = vpack.c.b16 %v718, %v718
  %v783 = vpack.c.b16 %v719, %v719
  %v784 = vpack.c.b16 %v720, %v720
  %v785 = vpack.c.b16 %v721, %v721
  %v786 = vpack.c.b16 %v722, %v722
  %v787 = vpack.c.b16 %v723, %v723
  %v788 = vpack.c.b16 %v724, %v724
  %v789 = vpack.c.b16 %v725, %v725
  %v790 = vpack.c.b16 %v726, %v726
  %v791 = vpack.c.b16 %v727, %v727
  %v792 = vpack.c.b16 %v728, %v728
  %v793 = vpack.c.b16 %v729, %v729
  %v794 = vpack.c.b16 %v730, %v730
  %v795 = vpack.c.b16 %v731, %v731
  %v796 = vpack.c.b16 %v732, %v732
  %v797 = vpack.c.b16 %v733, %v733
  %v798 = vpack.c.b16 %v734, %v734
  %v799 = vpack.c.b16 %v735, %v735
  %v800 = vpack.c.b16 %v736, %v736
  %v801 = vpack.c.b16 %v737, %v737
  %v802 = vpack.c.b16 %v738, %v738
  %v803 = vpack.c.b16 %v739, %v739
  %v804 = vpack.c.b16 %v740, %v740
  %v805 = vpack.c.b16 %v741, %v741
  %v806 = vpack.c.b16 %v742, %v742
  %v807 = vpack.c.b16 %v743, %v743
  %v808 = vpack.c.b16 %v744, %v744
  %v809 = vpack.c.b16 %v745, %v745
  %v810 = vpack.c.b16 %v746, %v746
  %v811 = vpack.c.b16 %v747, %v747
  %v812 = vpack.c.b16 %v748, %v748
  %v813 = vpack.c.b16 %v749, %v749
  %v814 = vpack.c.b16 %v750, %v750
  %v815 = vpack.c.b16 %v751, %v751
  %v816 = vpack.c.b16 %v752, %v752
  %v817 = vpack.c.b16 %v753, %v753
  %v818 = vpack.c.b16 %v754, %v754
  %v819 = vpack.c.b16 %v755, %v755
  %v820 = vpack.c.b16 %v756, %v756
  %v821 = vpack.c.b16 %v757, %v757
  %v822 = vpack.c.b16 %v758, %v758
  %v823 = vpack.c.b16 %v759, %v759
  %v824 = vpack.c.b16 %v760, %v760
  %v825 = vpack.c.b16 %v761, %v761
  %v826 = vpack.c.b16 %v762, %v762
  %v827 = vpack.c.b16 %v763, %v763
  %v828 = vpack.c.b16 %v764, %v764
  %v829 = vpack.c.b16 %v765, %v765
  %v830 = vpack.c.b16 %v766, %v766
  %v831 = vpack.c.b16 %v767, %v767
  %v832 = vpack.c.b16 %v768, %v768
  %v833 = vpack.c.b16 %v769, %v769
  %v834 = vpack.c.b16 %v770, %v770
  %vm899 = vcmask 60416
  %900 = vst.msk [vmem:[%s5] sm:$0xf] %vm899, %v771
  %901 = vst.msk [vmem:[%s5 + $0x4] sm:$0xf] %vm899, %v772
  %902 = vst.msk [vmem:[%s5 + $0x8] sm:$0xf] %vm899, %v773
  %903 = vst.msk [vmem:[%s5 + $0xc] sm:$0xf] %vm899, %v774
  %904 = vst.msk [vmem:[%s5 + $0x10] sm:$0xf] %vm899, %v775
  %905 = vst.msk [vmem:[%s5 + $0x14] sm:$0xf] %vm899, %v776
  %906 = vst.msk [vmem:[%s5 + $0x18] sm:$0xf] %vm899, %v777
  %907 = vst.msk [vmem:[%s5 + $0x1c] sm:$0xf] %vm899, %v778
  %908 = vst.msk [vmem:[%s5 + $0x20] sm:$0xf] %vm899, %v779
  %909 = vst.msk [vmem:[%s5 + $0x24] sm:$0xf] %vm899, %v780
  %910 = vst.msk [vmem:[%s5 + $0x28] sm:$0xf] %vm899, %v781
  %911 = vst.msk [vmem:[%s5 + $0x2c] sm:$0xf] %vm899, %v782
  %912 = vst.msk [vmem:[%s5 + $0x30] sm:$0xf] %vm899, %v783
  %913 = vst.msk [vmem:[%s5 + $0x34] sm:$0xf] %vm899, %v784
  %914 = vst.msk [vmem:[%s5 + $0x38] sm:$0xf] %vm899, %v785
  %915 = vst.msk [vmem:[%s5 + $0x3c] sm:$0xf] %vm899, %v786
  %916 = vst.msk [vmem:[%s5 + $0x40] sm:$0xf] %vm899, %v787
  %917 = vst.msk [vmem:[%s5 + $0x44] sm:$0xf] %vm899, %v788
  %918 = vst.msk [vmem:[%s5 + $0x48] sm:$0xf] %vm899, %v789
  %919 = vst.msk [vmem:[%s5 + $0x4c] sm:$0xf] %vm899, %v790
  %920 = vst.msk [vmem:[%s5 + $0x50] sm:$0xf] %vm899, %v791
  %921 = vst.msk [vmem:[%s5 + $0x54] sm:$0xf] %vm899, %v792
  %922 = vst.msk [vmem:[%s5 + $0x58] sm:$0xf] %vm899, %v793
  %923 = vst.msk [vmem:[%s5 + $0x5c] sm:$0xf] %vm899, %v794
  %924 = vst.msk [vmem:[%s5 + $0x60] sm:$0xf] %vm899, %v795
  %925 = vst.msk [vmem:[%s5 + $0x64] sm:$0xf] %vm899, %v796
  %926 = vst.msk [vmem:[%s5 + $0x68] sm:$0xf] %vm899, %v797
  %927 = vst.msk [vmem:[%s5 + $0x6c] sm:$0xf] %vm899, %v798
  %928 = vst.msk [vmem:[%s5 + $0x70] sm:$0xf] %vm899, %v799
  %929 = vst.msk [vmem:[%s5 + $0x74] sm:$0xf] %vm899, %v800
  %930 = vst.msk [vmem:[%s5 + $0x78] sm:$0xf] %vm899, %v801
  %931 = vst.msk [vmem:[%s5 + $0x7c] sm:$0xf] %vm899, %v802
  %932 = vst.msk [vmem:[%s5 + $0x80] sm:$0xf] %vm899, %v803
  %933 = vst.msk [vmem:[%s5 + $0x84] sm:$0xf] %vm899, %v804
  %934 = vst.msk [vmem:[%s5 + $0x88] sm:$0xf] %vm899, %v805
  %935 = vst.msk [vmem:[%s5 + $0x8c] sm:$0xf] %vm899, %v806
  %936 = vst.msk [vmem:[%s5 + $0x90] sm:$0xf] %vm899, %v807
  %937 = vst.msk [vmem:[%s5 + $0x94] sm:$0xf] %vm899, %v808
  %938 = vst.msk [vmem:[%s5 + $0x98] sm:$0xf] %vm899, %v809
  %939 = vst.msk [vmem:[%s5 + $0x9c] sm:$0xf] %vm899, %v810
  %940 = vst.msk [vmem:[%s5 + $0xa0] sm:$0xf] %vm899, %v811
  %941 = vst.msk [vmem:[%s5 + $0xa4] sm:$0xf] %vm899, %v812
  %942 = vst.msk [vmem:[%s5 + $0xa8] sm:$0xf] %vm899, %v813
  %943 = vst.msk [vmem:[%s5 + $0xac] sm:$0xf] %vm899, %v814
  %944 = vst.msk [vmem:[%s5 + $0xb0] sm:$0xf] %vm899, %v815
  %945 = vst.msk [vmem:[%s5 + $0xb4] sm:$0xf] %vm899, %v816
  %946 = vst.msk [vmem:[%s5 + $0xb8] sm:$0xf] %vm899, %v817
  %947 = vst.msk [vmem:[%s5 + $0xbc] sm:$0xf] %vm899, %v818
  %948 = vst.msk [vmem:[%s5 + $0xc0] sm:$0xf] %vm899, %v819
  %949 = vst.msk [vmem:[%s5 + $0xc4] sm:$0xf] %vm899, %v820
  %950 = vst.msk [vmem:[%s5 + $0xc8] sm:$0xf] %vm899, %v821
  %951 = vst.msk [vmem:[%s5 + $0xcc] sm:$0xf] %vm899, %v822
  %952 = vst.msk [vmem:[%s5 + $0xd0] sm:$0xf] %vm899, %v823
  %953 = vst.msk [vmem:[%s5 + $0xd4] sm:$0xf] %vm899, %v824
  %954 = vst.msk [vmem:[%s5 + $0xd8] sm:$0xf] %vm899, %v825
  %955 = vst.msk [vmem:[%s5 + $0xdc] sm:$0xf] %vm899, %v826
  %956 = vst.msk [vmem:[%s5 + $0xe0] sm:$0xf] %vm899, %v827
  %957 = vst.msk [vmem:[%s5 + $0xe4] sm:$0xf] %vm899, %v828
  %958 = vst.msk [vmem:[%s5 + $0xe8] sm:$0xf] %vm899, %v829
  %959 = vst.msk [vmem:[%s5 + $0xec] sm:$0xf] %vm899, %v830
  %960 = vst.msk [vmem:[%s5 + $0xf0] sm:$0xf] %vm899, %v831
  %961 = vst.msk [vmem:[%s5 + $0xf4] sm:$0xf] %vm899, %v832
  %962 = vst.msk [vmem:[%s5 + $0xf8] sm:$0xf] %vm899, %v833
  %963 = vst.msk [vmem:[%s5 + $0xfc] sm:$0xf] %vm899, %v834
  // Predicated region
  $region22: #{custom_unet_generator.8} parent=0 // pred_check
    _
  $region23: #{custom_unet_generator.8} parent=0 // pred_check_branch
    %965 = sbr.rel (0) target = $region25
  $region24: #{custom_unet_generator.8} parent=0 // pred_region
    _
  $region25: #{custom_unet_generator.8} parent=0 // pred_fallthru
    _
  // Predicated region
  $region26: #{custom_unet_generator.8} parent=0 // pred_check
    _
  $region27: #{custom_unet_generator.8} parent=0 // pred_check_branch
    %967 = sbr.rel (0) target = $region29
  $region28: #{custom_unet_generator.8} parent=0 // pred_region
    _
  $region29: #{custom_unet_generator.8} parent=0 // pred_fallthru
    _

// kernel: custom_unet_generator.9
$region0: #{custom_unet_generator.9}
  #allocation0 [shape = 'u32[]', space=smem, size = 0x4, offset = 0x4, fixed_abs, tag = 'smem constant byte address 0x4 - core index']
  #allocation1 [shape = 'u32[144,128]{1,0:T(1,128)}', space=vmem, size = 0x12000, scoped, tag = 'internal scratch']
  %s0 = inlined_call_operand.vmem [shape: bf16[2,1,9,9,32], index: 0, kind: input, shape index: {}]
  %s1 = inlined_call_operand.vmem [shape: bf16[128,16], index: 1, kind: input, shape index: {}]
  %s2 = inlined_call_operand.vmem [shape: bf16[2,8,8,16], index: 2, kind: output, shape index: {0}]
  %s3 = inlined_call_operand.vmem [shape: f32[2,1,2,16], index: 3, kind: output, shape index: {1}]
  %4 = xla_tuple %s2, %s3
  %s5 = sld [smem:[#allocation0]]
  $region56: #{custom_unet_generator.9} parent=0
    _
  %s7 = ssub.s32 1, %s5
  %s8 = scalar_select 0, %s7, %s5
  loop: start=0, step=1, limit=4
  $region2: #{custom_unet_generator.9} parent=0 // loop_pre_header
    _
  $region3: #{custom_unet_generator.9} parent=0 // loop_header
    %s10 = sphi 0, %s14
    %p11 = scmp.ge.s32.totalorder %s10, 4
    %s17 = sphi 0, %s29
    %s18 = sphi 0, %s25
    %s19 = sphi 0, %s17
    %s20 = sphi 0, %s18
    %s21 = sphi 0, %s19
    %s22 = sphi 0, %s20
    %s34 = sphi 0, %s36
    %s37 = sphi 0, %s34
    %s38 = sphi 0, %s37
    %s54 = sphi 0, %s38
    %s58 = sphi 0, %s58
    %s60 = sphi 0, %s58
    %s61 = sphi 0, %s60
    %s75 = sphi 0, %s61
    %s83 = sphi 0, %s85
    %s86 = sphi 0, %s83
    %s87 = sphi 0, %s86
    %s103 = sphi 0, %s87
    %s111 = sphi 0, %s113
    %s114 = sphi 0, %s111
    %s115 = sphi 0, %s114
    %s131 = sphi 0, %s115
  $region4: #{custom_unet_generator.9} parent=0 // loop_header_branch
    %13 = sbr.rel (%p11) target = $region8
  $region5: #{custom_unet_generator.9} parent=0 // loop_body
    %s15 = ssub.s32 %s10, 1
    %s16 = ssub.s32 %s10, 2
    %s23 = sadd.s32 1, %s18
    %p24 = scmp.ge.s32.totalorder %s23, 1
    %s25 = scalar_select %p24, 0, %s23
    %s26 = sadd.s32 1, %s17
    %s27 = scalar_select %p24, %s26, %s17
    %p28 = scmp.ge.s32.totalorder %s27, 2
    %s29 = scalar_select %p28, 0, %s27
    %s30 = ssub.s32 %s17, %s29
    %s31 = ssub.s32 %s18, %s25
    %s32 = sor.u32 %s30, %s31
    %p33 = scmp.eq.s32.totalorder %s32, 0
    %s35 = sadd.s32 %s34, 1
    %s36 = scalar_select %p33, %s34, %s35
    %p39 = pneg %p33
    %p40 = scmp.eq.s32.totalorder %s10, 1
    %p41 = por %p39, %p40
    %p42 = scmp.ne.s32.totalorder %s34, %s37
    %p43 = scmp.eq.s32.totalorder %s10, 0
    %p44 = por %p42, %p43
    %p45 = scmp.ne.s32.totalorder %s34, %s37
    %p46 = scmp.eq.s32.totalorder %s15, 1
    %p47 = por %p45, %p46
    %p48 = scmp.ne.s32.totalorder %s37, %s38
    %p49 = scmp.eq.s32.totalorder %s15, 0
    %p50 = por %p48, %p49
    %p51 = scmp.ne.s32.totalorder %s37, %s38
    %p52 = scmp.eq.s32.totalorder %s16, 1
    %p53 = por %p51, %p52
    %p55 = scmp.ne.s32.totalorder %s38, %s54
    %p56 = scmp.eq.s32.totalorder %s16, 0
    %p57 = por %p55, %p56
    %s59 = sadd.s32 %s58, 1
    %p62 = scmp.eq.s32.totalorder %s10, 1
    %p63 = scmp.ne.s32.totalorder %s58, %s60
    %p64 = scmp.eq.s32.totalorder %s10, 0
    %p65 = por %p63, %p64
    %p66 = scmp.ne.s32.totalorder %s58, %s60
    %p67 = scmp.eq.s32.totalorder %s15, 1
    %p68 = por %p66, %p67
    %p69 = scmp.ne.s32.totalorder %s60, %s61
    %p70 = scmp.eq.s32.totalorder %s15, 0
    %p71 = por %p69, %p70
    %p72 = scmp.ne.s32.totalorder %s60, %s61
    %p73 = scmp.eq.s32.totalorder %s16, 1
    %p74 = por %p72, %p73
    %p76 = scmp.ne.s32.totalorder %s61, %s75
    %p77 = scmp.eq.s32.totalorder %s16, 0
    %p78 = por %p76, %p77
    %s79 = ssub.s32 %s17, %s29
    %s80 = ssub.s32 %s18, %s25
    %s81 = sor.u32 %s79, %s80
    %p82 = scmp.eq.s32.totalorder %s81, 0
    %s84 = sadd.s32 %s83, 1
    %s85 = scalar_select %p82, %s83, %s84
    %p88 = pneg %p82
    %p89 = scmp.eq.s32.totalorder %s10, 1
    %p90 = por %p88, %p89
    %p91 = scmp.ne.s32.totalorder %s83, %s86
    %p92 = scmp.eq.s32.totalorder %s10, 0
    %p93 = por %p91, %p92
    %p94 = scmp.ne.s32.totalorder %s83, %s86
    %p95 = scmp.eq.s32.totalorder %s15, 1
    %p96 = por %p94, %p95
    %p97 = scmp.ne.s32.totalorder %s86, %s87
    %p98 = scmp.eq.s32.totalorder %s15, 0
    %p99 = por %p97, %p98
    %p100 = scmp.ne.s32.totalorder %s86, %s87
    %p101 = scmp.eq.s32.totalorder %s16, 1
    %p102 = por %p100, %p101
    %p104 = scmp.ne.s32.totalorder %s87, %s103
    %p105 = scmp.eq.s32.totalorder %s16, 0
    %p106 = por %p104, %p105
    %s107 = ssub.s32 %s17, %s29
    %s108 = ssub.s32 %s18, %s25
    %s109 = sor.u32 %s107, %s108
    %p110 = scmp.eq.s32.totalorder %s109, 0
    %s112 = sadd.s32 %s111, 1
    %s113 = scalar_select %p110, %s111, %s112
    %p116 = pneg %p110
    %p117 = scmp.eq.s32.totalorder %s10, 1
    %p118 = por %p116, %p117
    %p119 = scmp.ne.s32.totalorder %s111, %s114
    %p120 = scmp.eq.s32.totalorder %s10, 0
    %p121 = por %p119, %p120
    %p122 = scmp.ne.s32.totalorder %s111, %s114
    %p123 = scmp.eq.s32.totalorder %s15, 1
    %p124 = por %p122, %p123
    %p125 = scmp.ne.s32.totalorder %s114, %s115
    %p126 = scmp.eq.s32.totalorder %s15, 0
    %p127 = por %p125, %p126
    %p128 = scmp.ne.s32.totalorder %s114, %s115
    %p129 = scmp.eq.s32.totalorder %s16, 1
    %p130 = por %p128, %p129
    %p132 = scmp.ne.s32.totalorder %s115, %s131
    %p133 = scmp.eq.s32.totalorder %s16, 0
    %p134 = por %p132, %p133
    %p135 = scmp.le.s32.totalorder 1, %s10
    %p136 = scmp.lt.s32.totalorder %s10, 3
    %p137 = pnand %p135, %p136
    %p138 = pneg %p137
    // Predicated region
    $region9: #{custom_unet_generator.9} parent=5 // pred_check
      _
    $region10: #{custom_unet_generator.9} parent=5 // pred_check_branch
      %140 = sbr.rel (%p137) target = $region12
    $region11: #{custom_unet_generator.9} parent=5 // pred_region
      %s141 = ssub.s32 %s10, 1
      // Predicated region
      $region13: #{custom_unet_generator.9} parent=11 // pred_check
        %p142 = pneg %p71
      $region14: #{custom_unet_generator.9} parent=11 // pred_check_branch
        %144 = sbr.rel (%p142) target = $region16
      $region15: #{custom_unet_generator.9} parent=11 // pred_region
        _
      $region16: #{custom_unet_generator.9} parent=11 // pred_fallthru
        _
    $region12: #{custom_unet_generator.9} parent=5 // pred_fallthru
      _
    %p145 = scmp.lt.s32.totalorder %s10, 2
    // Predicated region
    $region17: #{custom_unet_generator.9} parent=5 // pred_check
      %p146 = pneg %p145
    $region18: #{custom_unet_generator.9} parent=5 // pred_check_branch
      %148 = sbr.rel (%p146) target = $region20
    $region19: #{custom_unet_generator.9} parent=5 // pred_region
      // Predicated region
      $region21: #{custom_unet_generator.9} parent=19 // pred_check
        %p149 = pneg %p44
      $region22: #{custom_unet_generator.9} parent=19 // pred_check_branch
        %151 = sbr.rel (%p149) target = $region24
      $region23: #{custom_unet_generator.9} parent=19 // pred_region
        %p152 = scmp.lt.s32.totalorder %s17, 1
        %s153 = scalar_select %p152, %s17, 1
        %p154 = scmp.lt.s32.totalorder %s18, 0
        %s155 = scalar_select %p154, %s18, 0
        %s156 = smul.addr %s155, 18
        %s157 = smul.addr %s153, 18
        %s158 = sadd.s32 %s156, %s157
        %s159 = smul.addr %s158, 4
        %s160 = scalar_lea.vmem %s0, %s159
      $region24: #{custom_unet_generator.9} parent=19 // pred_fallthru
        _
    $region20: #{custom_unet_generator.9} parent=5 // pred_fallthru
      _
    %p161 = scmp.le.s32.totalorder 1, %s10
    %p162 = scmp.lt.s32.totalorder %s10, 3
    %p163 = pnand %p161, %p162
    %p164 = pneg %p163
    // Predicated region
    $region25: #{custom_unet_generator.9} parent=5 // pred_check
      _
    $region26: #{custom_unet_generator.9} parent=5 // pred_check_branch
      %166 = sbr.rel (%p163) target = $region28
    $region27: #{custom_unet_generator.9} parent=5 // pred_region
      %s167 = ssub.s32 %s10, 1
      %p168 = scmp.lt.s32.totalorder %s19, 1
      %s169 = scalar_select %p168, %s19, 1
      %p170 = scmp.lt.s32.totalorder %s20, 0
      %s171 = scalar_select %p170, %s20, 0
      %s172 = smul.addr %s171, 18
      %s173 = smul.addr %s169, 18
      %s174 = sadd.s32 %s172, %s173
      %s175 = smul.addr %s174, 4
      %s176 = scalar_lea.vmem %s0, %s175
      %p177 = pneg %p50
      %p178 = pneg %p47
      %p179 = pneg %p71
      %p180 = pneg %p68
      %p181 = pneg %p99
      %p182 = pneg %p96
      %s183 = smul.u32 8, %s20
      %p184 = scmp.lt.s32.totalorder %s19, 1
      %s185 = scalar_select %p184, %s19, 1
      %p186 = scmp.lt.s32.totalorder %s183, 7
      %s187 = scalar_select %p186, %s183, 7
      %s188 = smul.addr %s185, 8
      %s189 = sadd.s32 %s187, %s188
      %s190 = smul.addr %s189, 4
      %s191 = scalar_lea.vmem %s2, %s190
      %p192 = pneg %p127
      %p193 = pneg %p124
      %p194 = scmp.lt.s32.totalorder %s19, 1
      %s195 = scalar_select %p194, %s19, 1
      %p196 = scmp.lt.s32.totalorder %s20, 0
      %s197 = scalar_select %p196, %s20, 0
      %s198 = sadd.s32 %s197, %s195
      %s199 = smul.addr %s198, 2
      %s200 = scalar_lea.vmem %s3, %s199
      %p201 = scmp.lt.s32.totalorder %s19, 1
      %s202 = scalar_select %p201, %s19, 1
      %p203 = scmp.lt.s32.totalorder %s20, 0
      %s204 = scalar_select %p203, %s20, 0
      %s205 = smul.addr %s204, 18
      %s206 = smul.addr %s202, 18
      %s207 = sadd.s32 %s205, %s206
      %s208 = smul.addr %s207, 4
      %s209 = scalar_lea.vmem %s0, %s208
      %s210 = smul.u32 8, %s20
      %p211 = scmp.lt.s32.totalorder %s19, 1
      %s212 = scalar_select %p211, %s19, 1
      %p213 = scmp.lt.s32.totalorder %s210, 7
      %s214 = scalar_select %p213, %s210, 7
      %s215 = smul.addr %s212, 8
      %s216 = sadd.s32 %s214, %s215
      %s217 = smul.addr %s216, 4
      %s218 = scalar_lea.vmem %s2, %s217
      %s219 = smul.u32 8, %s20
      %p220 = scmp.lt.s32.totalorder %s19, 1
      %s221 = scalar_select %p220, %s19, 1
      %p222 = scmp.lt.s32.totalorder %s20, 0
      %s223 = scalar_select %p222, %s20, 0
      %s224 = sadd.s32 %s223, %s221
      %s225 = smul.addr %s224, 2
      %s226 = scalar_lea.vmem %s3, %s225
      %v228 = vld [vmem:[%s1] sm:$0xf]
      %v229 = vld [vmem:[%s1 + $0x4] sm:$0xf]
      %v230 = vld [vmem:[%s1 + $0x8] sm:$0xf]
      %v231 = vld [vmem:[%s1 + $0xc] sm:$0xf]
      %v232 = vld [vmem:[%s1 + $0x10] sm:$0xf]
      %v233 = vld [vmem:[%s1 + $0x14] sm:$0xf]
      %v234 = vld [vmem:[%s1 + $0x18] sm:$0xf]
      %v235 = vld [vmem:[%s1 + $0x1c] sm:$0xf]
      %v236 = vld [vmem:[%s1 + $0x20] sm:$0xf]
      %v237 = vld [vmem:[%s1 + $0x24] sm:$0xf]
      %v238 = vld [vmem:[%s1 + $0x28] sm:$0xf]
      %v239 = vld [vmem:[%s1 + $0x2c] sm:$0xf]
      %v240 = vld [vmem:[%s1 + $0x30] sm:$0xf]
      %v241 = vld [vmem:[%s1 + $0x34] sm:$0xf]
      %v242 = vld [vmem:[%s1 + $0x38] sm:$0xf]
      %v243 = vld [vmem:[%s1 + $0x3c] sm:$0xf]
      loop: start=0, step=1, limit=8
      $region29: #{custom_unet_generator.9} parent=27 // loop_pre_header
        _
      $region30: #{custom_unet_generator.9} parent=27 // loop_header
        %s245 = sphi 0, %s249
        %p246 = scmp.ge.s32.totalorder %s245, 8
        %v250 = vphi 0.0, %v406
        %v251 = vphi 0.0, %v415
      $region31: #{custom_unet_generator.9} parent=27 // loop_header_branch
        %248 = sbr.rel (%p246) target = $region35
      $region32: #{custom_unet_generator.9} parent=27 // loop_body
        %s252 = smul.u32 %s245, 2
        %s253 = smul.addr %s252, 4
        %s254 = scalar_lea.vmem %s209, %s253
        %v255 = vld [vmem:[%s254] sm:$0xf]
        %v256 = vld [vmem:[%s254 + $0x4] sm:$0x1]
        %s257 = sadd.s32 %s245, 1
        %s258 = smul.u32 %s257, 2
        %s259 = smul.addr %s258, 4
        %s260 = scalar_lea.vmem %s209, %s259
        %v261 = vld [vmem:[%s260] sm:$0xf]
        %v262 = vld [vmem:[%s260 + $0x4] sm:$0x1]
        %v265 = vunpack.c.l.b16 %v255
        %v266 = vunpack.c.l.b16 %v256
        %v267 = vpack.c.b16 %v266, %v265
        %v269 = vshrl.u32 %v267, 16
        %v271 = vshll.u32 %v267, 16
        %v273 = vrot.slane %v271, 1
        %v274 = vor.u32 %v269, %v273
        %275 = vrot.lane.b32.xlu0 %v274, 32
        %v276 = vpop.permute.xlu0 %275
        %v278 = vunpack.c.l.b16 %v261
        %v279 = vpack.c.b16 %v278, %v278
        %280 = vrot.lane.b32.xlu0 %v279, 64
        %v281 = vpop.permute.xlu0 %280
        %v283 = vunpack.c.l.b16 %v262
        %v284 = vpack.c.b16 %v283, %v278
        %v286 = vshrl.u32 %v284, 16
        %v288 = vshll.u32 %v284, 16
        %v290 = vrot.slane %v288, 1
        %v291 = vor.u32 %v286, %v290
        %292 = vrot.lane.b32.xlu0 %v291, 96
        %v293 = vpop.permute.xlu0 %292
        %vm294 = vcmask 261120
        %v297 = vsel %vm294, %v255, %v276
        %vm298 = vcmask 523264
        %v300 = vsel %vm298, %v297, %v281
        %vm301 = vcmask 785408
        %v303 = vsel %vm301, %v300, %v293
        %v321 = vunpack.c.l.b16 %v228
        %v322 = vunpack.c.l.b16 %v229
        %v323 = vunpack.c.l.b16 %v230
        %v324 = vunpack.c.l.b16 %v231
        %v325 = vunpack.c.l.b16 %v232
        %v326 = vunpack.c.l.b16 %v233
        %v327 = vunpack.c.l.b16 %v234
        %v328 = vunpack.c.l.b16 %v235
        %v329 = vunpack.c.l.b16 %v236
        %v330 = vunpack.c.l.b16 %v237
        %v331 = vunpack.c.l.b16 %v238
        %v332 = vunpack.c.l.b16 %v239
        %v333 = vunpack.c.l.b16 %v240
        %v334 = vunpack.c.l.b16 %v241
        %v335 = vunpack.c.l.b16 %v242
        %v336 = vunpack.c.l.b16 %v243
        %v337 = vpack.c.b16 %v322, %v321
        %v338 = vpack.c.b16 %v324, %v323
        %v339 = vpack.c.b16 %v326, %v325
        %v340 = vpack.c.b16 %v328, %v327
        %v341 = vpack.c.b16 %v330, %v329
        %v342 = vpack.c.b16 %v332, %v331
        %v343 = vpack.c.b16 %v334, %v333
        %v344 = vpack.c.b16 %v336, %v335
        %353 = vmatprep.subr.bf16.mxu0 0
        %354 = vmatpush1.bf16.msra.mxu0 %v337
        %355 = vmatprep.subr.bf16.mxu0 0
        %356 = vmatpush1.bf16.msra.mxu0 %v338
        %357 = vmatprep.subr.bf16.mxu0 0
        %358 = vmatpush1.bf16.msra.mxu0 %v339
        %359 = vmatprep.subr.bf16.mxu0 0
        %360 = vmatpush1.bf16.msra.mxu0 %v340
        %361 = vmatprep.subr.bf16.mxu0 0
        %362 = vmatpush1.bf16.msra.mxu0 %v341
        %363 = vmatprep.subr.bf16.mxu0 0
        %364 = vmatpush1.bf16.msra.mxu0 %v342
        %365 = vmatprep.subr.bf16.mxu0 0
        %366 = vmatpush1.bf16.msra.mxu0 %v343
        %367 = vmatprep.subr.bf16.mxu0 0
        %368 = vmatpush1.bf16.msra.mxu0 %v344
        %369 = vmatprep.subr.bf16.mxu0 0
        %370 = vmatpush1.bf16.msra.mxu0 0
        %371 = vmatprep.subr.bf16.mxu0 0
        %372 = vmatpush1.bf16.msra.mxu0 0
        %373 = vmatprep.subr.bf16.mxu0 0
        %374 = vmatpush1.bf16.msra.mxu0 0
        %375 = vmatprep.subr.bf16.mxu0 0
        %376 = vmatpush1.bf16.msra.mxu0 0
        %377 = vmatprep.subr.bf16.mxu0 0
        %378 = vmatpush1.bf16.msra.mxu0 0
        %379 = vmatprep.subr.bf16.mxu0 0
        %380 = vmatpush1.bf16.msra.mxu0 0
        %381 = vmatprep.subr.bf16.mxu0 0
        %382 = vmatpush1.bf16.msra.mxu0 0
        %383 = vmatprep.subr.bf16.mxu0 0
        %384 = vmatpush1.bf16.msra.mxu0 0
        %385 = vmatprep.mubr.bf16.mxu0 0
        %386 = vmatmul.mubr.bf16.gmra.mrb[0].mxu0 %v303
        %v387 = vpop.f32.mrb[0].mxu0
        %v388 = vadd.f32 0.0, %v387
        %v389 = vpop.f32.mrb[0].mxu0
        %v390 = vpop.f32.mrb[0].mxu0
        %v391 = vpop.f32.mrb[0].mxu0
        %392 = vdwg.mxu0
        %v393 = vpack.c.bf16 %v388, %v388
        %s394 = smul.addr %s245, 4
        %s395 = scalar_lea.vmem %s218, %s394
        %vm396 = vcmask 125952
        %397 = vst.msk [vmem:[%s395] sm:$0xf] %vm396, %v393
        %vm398 = vcmask 130048
        %v399 = vsel %vm398, %v388, 0.0
        %v400 = vrot.slane %v399, 4
        %v401 = vadd.f32 %v399, %v400
        %v402 = vrot.slane %v401, 2
        %v403 = vadd.f32 %v401, %v402
        %v404 = vrot.slane %v403, 1
        %v405 = vadd.f32 %v403, %v404
        %v406 = vadd.f32 %v250, %v405
        %v407 = vmul.f32 %v388, %v388
        %v408 = vsel %vm398, %v407, 0.0
        %v409 = vrot.slane %v408, 4
        %v410 = vadd.f32 %v408, %v409
        %v411 = vrot.slane %v410, 2
        %v412 = vadd.f32 %v410, %v411
        %v413 = vrot.slane %v412, 1
        %v414 = vadd.f32 %v412, %v413
        %v415 = vadd.f32 %v251, %v414
      $region33: #{custom_unet_generator.9} parent=27 // loop_footer
        %s249 = sadd.s32 1, %s245
      $region34: #{custom_unet_generator.9} parent=27 // loop_footer_branch
        %244 = sbr.rel target = $region30
      $region35: #{custom_unet_generator.9} parent=27 // loop_exit
        _
      %vm416 = vcmask 1040384
      %v417 = vsel %vm416, %v250, %v251
      %vm418 = vcmask 123904
      %419 = vst.msk [vmem:[%s226] sm:$0x3] %vm418, %v417
      %s420 = smul.u32 8, %s20
      %p421 = scmp.lt.s32.totalorder %s19, 1
      %s422 = scalar_select %p421, %s19, 1
      %p423 = scmp.lt.s32.totalorder %s420, 7
      %s424 = scalar_select %p423, %s420, 7
      %s425 = smul.addr %s422, 8
      %s426 = sadd.s32 %s424, %s425
      %s427 = smul.addr %s426, 4
      %s428 = scalar_lea.vmem %s2, %s427
      %p429 = scmp.lt.s32.totalorder %s19, 1
      %s430 = scalar_select %p429, %s19, 1
      %p431 = scmp.lt.s32.totalorder %s20, 0
      %s432 = scalar_select %p431, %s20, 0
      %s433 = sadd.s32 %s432, %s430
      %s434 = smul.addr %s433, 2
      %s435 = scalar_lea.vmem %s3, %s434
      // Predicated region
      $region36: #{custom_unet_generator.9} parent=27 // pred_check
        %p436 = pneg %p96
      $region37: #{custom_unet_generator.9} parent=27 // pred_check_branch
        %438 = sbr.rel (%p436) target = $region39
      $region38: #{custom_unet_generator.9} parent=27 // pred_region
        %s439 = smul.u32 8, %s20
      $region39: #{custom_unet_generator.9} parent=27 // pred_fallthru
        _
      // Predicated region
      $region40: #{custom_unet_generator.9} parent=27 // pred_check
        %p440 = pneg %p124
      $region41: #{custom_unet_generator.9} parent=27 // pred_check_branch
        %442 = sbr.rel (%p440) target = $region43
      $region42: #{custom_unet_generator.9} parent=27 // pred_region
        _
      $region43: #{custom_unet_generator.9} parent=27 // pred_fallthru
        _
    $region28: #{custom_unet_generator.9} parent=5 // pred_fallthru
      _
    %p443 = scmp.le.s32.totalorder 2, %s10
    // Predicated region
    $region44: #{custom_unet_generator.9} parent=5 // pred_check
      %p444 = pneg %p443
    $region45: #{custom_unet_generator.9} parent=5 // pred_check_branch
      %446 = sbr.rel (%p444) target = $region47
    $region46: #{custom_unet_generator.9} parent=5 // pred_region
      %s447 = ssub.s32 %s10, 2
      // Predicated region
      $region48: #{custom_unet_generator.9} parent=46 // pred_check
        %p448 = pneg %p102
      $region49: #{custom_unet_generator.9} parent=46 // pred_check_branch
        %450 = sbr.rel (%p448) target = $region51
      $region50: #{custom_unet_generator.9} parent=46 // pred_region
        %s451 = smul.u32 8, %s22
        %p452 = scmp.lt.s32.totalorder %s21, 1
        %s453 = scalar_select %p452, %s21, 1
        %p454 = scmp.lt.s32.totalorder %s451, 7
        %s455 = scalar_select %p454, %s451, 7
        %s456 = smul.addr %s453, 8
        %s457 = sadd.s32 %s455, %s456
        %s458 = smul.addr %s457, 4
        %s459 = scalar_lea.vmem %s2, %s458
      $region51: #{custom_unet_generator.9} parent=46 // pred_fallthru
        _
      // Predicated region
      $region52: #{custom_unet_generator.9} parent=46 // pred_check
        %p460 = pneg %p130
      $region53: #{custom_unet_generator.9} parent=46 // pred_check_branch
        %462 = sbr.rel (%p460) target = $region55
      $region54: #{custom_unet_generator.9} parent=46 // pred_region
        %p463 = scmp.lt.s32.totalorder %s21, 1
        %s464 = scalar_select %p463, %s21, 1
        %p465 = scmp.lt.s32.totalorder %s22, 0
        %s466 = scalar_select %p465, %s22, 0
        %s467 = sadd.s32 %s466, %s464
        %s468 = smul.addr %s467, 2
        %s469 = scalar_lea.vmem %s3, %s468
      $region55: #{custom_unet_generator.9} parent=46 // pred_fallthru
        _
    $region47: #{custom_unet_generator.9} parent=5 // pred_fallthru
      _
  $region6: #{custom_unet_generator.9} parent=0 // loop_footer
    %s14 = sadd.s32 1, %s10
  $region7: #{custom_unet_generator.9} parent=0 // loop_footer_branch
    %9 = sbr.rel target = $region3
  $region8: #{custom_unet_generator.9} parent=0 // loop_exit
    _

// kernel: custom_unet_generator.11
$region0: #{custom_unet_generator.11}
  #allocation0 [shape = 'u32[]', space=smem, size = 0x4, offset = 0x4, fixed_abs, tag = 'smem constant byte address 0x4 - core index']
  #allocation1 [shape = 'u32[144,128]{1,0:T(1,128)}', space=vmem, size = 0x12000, scoped, tag = 'internal scratch']
  %s0 = inlined_call_operand.vmem [shape: f32[1,32], index: 0, kind: input, shape index: {}]
  %s1 = inlined_call_operand.vmem [shape: f32[1,32], index: 1, kind: input, shape index: {}]
  %s2 = inlined_call_operand.vmem [shape: bf16[32,32], index: 2, kind: input, shape index: {}]
  %s3 = inlined_call_operand.vmem [shape: bf16[32,32], index: 3, kind: input, shape index: {}]
  %s4 = inlined_call_operand.vmem [shape: f32[1,32], index: 4, kind: input, shape index: {}]
  %s5 = inlined_call_operand.vmem [shape: bf16[32,32], index: 5, kind: output, shape index: {}]
  %s6 = sld [smem:[#allocation0]]
  $region30: #{custom_unet_generator.11} parent=0
    _
  %s8 = ssub.s32 1, %s6
  %s9 = scalar_select 0, %s8, %s6
  // Predicated region
  $region2: #{custom_unet_generator.11} parent=0 // pred_check
    _
  $region3: #{custom_unet_generator.11} parent=0 // pred_check_branch
    %11 = sbr.rel (0) target = $region5
  $region4: #{custom_unet_generator.11} parent=0 // pred_region
    _
  $region5: #{custom_unet_generator.11} parent=0 // pred_fallthru
    _
  // Predicated region
  $region6: #{custom_unet_generator.11} parent=0 // pred_check
    _
  $region7: #{custom_unet_generator.11} parent=0 // pred_check_branch
    %13 = sbr.rel (0) target = $region9
  $region8: #{custom_unet_generator.11} parent=0 // pred_region
    _
  $region9: #{custom_unet_generator.11} parent=0 // pred_fallthru
    _
  // Predicated region
  $region10: #{custom_unet_generator.11} parent=0 // pred_check
    _
  $region11: #{custom_unet_generator.11} parent=0 // pred_check_branch
    %15 = sbr.rel (0) target = $region13
  $region12: #{custom_unet_generator.11} parent=0 // pred_region
    _
  $region13: #{custom_unet_generator.11} parent=0 // pred_fallthru
    _
  // Predicated region
  $region14: #{custom_unet_generator.11} parent=0 // pred_check
    _
  $region15: #{custom_unet_generator.11} parent=0 // pred_check_branch
    %17 = sbr.rel (0) target = $region17
  $region16: #{custom_unet_generator.11} parent=0 // pred_region
    _
  $region17: #{custom_unet_generator.11} parent=0 // pred_fallthru
    _
  // Predicated region
  $region18: #{custom_unet_generator.11} parent=0 // pred_check
    _
  $region19: #{custom_unet_generator.11} parent=0 // pred_check_branch
    %19 = sbr.rel (0) target = $region21
  $region20: #{custom_unet_generator.11} parent=0 // pred_region
    _
  $region21: #{custom_unet_generator.11} parent=0 // pred_fallthru
    _
  %v21 = vld [vmem:[%s2] sm:$0xf]
  %v22 = vld [vmem:[%s2 + $0x4] sm:$0xf]
  %v23 = vld [vmem:[%s2 + $0x8] sm:$0xf]
  %v24 = vld [vmem:[%s2 + $0xc] sm:$0xf]
  %v25 = vunpack.c.l.bf16 %v21
  %v26 = vunpack.c.l.bf16 %v22
  %v27 = vunpack.c.l.bf16 %v23
  %v28 = vunpack.c.l.bf16 %v24
  %v29 = vld [vmem:[%s0] sm:$0x1]
  %v31 = vlaneseq
  %v32 = vshrl.u32 %v31, 7
  %v33 = vsub.s32 0, %v32
  %v34 = vrot.slane %v29, %v33
  %v36 = vmul.f32 %v25, %v34
  %v37 = vmul.f32 %v26, %v34
  %v38 = vmul.f32 %v27, %v34
  %v39 = vmul.f32 %v28, %v34
  %v40 = vld [vmem:[%s1] sm:$0x1]
  %v42 = vlaneseq
  %v43 = vshrl.u32 %v42, 7
  %v44 = vsub.s32 0, %v43
  %v45 = vrot.slane %v40, %v44
  %v47 = vadd.f32 %v36, %v45
  %v48 = vadd.f32 %v37, %v45
  %v49 = vadd.f32 %v38, %v45
  %v50 = vadd.f32 %v39, %v45
  %vm51 = vcmp.gt.f32.partialorder %v47, 0.0
  %vm52 = vcmp.gt.f32.partialorder %v48, 0.0
  %vm53 = vcmp.gt.f32.partialorder %v49, 0.0
  %vm54 = vcmp.gt.f32.partialorder %v50, 0.0
  %v55 = vmul.f32 %v47, 0.2
  %v56 = vmul.f32 %v48, 0.2
  %v57 = vmul.f32 %v49, 0.2
  %v58 = vmul.f32 %v50, 0.2
  %v59 = vsel %vm51, %v47, %v55
  %v60 = vsel %vm52, %v48, %v56
  %v61 = vsel %vm53, %v49, %v57
  %v62 = vsel %vm54, %v50, %v58
  %v63 = vpack.c.bf16 %v60, %v59
  %v64 = vpack.c.bf16 %v62, %v61
  %v65 = vld [vmem:[%s3] sm:$0xf]
  %v66 = vld [vmem:[%s3 + $0x4] sm:$0xf]
  %v67 = vld [vmem:[%s3 + $0x8] sm:$0xf]
  %v68 = vld [vmem:[%s3 + $0xc] sm:$0xf]
  %v69 = vld [vmem:[%s4] sm:$0x1]
  %v71 = vlaneseq
  %v72 = vshrl.u32 %v71, 7
  %v73 = vsub.s32 0, %v72
  %v74 = vrot.slane %v69, %v73
  %v80 = vunpack.c.l.b16 %v65
  %v81 = vunpack.c.l.b16 %v66
  %v82 = vunpack.c.l.b16 %v67
  %v83 = vunpack.c.l.b16 %v68
  %v84 = vpack.c.b16 %v81, %v80
  %v85 = vpack.c.b16 %v83, %v82
  %vm88 = vcmask 261120
  %v90 = vsel %vm88, %v63, 0
  %v93 = vsel %vm88, %v64, 0
  %95 = vmatprep.subr.bf16.mxu0 0
  %96 = vmatpush1.bf16.msra.mxu0 %v84
  %97 = vmatprep.subr.bf16.mxu0 0
  %98 = vmatpush1.bf16.msra.mxu0 %v85
  %99 = vmatprep.subr.bf16.mxu0 0
  %100 = vmatpush1.bf16.msra.mxu0 0
  %101 = vmatprep.subr.bf16.mxu0 0
  %102 = vmatpush1.bf16.msra.mxu0 0
  %103 = vmatprep.subr.bf16.mxu0 0
  %104 = vmatpush1.bf16.msra.mxu0 0
  %105 = vmatprep.subr.bf16.mxu0 0
  %106 = vmatpush1.bf16.msra.mxu0 0
  %107 = vmatprep.subr.bf16.mxu0 0
  %108 = vmatpush1.bf16.msra.mxu0 0
  %109 = vmatprep.subr.bf16.mxu0 0
  %110 = vmatpush1.bf16.msra.mxu0 0
  %111 = vmatprep.subr.bf16.mxu0 0
  %112 = vmatpush1.bf16.msra.mxu0 0
  %113 = vmatprep.subr.bf16.mxu0 0
  %114 = vmatpush1.bf16.msra.mxu0 0
  %115 = vmatprep.subr.bf16.mxu0 0
  %116 = vmatpush1.bf16.msra.mxu0 0
  %117 = vmatprep.subr.bf16.mxu0 0
  %118 = vmatpush1.bf16.msra.mxu0 0
  %119 = vmatprep.subr.bf16.mxu0 0
  %120 = vmatpush1.bf16.msra.mxu0 0
  %121 = vmatprep.subr.bf16.mxu0 0
  %122 = vmatpush1.bf16.msra.mxu0 0
  %123 = vmatprep.subr.bf16.mxu0 0
  %124 = vmatpush1.bf16.msra.mxu0 0
  %125 = vmatprep.subr.bf16.mxu0 0
  %126 = vmatpush1.bf16.msra.mxu0 0
  %127 = vmatprep.mubr.bf16.mxu0 0
  %128 = vmatmul.mubr.bf16.gmra.mrb[0].mxu0 %v90
  %v129 = vpop.f32.mrb[0].mxu0
  %v130 = vadd.f32 %v74, %v129
  %v131 = vpop.f32.mrb[0].mxu0
  %v132 = vpop.f32.mrb[0].mxu0
  %v133 = vadd.f32 %v74, %v132
  %v134 = vpop.f32.mrb[0].mxu0
  %135 = vmatprep.mubr.bf16.mxu0 0
  %136 = vmatmul.mubr.bf16.gmra.mrb[0].mxu0 %v93
  %v137 = vpop.f32.mrb[0].mxu0
  %v138 = vadd.f32 %v74, %v137
  %v139 = vpop.f32.mrb[0].mxu0
  %v140 = vpop.f32.mrb[0].mxu0
  %v141 = vadd.f32 %v74, %v140
  %v142 = vpop.f32.mrb[0].mxu0
  %143 = vdwg.mxu0
  %v144 = vpack.c.bf16 %v133, %v130
  %v145 = vpack.c.bf16 %v141, %v138
  %v148 = vunpack.c.l.b16 %v144
  %v149 = vunpack.c.h.b16 %v144
  %v150 = vunpack.c.l.b16 %v145
  %v151 = vunpack.c.h.b16 %v145
  %v152 = vpack.c.b16 %v148, %v148
  %v153 = vpack.c.b16 %v149, %v149
  %v154 = vpack.c.b16 %v150, %v150
  %v155 = vpack.c.b16 %v151, %v151
  %vm160 = vcmask 257024
  %161 = vst.msk [vmem:[%s5] sm:$0xf] %vm160, %v152
  %162 = vst.msk [vmem:[%s5 + $0x4] sm:$0xf] %vm160, %v153
  %163 = vst.msk [vmem:[%s5 + $0x8] sm:$0xf] %vm160, %v154
  %164 = vst.msk [vmem:[%s5 + $0xc] sm:$0xf] %vm160, %v155
  // Predicated region
  $region22: #{custom_unet_generator.11} parent=0 // pred_check
    _
  $region23: #{custom_unet_generator.11} parent=0 // pred_check_branch
    %166 = sbr.rel (0) target = $region25
  $region24: #{custom_unet_generator.11} parent=0 // pred_region
    _
  $region25: #{custom_unet_generator.11} parent=0 // pred_fallthru
    _
  // Predicated region
  $region26: #{custom_unet_generator.11} parent=0 // pred_check
    _
  $region27: #{custom_unet_generator.11} parent=0 // pred_check_branch
    %168 = sbr.rel (0) target = $region29
  $region28: #{custom_unet_generator.11} parent=0 // pred_region
    _
  $region29: #{custom_unet_generator.11} parent=0 // pred_fallthru
    _

// kernel: custom_unet_generator.12
$region0: #{custom_unet_generator.12}
  #allocation0 [shape = 'u32[]', space=smem, size = 0x4, offset = 0x4, fixed_abs, tag = 'smem constant byte address 0x4 - core index']
  #allocation1 [shape = 'u32[144,128]{1,0:T(1,128)}', space=vmem, size = 0x12000, scoped, tag = 'internal scratch']
  %s0 = inlined_call_operand.vmem [shape: f32[1,32], index: 0, kind: input, shape index: {}]
  %s1 = inlined_call_operand.vmem [shape: f32[1,32], index: 1, kind: input, shape index: {}]
  %s2 = inlined_call_operand.vmem [shape: bf16[32,32], index: 2, kind: input, shape index: {}]
  %s3 = inlined_call_operand.vmem [shape: bf16[32,32], index: 3, kind: input, shape index: {}]
  %s4 = inlined_call_operand.vmem [shape: f32[1,32], index: 4, kind: input, shape index: {}]
  %s5 = inlined_call_operand.vmem [shape: bf16[32,32], index: 5, kind: output, shape index: {0}]
  %s6 = inlined_call_operand.vmem [shape: f32[1,2,32], index: 6, kind: output, shape index: {1}]
  %7 = xla_tuple %s5, %s6
  %s8 = sld [smem:[#allocation0]]
  $region38: #{custom_unet_generator.12} parent=0
    _
  %s10 = ssub.s32 1, %s8
  %s11 = scalar_select 0, %s10, %s8
  // Predicated region
  $region2: #{custom_unet_generator.12} parent=0 // pred_check
    _
  $region3: #{custom_unet_generator.12} parent=0 // pred_check_branch
    %13 = sbr.rel (0) target = $region5
  $region4: #{custom_unet_generator.12} parent=0 // pred_region
    _
  $region5: #{custom_unet_generator.12} parent=0 // pred_fallthru
    _
  // Predicated region
  $region6: #{custom_unet_generator.12} parent=0 // pred_check
    _
  $region7: #{custom_unet_generator.12} parent=0 // pred_check_branch
    %15 = sbr.rel (0) target = $region9
  $region8: #{custom_unet_generator.12} parent=0 // pred_region
    _
  $region9: #{custom_unet_generator.12} parent=0 // pred_fallthru
    _
  // Predicated region
  $region10: #{custom_unet_generator.12} parent=0 // pred_check
    _
  $region11: #{custom_unet_generator.12} parent=0 // pred_check_branch
    %17 = sbr.rel (0) target = $region13
  $region12: #{custom_unet_generator.12} parent=0 // pred_region
    _
  $region13: #{custom_unet_generator.12} parent=0 // pred_fallthru
    _
  // Predicated region
  $region14: #{custom_unet_generator.12} parent=0 // pred_check
    _
  $region15: #{custom_unet_generator.12} parent=0 // pred_check_branch
    %19 = sbr.rel (0) target = $region17
  $region16: #{custom_unet_generator.12} parent=0 // pred_region
    _
  $region17: #{custom_unet_generator.12} parent=0 // pred_fallthru
    _
  // Predicated region
  $region18: #{custom_unet_generator.12} parent=0 // pred_check
    _
  $region19: #{custom_unet_generator.12} parent=0 // pred_check_branch
    %21 = sbr.rel (0) target = $region21
  $region20: #{custom_unet_generator.12} parent=0 // pred_region
    _
  $region21: #{custom_unet_generator.12} parent=0 // pred_fallthru
    _
  %v23 = vld [vmem:[%s2] sm:$0xf]
  %v24 = vld [vmem:[%s2 + $0x4] sm:$0xf]
  %v25 = vld [vmem:[%s2 + $0x8] sm:$0xf]
  %v26 = vld [vmem:[%s2 + $0xc] sm:$0xf]
  %v27 = vmax.bf16 %v23, 0
  %v28 = vmax.bf16 %v24, 0
  %v29 = vmax.bf16 %v25, 0
  %v30 = vmax.bf16 %v26, 0
  %v31 = vld [vmem:[%s3] sm:$0xf]
  %v32 = vld [vmem:[%s3 + $0x4] sm:$0xf]
  %v33 = vld [vmem:[%s3 + $0x8] sm:$0xf]
  %v34 = vld [vmem:[%s3 + $0xc] sm:$0xf]
  %v35 = vld [vmem:[%s4] sm:$0x1]
  %v37 = vlaneseq
  %v38 = vshrl.u32 %v37, 7
  %v39 = vsub.s32 0, %v38
  %v40 = vrot.slane %v35, %v39
  %v46 = vunpack.c.l.b16 %v27
  %v47 = vunpack.c.l.b16 %v28
  %v48 = vunpack.c.l.b16 %v29
  %v49 = vunpack.c.l.b16 %v30
  %v50 = vpack.c.b16 %v47, %v46
  %v51 = vpack.c.b16 %v49, %v48
  %v56 = vunpack.c.l.b16 %v31
  %v57 = vunpack.c.l.b16 %v32
  %v58 = vunpack.c.l.b16 %v33
  %v59 = vunpack.c.l.b16 %v34
  %v60 = vpack.c.b16 %v57, %v56
  %v61 = vpack.c.b16 %v59, %v58
  %vm64 = vcmask 261120
  %v66 = vsel %vm64, %v50, 0
  %v69 = vsel %vm64, %v51, 0
  %71 = vmatprep.subr.bf16.mxu0 0
  %72 = vmatpush1.bf16.msra.mxu0 %v60
  %73 = vmatprep.subr.bf16.mxu0 0
  %74 = vmatpush1.bf16.msra.mxu0 %v61
  %75 = vmatprep.subr.bf16.mxu0 0
  %76 = vmatpush1.bf16.msra.mxu0 0
  %77 = vmatprep.subr.bf16.mxu0 0
  %78 = vmatpush1.bf16.msra.mxu0 0
  %79 = vmatprep.subr.bf16.mxu0 0
  %80 = vmatpush1.bf16.msra.mxu0 0
  %81 = vmatprep.subr.bf16.mxu0 0
  %82 = vmatpush1.bf16.msra.mxu0 0
  %83 = vmatprep.subr.bf16.mxu0 0
  %84 = vmatpush1.bf16.msra.mxu0 0
  %85 = vmatprep.subr.bf16.mxu0 0
  %86 = vmatpush1.bf16.msra.mxu0 0
  %87 = vmatprep.subr.bf16.mxu0 0
  %88 = vmatpush1.bf16.msra.mxu0 0
  %89 = vmatprep.subr.bf16.mxu0 0
  %90 = vmatpush1.bf16.msra.mxu0 0
  %91 = vmatprep.subr.bf16.mxu0 0
  %92 = vmatpush1.bf16.msra.mxu0 0
  %93 = vmatprep.subr.bf16.mxu0 0
  %94 = vmatpush1.bf16.msra.mxu0 0
  %95 = vmatprep.subr.bf16.mxu0 0
  %96 = vmatpush1.bf16.msra.mxu0 0
  %97 = vmatprep.subr.bf16.mxu0 0
  %98 = vmatpush1.bf16.msra.mxu0 0
  %99 = vmatprep.subr.bf16.mxu0 0
  %100 = vmatpush1.bf16.msra.mxu0 0
  %101 = vmatprep.subr.bf16.mxu0 0
  %102 = vmatpush1.bf16.msra.mxu0 0
  %103 = vmatprep.mubr.bf16.mxu0 0
  %104 = vmatmul.mubr.bf16.gmra.mrb[0].mxu0 %v66
  %v105 = vpop.f32.mrb[0].mxu0
  %v106 = vadd.f32 %v40, %v105
  %v107 = vpop.f32.mrb[0].mxu0
  %v108 = vpop.f32.mrb[0].mxu0
  %v109 = vadd.f32 %v40, %v108
  %v110 = vpop.f32.mrb[0].mxu0
  %111 = vmatprep.mubr.bf16.mxu0 0
  %112 = vmatmul.mubr.bf16.gmra.mrb[0].mxu0 %v69
  %v113 = vpop.f32.mrb[0].mxu0
  %v114 = vadd.f32 %v40, %v113
  %v115 = vpop.f32.mrb[0].mxu0
  %v116 = vpop.f32.mrb[0].mxu0
  %v117 = vadd.f32 %v40, %v116
  %v118 = vpop.f32.mrb[0].mxu0
  %119 = vdwg.mxu0
  %v120 = vpack.c.bf16 %v109, %v106
  %v121 = vpack.c.bf16 %v117, %v114
  %v124 = vunpack.c.l.b16 %v120
  %v125 = vunpack.c.h.b16 %v120
  %v126 = vunpack.c.l.b16 %v121
  %v127 = vunpack.c.h.b16 %v121
  %v128 = vpack.c.b16 %v124, %v124
  %v129 = vpack.c.b16 %v125, %v125
  %v130 = vpack.c.b16 %v126, %v126
  %v131 = vpack.c.b16 %v127, %v127
  %vm136 = vcmask 257024
  %137 = vst.msk [vmem:[%s5] sm:$0xf] %vm136, %v128
  %138 = vst.msk [vmem:[%s5 + $0x4] sm:$0xf] %vm136, %v129
  %139 = vst.msk [vmem:[%s5 + $0x8] sm:$0xf] %vm136, %v130
  %140 = vst.msk [vmem:[%s5 + $0xc] sm:$0xf] %vm136, %v131
  %v141 = vsel %vm64, %v106, 0.0
  %v142 = vsel %vm64, %v109, 0.0
  %v143 = vadd.f32 %v141, %v142
  %v144 = vsel %vm64, %v114, 0.0
  %v145 = vadd.f32 %v143, %v144
  %v146 = vsel %vm64, %v117, 0.0
  %v147 = vadd.f32 %v145, %v146
  %v148 = vrot.slane %v147, 4
  %v149 = vadd.f32 %v147, %v148
  %v150 = vrot.slane %v149, 2
  %v151 = vadd.f32 %v149, %v150
  %v152 = vrot.slane %v151, 1
  %v153 = vadd.f32 %v151, %v152
  %v154 = vmul.f32 %v106, %v106
  %v155 = vmul.f32 %v109, %v109
  %v156 = vmul.f32 %v114, %v114
  %v157 = vmul.f32 %v117, %v117
  %v158 = vsel %vm64, %v154, 0.0
  %v159 = vsel %vm64, %v155, 0.0
  %v160 = vadd.f32 %v158, %v159
  %v161 = vsel %vm64, %v156, 0.0
  %v162 = vadd.f32 %v160, %v161
  %v163 = vsel %vm64, %v157, 0.0
  %v164 = vadd.f32 %v162, %v163
  %v165 = vrot.slane %v164, 4
  %v166 = vadd.f32 %v164, %v165
  %v167 = vrot.slane %v166, 2
  %v168 = vadd.f32 %v166, %v167
  %v169 = vrot.slane %v168, 1
  %v170 = vadd.f32 %v168, %v169
  %vm171 = vcmask 1040384
  %v172 = vsel %vm171, %v153, %v170
  %vm173 = vcmask 254976
  %174 = vst.msk [vmem:[%s6] sm:$0x3] %vm173, %v172
  // Predicated region
  $region22: #{custom_unet_generator.12} parent=0 // pred_check
    _
  $region23: #{custom_unet_generator.12} parent=0 // pred_check_branch
    %176 = sbr.rel (0) target = $region25
  $region24: #{custom_unet_generator.12} parent=0 // pred_region
    _
  $region25: #{custom_unet_generator.12} parent=0 // pred_fallthru
    _
  // Predicated region
  $region26: #{custom_unet_generator.12} parent=0 // pred_check
    _
  $region27: #{custom_unet_generator.12} parent=0 // pred_check_branch
    %178 = sbr.rel (0) target = $region29
  $region28: #{custom_unet_generator.12} parent=0 // pred_region
    _
  $region29: #{custom_unet_generator.12} parent=0 // pred_fallthru
    _
  // Predicated region
  $region30: #{custom_unet_generator.12} parent=0 // pred_check
    _
  $region31: #{custom_unet_generator.12} parent=0 // pred_check_branch
    %180 = sbr.rel (0) target = $region33
  $region32: #{custom_unet_generator.12} parent=0 // pred_region
    _
  $region33: #{custom_unet_generator.12} parent=0 // pred_fallthru
    _
  // Predicated region
  $region34: #{custom_unet_generator.12} parent=0 // pred_check
    _
  $region35: #{custom_unet_generator.12} parent=0 // pred_check_branch
    %182 = sbr.rel (0) target = $region37
  $region36: #{custom_unet_generator.12} parent=0 // pred_region
    _
  $region37: #{custom_unet_generator.12} parent=0 // pred_fallthru
    _

// kernel: custom_unet_generator.10
$region0: #{custom_unet_generator.10}
  #allocation0 [shape = 'u32[]', space=smem, size = 0x4, offset = 0x4, fixed_abs, tag = 'smem constant byte address 0x4 - core index']
  #allocation1 [shape = 'u32[144,128]{1,0:T(1,128)}', space=vmem, size = 0x12000, scoped, tag = 'internal scratch']
  %s0 = inlined_call_operand.vmem [shape: bf16[2,1,5,5,64], index: 0, kind: input, shape index: {}]
  %s1 = inlined_call_operand.vmem [shape: bf16[256,32], index: 1, kind: input, shape index: {}]
  %s2 = inlined_call_operand.vmem [shape: bf16[2,4,4,32], index: 2, kind: output, shape index: {0}]
  %s3 = inlined_call_operand.vmem [shape: f32[2,1,2,32], index: 3, kind: output, shape index: {1}]
  %4 = xla_tuple %s2, %s3
  %s5 = sld [smem:[#allocation0]]
  $region56: #{custom_unet_generator.10} parent=0
    _
  %s7 = ssub.s32 1, %s5
  %s8 = scalar_select 0, %s7, %s5
  loop: start=0, step=1, limit=4
  $region2: #{custom_unet_generator.10} parent=0 // loop_pre_header
    _
  $region3: #{custom_unet_generator.10} parent=0 // loop_header
    %s10 = sphi 0, %s14
    %p11 = scmp.ge.s32.totalorder %s10, 4
    %s17 = sphi 0, %s29
    %s18 = sphi 0, %s25
    %s19 = sphi 0, %s17
    %s20 = sphi 0, %s18
    %s21 = sphi 0, %s19
    %s22 = sphi 0, %s20
    %s34 = sphi 0, %s36
    %s37 = sphi 0, %s34
    %s38 = sphi 0, %s37
    %s54 = sphi 0, %s38
    %s58 = sphi 0, %s58
    %s60 = sphi 0, %s58
    %s61 = sphi 0, %s60
    %s75 = sphi 0, %s61
    %s83 = sphi 0, %s85
    %s86 = sphi 0, %s83
    %s87 = sphi 0, %s86
    %s103 = sphi 0, %s87
    %s111 = sphi 0, %s113
    %s114 = sphi 0, %s111
    %s115 = sphi 0, %s114
    %s131 = sphi 0, %s115
  $region4: #{custom_unet_generator.10} parent=0 // loop_header_branch
    %13 = sbr.rel (%p11) target = $region8
  $region5: #{custom_unet_generator.10} parent=0 // loop_body
    %s15 = ssub.s32 %s10, 1
    %s16 = ssub.s32 %s10, 2
    %s23 = sadd.s32 1, %s18
    %p24 = scmp.ge.s32.totalorder %s23, 1
    %s25 = scalar_select %p24, 0, %s23
    %s26 = sadd.s32 1, %s17
    %s27 = scalar_select %p24, %s26, %s17
    %p28 = scmp.ge.s32.totalorder %s27, 2
    %s29 = scalar_select %p28, 0, %s27
    %s30 = ssub.s32 %s17, %s29
    %s31 = ssub.s32 %s18, %s25
    %s32 = sor.u32 %s30, %s31
    %p33 = scmp.eq.s32.totalorder %s32, 0
    %s35 = sadd.s32 %s34, 1
    %s36 = scalar_select %p33, %s34, %s35
    %p39 = pneg %p33
    %p40 = scmp.eq.s32.totalorder %s10, 1
    %p41 = por %p39, %p40
    %p42 = scmp.ne.s32.totalorder %s34, %s37
    %p43 = scmp.eq.s32.totalorder %s10, 0
    %p44 = por %p42, %p43
    %p45 = scmp.ne.s32.totalorder %s34, %s37
    %p46 = scmp.eq.s32.totalorder %s15, 1
    %p47 = por %p45, %p46
    %p48 = scmp.ne.s32.totalorder %s37, %s38
    %p49 = scmp.eq.s32.totalorder %s15, 0
    %p50 = por %p48, %p49
    %p51 = scmp.ne.s32.totalorder %s37, %s38
    %p52 = scmp.eq.s32.totalorder %s16, 1
    %p53 = por %p51, %p52
    %p55 = scmp.ne.s32.totalorder %s38, %s54
    %p56 = scmp.eq.s32.totalorder %s16, 0
    %p57 = por %p55, %p56
    %s59 = sadd.s32 %s58, 1
    %p62 = scmp.eq.s32.totalorder %s10, 1
    %p63 = scmp.ne.s32.totalorder %s58, %s60
    %p64 = scmp.eq.s32.totalorder %s10, 0
    %p65 = por %p63, %p64
    %p66 = scmp.ne.s32.totalorder %s58, %s60
    %p67 = scmp.eq.s32.totalorder %s15, 1
    %p68 = por %p66, %p67
    %p69 = scmp.ne.s32.totalorder %s60, %s61
    %p70 = scmp.eq.s32.totalorder %s15, 0
    %p71 = por %p69, %p70
    %p72 = scmp.ne.s32.totalorder %s60, %s61
    %p73 = scmp.eq.s32.totalorder %s16, 1
    %p74 = por %p72, %p73
    %p76 = scmp.ne.s32.totalorder %s61, %s75
    %p77 = scmp.eq.s32.totalorder %s16, 0
    %p78 = por %p76, %p77
    %s79 = ssub.s32 %s17, %s29
    %s80 = ssub.s32 %s18, %s25
    %s81 = sor.u32 %s79, %s80
    %p82 = scmp.eq.s32.totalorder %s81, 0
    %s84 = sadd.s32 %s83, 1
    %s85 = scalar_select %p82, %s83, %s84
    %p88 = pneg %p82
    %p89 = scmp.eq.s32.totalorder %s10, 1
    %p90 = por %p88, %p89
    %p91 = scmp.ne.s32.totalorder %s83, %s86
    %p92 = scmp.eq.s32.totalorder %s10, 0
    %p93 = por %p91, %p92
    %p94 = scmp.ne.s32.totalorder %s83, %s86
    %p95 = scmp.eq.s32.totalorder %s15, 1
    %p96 = por %p94, %p95
    %p97 = scmp.ne.s32.totalorder %s86, %s87
    %p98 = scmp.eq.s32.totalorder %s15, 0
    %p99 = por %p97, %p98
    %p100 = scmp.ne.s32.totalorder %s86, %s87
    %p101 = scmp.eq.s32.totalorder %s16, 1
    %p102 = por %p100, %p101
    %p104 = scmp.ne.s32.totalorder %s87, %s103
    %p105 = scmp.eq.s32.totalorder %s16, 0
    %p106 = por %p104, %p105
    %s107 = ssub.s32 %s17, %s29
    %s108 = ssub.s32 %s18, %s25
    %s109 = sor.u32 %s107, %s108
    %p110 = scmp.eq.s32.totalorder %s109, 0
    %s112 = sadd.s32 %s111, 1
    %s113 = scalar_select %p110, %s111, %s112
    %p116 = pneg %p110
    %p117 = scmp.eq.s32.totalorder %s10, 1
    %p118 = por %p116, %p117
    %p119 = scmp.ne.s32.totalorder %s111, %s114
    %p120 = scmp.eq.s32.totalorder %s10, 0
    %p121 = por %p119, %p120
    %p122 = scmp.ne.s32.totalorder %s111, %s114
    %p123 = scmp.eq.s32.totalorder %s15, 1
    %p124 = por %p122, %p123
    %p125 = scmp.ne.s32.totalorder %s114, %s115
    %p126 = scmp.eq.s32.totalorder %s15, 0
    %p127 = por %p125, %p126
    %p128 = scmp.ne.s32.totalorder %s114, %s115
    %p129 = scmp.eq.s32.totalorder %s16, 1
    %p130 = por %p128, %p129
    %p132 = scmp.ne.s32.totalorder %s115, %s131
    %p133 = scmp.eq.s32.totalorder %s16, 0
    %p134 = por %p132, %p133
    %p135 = scmp.le.s32.totalorder 1, %s10
    %p136 = scmp.lt.s32.totalorder %s10, 3
    %p137 = pnand %p135, %p136
    %p138 = pneg %p137
    // Predicated region
    $region9: #{custom_unet_generator.10} parent=5 // pred_check
      _
    $region10: #{custom_unet_generator.10} parent=5 // pred_check_branch
      %140 = sbr.rel (%p137) target = $region12
    $region11: #{custom_unet_generator.10} parent=5 // pred_region
      %s141 = ssub.s32 %s10, 1
      // Predicated region
      $region13: #{custom_unet_generator.10} parent=11 // pred_check
        %p142 = pneg %p71
      $region14: #{custom_unet_generator.10} parent=11 // pred_check_branch
        %144 = sbr.rel (%p142) target = $region16
      $region15: #{custom_unet_generator.10} parent=11 // pred_region
        _
      $region16: #{custom_unet_generator.10} parent=11 // pred_fallthru
        _
    $region12: #{custom_unet_generator.10} parent=5 // pred_fallthru
      _
    %p145 = scmp.lt.s32.totalorder %s10, 2
    // Predicated region
    $region17: #{custom_unet_generator.10} parent=5 // pred_check
      %p146 = pneg %p145
    $region18: #{custom_unet_generator.10} parent=5 // pred_check_branch
      %148 = sbr.rel (%p146) target = $region20
    $region19: #{custom_unet_generator.10} parent=5 // pred_region
      // Predicated region
      $region21: #{custom_unet_generator.10} parent=19 // pred_check
        %p149 = pneg %p44
      $region22: #{custom_unet_generator.10} parent=19 // pred_check_branch
        %151 = sbr.rel (%p149) target = $region24
      $region23: #{custom_unet_generator.10} parent=19 // pred_region
        %p152 = scmp.lt.s32.totalorder %s17, 1
        %s153 = scalar_select %p152, %s17, 1
        %p154 = scmp.lt.s32.totalorder %s18, 0
        %s155 = scalar_select %p154, %s18, 0
        %s156 = smul.addr %s155, 5
        %s157 = smul.addr %s153, 5
        %s158 = sadd.s32 %s156, %s157
        %s159 = smul.addr %s158, 4
        %s160 = scalar_lea.vmem %s0, %s159
      $region24: #{custom_unet_generator.10} parent=19 // pred_fallthru
        _
    $region20: #{custom_unet_generator.10} parent=5 // pred_fallthru
      _
    %p161 = scmp.le.s32.totalorder 1, %s10
    %p162 = scmp.lt.s32.totalorder %s10, 3
    %p163 = pnand %p161, %p162
    %p164 = pneg %p163
    // Predicated region
    $region25: #{custom_unet_generator.10} parent=5 // pred_check
      _
    $region26: #{custom_unet_generator.10} parent=5 // pred_check_branch
      %166 = sbr.rel (%p163) target = $region28
    $region27: #{custom_unet_generator.10} parent=5 // pred_region
      %s167 = ssub.s32 %s10, 1
      %p168 = scmp.lt.s32.totalorder %s19, 1
      %s169 = scalar_select %p168, %s19, 1
      %p170 = scmp.lt.s32.totalorder %s20, 0
      %s171 = scalar_select %p170, %s20, 0
      %s172 = smul.addr %s171, 5
      %s173 = smul.addr %s169, 5
      %s174 = sadd.s32 %s172, %s173
      %s175 = smul.addr %s174, 4
      %s176 = scalar_lea.vmem %s0, %s175
      %p177 = pneg %p50
      %p178 = pneg %p47
      %p179 = pneg %p71
      %p180 = pneg %p68
      %p181 = pneg %p99
      %p182 = pneg %p96
      %s183 = smul.u32 4, %s20
      %p184 = scmp.lt.s32.totalorder %s19, 1
      %s185 = scalar_select %p184, %s19, 1
      %p186 = scmp.lt.s32.totalorder %s183, 3
      %s187 = scalar_select %p186, %s183, 3
      %s188 = smul.addr %s185, 4
      %s189 = sadd.s32 %s187, %s188
      %s190 = smul.addr %s189, 2
      %s191 = scalar_lea.vmem %s2, %s190
      %p192 = pneg %p127
      %p193 = pneg %p124
      %p194 = scmp.lt.s32.totalorder %s19, 1
      %s195 = scalar_select %p194, %s19, 1
      %p196 = scmp.lt.s32.totalorder %s20, 0
      %s197 = scalar_select %p196, %s20, 0
      %s198 = sadd.s32 %s197, %s195
      %s199 = smul.addr %s198, 2
      %s200 = scalar_lea.vmem %s3, %s199
      %p201 = scmp.lt.s32.totalorder %s19, 1
      %s202 = scalar_select %p201, %s19, 1
      %p203 = scmp.lt.s32.totalorder %s20, 0
      %s204 = scalar_select %p203, %s20, 0
      %s205 = smul.addr %s204, 5
      %s206 = smul.addr %s202, 5
      %s207 = sadd.s32 %s205, %s206
      %s208 = smul.addr %s207, 4
      %s209 = scalar_lea.vmem %s0, %s208
      %s210 = smul.u32 4, %s20
      %p211 = scmp.lt.s32.totalorder %s19, 1
      %s212 = scalar_select %p211, %s19, 1
      %p213 = scmp.lt.s32.totalorder %s210, 3
      %s214 = scalar_select %p213, %s210, 3
      %s215 = smul.addr %s212, 4
      %s216 = sadd.s32 %s214, %s215
      %s217 = smul.addr %s216, 2
      %s218 = scalar_lea.vmem %s2, %s217
      %s219 = smul.u32 4, %s20
      %p220 = scmp.lt.s32.totalorder %s19, 1
      %s221 = scalar_select %p220, %s19, 1
      %p222 = scmp.lt.s32.totalorder %s20, 0
      %s223 = scalar_select %p222, %s20, 0
      %s224 = sadd.s32 %s223, %s221
      %s225 = smul.addr %s224, 2
      %s226 = scalar_lea.vmem %s3, %s225
      %v228 = vld [vmem:[%s1] sm:$0xf]
      %v229 = vld [vmem:[%s1 + $0x4] sm:$0xf]
      %v230 = vld [vmem:[%s1 + $0x8] sm:$0xf]
      %v231 = vld [vmem:[%s1 + $0xc] sm:$0xf]
      %v232 = vld [vmem:[%s1 + $0x10] sm:$0xf]
      %v233 = vld [vmem:[%s1 + $0x14] sm:$0xf]
      %v234 = vld [vmem:[%s1 + $0x18] sm:$0xf]
      %v235 = vld [vmem:[%s1 + $0x1c] sm:$0xf]
      %v236 = vld [vmem:[%s1 + $0x20] sm:$0xf]
      %v237 = vld [vmem:[%s1 + $0x24] sm:$0xf]
      %v238 = vld [vmem:[%s1 + $0x28] sm:$0xf]
      %v239 = vld [vmem:[%s1 + $0x2c] sm:$0xf]
      %v240 = vld [vmem:[%s1 + $0x30] sm:$0xf]
      %v241 = vld [vmem:[%s1 + $0x34] sm:$0xf]
      %v242 = vld [vmem:[%s1 + $0x38] sm:$0xf]
      %v243 = vld [vmem:[%s1 + $0x3c] sm:$0xf]
      %v244 = vld [vmem:[%s1 + $0x40] sm:$0xf]
      %v245 = vld [vmem:[%s1 + $0x44] sm:$0xf]
      %v246 = vld [vmem:[%s1 + $0x48] sm:$0xf]
      %v247 = vld [vmem:[%s1 + $0x4c] sm:$0xf]
      %v248 = vld [vmem:[%s1 + $0x50] sm:$0xf]
      %v249 = vld [vmem:[%s1 + $0x54] sm:$0xf]
      %v250 = vld [vmem:[%s1 + $0x58] sm:$0xf]
      %v251 = vld [vmem:[%s1 + $0x5c] sm:$0xf]
      %v252 = vld [vmem:[%s1 + $0x60] sm:$0xf]
      %v253 = vld [vmem:[%s1 + $0x64] sm:$0xf]
      %v254 = vld [vmem:[%s1 + $0x68] sm:$0xf]
      %v255 = vld [vmem:[%s1 + $0x6c] sm:$0xf]
      %v256 = vld [vmem:[%s1 + $0x70] sm:$0xf]
      %v257 = vld [vmem:[%s1 + $0x74] sm:$0xf]
      %v258 = vld [vmem:[%s1 + $0x78] sm:$0xf]
      %v259 = vld [vmem:[%s1 + $0x7c] sm:$0xf]
      loop: start=0, step=1, limit=4
      $region29: #{custom_unet_generator.10} parent=27 // loop_pre_header
        _
      $region30: #{custom_unet_generator.10} parent=27 // loop_header
        %s261 = sphi 0, %s265
        %p262 = scmp.ge.s32.totalorder %s261, 4
        %v266 = vphi 0.0, %v459
        %v267 = vphi 0.0, %v468
      $region31: #{custom_unet_generator.10} parent=27 // loop_header_branch
        %264 = sbr.rel (%p262) target = $region35
      $region32: #{custom_unet_generator.10} parent=27 // loop_body
        %s268 = smul.addr %s261, 4
        %s269 = scalar_lea.vmem %s209, %s268
        %v270 = vld [vmem:[%s269] sm:$0x3]
        %v271 = vld [vmem:[%s269] sm:$0x7]
        %s272 = sadd.s32 %s261, 1
        %s273 = smul.addr %s272, 4
        %s274 = scalar_lea.vmem %s209, %s273
        %v275 = vld [vmem:[%s274] sm:$0x3]
        %v276 = vld [vmem:[%s274] sm:$0x7]
        %v278 = vunpack.c.l.b16 %v271
        %v279 = vpack.c.b16 %v278, %v278
        %v281 = vshrl.u32 %v279, 16
        %v283 = vshll.u32 %v279, 16
        %v285 = vrot.slane %v283, 1
        %v286 = vor.u32 %v281, %v285
        %287 = vrot.lane.b32.xlu0 %v286, 64
        %v288 = vpop.permute.xlu0 %287
        %v290 = vunpack.c.l.b16 %v276
        %v291 = vpack.c.b16 %v290, %v290
        %v293 = vshrl.u32 %v291, 16
        %v295 = vshll.u32 %v291, 16
        %v297 = vrot.slane %v295, 1
        %v298 = vor.u32 %v293, %v297
        %299 = vrot.lane.b32.xlu0 %v298, 64
        %v300 = vpop.permute.xlu0 %299
        %vm301 = vcmask 523264
        %v304 = vsel %vm301, %v270, %v288
        %v308 = vsel %vm301, %v275, %v300
        %v342 = vunpack.c.l.b16 %v228
        %v343 = vunpack.c.l.b16 %v229
        %v344 = vunpack.c.l.b16 %v230
        %v345 = vunpack.c.l.b16 %v231
        %v346 = vunpack.c.l.b16 %v232
        %v347 = vunpack.c.l.b16 %v233
        %v348 = vunpack.c.l.b16 %v234
        %v349 = vunpack.c.l.b16 %v235
        %v350 = vunpack.c.l.b16 %v236
        %v351 = vunpack.c.l.b16 %v237
        %v352 = vunpack.c.l.b16 %v238
        %v353 = vunpack.c.l.b16 %v239
        %v354 = vunpack.c.l.b16 %v240
        %v355 = vunpack.c.l.b16 %v241
        %v356 = vunpack.c.l.b16 %v242
        %v357 = vunpack.c.l.b16 %v243
        %v358 = vunpack.c.l.b16 %v244
        %v359 = vunpack.c.l.b16 %v245
        %v360 = vunpack.c.l.b16 %v246
        %v361 = vunpack.c.l.b16 %v247
        %v362 = vunpack.c.l.b16 %v248
        %v363 = vunpack.c.l.b16 %v249
        %v364 = vunpack.c.l.b16 %v250
        %v365 = vunpack.c.l.b16 %v251
        %v366 = vunpack.c.l.b16 %v252
        %v367 = vunpack.c.l.b16 %v253
        %v368 = vunpack.c.l.b16 %v254
        %v369 = vunpack.c.l.b16 %v255
        %v370 = vunpack.c.l.b16 %v256
        %v371 = vunpack.c.l.b16 %v257
        %v372 = vunpack.c.l.b16 %v258
        %v373 = vunpack.c.l.b16 %v259
        %v374 = vpack.c.b16 %v343, %v342
        %v375 = vpack.c.b16 %v345, %v344
        %v376 = vpack.c.b16 %v347, %v346
        %v377 = vpack.c.b16 %v349, %v348
        %v378 = vpack.c.b16 %v351, %v350
        %v379 = vpack.c.b16 %v353, %v352
        %v380 = vpack.c.b16 %v355, %v354
        %v381 = vpack.c.b16 %v357, %v356
        %v382 = vpack.c.b16 %v359, %v358
        %v383 = vpack.c.b16 %v361, %v360
        %v384 = vpack.c.b16 %v363, %v362
        %v385 = vpack.c.b16 %v365, %v364
        %v386 = vpack.c.b16 %v367, %v366
        %v387 = vpack.c.b16 %v369, %v368
        %v388 = vpack.c.b16 %v371, %v370
        %v389 = vpack.c.b16 %v373, %v372
        %406 = vmatprep.subr.bf16.mxu0 0
        %407 = vmatpush1.bf16.msra.mxu0 %v374
        %408 = vmatprep.subr.bf16.mxu0 0
        %409 = vmatpush1.bf16.msra.mxu0 %v375
        %410 = vmatprep.subr.bf16.mxu0 0
        %411 = vmatpush1.bf16.msra.mxu0 %v376
        %412 = vmatprep.subr.bf16.mxu0 0
        %413 = vmatpush1.bf16.msra.mxu0 %v377
        %414 = vmatprep.subr.bf16.mxu0 0
        %415 = vmatpush1.bf16.msra.mxu0 %v378
        %416 = vmatprep.subr.bf16.mxu0 0
        %417 = vmatpush1.bf16.msra.mxu0 %v379
        %418 = vmatprep.subr.bf16.mxu0 0
        %419 = vmatpush1.bf16.msra.mxu0 %v380
        %420 = vmatprep.subr.bf16.mxu0 0
        %421 = vmatpush1.bf16.msra.mxu0 %v381
        %422 = vmatprep.subr.bf16.mxu0 0
        %423 = vmatpush1.bf16.msra.mxu0 %v382
        %424 = vmatprep.subr.bf16.mxu0 0
        %425 = vmatpush1.bf16.msra.mxu0 %v383
        %426 = vmatprep.subr.bf16.mxu0 0
        %427 = vmatpush1.bf16.msra.mxu0 %v384
        %428 = vmatprep.subr.bf16.mxu0 0
        %429 = vmatpush1.bf16.msra.mxu0 %v385
        %430 = vmatprep.subr.bf16.mxu0 0
        %431 = vmatpush1.bf16.msra.mxu0 %v386
        %432 = vmatprep.subr.bf16.mxu0 0
        %433 = vmatpush1.bf16.msra.mxu0 %v387
        %434 = vmatprep.subr.bf16.mxu0 0
        %435 = vmatpush1.bf16.msra.mxu0 %v388
        %436 = vmatprep.subr.bf16.mxu0 0
        %437 = vmatpush1.bf16.msra.mxu0 %v389
        %438 = vmatprep.mubr.bf16.mxu0 %v308
        %439 = vmatmul.mubr.bf16.gmra.mrb[0].mxu0 %v304
        %v440 = vpop.f32.mrb[0].mxu0
        %v441 = vadd.f32 0.0, %v440
        %v442 = vpop.f32.mrb[0].mxu0
        %v443 = vpop.f32.mrb[0].mxu0
        %v444 = vpop.f32.mrb[0].mxu0
        %445 = vdwg.mxu0
        %v446 = vpack.c.bf16 %v441, %v441
        %s447 = smul.addr %s261, 2
        %s448 = scalar_lea.vmem %s218, %s447
        %vm449 = vcmask 254976
        %450 = vst.msk [vmem:[%s448] sm:$0x3] %vm449, %v446
        %vm451 = vcmask 257024
        %v452 = vsel %vm451, %v441, 0.0
        %v453 = vrot.slane %v452, 4
        %v454 = vadd.f32 %v452, %v453
        %v455 = vrot.slane %v454, 2
        %v456 = vadd.f32 %v454, %v455
        %v457 = vrot.slane %v456, 1
        %v458 = vadd.f32 %v456, %v457
        %v459 = vadd.f32 %v266, %v458
        %v460 = vmul.f32 %v441, %v441
        %v461 = vsel %vm451, %v460, 0.0
        %v462 = vrot.slane %v461, 4
        %v463 = vadd.f32 %v461, %v462
        %v464 = vrot.slane %v463, 2
        %v465 = vadd.f32 %v463, %v464
        %v466 = vrot.slane %v465, 1
        %v467 = vadd.f32 %v465, %v466
        %v468 = vadd.f32 %v267, %v467
      $region33: #{custom_unet_generator.10} parent=27 // loop_footer
        %s265 = sadd.s32 1, %s261
      $region34: #{custom_unet_generator.10} parent=27 // loop_footer_branch
        %260 = sbr.rel target = $region30
      $region35: #{custom_unet_generator.10} parent=27 // loop_exit
        _
      %vm469 = vcmask 1040384
      %v470 = vsel %vm469, %v266, %v267
      %vm471 = vcmask 254976
      %472 = vst.msk [vmem:[%s226] sm:$0x3] %vm471, %v470
      %s473 = smul.u32 4, %s20
      %p474 = scmp.lt.s32.totalorder %s19, 1
      %s475 = scalar_select %p474, %s19, 1
      %p476 = scmp.lt.s32.totalorder %s473, 3
      %s477 = scalar_select %p476, %s473, 3
      %s478 = smul.addr %s475, 4
      %s479 = sadd.s32 %s477, %s478
      %s480 = smul.addr %s479, 2
      %s481 = scalar_lea.vmem %s2, %s480
      %p482 = scmp.lt.s32.totalorder %s19, 1
      %s483 = scalar_select %p482, %s19, 1
      %p484 = scmp.lt.s32.totalorder %s20, 0
      %s485 = scalar_select %p484, %s20, 0
      %s486 = sadd.s32 %s485, %s483
      %s487 = smul.addr %s486, 2
      %s488 = scalar_lea.vmem %s3, %s487
      // Predicated region
      $region36: #{custom_unet_generator.10} parent=27 // pred_check
        %p489 = pneg %p96
      $region37: #{custom_unet_generator.10} parent=27 // pred_check_branch
        %491 = sbr.rel (%p489) target = $region39
      $region38: #{custom_unet_generator.10} parent=27 // pred_region
        %s492 = smul.u32 4, %s20
      $region39: #{custom_unet_generator.10} parent=27 // pred_fallthru
        _
      // Predicated region
      $region40: #{custom_unet_generator.10} parent=27 // pred_check
        %p493 = pneg %p124
      $region41: #{custom_unet_generator.10} parent=27 // pred_check_branch
        %495 = sbr.rel (%p493) target = $region43
      $region42: #{custom_unet_generator.10} parent=27 // pred_region
        _
      $region43: #{custom_unet_generator.10} parent=27 // pred_fallthru
        _
    $region28: #{custom_unet_generator.10} parent=5 // pred_fallthru
      _
    %p496 = scmp.le.s32.totalorder 2, %s10
    // Predicated region
    $region44: #{custom_unet_generator.10} parent=5 // pred_check
      %p497 = pneg %p496
    $region45: #{custom_unet_generator.10} parent=5 // pred_check_branch
      %499 = sbr.rel (%p497) target = $region47
    $region46: #{custom_unet_generator.10} parent=5 // pred_region
      %s500 = ssub.s32 %s10, 2
      // Predicated region
      $region48: #{custom_unet_generator.10} parent=46 // pred_check
        %p501 = pneg %p102
      $region49: #{custom_unet_generator.10} parent=46 // pred_check_branch
        %503 = sbr.rel (%p501) target = $region51
      $region50: #{custom_unet_generator.10} parent=46 // pred_region
        %s504 = smul.u32 4, %s22
        %p505 = scmp.lt.s32.totalorder %s21, 1
        %s506 = scalar_select %p505, %s21, 1
        %p507 = scmp.lt.s32.totalorder %s504, 3
        %s508 = scalar_select %p507, %s504, 3
        %s509 = smul.addr %s506, 4
        %s510 = sadd.s32 %s508, %s509
        %s511 = smul.addr %s510, 2
        %s512 = scalar_lea.vmem %s2, %s511
      $region51: #{custom_unet_generator.10} parent=46 // pred_fallthru
        _
      // Predicated region
      $region52: #{custom_unet_generator.10} parent=46 // pred_check
        %p513 = pneg %p130
      $region53: #{custom_unet_generator.10} parent=46 // pred_check_branch
        %515 = sbr.rel (%p513) target = $region55
      $region54: #{custom_unet_generator.10} parent=46 // pred_region
        %p516 = scmp.lt.s32.totalorder %s21, 1
        %s517 = scalar_select %p516, %s21, 1
        %p518 = scmp.lt.s32.totalorder %s22, 0
        %s519 = scalar_select %p518, %s22, 0
        %s520 = sadd.s32 %s519, %s517
        %s521 = smul.addr %s520, 2
        %s522 = scalar_lea.vmem %s3, %s521
      $region55: #{custom_unet_generator.10} parent=46 // pred_fallthru
        _
    $region47: #{custom_unet_generator.10} parent=5 // pred_fallthru
      _
  $region6: #{custom_unet_generator.10} parent=0 // loop_footer
    %s14 = sadd.s32 1, %s10
  $region7: #{custom_unet_generator.10} parent=0 // loop_footer_branch
    %9 = sbr.rel target = $region3
  $region8: #{custom_unet_generator.10} parent=0 // loop_exit
    _

// kernel: custom_unet_generator.13
$region0: #{custom_unet_generator.13}
  #allocation0 [shape = 'u32[]', space=smem, size = 0x4, offset = 0x4, fixed_abs, tag = 'smem constant byte address 0x4 - core index']
  #allocation1 [shape = 'u32[144,128]{1,0:T(1,128)}', space=vmem, size = 0x12000, scoped, tag = 'internal scratch']
  %s0 = inlined_call_operand.vmem [shape: bf16[2,1,6,6,64], index: 0, kind: input, shape index: {}]
  %s1 = inlined_call_operand.vmem [shape: bf16[4,256,16], index: 1, kind: input, shape index: {}]
  %s2 = inlined_call_operand.vmem [shape: bf16[2,4,2,4,32], index: 2, kind: output, shape index: {0}]
  %s3 = inlined_call_operand.vmem [shape: f32[2,1,2,16], index: 3, kind: output, shape index: {1}]
  %4 = xla_tuple %s2, %s3
  %s5 = sld [smem:[#allocation0]]
  $region56: #{custom_unet_generator.13} parent=0
    _
  %s7 = ssub.s32 1, %s5
  %s8 = scalar_select 0, %s7, %s5
  loop: start=0, step=1, limit=4
  $region2: #{custom_unet_generator.13} parent=0 // loop_pre_header
    _
  $region3: #{custom_unet_generator.13} parent=0 // loop_header
    %s10 = sphi 0, %s14
    %p11 = scmp.ge.s32.totalorder %s10, 4
    %s17 = sphi 0, %s29
    %s18 = sphi 0, %s25
    %s19 = sphi 0, %s17
    %s20 = sphi 0, %s18
    %s21 = sphi 0, %s19
    %s22 = sphi 0, %s20
    %s34 = sphi 0, %s36
    %s37 = sphi 0, %s34
    %s38 = sphi 0, %s37
    %s54 = sphi 0, %s38
    %s58 = sphi 0, %s58
    %s60 = sphi 0, %s58
    %s61 = sphi 0, %s60
    %s75 = sphi 0, %s61
    %s83 = sphi 0, %s85
    %s86 = sphi 0, %s83
    %s87 = sphi 0, %s86
    %s103 = sphi 0, %s87
    %s111 = sphi 0, %s113
    %s114 = sphi 0, %s111
    %s115 = sphi 0, %s114
    %s131 = sphi 0, %s115
  $region4: #{custom_unet_generator.13} parent=0 // loop_header_branch
    %13 = sbr.rel (%p11) target = $region8
  $region5: #{custom_unet_generator.13} parent=0 // loop_body
    %s15 = ssub.s32 %s10, 1
    %s16 = ssub.s32 %s10, 2
    %s23 = sadd.s32 1, %s18
    %p24 = scmp.ge.s32.totalorder %s23, 1
    %s25 = scalar_select %p24, 0, %s23
    %s26 = sadd.s32 1, %s17
    %s27 = scalar_select %p24, %s26, %s17
    %p28 = scmp.ge.s32.totalorder %s27, 2
    %s29 = scalar_select %p28, 0, %s27
    %s30 = ssub.s32 %s17, %s29
    %s31 = ssub.s32 %s18, %s25
    %s32 = sor.u32 %s30, %s31
    %p33 = scmp.eq.s32.totalorder %s32, 0
    %s35 = sadd.s32 %s34, 1
    %s36 = scalar_select %p33, %s34, %s35
    %p39 = pneg %p33
    %p40 = scmp.eq.s32.totalorder %s10, 1
    %p41 = por %p39, %p40
    %p42 = scmp.ne.s32.totalorder %s34, %s37
    %p43 = scmp.eq.s32.totalorder %s10, 0
    %p44 = por %p42, %p43
    %p45 = scmp.ne.s32.totalorder %s34, %s37
    %p46 = scmp.eq.s32.totalorder %s15, 1
    %p47 = por %p45, %p46
    %p48 = scmp.ne.s32.totalorder %s37, %s38
    %p49 = scmp.eq.s32.totalorder %s15, 0
    %p50 = por %p48, %p49
    %p51 = scmp.ne.s32.totalorder %s37, %s38
    %p52 = scmp.eq.s32.totalorder %s16, 1
    %p53 = por %p51, %p52
    %p55 = scmp.ne.s32.totalorder %s38, %s54
    %p56 = scmp.eq.s32.totalorder %s16, 0
    %p57 = por %p55, %p56
    %s59 = sadd.s32 %s58, 1
    %p62 = scmp.eq.s32.totalorder %s10, 1
    %p63 = scmp.ne.s32.totalorder %s58, %s60
    %p64 = scmp.eq.s32.totalorder %s10, 0
    %p65 = por %p63, %p64
    %p66 = scmp.ne.s32.totalorder %s58, %s60
    %p67 = scmp.eq.s32.totalorder %s15, 1
    %p68 = por %p66, %p67
    %p69 = scmp.ne.s32.totalorder %s60, %s61
    %p70 = scmp.eq.s32.totalorder %s15, 0
    %p71 = por %p69, %p70
    %p72 = scmp.ne.s32.totalorder %s60, %s61
    %p73 = scmp.eq.s32.totalorder %s16, 1
    %p74 = por %p72, %p73
    %p76 = scmp.ne.s32.totalorder %s61, %s75
    %p77 = scmp.eq.s32.totalorder %s16, 0
    %p78 = por %p76, %p77
    %s79 = ssub.s32 %s17, %s29
    %s80 = ssub.s32 %s18, %s25
    %s81 = sor.u32 %s79, %s80
    %p82 = scmp.eq.s32.totalorder %s81, 0
    %s84 = sadd.s32 %s83, 1
    %s85 = scalar_select %p82, %s83, %s84
    %p88 = pneg %p82
    %p89 = scmp.eq.s32.totalorder %s10, 1
    %p90 = por %p88, %p89
    %p91 = scmp.ne.s32.totalorder %s83, %s86
    %p92 = scmp.eq.s32.totalorder %s10, 0
    %p93 = por %p91, %p92
    %p94 = scmp.ne.s32.totalorder %s83, %s86
    %p95 = scmp.eq.s32.totalorder %s15, 1
    %p96 = por %p94, %p95
    %p97 = scmp.ne.s32.totalorder %s86, %s87
    %p98 = scmp.eq.s32.totalorder %s15, 0
    %p99 = por %p97, %p98
    %p100 = scmp.ne.s32.totalorder %s86, %s87
    %p101 = scmp.eq.s32.totalorder %s16, 1
    %p102 = por %p100, %p101
    %p104 = scmp.ne.s32.totalorder %s87, %s103
    %p105 = scmp.eq.s32.totalorder %s16, 0
    %p106 = por %p104, %p105
    %s107 = ssub.s32 %s17, %s29
    %s108 = ssub.s32 %s18, %s25
    %s109 = sor.u32 %s107, %s108
    %p110 = scmp.eq.s32.totalorder %s109, 0
    %s112 = sadd.s32 %s111, 1
    %s113 = scalar_select %p110, %s111, %s112
    %p116 = pneg %p110
    %p117 = scmp.eq.s32.totalorder %s10, 1
    %p118 = por %p116, %p117
    %p119 = scmp.ne.s32.totalorder %s111, %s114
    %p120 = scmp.eq.s32.totalorder %s10, 0
    %p121 = por %p119, %p120
    %p122 = scmp.ne.s32.totalorder %s111, %s114
    %p123 = scmp.eq.s32.totalorder %s15, 1
    %p124 = por %p122, %p123
    %p125 = scmp.ne.s32.totalorder %s114, %s115
    %p126 = scmp.eq.s32.totalorder %s15, 0
    %p127 = por %p125, %p126
    %p128 = scmp.ne.s32.totalorder %s114, %s115
    %p129 = scmp.eq.s32.totalorder %s16, 1
    %p130 = por %p128, %p129
    %p132 = scmp.ne.s32.totalorder %s115, %s131
    %p133 = scmp.eq.s32.totalorder %s16, 0
    %p134 = por %p132, %p133
    %p135 = scmp.le.s32.totalorder 1, %s10
    %p136 = scmp.lt.s32.totalorder %s10, 3
    %p137 = pnand %p135, %p136
    %p138 = pneg %p137
    // Predicated region
    $region9: #{custom_unet_generator.13} parent=5 // pred_check
      _
    $region10: #{custom_unet_generator.13} parent=5 // pred_check_branch
      %140 = sbr.rel (%p137) target = $region12
    $region11: #{custom_unet_generator.13} parent=5 // pred_region
      %s141 = ssub.s32 %s10, 1
      // Predicated region
      $region13: #{custom_unet_generator.13} parent=11 // pred_check
        %p142 = pneg %p71
      $region14: #{custom_unet_generator.13} parent=11 // pred_check_branch
        %144 = sbr.rel (%p142) target = $region16
      $region15: #{custom_unet_generator.13} parent=11 // pred_region
        _
      $region16: #{custom_unet_generator.13} parent=11 // pred_fallthru
        _
    $region12: #{custom_unet_generator.13} parent=5 // pred_fallthru
      _
    %p145 = scmp.lt.s32.totalorder %s10, 2
    // Predicated region
    $region17: #{custom_unet_generator.13} parent=5 // pred_check
      %p146 = pneg %p145
    $region18: #{custom_unet_generator.13} parent=5 // pred_check_branch
      %148 = sbr.rel (%p146) target = $region20
    $region19: #{custom_unet_generator.13} parent=5 // pred_region
      // Predicated region
      $region21: #{custom_unet_generator.13} parent=19 // pred_check
        %p149 = pneg %p44
      $region22: #{custom_unet_generator.13} parent=19 // pred_check_branch
        %151 = sbr.rel (%p149) target = $region24
      $region23: #{custom_unet_generator.13} parent=19 // pred_region
        %p152 = scmp.lt.s32.totalorder %s17, 1
        %s153 = scalar_select %p152, %s17, 1
        %p154 = scmp.lt.s32.totalorder %s18, 0
        %s155 = scalar_select %p154, %s18, 0
        %s156 = smul.addr %s155, 6
        %s157 = smul.addr %s153, 6
        %s158 = sadd.s32 %s156, %s157
        %s159 = smul.addr %s158, 4
        %s160 = scalar_lea.vmem %s0, %s159
      $region24: #{custom_unet_generator.13} parent=19 // pred_fallthru
        _
    $region20: #{custom_unet_generator.13} parent=5 // pred_fallthru
      _
    %p161 = scmp.le.s32.totalorder 1, %s10
    %p162 = scmp.lt.s32.totalorder %s10, 3
    %p163 = pnand %p161, %p162
    %p164 = pneg %p163
    // Predicated region
    $region25: #{custom_unet_generator.13} parent=5 // pred_check
      _
    $region26: #{custom_unet_generator.13} parent=5 // pred_check_branch
      %166 = sbr.rel (%p163) target = $region28
    $region27: #{custom_unet_generator.13} parent=5 // pred_region
      %s167 = ssub.s32 %s10, 1
      %p168 = scmp.lt.s32.totalorder %s19, 1
      %s169 = scalar_select %p168, %s19, 1
      %p170 = scmp.lt.s32.totalorder %s20, 0
      %s171 = scalar_select %p170, %s20, 0
      %s172 = smul.addr %s171, 6
      %s173 = smul.addr %s169, 6
      %s174 = sadd.s32 %s172, %s173
      %s175 = smul.addr %s174, 4
      %s176 = scalar_lea.vmem %s0, %s175
      %p177 = pneg %p50
      %p178 = pneg %p47
      %p179 = pneg %p71
      %p180 = pneg %p68
      %p181 = pneg %p99
      %p182 = pneg %p96
      %s183 = smul.u32 4, %s20
      %p184 = scmp.lt.s32.totalorder %s19, 1
      %s185 = scalar_select %p184, %s19, 1
      %p186 = scmp.lt.s32.totalorder %s183, 3
      %s187 = scalar_select %p186, %s183, 3
      %s188 = smul.addr %s187, 2
      %s189 = smul.addr %s185, 8
      %s190 = sadd.s32 %s188, %s189
      %s191 = smul.addr %s190, 2
      %s192 = scalar_lea.vmem %s2, %s191
      %p193 = pneg %p127
      %p194 = pneg %p124
      %p195 = scmp.lt.s32.totalorder %s19, 1
      %s196 = scalar_select %p195, %s19, 1
      %p197 = scmp.lt.s32.totalorder %s20, 0
      %s198 = scalar_select %p197, %s20, 0
      %s199 = sadd.s32 %s198, %s196
      %s200 = smul.addr %s199, 2
      %s201 = scalar_lea.vmem %s3, %s200
      %p202 = scmp.lt.s32.totalorder %s19, 1
      %s203 = scalar_select %p202, %s19, 1
      %p204 = scmp.lt.s32.totalorder %s20, 0
      %s205 = scalar_select %p204, %s20, 0
      %s206 = smul.addr %s205, 6
      %s207 = smul.addr %s203, 6
      %s208 = sadd.s32 %s206, %s207
      %s209 = smul.addr %s208, 4
      %s210 = scalar_lea.vmem %s0, %s209
      %s211 = smul.u32 4, %s20
      %p212 = scmp.lt.s32.totalorder %s19, 1
      %s213 = scalar_select %p212, %s19, 1
      %p214 = scmp.lt.s32.totalorder %s211, 3
      %s215 = scalar_select %p214, %s211, 3
      %s216 = smul.addr %s215, 2
      %s217 = smul.addr %s213, 8
      %s218 = sadd.s32 %s216, %s217
      %s219 = smul.addr %s218, 2
      %s220 = scalar_lea.vmem %s2, %s219
      %s221 = smul.u32 4, %s20
      %p222 = scmp.lt.s32.totalorder %s19, 1
      %s223 = scalar_select %p222, %s19, 1
      %p224 = scmp.lt.s32.totalorder %s20, 0
      %s225 = scalar_select %p224, %s20, 0
      %s226 = sadd.s32 %s225, %s223
      %s227 = smul.addr %s226, 2
      %s228 = scalar_lea.vmem %s3, %s227
      %v230 = vld [vmem:[%s1] sm:$0xf]
      %v231 = vld [vmem:[%s1 + $0x4] sm:$0xf]
      %v232 = vld [vmem:[%s1 + $0x8] sm:$0xf]
      %v233 = vld [vmem:[%s1 + $0xc] sm:$0xf]
      %v234 = vld [vmem:[%s1 + $0x10] sm:$0xf]
      %v235 = vld [vmem:[%s1 + $0x14] sm:$0xf]
      %v236 = vld [vmem:[%s1 + $0x18] sm:$0xf]
      %v237 = vld [vmem:[%s1 + $0x1c] sm:$0xf]
      %v238 = vld [vmem:[%s1 + $0x20] sm:$0xf]
      %v239 = vld [vmem:[%s1 + $0x24] sm:$0xf]
      %v240 = vld [vmem:[%s1 + $0x28] sm:$0xf]
      %v241 = vld [vmem:[%s1 + $0x2c] sm:$0xf]
      %v242 = vld [vmem:[%s1 + $0x30] sm:$0xf]
      %v243 = vld [vmem:[%s1 + $0x34] sm:$0xf]
      %v244 = vld [vmem:[%s1 + $0x38] sm:$0xf]
      %v245 = vld [vmem:[%s1 + $0x3c] sm:$0xf]
      %v246 = vld [vmem:[%s1 + $0x40] sm:$0xf]
      %v247 = vld [vmem:[%s1 + $0x44] sm:$0xf]
      %v248 = vld [vmem:[%s1 + $0x48] sm:$0xf]
      %v249 = vld [vmem:[%s1 + $0x4c] sm:$0xf]
      %v250 = vld [vmem:[%s1 + $0x50] sm:$0xf]
      %v251 = vld [vmem:[%s1 + $0x54] sm:$0xf]
      %v252 = vld [vmem:[%s1 + $0x58] sm:$0xf]
      %v253 = vld [vmem:[%s1 + $0x5c] sm:$0xf]
      %v254 = vld [vmem:[%s1 + $0x60] sm:$0xf]
      %v255 = vld [vmem:[%s1 + $0x64] sm:$0xf]
      %v256 = vld [vmem:[%s1 + $0x68] sm:$0xf]
      %v257 = vld [vmem:[%s1 + $0x6c] sm:$0xf]
      %v258 = vld [vmem:[%s1 + $0x70] sm:$0xf]
      %v259 = vld [vmem:[%s1 + $0x74] sm:$0xf]
      %v260 = vld [vmem:[%s1 + $0x78] sm:$0xf]
      %v261 = vld [vmem:[%s1 + $0x7c] sm:$0xf]
      %s262 = scalar_lea.vmem %s1, 128
      %v263 = vld [vmem:[%s262] sm:$0xf]
      %v264 = vld [vmem:[%s262 + $0x4] sm:$0xf]
      %v265 = vld [vmem:[%s262 + $0x8] sm:$0xf]
      %v266 = vld [vmem:[%s262 + $0xc] sm:$0xf]
      %v267 = vld [vmem:[%s262 + $0x10] sm:$0xf]
      %v268 = vld [vmem:[%s262 + $0x14] sm:$0xf]
      %v269 = vld [vmem:[%s262 + $0x18] sm:$0xf]
      %v270 = vld [vmem:[%s262 + $0x1c] sm:$0xf]
      %v271 = vld [vmem:[%s262 + $0x20] sm:$0xf]
      %v272 = vld [vmem:[%s262 + $0x24] sm:$0xf]
      %v273 = vld [vmem:[%s262 + $0x28] sm:$0xf]
      %v274 = vld [vmem:[%s262 + $0x2c] sm:$0xf]
      %v275 = vld [vmem:[%s262 + $0x30] sm:$0xf]
      %v276 = vld [vmem:[%s262 + $0x34] sm:$0xf]
      %v277 = vld [vmem:[%s262 + $0x38] sm:$0xf]
      %v278 = vld [vmem:[%s262 + $0x3c] sm:$0xf]
      %v279 = vld [vmem:[%s262 + $0x40] sm:$0xf]
      %v280 = vld [vmem:[%s262 + $0x44] sm:$0xf]
      %v281 = vld [vmem:[%s262 + $0x48] sm:$0xf]
      %v282 = vld [vmem:[%s262 + $0x4c] sm:$0xf]
      %v283 = vld [vmem:[%s262 + $0x50] sm:$0xf]
      %v284 = vld [vmem:[%s262 + $0x54] sm:$0xf]
      %v285 = vld [vmem:[%s262 + $0x58] sm:$0xf]
      %v286 = vld [vmem:[%s262 + $0x5c] sm:$0xf]
      %v287 = vld [vmem:[%s262 + $0x60] sm:$0xf]
      %v288 = vld [vmem:[%s262 + $0x64] sm:$0xf]
      %v289 = vld [vmem:[%s262 + $0x68] sm:$0xf]
      %v290 = vld [vmem:[%s262 + $0x6c] sm:$0xf]
      %v291 = vld [vmem:[%s262 + $0x70] sm:$0xf]
      %v292 = vld [vmem:[%s262 + $0x74] sm:$0xf]
      %v293 = vld [vmem:[%s262 + $0x78] sm:$0xf]
      %v294 = vld [vmem:[%s262 + $0x7c] sm:$0xf]
      %s295 = scalar_lea.vmem %s1, 256
      %v296 = vld [vmem:[%s295] sm:$0xf]
      %v297 = vld [vmem:[%s295 + $0x4] sm:$0xf]
      %v298 = vld [vmem:[%s295 + $0x8] sm:$0xf]
      %v299 = vld [vmem:[%s295 + $0xc] sm:$0xf]
      %v300 = vld [vmem:[%s295 + $0x10] sm:$0xf]
      %v301 = vld [vmem:[%s295 + $0x14] sm:$0xf]
      %v302 = vld [vmem:[%s295 + $0x18] sm:$0xf]
      %v303 = vld [vmem:[%s295 + $0x1c] sm:$0xf]
      %v304 = vld [vmem:[%s295 + $0x20] sm:$0xf]
      %v305 = vld [vmem:[%s295 + $0x24] sm:$0xf]
      %v306 = vld [vmem:[%s295 + $0x28] sm:$0xf]
      %v307 = vld [vmem:[%s295 + $0x2c] sm:$0xf]
      %v308 = vld [vmem:[%s295 + $0x30] sm:$0xf]
      %v309 = vld [vmem:[%s295 + $0x34] sm:$0xf]
      %v310 = vld [vmem:[%s295 + $0x38] sm:$0xf]
      %v311 = vld [vmem:[%s295 + $0x3c] sm:$0xf]
      %v312 = vld [vmem:[%s295 + $0x40] sm:$0xf]
      %v313 = vld [vmem:[%s295 + $0x44] sm:$0xf]
      %v314 = vld [vmem:[%s295 + $0x48] sm:$0xf]
      %v315 = vld [vmem:[%s295 + $0x4c] sm:$0xf]
      %v316 = vld [vmem:[%s295 + $0x50] sm:$0xf]
      %v317 = vld [vmem:[%s295 + $0x54] sm:$0xf]
      %v318 = vld [vmem:[%s295 + $0x58] sm:$0xf]
      %v319 = vld [vmem:[%s295 + $0x5c] sm:$0xf]
      %v320 = vld [vmem:[%s295 + $0x60] sm:$0xf]
      %v321 = vld [vmem:[%s295 + $0x64] sm:$0xf]
      %v322 = vld [vmem:[%s295 + $0x68] sm:$0xf]
      %v323 = vld [vmem:[%s295 + $0x6c] sm:$0xf]
      %v324 = vld [vmem:[%s295 + $0x70] sm:$0xf]
      %v325 = vld [vmem:[%s295 + $0x74] sm:$0xf]
      %v326 = vld [vmem:[%s295 + $0x78] sm:$0xf]
      %v327 = vld [vmem:[%s295 + $0x7c] sm:$0xf]
      %s328 = scalar_lea.vmem %s1, 384
      %v329 = vld [vmem:[%s328] sm:$0xf]
      %v330 = vld [vmem:[%s328 + $0x4] sm:$0xf]
      %v331 = vld [vmem:[%s328 + $0x8] sm:$0xf]
      %v332 = vld [vmem:[%s328 + $0xc] sm:$0xf]
      %v333 = vld [vmem:[%s328 + $0x10] sm:$0xf]
      %v334 = vld [vmem:[%s328 + $0x14] sm:$0xf]
      %v335 = vld [vmem:[%s328 + $0x18] sm:$0xf]
      %v336 = vld [vmem:[%s328 + $0x1c] sm:$0xf]
      %v337 = vld [vmem:[%s328 + $0x20] sm:$0xf]
      %v338 = vld [vmem:[%s328 + $0x24] sm:$0xf]
      %v339 = vld [vmem:[%s328 + $0x28] sm:$0xf]
      %v340 = vld [vmem:[%s328 + $0x2c] sm:$0xf]
      %v341 = vld [vmem:[%s328 + $0x30] sm:$0xf]
      %v342 = vld [vmem:[%s328 + $0x34] sm:$0xf]
      %v343 = vld [vmem:[%s328 + $0x38] sm:$0xf]
      %v344 = vld [vmem:[%s328 + $0x3c] sm:$0xf]
      %v345 = vld [vmem:[%s328 + $0x40] sm:$0xf]
      %v346 = vld [vmem:[%s328 + $0x44] sm:$0xf]
      %v347 = vld [vmem:[%s328 + $0x48] sm:$0xf]
      %v348 = vld [vmem:[%s328 + $0x4c] sm:$0xf]
      %v349 = vld [vmem:[%s328 + $0x50] sm:$0xf]
      %v350 = vld [vmem:[%s328 + $0x54] sm:$0xf]
      %v351 = vld [vmem:[%s328 + $0x58] sm:$0xf]
      %v352 = vld [vmem:[%s328 + $0x5c] sm:$0xf]
      %v353 = vld [vmem:[%s328 + $0x60] sm:$0xf]
      %v354 = vld [vmem:[%s328 + $0x64] sm:$0xf]
      %v355 = vld [vmem:[%s328 + $0x68] sm:$0xf]
      %v356 = vld [vmem:[%s328 + $0x6c] sm:$0xf]
      %v357 = vld [vmem:[%s328 + $0x70] sm:$0xf]
      %v358 = vld [vmem:[%s328 + $0x74] sm:$0xf]
      %v359 = vld [vmem:[%s328 + $0x78] sm:$0xf]
      %v360 = vld [vmem:[%s328 + $0x7c] sm:$0xf]
      loop: start=0, step=1, limit=4
      $region29: #{custom_unet_generator.13} parent=27 // loop_pre_header
        _
      $region30: #{custom_unet_generator.13} parent=27 // loop_header
        %s362 = sphi 0, %s366
        %p363 = scmp.ge.s32.totalorder %s362, 4
        %v367 = vphi 0.0, %v1157
        %v368 = vphi 0.0, %v1166
      $region31: #{custom_unet_generator.13} parent=27 // loop_header_branch
        %365 = sbr.rel (%p363) target = $region35
      $region32: #{custom_unet_generator.13} parent=27 // loop_body
        %s369 = smul.addr %s362, 4
        %s370 = scalar_lea.vmem %s210, %s369
        %v371 = vld [vmem:[%s370] sm:$0x3]
        %v372 = vld [vmem:[%s370] sm:$0x7]
        %s373 = sadd.s32 %s362, 1
        %s374 = smul.addr %s373, 4
        %s375 = scalar_lea.vmem %s210, %s374
        %v376 = vld [vmem:[%s375] sm:$0x3]
        %v377 = vld [vmem:[%s375] sm:$0x7]
        %v379 = vunpack.c.l.b16 %v372
        %v380 = vpack.c.b16 %v379, %v379
        %v382 = vshrl.u32 %v380, 16
        %v384 = vshll.u32 %v380, 16
        %v386 = vrot.slane %v384, 1
        %v387 = vor.u32 %v382, %v386
        %388 = vrot.lane.b32.xlu0 %v387, 64
        %v389 = vpop.permute.xlu0 %388
        %v391 = vunpack.c.l.b16 %v377
        %v392 = vpack.c.b16 %v391, %v391
        %v394 = vshrl.u32 %v392, 16
        %v396 = vshll.u32 %v392, 16
        %v398 = vrot.slane %v396, 1
        %v399 = vor.u32 %v394, %v398
        %400 = vrot.lane.b32.xlu0 %v399, 64
        %v401 = vpop.permute.xlu0 %400
        %vm402 = vcmask 523264
        %v405 = vsel %vm402, %v371, %v389
        %v409 = vsel %vm402, %v376, %v401
        %v443 = vunpack.c.l.b16 %v230
        %v444 = vunpack.c.l.b16 %v231
        %v445 = vunpack.c.l.b16 %v232
        %v446 = vunpack.c.l.b16 %v233
        %v447 = vunpack.c.l.b16 %v234
        %v448 = vunpack.c.l.b16 %v235
        %v449 = vunpack.c.l.b16 %v236
        %v450 = vunpack.c.l.b16 %v237
        %v451 = vunpack.c.l.b16 %v238
        %v452 = vunpack.c.l.b16 %v239
        %v453 = vunpack.c.l.b16 %v240
        %v454 = vunpack.c.l.b16 %v241
        %v455 = vunpack.c.l.b16 %v242
        %v456 = vunpack.c.l.b16 %v243
        %v457 = vunpack.c.l.b16 %v244
        %v458 = vunpack.c.l.b16 %v245
        %v459 = vunpack.c.l.b16 %v246
        %v460 = vunpack.c.l.b16 %v247
        %v461 = vunpack.c.l.b16 %v248
        %v462 = vunpack.c.l.b16 %v249
        %v463 = vunpack.c.l.b16 %v250
        %v464 = vunpack.c.l.b16 %v251
        %v465 = vunpack.c.l.b16 %v252
        %v466 = vunpack.c.l.b16 %v253
        %v467 = vunpack.c.l.b16 %v254
        %v468 = vunpack.c.l.b16 %v255
        %v469 = vunpack.c.l.b16 %v256
        %v470 = vunpack.c.l.b16 %v257
        %v471 = vunpack.c.l.b16 %v258
        %v472 = vunpack.c.l.b16 %v259
        %v473 = vunpack.c.l.b16 %v260
        %v474 = vunpack.c.l.b16 %v261
        %v475 = vpack.c.b16 %v444, %v443
        %v476 = vpack.c.b16 %v446, %v445
        %v477 = vpack.c.b16 %v448, %v447
        %v478 = vpack.c.b16 %v450, %v449
        %v479 = vpack.c.b16 %v452, %v451
        %v480 = vpack.c.b16 %v454, %v453
        %v481 = vpack.c.b16 %v456, %v455
        %v482 = vpack.c.b16 %v458, %v457
        %v483 = vpack.c.b16 %v460, %v459
        %v484 = vpack.c.b16 %v462, %v461
        %v485 = vpack.c.b16 %v464, %v463
        %v486 = vpack.c.b16 %v466, %v465
        %v487 = vpack.c.b16 %v468, %v467
        %v488 = vpack.c.b16 %v470, %v469
        %v489 = vpack.c.b16 %v472, %v471
        %v490 = vpack.c.b16 %v474, %v473
        %507 = vmatprep.subr.bf16.mxu0 0
        %508 = vmatpush1.bf16.msra.mxu0 %v475
        %509 = vmatprep.subr.bf16.mxu0 0
        %510 = vmatpush1.bf16.msra.mxu0 %v476
        %511 = vmatprep.subr.bf16.mxu0 0
        %512 = vmatpush1.bf16.msra.mxu0 %v477
        %513 = vmatprep.subr.bf16.mxu0 0
        %514 = vmatpush1.bf16.msra.mxu0 %v478
        %515 = vmatprep.subr.bf16.mxu0 0
        %516 = vmatpush1.bf16.msra.mxu0 %v479
        %517 = vmatprep.subr.bf16.mxu0 0
        %518 = vmatpush1.bf16.msra.mxu0 %v480
        %519 = vmatprep.subr.bf16.mxu0 0
        %520 = vmatpush1.bf16.msra.mxu0 %v481
        %521 = vmatprep.subr.bf16.mxu0 0
        %522 = vmatpush1.bf16.msra.mxu0 %v482
        %523 = vmatprep.subr.bf16.mxu0 0
        %524 = vmatpush1.bf16.msra.mxu0 %v483
        %525 = vmatprep.subr.bf16.mxu0 0
        %526 = vmatpush1.bf16.msra.mxu0 %v484
        %527 = vmatprep.subr.bf16.mxu0 0
        %528 = vmatpush1.bf16.msra.mxu0 %v485
        %529 = vmatprep.subr.bf16.mxu0 0
        %530 = vmatpush1.bf16.msra.mxu0 %v486
        %531 = vmatprep.subr.bf16.mxu0 0
        %532 = vmatpush1.bf16.msra.mxu0 %v487
        %533 = vmatprep.subr.bf16.mxu0 0
        %534 = vmatpush1.bf16.msra.mxu0 %v488
        %535 = vmatprep.subr.bf16.mxu0 0
        %536 = vmatpush1.bf16.msra.mxu0 %v489
        %537 = vmatprep.subr.bf16.mxu0 0
        %538 = vmatpush1.bf16.msra.mxu0 %v490
        %539 = vmatprep.mubr.bf16.mxu0 %v409
        %540 = vmatmul.mubr.bf16.gmra.mrb[0].mxu0 %v405
        %v541 = vpop.f32.mrb[0].mxu0
        %v542 = vadd.f32 0.0, %v541
        %v543 = vpop.f32.mrb[0].mxu0
        %v544 = vpop.f32.mrb[0].mxu0
        %v545 = vpop.f32.mrb[0].mxu0
        %546 = vdwg.mxu0
        %vm547 = vcmask 125952
        %v548 = vsel %vm547, %v542, 0.0
        %v549 = vrot.slane %v548, 4
        %v550 = vadd.f32 %v548, %v549
        %v551 = vrot.slane %v550, 2
        %v552 = vadd.f32 %v550, %v551
        %v553 = vrot.slane %v552, 1
        %v554 = vadd.f32 %v552, %v553
        %v555 = vadd.f32 %v367, %v554
        %v556 = vmul.f32 %v542, %v542
        %v557 = vsel %vm547, %v556, 0.0
        %v558 = vrot.slane %v557, 4
        %v559 = vadd.f32 %v557, %v558
        %v560 = vrot.slane %v559, 2
        %v561 = vadd.f32 %v559, %v560
        %v562 = vrot.slane %v561, 1
        %v563 = vadd.f32 %v561, %v562
        %v564 = vadd.f32 %v368, %v563
        %v565 = vld [vmem:[%s370] sm:$0x6]
        %v566 = vld [vmem:[%s375] sm:$0x6]
        %v568 = vunpack.c.l.b16 %v565
        %v569 = vpack.c.b16 %v568, %v568
        %v571 = vshrl.u32 %v569, 16
        %v573 = vshll.u32 %v569, 16
        %v575 = vrot.slane %v573, 1
        %v576 = vor.u32 %v571, %v575
        %577 = vrot.lane.b32.xlu0 %v576, 64
        %v578 = vpop.permute.xlu0 %577
        %v580 = vunpack.c.l.b16 %v566
        %v581 = vpack.c.b16 %v580, %v580
        %v583 = vshrl.u32 %v581, 16
        %v585 = vshll.u32 %v581, 16
        %v587 = vrot.slane %v585, 1
        %v588 = vor.u32 %v583, %v587
        %589 = vrot.lane.b32.xlu0 %v588, 64
        %v590 = vpop.permute.xlu0 %589
        %v593 = vsel %vm402, %v372, %v578
        %v596 = vsel %vm402, %v377, %v590
        %v597 = vshrl.u32 %v593, 16
        %v599 = vshll.u32 %v593, 16
        %v601 = vrot.slane %v599, 1
        %v602 = vor.u32 %v597, %v601
        %v603 = vshrl.u32 %v596, 16
        %v605 = vshll.u32 %v596, 16
        %v607 = vrot.slane %v605, 1
        %v608 = vor.u32 %v603, %v607
        %v643 = vunpack.c.l.b16 %v263
        %v644 = vunpack.c.l.b16 %v264
        %v645 = vunpack.c.l.b16 %v265
        %v646 = vunpack.c.l.b16 %v266
        %v647 = vunpack.c.l.b16 %v267
        %v648 = vunpack.c.l.b16 %v268
        %v649 = vunpack.c.l.b16 %v269
        %v650 = vunpack.c.l.b16 %v270
        %v651 = vunpack.c.l.b16 %v271
        %v652 = vunpack.c.l.b16 %v272
        %v653 = vunpack.c.l.b16 %v273
        %v654 = vunpack.c.l.b16 %v274
        %v655 = vunpack.c.l.b16 %v275
        %v656 = vunpack.c.l.b16 %v276
        %v657 = vunpack.c.l.b16 %v277
        %v658 = vunpack.c.l.b16 %v278
        %v659 = vunpack.c.l.b16 %v279
        %v660 = vunpack.c.l.b16 %v280
        %v661 = vunpack.c.l.b16 %v281
        %v662 = vunpack.c.l.b16 %v282
        %v663 = vunpack.c.l.b16 %v283
        %v664 = vunpack.c.l.b16 %v284
        %v665 = vunpack.c.l.b16 %v285
        %v666 = vunpack.c.l.b16 %v286
        %v667 = vunpack.c.l.b16 %v287
        %v668 = vunpack.c.l.b16 %v288
        %v669 = vunpack.c.l.b16 %v289
        %v670 = vunpack.c.l.b16 %v290
        %v671 = vunpack.c.l.b16 %v291
        %v672 = vunpack.c.l.b16 %v292
        %v673 = vunpack.c.l.b16 %v293
        %v674 = vunpack.c.l.b16 %v294
        %v675 = vpack.c.b16 %v644, %v643
        %v676 = vpack.c.b16 %v646, %v645
        %v677 = vpack.c.b16 %v648, %v647
        %v678 = vpack.c.b16 %v650, %v649
        %v679 = vpack.c.b16 %v652, %v651
        %v680 = vpack.c.b16 %v654, %v653
        %v681 = vpack.c.b16 %v656, %v655
        %v682 = vpack.c.b16 %v658, %v657
        %v683 = vpack.c.b16 %v660, %v659
        %v684 = vpack.c.b16 %v662, %v661
        %v685 = vpack.c.b16 %v664, %v663
        %v686 = vpack.c.b16 %v666, %v665
        %v687 = vpack.c.b16 %v668, %v667
        %v688 = vpack.c.b16 %v670, %v669
        %v689 = vpack.c.b16 %v672, %v671
        %v690 = vpack.c.b16 %v674, %v673
        %707 = vmatprep.subr.bf16.mxu0 0
        %708 = vmatpush1.bf16.msra.mxu0 %v675
        %709 = vmatprep.subr.bf16.mxu0 0
        %710 = vmatpush1.bf16.msra.mxu0 %v676
        %711 = vmatprep.subr.bf16.mxu0 0
        %712 = vmatpush1.bf16.msra.mxu0 %v677
        %713 = vmatprep.subr.bf16.mxu0 0
        %714 = vmatpush1.bf16.msra.mxu0 %v678
        %715 = vmatprep.subr.bf16.mxu0 0
        %716 = vmatpush1.bf16.msra.mxu0 %v679
        %717 = vmatprep.subr.bf16.mxu0 0
        %718 = vmatpush1.bf16.msra.mxu0 %v680
        %719 = vmatprep.subr.bf16.mxu0 0
        %720 = vmatpush1.bf16.msra.mxu0 %v681
        %721 = vmatprep.subr.bf16.mxu0 0
        %722 = vmatpush1.bf16.msra.mxu0 %v682
        %723 = vmatprep.subr.bf16.mxu0 0
        %724 = vmatpush1.bf16.msra.mxu0 %v683
        %725 = vmatprep.subr.bf16.mxu0 0
        %726 = vmatpush1.bf16.msra.mxu0 %v684
        %727 = vmatprep.subr.bf16.mxu0 0
        %728 = vmatpush1.bf16.msra.mxu0 %v685
        %729 = vmatprep.subr.bf16.mxu0 0
        %730 = vmatpush1.bf16.msra.mxu0 %v686
        %731 = vmatprep.subr.bf16.mxu0 0
        %732 = vmatpush1.bf16.msra.mxu0 %v687
        %733 = vmatprep.subr.bf16.mxu0 0
        %734 = vmatpush1.bf16.msra.mxu0 %v688
        %735 = vmatprep.subr.bf16.mxu0 0
        %736 = vmatpush1.bf16.msra.mxu0 %v689
        %737 = vmatprep.subr.bf16.mxu0 0
        %738 = vmatpush1.bf16.msra.mxu0 %v690
        %739 = vmatprep.mubr.bf16.mxu0 %v608
        %740 = vmatmul.mubr.bf16.gmra.mrb[0].mxu0 %v602
        %v741 = vpop.f32.mrb[0].mxu0
        %v742 = vadd.f32 0.0, %v741
        %v743 = vpop.f32.mrb[0].mxu0
        %v744 = vpop.f32.mrb[0].mxu0
        %v745 = vpop.f32.mrb[0].mxu0
        %746 = vdwg.mxu0
        %v747 = vsel %vm547, %v742, 0.0
        %v748 = vrot.slane %v747, 4
        %v749 = vadd.f32 %v747, %v748
        %v750 = vrot.slane %v749, 2
        %v751 = vadd.f32 %v749, %v750
        %v752 = vrot.slane %v751, 1
        %v753 = vadd.f32 %v751, %v752
        %v754 = vadd.f32 %v555, %v753
        %v755 = vmul.f32 %v742, %v742
        %v756 = vsel %vm547, %v755, 0.0
        %v757 = vrot.slane %v756, 4
        %v758 = vadd.f32 %v756, %v757
        %v759 = vrot.slane %v758, 2
        %v760 = vadd.f32 %v758, %v759
        %v761 = vrot.slane %v760, 1
        %v762 = vadd.f32 %v760, %v761
        %v763 = vadd.f32 %v564, %v762
        %765 = vrot.lane.b32.xlu0 %v742, 16
        %v766 = vpop.permute.xlu0 %765
        %vm768 = vcmask 130048
        %v769 = vsel %vm768, %v542, %v766
        %v770 = vpack.c.bf16 %v769, %v769
        %s771 = smul.u32 %s362, 2
        %s772 = smul.addr %s771, 2
        %s773 = scalar_lea.vmem %s220, %s772
        %vm774 = vcmask 254976
        %775 = vst.msk [vmem:[%s773] sm:$0x3] %vm774, %v770
        %v776 = vld [vmem:[%s375] sm:$0x3]
        %v777 = vld [vmem:[%s375] sm:$0x7]
        %s778 = sadd.s32 %s362, 2
        %s779 = smul.addr %s778, 4
        %s780 = scalar_lea.vmem %s210, %s779
        %v781 = vld [vmem:[%s780] sm:$0x3]
        %v782 = vld [vmem:[%s780] sm:$0x7]
        %v784 = vunpack.c.l.b16 %v777
        %v785 = vpack.c.b16 %v784, %v784
        %v787 = vshrl.u32 %v785, 16
        %v789 = vshll.u32 %v785, 16
        %v791 = vrot.slane %v789, 1
        %v792 = vor.u32 %v787, %v791
        %793 = vrot.lane.b32.xlu0 %v792, 64
        %v794 = vpop.permute.xlu0 %793
        %v796 = vunpack.c.l.b16 %v782
        %v797 = vpack.c.b16 %v796, %v796
        %v799 = vshrl.u32 %v797, 16
        %v801 = vshll.u32 %v797, 16
        %v803 = vrot.slane %v801, 1
        %v804 = vor.u32 %v799, %v803
        %805 = vrot.lane.b32.xlu0 %v804, 64
        %v806 = vpop.permute.xlu0 %805
        %v809 = vsel %vm402, %v776, %v794
        %v813 = vsel %vm402, %v781, %v806
        %v847 = vunpack.c.l.b16 %v296
        %v848 = vunpack.c.l.b16 %v297
        %v849 = vunpack.c.l.b16 %v298
        %v850 = vunpack.c.l.b16 %v299
        %v851 = vunpack.c.l.b16 %v300
        %v852 = vunpack.c.l.b16 %v301
        %v853 = vunpack.c.l.b16 %v302
        %v854 = vunpack.c.l.b16 %v303
        %v855 = vunpack.c.l.b16 %v304
        %v856 = vunpack.c.l.b16 %v305
        %v857 = vunpack.c.l.b16 %v306
        %v858 = vunpack.c.l.b16 %v307
        %v859 = vunpack.c.l.b16 %v308
        %v860 = vunpack.c.l.b16 %v309
        %v861 = vunpack.c.l.b16 %v310
        %v862 = vunpack.c.l.b16 %v311
        %v863 = vunpack.c.l.b16 %v312
        %v864 = vunpack.c.l.b16 %v313
        %v865 = vunpack.c.l.b16 %v314
        %v866 = vunpack.c.l.b16 %v315
        %v867 = vunpack.c.l.b16 %v316
        %v868 = vunpack.c.l.b16 %v317
        %v869 = vunpack.c.l.b16 %v318
        %v870 = vunpack.c.l.b16 %v319
        %v871 = vunpack.c.l.b16 %v320
        %v872 = vunpack.c.l.b16 %v321
        %v873 = vunpack.c.l.b16 %v322
        %v874 = vunpack.c.l.b16 %v323
        %v875 = vunpack.c.l.b16 %v324
        %v876 = vunpack.c.l.b16 %v325
        %v877 = vunpack.c.l.b16 %v326
        %v878 = vunpack.c.l.b16 %v327
        %v879 = vpack.c.b16 %v848, %v847
        %v880 = vpack.c.b16 %v850, %v849
        %v881 = vpack.c.b16 %v852, %v851
        %v882 = vpack.c.b16 %v854, %v853
        %v883 = vpack.c.b16 %v856, %v855
        %v884 = vpack.c.b16 %v858, %v857
        %v885 = vpack.c.b16 %v860, %v859
        %v886 = vpack.c.b16 %v862, %v861
        %v887 = vpack.c.b16 %v864, %v863
        %v888 = vpack.c.b16 %v866, %v865
        %v889 = vpack.c.b16 %v868, %v867
        %v890 = vpack.c.b16 %v870, %v869
        %v891 = vpack.c.b16 %v872, %v871
        %v892 = vpack.c.b16 %v874, %v873
        %v893 = vpack.c.b16 %v876, %v875
        %v894 = vpack.c.b16 %v878, %v877
        %911 = vmatprep.subr.bf16.mxu0 0
        %912 = vmatpush1.bf16.msra.mxu0 %v879
        %913 = vmatprep.subr.bf16.mxu0 0
        %914 = vmatpush1.bf16.msra.mxu0 %v880
        %915 = vmatprep.subr.bf16.mxu0 0
        %916 = vmatpush1.bf16.msra.mxu0 %v881
        %917 = vmatprep.subr.bf16.mxu0 0
        %918 = vmatpush1.bf16.msra.mxu0 %v882
        %919 = vmatprep.subr.bf16.mxu0 0
        %920 = vmatpush1.bf16.msra.mxu0 %v883
        %921 = vmatprep.subr.bf16.mxu0 0
        %922 = vmatpush1.bf16.msra.mxu0 %v884
        %923 = vmatprep.subr.bf16.mxu0 0
        %924 = vmatpush1.bf16.msra.mxu0 %v885
        %925 = vmatprep.subr.bf16.mxu0 0
        %926 = vmatpush1.bf16.msra.mxu0 %v886
        %927 = vmatprep.subr.bf16.mxu0 0
        %928 = vmatpush1.bf16.msra.mxu0 %v887
        %929 = vmatprep.subr.bf16.mxu0 0
        %930 = vmatpush1.bf16.msra.mxu0 %v888
        %931 = vmatprep.subr.bf16.mxu0 0
        %932 = vmatpush1.bf16.msra.mxu0 %v889
        %933 = vmatprep.subr.bf16.mxu0 0
        %934 = vmatpush1.bf16.msra.mxu0 %v890
        %935 = vmatprep.subr.bf16.mxu0 0
        %936 = vmatpush1.bf16.msra.mxu0 %v891
        %937 = vmatprep.subr.bf16.mxu0 0
        %938 = vmatpush1.bf16.msra.mxu0 %v892
        %939 = vmatprep.subr.bf16.mxu0 0
        %940 = vmatpush1.bf16.msra.mxu0 %v893
        %941 = vmatprep.subr.bf16.mxu0 0
        %942 = vmatpush1.bf16.msra.mxu0 %v894
        %943 = vmatprep.mubr.bf16.mxu0 %v813
        %944 = vmatmul.mubr.bf16.gmra.mrb[0].mxu0 %v809
        %v945 = vpop.f32.mrb[0].mxu0
        %v946 = vadd.f32 0.0, %v945
        %v947 = vpop.f32.mrb[0].mxu0
        %v948 = vpop.f32.mrb[0].mxu0
        %v949 = vpop.f32.mrb[0].mxu0
        %950 = vdwg.mxu0
        %v951 = vsel %vm547, %v946, 0.0
        %v952 = vrot.slane %v951, 4
        %v953 = vadd.f32 %v951, %v952
        %v954 = vrot.slane %v953, 2
        %v955 = vadd.f32 %v953, %v954
        %v956 = vrot.slane %v955, 1
        %v957 = vadd.f32 %v955, %v956
        %v958 = vadd.f32 %v754, %v957
        %v959 = vmul.f32 %v946, %v946
        %v960 = vsel %vm547, %v959, 0.0
        %v961 = vrot.slane %v960, 4
        %v962 = vadd.f32 %v960, %v961
        %v963 = vrot.slane %v962, 2
        %v964 = vadd.f32 %v962, %v963
        %v965 = vrot.slane %v964, 1
        %v966 = vadd.f32 %v964, %v965
        %v967 = vadd.f32 %v763, %v966
        %v968 = vld [vmem:[%s375] sm:$0x6]
        %v969 = vld [vmem:[%s780] sm:$0x6]
        %v971 = vunpack.c.l.b16 %v968
        %v972 = vpack.c.b16 %v971, %v971
        %v974 = vshrl.u32 %v972, 16
        %v976 = vshll.u32 %v972, 16
        %v978 = vrot.slane %v976, 1
        %v979 = vor.u32 %v974, %v978
        %980 = vrot.lane.b32.xlu0 %v979, 64
        %v981 = vpop.permute.xlu0 %980
        %v983 = vunpack.c.l.b16 %v969
        %v984 = vpack.c.b16 %v983, %v983
        %v986 = vshrl.u32 %v984, 16
        %v988 = vshll.u32 %v984, 16
        %v990 = vrot.slane %v988, 1
        %v991 = vor.u32 %v986, %v990
        %992 = vrot.lane.b32.xlu0 %v991, 64
        %v993 = vpop.permute.xlu0 %992
        %v996 = vsel %vm402, %v777, %v981
        %v999 = vsel %vm402, %v782, %v993
        %v1000 = vshrl.u32 %v996, 16
        %v1002 = vshll.u32 %v996, 16
        %v1004 = vrot.slane %v1002, 1
        %v1005 = vor.u32 %v1000, %v1004
        %v1006 = vshrl.u32 %v999, 16
        %v1008 = vshll.u32 %v999, 16
        %v1010 = vrot.slane %v1008, 1
        %v1011 = vor.u32 %v1006, %v1010
        %v1046 = vunpack.c.l.b16 %v329
        %v1047 = vunpack.c.l.b16 %v330
        %v1048 = vunpack.c.l.b16 %v331
        %v1049 = vunpack.c.l.b16 %v332
        %v1050 = vunpack.c.l.b16 %v333
        %v1051 = vunpack.c.l.b16 %v334
        %v1052 = vunpack.c.l.b16 %v335
        %v1053 = vunpack.c.l.b16 %v336
        %v1054 = vunpack.c.l.b16 %v337
        %v1055 = vunpack.c.l.b16 %v338
        %v1056 = vunpack.c.l.b16 %v339
        %v1057 = vunpack.c.l.b16 %v340
        %v1058 = vunpack.c.l.b16 %v341
        %v1059 = vunpack.c.l.b16 %v342
        %v1060 = vunpack.c.l.b16 %v343
        %v1061 = vunpack.c.l.b16 %v344
        %v1062 = vunpack.c.l.b16 %v345
        %v1063 = vunpack.c.l.b16 %v346
        %v1064 = vunpack.c.l.b16 %v347
        %v1065 = vunpack.c.l.b16 %v348
        %v1066 = vunpack.c.l.b16 %v349
        %v1067 = vunpack.c.l.b16 %v350
        %v1068 = vunpack.c.l.b16 %v351
        %v1069 = vunpack.c.l.b16 %v352
        %v1070 = vunpack.c.l.b16 %v353
        %v1071 = vunpack.c.l.b16 %v354
        %v1072 = vunpack.c.l.b16 %v355
        %v1073 = vunpack.c.l.b16 %v356
        %v1074 = vunpack.c.l.b16 %v357
        %v1075 = vunpack.c.l.b16 %v358
        %v1076 = vunpack.c.l.b16 %v359
        %v1077 = vunpack.c.l.b16 %v360
        %v1078 = vpack.c.b16 %v1047, %v1046
        %v1079 = vpack.c.b16 %v1049, %v1048
        %v1080 = vpack.c.b16 %v1051, %v1050
        %v1081 = vpack.c.b16 %v1053, %v1052
        %v1082 = vpack.c.b16 %v1055, %v1054
        %v1083 = vpack.c.b16 %v1057, %v1056
        %v1084 = vpack.c.b16 %v1059, %v1058
        %v1085 = vpack.c.b16 %v1061, %v1060
        %v1086 = vpack.c.b16 %v1063, %v1062
        %v1087 = vpack.c.b16 %v1065, %v1064
        %v1088 = vpack.c.b16 %v1067, %v1066
        %v1089 = vpack.c.b16 %v1069, %v1068
        %v1090 = vpack.c.b16 %v1071, %v1070
        %v1091 = vpack.c.b16 %v1073, %v1072
        %v1092 = vpack.c.b16 %v1075, %v1074
        %v1093 = vpack.c.b16 %v1077, %v1076
        %1110 = vmatprep.subr.bf16.mxu0 0
        %1111 = vmatpush1.bf16.msra.mxu0 %v1078
        %1112 = vmatprep.subr.bf16.mxu0 0
        %1113 = vmatpush1.bf16.msra.mxu0 %v1079
        %1114 = vmatprep.subr.bf16.mxu0 0
        %1115 = vmatpush1.bf16.msra.mxu0 %v1080
        %1116 = vmatprep.subr.bf16.mxu0 0
        %1117 = vmatpush1.bf16.msra.mxu0 %v1081
        %1118 = vmatprep.subr.bf16.mxu0 0
        %1119 = vmatpush1.bf16.msra.mxu0 %v1082
        %1120 = vmatprep.subr.bf16.mxu0 0
        %1121 = vmatpush1.bf16.msra.mxu0 %v1083
        %1122 = vmatprep.subr.bf16.mxu0 0
        %1123 = vmatpush1.bf16.msra.mxu0 %v1084
        %1124 = vmatprep.subr.bf16.mxu0 0
        %1125 = vmatpush1.bf16.msra.mxu0 %v1085
        %1126 = vmatprep.subr.bf16.mxu0 0
        %1127 = vmatpush1.bf16.msra.mxu0 %v1086
        %1128 = vmatprep.subr.bf16.mxu0 0
        %1129 = vmatpush1.bf16.msra.mxu0 %v1087
        %1130 = vmatprep.subr.bf16.mxu0 0
        %1131 = vmatpush1.bf16.msra.mxu0 %v1088
        %1132 = vmatprep.subr.bf16.mxu0 0
        %1133 = vmatpush1.bf16.msra.mxu0 %v1089
        %1134 = vmatprep.subr.bf16.mxu0 0
        %1135 = vmatpush1.bf16.msra.mxu0 %v1090
        %1136 = vmatprep.subr.bf16.mxu0 0
        %1137 = vmatpush1.bf16.msra.mxu0 %v1091
        %1138 = vmatprep.subr.bf16.mxu0 0
        %1139 = vmatpush1.bf16.msra.mxu0 %v1092
        %1140 = vmatprep.subr.bf16.mxu0 0
        %1141 = vmatpush1.bf16.msra.mxu0 %v1093
        %1142 = vmatprep.mubr.bf16.mxu0 %v1011
        %1143 = vmatmul.mubr.bf16.gmra.mrb[0].mxu0 %v1005
        %v1144 = vpop.f32.mrb[0].mxu0
        %v1145 = vadd.f32 0.0, %v1144
        %v1146 = vpop.f32.mrb[0].mxu0
        %v1147 = vpop.f32.mrb[0].mxu0
        %v1148 = vpop.f32.mrb[0].mxu0
        %1149 = vdwg.mxu0
        %v1150 = vsel %vm547, %v1145, 0.0
        %v1151 = vrot.slane %v1150, 4
        %v1152 = vadd.f32 %v1150, %v1151
        %v1153 = vrot.slane %v1152, 2
        %v1154 = vadd.f32 %v1152, %v1153
        %v1155 = vrot.slane %v1154, 1
        %v1156 = vadd.f32 %v1154, %v1155
        %v1157 = vadd.f32 %v958, %v1156
        %v1158 = vmul.f32 %v1145, %v1145
        %v1159 = vsel %vm547, %v1158, 0.0
        %v1160 = vrot.slane %v1159, 4
        %v1161 = vadd.f32 %v1159, %v1160
        %v1162 = vrot.slane %v1161, 2
        %v1163 = vadd.f32 %v1161, %v1162
        %v1164 = vrot.slane %v1163, 1
        %v1165 = vadd.f32 %v1163, %v1164
        %v1166 = vadd.f32 %v967, %v1165
        %1168 = vrot.lane.b32.xlu0 %v1145, 16
        %v1169 = vpop.permute.xlu0 %1168
        %v1171 = vsel %vm768, %v946, %v1169
        %v1172 = vpack.c.bf16 %v1171, %v1171
        %s1173 = sadd.s32 1, %s771
        %s1174 = smul.addr %s1173, 2
        %s1175 = scalar_lea.vmem %s220, %s1174
        %1176 = vst.msk [vmem:[%s1175] sm:$0x3] %vm774, %v1172
      $region33: #{custom_unet_generator.13} parent=27 // loop_footer
        %s366 = sadd.s32 1, %s362
      $region34: #{custom_unet_generator.13} parent=27 // loop_footer_branch
        %361 = sbr.rel target = $region30
      $region35: #{custom_unet_generator.13} parent=27 // loop_exit
        _
      %vm1177 = vcmask 1040384
      %v1178 = vsel %vm1177, %v367, %v368
      %vm1179 = vcmask 123904
      %1180 = vst.msk [vmem:[%s228] sm:$0x3] %vm1179, %v1178
      %s1181 = smul.u32 4, %s20
      %p1182 = scmp.lt.s32.totalorder %s19, 1
      %s1183 = scalar_select %p1182, %s19, 1
      %p1184 = scmp.lt.s32.totalorder %s1181, 3
      %s1185 = scalar_select %p1184, %s1181, 3
      %s1186 = smul.addr %s1185, 2
      %s1187 = smul.addr %s1183, 8
      %s1188 = sadd.s32 %s1186, %s1187
      %s1189 = smul.addr %s1188, 2
      %s1190 = scalar_lea.vmem %s2, %s1189
      %p1191 = scmp.lt.s32.totalorder %s19, 1
      %s1192 = scalar_select %p1191, %s19, 1
      %p1193 = scmp.lt.s32.totalorder %s20, 0
      %s1194 = scalar_select %p1193, %s20, 0
      %s1195 = sadd.s32 %s1194, %s1192
      %s1196 = smul.addr %s1195, 2
      %s1197 = scalar_lea.vmem %s3, %s1196
      // Predicated region
      $region36: #{custom_unet_generator.13} parent=27 // pred_check
        %p1198 = pneg %p96
      $region37: #{custom_unet_generator.13} parent=27 // pred_check_branch
        %1200 = sbr.rel (%p1198) target = $region39
      $region38: #{custom_unet_generator.13} parent=27 // pred_region
        %s1201 = smul.u32 4, %s20
      $region39: #{custom_unet_generator.13} parent=27 // pred_fallthru
        _
      // Predicated region
      $region40: #{custom_unet_generator.13} parent=27 // pred_check
        %p1202 = pneg %p124
      $region41: #{custom_unet_generator.13} parent=27 // pred_check_branch
        %1204 = sbr.rel (%p1202) target = $region43
      $region42: #{custom_unet_generator.13} parent=27 // pred_region
        _
      $region43: #{custom_unet_generator.13} parent=27 // pred_fallthru
        _
    $region28: #{custom_unet_generator.13} parent=5 // pred_fallthru
      _
    %p1205 = scmp.le.s32.totalorder 2, %s10
    // Predicated region
    $region44: #{custom_unet_generator.13} parent=5 // pred_check
      %p1206 = pneg %p1205
    $region45: #{custom_unet_generator.13} parent=5 // pred_check_branch
      %1208 = sbr.rel (%p1206) target = $region47
    $region46: #{custom_unet_generator.13} parent=5 // pred_region
      %s1209 = ssub.s32 %s10, 2
      // Predicated region
      $region48: #{custom_unet_generator.13} parent=46 // pred_check
        %p1210 = pneg %p102
      $region49: #{custom_unet_generator.13} parent=46 // pred_check_branch
        %1212 = sbr.rel (%p1210) target = $region51
      $region50: #{custom_unet_generator.13} parent=46 // pred_region
        %s1213 = smul.u32 4, %s22
        %p1214 = scmp.lt.s32.totalorder %s21, 1
        %s1215 = scalar_select %p1214, %s21, 1
        %p1216 = scmp.lt.s32.totalorder %s1213, 3
        %s1217 = scalar_select %p1216, %s1213, 3
        %s1218 = smul.addr %s1217, 2
        %s1219 = smul.addr %s1215, 8
        %s1220 = sadd.s32 %s1218, %s1219
        %s1221 = smul.addr %s1220, 2
        %s1222 = scalar_lea.vmem %s2, %s1221
      $region51: #{custom_unet_generator.13} parent=46 // pred_fallthru
        _
      // Predicated region
      $region52: #{custom_unet_generator.13} parent=46 // pred_check
        %p1223 = pneg %p130
      $region53: #{custom_unet_generator.13} parent=46 // pred_check_branch
        %1225 = sbr.rel (%p1223) target = $region55
      $region54: #{custom_unet_generator.13} parent=46 // pred_region
        %p1226 = scmp.lt.s32.totalorder %s21, 1
        %s1227 = scalar_select %p1226, %s21, 1
        %p1228 = scmp.lt.s32.totalorder %s22, 0
        %s1229 = scalar_select %p1228, %s22, 0
        %s1230 = sadd.s32 %s1229, %s1227
        %s1231 = smul.addr %s1230, 2
        %s1232 = scalar_lea.vmem %s3, %s1231
      $region55: #{custom_unet_generator.13} parent=46 // pred_fallthru
        _
    $region47: #{custom_unet_generator.13} parent=5 // pred_fallthru
      _
  $region6: #{custom_unet_generator.13} parent=0 // loop_footer
    %s14 = sadd.s32 1, %s10
  $region7: #{custom_unet_generator.13} parent=0 // loop_footer_branch
    %9 = sbr.rel target = $region3
  $region8: #{custom_unet_generator.13} parent=0 // loop_exit
    _

// kernel: custom_unet_generator.14
$region0: #{custom_unet_generator.14}
  #allocation0 [shape = 'u32[]', space=smem, size = 0x4, offset = 0x4, fixed_abs, tag = 'smem constant byte address 0x4 - core index']
  #allocation1 [shape = 'u32[144,128]{1,0:T(1,128)}', space=vmem, size = 0x12000, scoped, tag = 'internal scratch']
  %s0 = inlined_call_operand.vmem [shape: bf16[2,1,10,10,32], index: 0, kind: input, shape index: {}]
  %s1 = inlined_call_operand.vmem [shape: bf16[4,128,8], index: 1, kind: input, shape index: {}]
  %s2 = inlined_call_operand.vmem [shape: bf16[2,8,2,8,16], index: 2, kind: output, shape index: {0}]
  %s3 = inlined_call_operand.vmem [shape: f32[2,1,2,8], index: 3, kind: output, shape index: {1}]
  %4 = xla_tuple %s2, %s3
  %s5 = sld [smem:[#allocation0]]
  $region56: #{custom_unet_generator.14} parent=0
    _
  %s7 = ssub.s32 1, %s5
  %s8 = scalar_select 0, %s7, %s5
  loop: start=0, step=1, limit=4
  $region2: #{custom_unet_generator.14} parent=0 // loop_pre_header
    _
  $region3: #{custom_unet_generator.14} parent=0 // loop_header
    %s10 = sphi 0, %s14
    %p11 = scmp.ge.s32.totalorder %s10, 4
    %s17 = sphi 0, %s29
    %s18 = sphi 0, %s25
    %s19 = sphi 0, %s17
    %s20 = sphi 0, %s18
    %s21 = sphi 0, %s19
    %s22 = sphi 0, %s20
    %s34 = sphi 0, %s36
    %s37 = sphi 0, %s34
    %s38 = sphi 0, %s37
    %s54 = sphi 0, %s38
    %s58 = sphi 0, %s58
    %s60 = sphi 0, %s58
    %s61 = sphi 0, %s60
    %s75 = sphi 0, %s61
    %s83 = sphi 0, %s85
    %s86 = sphi 0, %s83
    %s87 = sphi 0, %s86
    %s103 = sphi 0, %s87
    %s111 = sphi 0, %s113
    %s114 = sphi 0, %s111
    %s115 = sphi 0, %s114
    %s131 = sphi 0, %s115
  $region4: #{custom_unet_generator.14} parent=0 // loop_header_branch
    %13 = sbr.rel (%p11) target = $region8
  $region5: #{custom_unet_generator.14} parent=0 // loop_body
    %s15 = ssub.s32 %s10, 1
    %s16 = ssub.s32 %s10, 2
    %s23 = sadd.s32 1, %s18
    %p24 = scmp.ge.s32.totalorder %s23, 1
    %s25 = scalar_select %p24, 0, %s23
    %s26 = sadd.s32 1, %s17
    %s27 = scalar_select %p24, %s26, %s17
    %p28 = scmp.ge.s32.totalorder %s27, 2
    %s29 = scalar_select %p28, 0, %s27
    %s30 = ssub.s32 %s17, %s29
    %s31 = ssub.s32 %s18, %s25
    %s32 = sor.u32 %s30, %s31
    %p33 = scmp.eq.s32.totalorder %s32, 0
    %s35 = sadd.s32 %s34, 1
    %s36 = scalar_select %p33, %s34, %s35
    %p39 = pneg %p33
    %p40 = scmp.eq.s32.totalorder %s10, 1
    %p41 = por %p39, %p40
    %p42 = scmp.ne.s32.totalorder %s34, %s37
    %p43 = scmp.eq.s32.totalorder %s10, 0
    %p44 = por %p42, %p43
    %p45 = scmp.ne.s32.totalorder %s34, %s37
    %p46 = scmp.eq.s32.totalorder %s15, 1
    %p47 = por %p45, %p46
    %p48 = scmp.ne.s32.totalorder %s37, %s38
    %p49 = scmp.eq.s32.totalorder %s15, 0
    %p50 = por %p48, %p49
    %p51 = scmp.ne.s32.totalorder %s37, %s38
    %p52 = scmp.eq.s32.totalorder %s16, 1
    %p53 = por %p51, %p52
    %p55 = scmp.ne.s32.totalorder %s38, %s54
    %p56 = scmp.eq.s32.totalorder %s16, 0
    %p57 = por %p55, %p56
    %s59 = sadd.s32 %s58, 1
    %p62 = scmp.eq.s32.totalorder %s10, 1
    %p63 = scmp.ne.s32.totalorder %s58, %s60
    %p64 = scmp.eq.s32.totalorder %s10, 0
    %p65 = por %p63, %p64
    %p66 = scmp.ne.s32.totalorder %s58, %s60
    %p67 = scmp.eq.s32.totalorder %s15, 1
    %p68 = por %p66, %p67
    %p69 = scmp.ne.s32.totalorder %s60, %s61
    %p70 = scmp.eq.s32.totalorder %s15, 0
    %p71 = por %p69, %p70
    %p72 = scmp.ne.s32.totalorder %s60, %s61
    %p73 = scmp.eq.s32.totalorder %s16, 1
    %p74 = por %p72, %p73
    %p76 = scmp.ne.s32.totalorder %s61, %s75
    %p77 = scmp.eq.s32.totalorder %s16, 0
    %p78 = por %p76, %p77
    %s79 = ssub.s32 %s17, %s29
    %s80 = ssub.s32 %s18, %s25
    %s81 = sor.u32 %s79, %s80
    %p82 = scmp.eq.s32.totalorder %s81, 0
    %s84 = sadd.s32 %s83, 1
    %s85 = scalar_select %p82, %s83, %s84
    %p88 = pneg %p82
    %p89 = scmp.eq.s32.totalorder %s10, 1
    %p90 = por %p88, %p89
    %p91 = scmp.ne.s32.totalorder %s83, %s86
    %p92 = scmp.eq.s32.totalorder %s10, 0
    %p93 = por %p91, %p92
    %p94 = scmp.ne.s32.totalorder %s83, %s86
    %p95 = scmp.eq.s32.totalorder %s15, 1
    %p96 = por %p94, %p95
    %p97 = scmp.ne.s32.totalorder %s86, %s87
    %p98 = scmp.eq.s32.totalorder %s15, 0
    %p99 = por %p97, %p98
    %p100 = scmp.ne.s32.totalorder %s86, %s87
    %p101 = scmp.eq.s32.totalorder %s16, 1
    %p102 = por %p100, %p101
    %p104 = scmp.ne.s32.totalorder %s87, %s103
    %p105 = scmp.eq.s32.totalorder %s16, 0
    %p106 = por %p104, %p105
    %s107 = ssub.s32 %s17, %s29
    %s108 = ssub.s32 %s18, %s25
    %s109 = sor.u32 %s107, %s108
    %p110 = scmp.eq.s32.totalorder %s109, 0
    %s112 = sadd.s32 %s111, 1
    %s113 = scalar_select %p110, %s111, %s112
    %p116 = pneg %p110
    %p117 = scmp.eq.s32.totalorder %s10, 1
    %p118 = por %p116, %p117
    %p119 = scmp.ne.s32.totalorder %s111, %s114
    %p120 = scmp.eq.s32.totalorder %s10, 0
    %p121 = por %p119, %p120
    %p122 = scmp.ne.s32.totalorder %s111, %s114
    %p123 = scmp.eq.s32.totalorder %s15, 1
    %p124 = por %p122, %p123
    %p125 = scmp.ne.s32.totalorder %s114, %s115
    %p126 = scmp.eq.s32.totalorder %s15, 0
    %p127 = por %p125, %p126
    %p128 = scmp.ne.s32.totalorder %s114, %s115
    %p129 = scmp.eq.s32.totalorder %s16, 1
    %p130 = por %p128, %p129
    %p132 = scmp.ne.s32.totalorder %s115, %s131
    %p133 = scmp.eq.s32.totalorder %s16, 0
    %p134 = por %p132, %p133
    %p135 = scmp.le.s32.totalorder 1, %s10
    %p136 = scmp.lt.s32.totalorder %s10, 3
    %p137 = pnand %p135, %p136
    %p138 = pneg %p137
    // Predicated region
    $region9: #{custom_unet_generator.14} parent=5 // pred_check
      _
    $region10: #{custom_unet_generator.14} parent=5 // pred_check_branch
      %140 = sbr.rel (%p137) target = $region12
    $region11: #{custom_unet_generator.14} parent=5 // pred_region
      %s141 = ssub.s32 %s10, 1
      // Predicated region
      $region13: #{custom_unet_generator.14} parent=11 // pred_check
        %p142 = pneg %p71
      $region14: #{custom_unet_generator.14} parent=11 // pred_check_branch
        %144 = sbr.rel (%p142) target = $region16
      $region15: #{custom_unet_generator.14} parent=11 // pred_region
        _
      $region16: #{custom_unet_generator.14} parent=11 // pred_fallthru
        _
    $region12: #{custom_unet_generator.14} parent=5 // pred_fallthru
      _
    %p145 = scmp.lt.s32.totalorder %s10, 2
    // Predicated region
    $region17: #{custom_unet_generator.14} parent=5 // pred_check
      %p146 = pneg %p145
    $region18: #{custom_unet_generator.14} parent=5 // pred_check_branch
      %148 = sbr.rel (%p146) target = $region20
    $region19: #{custom_unet_generator.14} parent=5 // pred_region
      // Predicated region
      $region21: #{custom_unet_generator.14} parent=19 // pred_check
        %p149 = pneg %p44
      $region22: #{custom_unet_generator.14} parent=19 // pred_check_branch
        %151 = sbr.rel (%p149) target = $region24
      $region23: #{custom_unet_generator.14} parent=19 // pred_region
        %p152 = scmp.lt.s32.totalorder %s17, 1
        %s153 = scalar_select %p152, %s17, 1
        %p154 = scmp.lt.s32.totalorder %s18, 0
        %s155 = scalar_select %p154, %s18, 0
        %s156 = smul.addr %s155, 20
        %s157 = smul.addr %s153, 20
        %s158 = sadd.s32 %s156, %s157
        %s159 = smul.addr %s158, 4
        %s160 = scalar_lea.vmem %s0, %s159
      $region24: #{custom_unet_generator.14} parent=19 // pred_fallthru
        _
    $region20: #{custom_unet_generator.14} parent=5 // pred_fallthru
      _
    %p161 = scmp.le.s32.totalorder 1, %s10
    %p162 = scmp.lt.s32.totalorder %s10, 3
    %p163 = pnand %p161, %p162
    %p164 = pneg %p163
    // Predicated region
    $region25: #{custom_unet_generator.14} parent=5 // pred_check
      _
    $region26: #{custom_unet_generator.14} parent=5 // pred_check_branch
      %166 = sbr.rel (%p163) target = $region28
    $region27: #{custom_unet_generator.14} parent=5 // pred_region
      %s167 = ssub.s32 %s10, 1
      %p168 = scmp.lt.s32.totalorder %s19, 1
      %s169 = scalar_select %p168, %s19, 1
      %p170 = scmp.lt.s32.totalorder %s20, 0
      %s171 = scalar_select %p170, %s20, 0
      %s172 = smul.addr %s171, 20
      %s173 = smul.addr %s169, 20
      %s174 = sadd.s32 %s172, %s173
      %s175 = smul.addr %s174, 4
      %s176 = scalar_lea.vmem %s0, %s175
      %p177 = pneg %p50
      %p178 = pneg %p47
      %p179 = pneg %p71
      %p180 = pneg %p68
      %p181 = pneg %p99
      %p182 = pneg %p96
      %s183 = smul.u32 8, %s20
      %p184 = scmp.lt.s32.totalorder %s19, 1
      %s185 = scalar_select %p184, %s19, 1
      %p186 = scmp.lt.s32.totalorder %s183, 7
      %s187 = scalar_select %p186, %s183, 7
      %s188 = smul.addr %s187, 2
      %s189 = smul.addr %s185, 16
      %s190 = sadd.s32 %s188, %s189
      %s191 = smul.addr %s190, 4
      %s192 = scalar_lea.vmem %s2, %s191
      %p193 = pneg %p127
      %p194 = pneg %p124
      %p195 = scmp.lt.s32.totalorder %s19, 1
      %s196 = scalar_select %p195, %s19, 1
      %p197 = scmp.lt.s32.totalorder %s20, 0
      %s198 = scalar_select %p197, %s20, 0
      %s199 = sadd.s32 %s198, %s196
      %s200 = smul.addr %s199, 2
      %s201 = scalar_lea.vmem %s3, %s200
      %p202 = scmp.lt.s32.totalorder %s19, 1
      %s203 = scalar_select %p202, %s19, 1
      %p204 = scmp.lt.s32.totalorder %s20, 0
      %s205 = scalar_select %p204, %s20, 0
      %s206 = smul.addr %s205, 20
      %s207 = smul.addr %s203, 20
      %s208 = sadd.s32 %s206, %s207
      %s209 = smul.addr %s208, 4
      %s210 = scalar_lea.vmem %s0, %s209
      %s211 = smul.u32 8, %s20
      %p212 = scmp.lt.s32.totalorder %s19, 1
      %s213 = scalar_select %p212, %s19, 1
      %p214 = scmp.lt.s32.totalorder %s211, 7
      %s215 = scalar_select %p214, %s211, 7
      %s216 = smul.addr %s215, 2
      %s217 = smul.addr %s213, 16
      %s218 = sadd.s32 %s216, %s217
      %s219 = smul.addr %s218, 4
      %s220 = scalar_lea.vmem %s2, %s219
      %s221 = smul.u32 8, %s20
      %p222 = scmp.lt.s32.totalorder %s19, 1
      %s223 = scalar_select %p222, %s19, 1
      %p224 = scmp.lt.s32.totalorder %s20, 0
      %s225 = scalar_select %p224, %s20, 0
      %s226 = sadd.s32 %s225, %s223
      %s227 = smul.addr %s226, 2
      %s228 = scalar_lea.vmem %s3, %s227
      %v230 = vld [vmem:[%s1] sm:$0xf]
      %v231 = vld [vmem:[%s1 + $0x4] sm:$0xf]
      %v232 = vld [vmem:[%s1 + $0x8] sm:$0xf]
      %v233 = vld [vmem:[%s1 + $0xc] sm:$0xf]
      %v234 = vld [vmem:[%s1 + $0x10] sm:$0xf]
      %v235 = vld [vmem:[%s1 + $0x14] sm:$0xf]
      %v236 = vld [vmem:[%s1 + $0x18] sm:$0xf]
      %v237 = vld [vmem:[%s1 + $0x1c] sm:$0xf]
      %v238 = vld [vmem:[%s1 + $0x20] sm:$0xf]
      %v239 = vld [vmem:[%s1 + $0x24] sm:$0xf]
      %v240 = vld [vmem:[%s1 + $0x28] sm:$0xf]
      %v241 = vld [vmem:[%s1 + $0x2c] sm:$0xf]
      %v242 = vld [vmem:[%s1 + $0x30] sm:$0xf]
      %v243 = vld [vmem:[%s1 + $0x34] sm:$0xf]
      %v244 = vld [vmem:[%s1 + $0x38] sm:$0xf]
      %v245 = vld [vmem:[%s1 + $0x3c] sm:$0xf]
      %s246 = scalar_lea.vmem %s1, 64
      %v247 = vld [vmem:[%s246] sm:$0xf]
      %v248 = vld [vmem:[%s246 + $0x4] sm:$0xf]
      %v249 = vld [vmem:[%s246 + $0x8] sm:$0xf]
      %v250 = vld [vmem:[%s246 + $0xc] sm:$0xf]
      %v251 = vld [vmem:[%s246 + $0x10] sm:$0xf]
      %v252 = vld [vmem:[%s246 + $0x14] sm:$0xf]
      %v253 = vld [vmem:[%s246 + $0x18] sm:$0xf]
      %v254 = vld [vmem:[%s246 + $0x1c] sm:$0xf]
      %v255 = vld [vmem:[%s246 + $0x20] sm:$0xf]
      %v256 = vld [vmem:[%s246 + $0x24] sm:$0xf]
      %v257 = vld [vmem:[%s246 + $0x28] sm:$0xf]
      %v258 = vld [vmem:[%s246 + $0x2c] sm:$0xf]
      %v259 = vld [vmem:[%s246 + $0x30] sm:$0xf]
      %v260 = vld [vmem:[%s246 + $0x34] sm:$0xf]
      %v261 = vld [vmem:[%s246 + $0x38] sm:$0xf]
      %v262 = vld [vmem:[%s246 + $0x3c] sm:$0xf]
      %s263 = scalar_lea.vmem %s1, 128
      %v264 = vld [vmem:[%s263] sm:$0xf]
      %v265 = vld [vmem:[%s263 + $0x4] sm:$0xf]
      %v266 = vld [vmem:[%s263 + $0x8] sm:$0xf]
      %v267 = vld [vmem:[%s263 + $0xc] sm:$0xf]
      %v268 = vld [vmem:[%s263 + $0x10] sm:$0xf]
      %v269 = vld [vmem:[%s263 + $0x14] sm:$0xf]
      %v270 = vld [vmem:[%s263 + $0x18] sm:$0xf]
      %v271 = vld [vmem:[%s263 + $0x1c] sm:$0xf]
      %v272 = vld [vmem:[%s263 + $0x20] sm:$0xf]
      %v273 = vld [vmem:[%s263 + $0x24] sm:$0xf]
      %v274 = vld [vmem:[%s263 + $0x28] sm:$0xf]
      %v275 = vld [vmem:[%s263 + $0x2c] sm:$0xf]
      %v276 = vld [vmem:[%s263 + $0x30] sm:$0xf]
      %v277 = vld [vmem:[%s263 + $0x34] sm:$0xf]
      %v278 = vld [vmem:[%s263 + $0x38] sm:$0xf]
      %v279 = vld [vmem:[%s263 + $0x3c] sm:$0xf]
      %s280 = scalar_lea.vmem %s1, 192
      %v281 = vld [vmem:[%s280] sm:$0xf]
      %v282 = vld [vmem:[%s280 + $0x4] sm:$0xf]
      %v283 = vld [vmem:[%s280 + $0x8] sm:$0xf]
      %v284 = vld [vmem:[%s280 + $0xc] sm:$0xf]
      %v285 = vld [vmem:[%s280 + $0x10] sm:$0xf]
      %v286 = vld [vmem:[%s280 + $0x14] sm:$0xf]
      %v287 = vld [vmem:[%s280 + $0x18] sm:$0xf]
      %v288 = vld [vmem:[%s280 + $0x1c] sm:$0xf]
      %v289 = vld [vmem:[%s280 + $0x20] sm:$0xf]
      %v290 = vld [vmem:[%s280 + $0x24] sm:$0xf]
      %v291 = vld [vmem:[%s280 + $0x28] sm:$0xf]
      %v292 = vld [vmem:[%s280 + $0x2c] sm:$0xf]
      %v293 = vld [vmem:[%s280 + $0x30] sm:$0xf]
      %v294 = vld [vmem:[%s280 + $0x34] sm:$0xf]
      %v295 = vld [vmem:[%s280 + $0x38] sm:$0xf]
      %v296 = vld [vmem:[%s280 + $0x3c] sm:$0xf]
      loop: start=0, step=1, limit=8
      $region29: #{custom_unet_generator.14} parent=27 // loop_pre_header
        _
      $region30: #{custom_unet_generator.14} parent=27 // loop_header
        %s298 = sphi 0, %s302
        %p299 = scmp.ge.s32.totalorder %s298, 8
        %v303 = vphi 0.0, %v908
        %v304 = vphi 0.0, %v917
      $region31: #{custom_unet_generator.14} parent=27 // loop_header_branch
        %301 = sbr.rel (%p299) target = $region35
      $region32: #{custom_unet_generator.14} parent=27 // loop_body
        %s305 = smul.u32 %s298, 2
        %s306 = smul.addr %s305, 4
        %s307 = scalar_lea.vmem %s210, %s306
        %v308 = vld [vmem:[%s307] sm:$0xf]
        %v309 = vld [vmem:[%s307 + $0x4] sm:$0x1]
        %s310 = sadd.s32 %s298, 1
        %s311 = smul.u32 %s310, 2
        %s312 = smul.addr %s311, 4
        %s313 = scalar_lea.vmem %s210, %s312
        %v314 = vld [vmem:[%s313] sm:$0xf]
        %v315 = vld [vmem:[%s313 + $0x4] sm:$0x1]
        %v318 = vunpack.c.l.b16 %v308
        %v319 = vunpack.c.l.b16 %v309
        %v320 = vpack.c.b16 %v319, %v318
        %v322 = vshrl.u32 %v320, 16
        %v324 = vshll.u32 %v320, 16
        %v326 = vrot.slane %v324, 1
        %v327 = vor.u32 %v322, %v326
        %328 = vrot.lane.b32.xlu0 %v327, 32
        %v329 = vpop.permute.xlu0 %328
        %v331 = vunpack.c.l.b16 %v314
        %v332 = vpack.c.b16 %v331, %v331
        %333 = vrot.lane.b32.xlu0 %v332, 64
        %v334 = vpop.permute.xlu0 %333
        %v336 = vunpack.c.l.b16 %v315
        %v337 = vpack.c.b16 %v336, %v331
        %v339 = vshrl.u32 %v337, 16
        %v341 = vshll.u32 %v337, 16
        %v343 = vrot.slane %v341, 1
        %v344 = vor.u32 %v339, %v343
        %345 = vrot.lane.b32.xlu0 %v344, 96
        %v346 = vpop.permute.xlu0 %345
        %vm347 = vcmask 261120
        %v350 = vsel %vm347, %v308, %v329
        %vm351 = vcmask 523264
        %v353 = vsel %vm351, %v350, %v334
        %vm354 = vcmask 785408
        %v356 = vsel %vm354, %v353, %v346
        %v374 = vunpack.c.l.b16 %v230
        %v375 = vunpack.c.l.b16 %v231
        %v376 = vunpack.c.l.b16 %v232
        %v377 = vunpack.c.l.b16 %v233
        %v378 = vunpack.c.l.b16 %v234
        %v379 = vunpack.c.l.b16 %v235
        %v380 = vunpack.c.l.b16 %v236
        %v381 = vunpack.c.l.b16 %v237
        %v382 = vunpack.c.l.b16 %v238
        %v383 = vunpack.c.l.b16 %v239
        %v384 = vunpack.c.l.b16 %v240
        %v385 = vunpack.c.l.b16 %v241
        %v386 = vunpack.c.l.b16 %v242
        %v387 = vunpack.c.l.b16 %v243
        %v388 = vunpack.c.l.b16 %v244
        %v389 = vunpack.c.l.b16 %v245
        %v390 = vpack.c.b16 %v375, %v374
        %v391 = vpack.c.b16 %v377, %v376
        %v392 = vpack.c.b16 %v379, %v378
        %v393 = vpack.c.b16 %v381, %v380
        %v394 = vpack.c.b16 %v383, %v382
        %v395 = vpack.c.b16 %v385, %v384
        %v396 = vpack.c.b16 %v387, %v386
        %v397 = vpack.c.b16 %v389, %v388
        %406 = vmatprep.subr.bf16.mxu0 0
        %407 = vmatpush1.bf16.msra.mxu0 %v390
        %408 = vmatprep.subr.bf16.mxu0 0
        %409 = vmatpush1.bf16.msra.mxu0 %v391
        %410 = vmatprep.subr.bf16.mxu0 0
        %411 = vmatpush1.bf16.msra.mxu0 %v392
        %412 = vmatprep.subr.bf16.mxu0 0
        %413 = vmatpush1.bf16.msra.mxu0 %v393
        %414 = vmatprep.subr.bf16.mxu0 0
        %415 = vmatpush1.bf16.msra.mxu0 %v394
        %416 = vmatprep.subr.bf16.mxu0 0
        %417 = vmatpush1.bf16.msra.mxu0 %v395
        %418 = vmatprep.subr.bf16.mxu0 0
        %419 = vmatpush1.bf16.msra.mxu0 %v396
        %420 = vmatprep.subr.bf16.mxu0 0
        %421 = vmatpush1.bf16.msra.mxu0 %v397
        %422 = vmatprep.subr.bf16.mxu0 0
        %423 = vmatpush1.bf16.msra.mxu0 0
        %424 = vmatprep.subr.bf16.mxu0 0
        %425 = vmatpush1.bf16.msra.mxu0 0
        %426 = vmatprep.subr.bf16.mxu0 0
        %427 = vmatpush1.bf16.msra.mxu0 0
        %428 = vmatprep.subr.bf16.mxu0 0
        %429 = vmatpush1.bf16.msra.mxu0 0
        %430 = vmatprep.subr.bf16.mxu0 0
        %431 = vmatpush1.bf16.msra.mxu0 0
        %432 = vmatprep.subr.bf16.mxu0 0
        %433 = vmatpush1.bf16.msra.mxu0 0
        %434 = vmatprep.subr.bf16.mxu0 0
        %435 = vmatpush1.bf16.msra.mxu0 0
        %436 = vmatprep.subr.bf16.mxu0 0
        %437 = vmatpush1.bf16.msra.mxu0 0
        %438 = vmatprep.mubr.bf16.mxu0 0
        %439 = vmatmul.mubr.bf16.gmra.mrb[0].mxu0 %v356
        %v440 = vpop.f32.mrb[0].mxu0
        %v441 = vadd.f32 0.0, %v440
        %v442 = vpop.f32.mrb[0].mxu0
        %v443 = vpop.f32.mrb[0].mxu0
        %v444 = vpop.f32.mrb[0].mxu0
        %445 = vdwg.mxu0
        %vm446 = vcmask 64512
        %v447 = vsel %vm446, %v441, 0.0
        %v448 = vrot.slane %v447, 4
        %v449 = vadd.f32 %v447, %v448
        %v450 = vrot.slane %v449, 2
        %v451 = vadd.f32 %v449, %v450
        %v452 = vrot.slane %v451, 1
        %v453 = vadd.f32 %v451, %v452
        %v454 = vadd.f32 %v303, %v453
        %v455 = vmul.f32 %v441, %v441
        %v456 = vsel %vm446, %v455, 0.0
        %v457 = vrot.slane %v456, 4
        %v458 = vadd.f32 %v456, %v457
        %v459 = vrot.slane %v458, 2
        %v460 = vadd.f32 %v458, %v459
        %v461 = vrot.slane %v460, 1
        %v462 = vadd.f32 %v460, %v461
        %v463 = vadd.f32 %v304, %v462
        %v464 = vld [vmem:[%s307] sm:$0xe]
        %v465 = vld [vmem:[%s313] sm:$0xe]
        %v467 = vunpack.c.l.b16 %v464
        %v468 = vpack.c.b16 %v319, %v467
        %v470 = vshrl.u32 %v468, 16
        %v472 = vshll.u32 %v468, 16
        %v474 = vrot.slane %v472, 1
        %v475 = vor.u32 %v470, %v474
        %476 = vrot.lane.b32.xlu0 %v475, 32
        %v477 = vpop.permute.xlu0 %476
        %478 = vrot.lane.b32.xlu0 %v337, 64
        %v479 = vpop.permute.xlu0 %478
        %v481 = vunpack.c.l.b16 %v465
        %v482 = vpack.c.b16 %v336, %v481
        %v484 = vshrl.u32 %v482, 16
        %v486 = vshll.u32 %v482, 16
        %v488 = vrot.slane %v486, 1
        %v489 = vor.u32 %v484, %v488
        %490 = vrot.lane.b32.xlu0 %v489, 96
        %v491 = vpop.permute.xlu0 %490
        %v493 = vsel %vm347, %v320, %v477
        %v495 = vsel %vm351, %v493, %v479
        %v497 = vsel %vm354, %v495, %v491
        %v498 = vshrl.u32 %v497, 16
        %v500 = vshll.u32 %v497, 16
        %v502 = vrot.slane %v500, 1
        %v503 = vor.u32 %v498, %v502
        %v521 = vunpack.c.l.b16 %v247
        %v522 = vunpack.c.l.b16 %v248
        %v523 = vunpack.c.l.b16 %v249
        %v524 = vunpack.c.l.b16 %v250
        %v525 = vunpack.c.l.b16 %v251
        %v526 = vunpack.c.l.b16 %v252
        %v527 = vunpack.c.l.b16 %v253
        %v528 = vunpack.c.l.b16 %v254
        %v529 = vunpack.c.l.b16 %v255
        %v530 = vunpack.c.l.b16 %v256
        %v531 = vunpack.c.l.b16 %v257
        %v532 = vunpack.c.l.b16 %v258
        %v533 = vunpack.c.l.b16 %v259
        %v534 = vunpack.c.l.b16 %v260
        %v535 = vunpack.c.l.b16 %v261
        %v536 = vunpack.c.l.b16 %v262
        %v537 = vpack.c.b16 %v522, %v521
        %v538 = vpack.c.b16 %v524, %v523
        %v539 = vpack.c.b16 %v526, %v525
        %v540 = vpack.c.b16 %v528, %v527
        %v541 = vpack.c.b16 %v530, %v529
        %v542 = vpack.c.b16 %v532, %v531
        %v543 = vpack.c.b16 %v534, %v533
        %v544 = vpack.c.b16 %v536, %v535
        %553 = vmatprep.subr.bf16.mxu0 0
        %554 = vmatpush1.bf16.msra.mxu0 %v537
        %555 = vmatprep.subr.bf16.mxu0 0
        %556 = vmatpush1.bf16.msra.mxu0 %v538
        %557 = vmatprep.subr.bf16.mxu0 0
        %558 = vmatpush1.bf16.msra.mxu0 %v539
        %559 = vmatprep.subr.bf16.mxu0 0
        %560 = vmatpush1.bf16.msra.mxu0 %v540
        %561 = vmatprep.subr.bf16.mxu0 0
        %562 = vmatpush1.bf16.msra.mxu0 %v541
        %563 = vmatprep.subr.bf16.mxu0 0
        %564 = vmatpush1.bf16.msra.mxu0 %v542
        %565 = vmatprep.subr.bf16.mxu0 0
        %566 = vmatpush1.bf16.msra.mxu0 %v543
        %567 = vmatprep.subr.bf16.mxu0 0
        %568 = vmatpush1.bf16.msra.mxu0 %v544
        %569 = vmatprep.subr.bf16.mxu0 0
        %570 = vmatpush1.bf16.msra.mxu0 0
        %571 = vmatprep.subr.bf16.mxu0 0
        %572 = vmatpush1.bf16.msra.mxu0 0
        %573 = vmatprep.subr.bf16.mxu0 0
        %574 = vmatpush1.bf16.msra.mxu0 0
        %575 = vmatprep.subr.bf16.mxu0 0
        %576 = vmatpush1.bf16.msra.mxu0 0
        %577 = vmatprep.subr.bf16.mxu0 0
        %578 = vmatpush1.bf16.msra.mxu0 0
        %579 = vmatprep.subr.bf16.mxu0 0
        %580 = vmatpush1.bf16.msra.mxu0 0
        %581 = vmatprep.subr.bf16.mxu0 0
        %582 = vmatpush1.bf16.msra.mxu0 0
        %583 = vmatprep.subr.bf16.mxu0 0
        %584 = vmatpush1.bf16.msra.mxu0 0
        %585 = vmatprep.mubr.bf16.mxu0 0
        %586 = vmatmul.mubr.bf16.gmra.mrb[0].mxu0 %v503
        %v587 = vpop.f32.mrb[0].mxu0
        %v588 = vadd.f32 0.0, %v587
        %v589 = vpop.f32.mrb[0].mxu0
        %v590 = vpop.f32.mrb[0].mxu0
        %v591 = vpop.f32.mrb[0].mxu0
        %592 = vdwg.mxu0
        %v593 = vsel %vm446, %v588, 0.0
        %v594 = vrot.slane %v593, 4
        %v595 = vadd.f32 %v593, %v594
        %v596 = vrot.slane %v595, 2
        %v597 = vadd.f32 %v595, %v596
        %v598 = vrot.slane %v597, 1
        %v599 = vadd.f32 %v597, %v598
        %v600 = vadd.f32 %v454, %v599
        %v601 = vmul.f32 %v588, %v588
        %v602 = vsel %vm446, %v601, 0.0
        %v603 = vrot.slane %v602, 4
        %v604 = vadd.f32 %v602, %v603
        %v605 = vrot.slane %v604, 2
        %v606 = vadd.f32 %v604, %v605
        %v607 = vrot.slane %v606, 1
        %v608 = vadd.f32 %v606, %v607
        %v609 = vadd.f32 %v463, %v608
        %611 = vrot.lane.b32.xlu0 %v588, 8
        %v612 = vpop.permute.xlu0 %611
        %v614 = vsel %vm446, %v441, %v612
        %v615 = vpack.c.bf16 %v614, %v614
        %s616 = smul.addr %s305, 4
        %s617 = scalar_lea.vmem %s220, %s616
        %vm618 = vcmask 125952
        %619 = vst.msk [vmem:[%s617] sm:$0xf] %vm618, %v615
        %v620 = vld [vmem:[%s313] sm:$0xf]
        %v621 = vld [vmem:[%s313 + $0x4] sm:$0x1]
        %s622 = sadd.s32 %s298, 2
        %s623 = smul.u32 %s622, 2
        %s624 = smul.addr %s623, 4
        %s625 = scalar_lea.vmem %s210, %s624
        %v626 = vld [vmem:[%s625] sm:$0xf]
        %v627 = vld [vmem:[%s625 + $0x4] sm:$0x1]
        %v630 = vunpack.c.l.b16 %v620
        %v631 = vunpack.c.l.b16 %v621
        %v632 = vpack.c.b16 %v631, %v630
        %v634 = vshrl.u32 %v632, 16
        %v636 = vshll.u32 %v632, 16
        %v638 = vrot.slane %v636, 1
        %v639 = vor.u32 %v634, %v638
        %640 = vrot.lane.b32.xlu0 %v639, 32
        %v641 = vpop.permute.xlu0 %640
        %v643 = vunpack.c.l.b16 %v626
        %v644 = vpack.c.b16 %v643, %v643
        %645 = vrot.lane.b32.xlu0 %v644, 64
        %v646 = vpop.permute.xlu0 %645
        %v648 = vunpack.c.l.b16 %v627
        %v649 = vpack.c.b16 %v648, %v643
        %v651 = vshrl.u32 %v649, 16
        %v653 = vshll.u32 %v649, 16
        %v655 = vrot.slane %v653, 1
        %v656 = vor.u32 %v651, %v655
        %657 = vrot.lane.b32.xlu0 %v656, 96
        %v658 = vpop.permute.xlu0 %657
        %v661 = vsel %vm347, %v620, %v641
        %v663 = vsel %vm351, %v661, %v646
        %v665 = vsel %vm354, %v663, %v658
        %v683 = vunpack.c.l.b16 %v264
        %v684 = vunpack.c.l.b16 %v265
        %v685 = vunpack.c.l.b16 %v266
        %v686 = vunpack.c.l.b16 %v267
        %v687 = vunpack.c.l.b16 %v268
        %v688 = vunpack.c.l.b16 %v269
        %v689 = vunpack.c.l.b16 %v270
        %v690 = vunpack.c.l.b16 %v271
        %v691 = vunpack.c.l.b16 %v272
        %v692 = vunpack.c.l.b16 %v273
        %v693 = vunpack.c.l.b16 %v274
        %v694 = vunpack.c.l.b16 %v275
        %v695 = vunpack.c.l.b16 %v276
        %v696 = vunpack.c.l.b16 %v277
        %v697 = vunpack.c.l.b16 %v278
        %v698 = vunpack.c.l.b16 %v279
        %v699 = vpack.c.b16 %v684, %v683
        %v700 = vpack.c.b16 %v686, %v685
        %v701 = vpack.c.b16 %v688, %v687
        %v702 = vpack.c.b16 %v690, %v689
        %v703 = vpack.c.b16 %v692, %v691
        %v704 = vpack.c.b16 %v694, %v693
        %v705 = vpack.c.b16 %v696, %v695
        %v706 = vpack.c.b16 %v698, %v697
        %715 = vmatprep.subr.bf16.mxu0 0
        %716 = vmatpush1.bf16.msra.mxu0 %v699
        %717 = vmatprep.subr.bf16.mxu0 0
        %718 = vmatpush1.bf16.msra.mxu0 %v700
        %719 = vmatprep.subr.bf16.mxu0 0
        %720 = vmatpush1.bf16.msra.mxu0 %v701
        %721 = vmatprep.subr.bf16.mxu0 0
        %722 = vmatpush1.bf16.msra.mxu0 %v702
        %723 = vmatprep.subr.bf16.mxu0 0
        %724 = vmatpush1.bf16.msra.mxu0 %v703
        %725 = vmatprep.subr.bf16.mxu0 0
        %726 = vmatpush1.bf16.msra.mxu0 %v704
        %727 = vmatprep.subr.bf16.mxu0 0
        %728 = vmatpush1.bf16.msra.mxu0 %v705
        %729 = vmatprep.subr.bf16.mxu0 0
        %730 = vmatpush1.bf16.msra.mxu0 %v706
        %731 = vmatprep.subr.bf16.mxu0 0
        %732 = vmatpush1.bf16.msra.mxu0 0
        %733 = vmatprep.subr.bf16.mxu0 0
        %734 = vmatpush1.bf16.msra.mxu0 0
        %735 = vmatprep.subr.bf16.mxu0 0
        %736 = vmatpush1.bf16.msra.mxu0 0
        %737 = vmatprep.subr.bf16.mxu0 0
        %738 = vmatpush1.bf16.msra.mxu0 0
        %739 = vmatprep.subr.bf16.mxu0 0
        %740 = vmatpush1.bf16.msra.mxu0 0
        %741 = vmatprep.subr.bf16.mxu0 0
        %742 = vmatpush1.bf16.msra.mxu0 0
        %743 = vmatprep.subr.bf16.mxu0 0
        %744 = vmatpush1.bf16.msra.mxu0 0
        %745 = vmatprep.subr.bf16.mxu0 0
        %746 = vmatpush1.bf16.msra.mxu0 0
        %747 = vmatprep.mubr.bf16.mxu0 0
        %748 = vmatmul.mubr.bf16.gmra.mrb[0].mxu0 %v665
        %v749 = vpop.f32.mrb[0].mxu0
        %v750 = vadd.f32 0.0, %v749
        %v751 = vpop.f32.mrb[0].mxu0
        %v752 = vpop.f32.mrb[0].mxu0
        %v753 = vpop.f32.mrb[0].mxu0
        %754 = vdwg.mxu0
        %v755 = vsel %vm446, %v750, 0.0
        %v756 = vrot.slane %v755, 4
        %v757 = vadd.f32 %v755, %v756
        %v758 = vrot.slane %v757, 2
        %v759 = vadd.f32 %v757, %v758
        %v760 = vrot.slane %v759, 1
        %v761 = vadd.f32 %v759, %v760
        %v762 = vadd.f32 %v600, %v761
        %v763 = vmul.f32 %v750, %v750
        %v764 = vsel %vm446, %v763, 0.0
        %v765 = vrot.slane %v764, 4
        %v766 = vadd.f32 %v764, %v765
        %v767 = vrot.slane %v766, 2
        %v768 = vadd.f32 %v766, %v767
        %v769 = vrot.slane %v768, 1
        %v770 = vadd.f32 %v768, %v769
        %v771 = vadd.f32 %v609, %v770
        %v772 = vld [vmem:[%s313] sm:$0xe]
        %v773 = vld [vmem:[%s625] sm:$0xe]
        %v775 = vunpack.c.l.b16 %v772
        %v776 = vpack.c.b16 %v631, %v775
        %v778 = vshrl.u32 %v776, 16
        %v780 = vshll.u32 %v776, 16
        %v782 = vrot.slane %v780, 1
        %v783 = vor.u32 %v778, %v782
        %784 = vrot.lane.b32.xlu0 %v783, 32
        %v785 = vpop.permute.xlu0 %784
        %786 = vrot.lane.b32.xlu0 %v649, 64
        %v787 = vpop.permute.xlu0 %786
        %v789 = vunpack.c.l.b16 %v773
        %v790 = vpack.c.b16 %v648, %v789
        %v792 = vshrl.u32 %v790, 16
        %v794 = vshll.u32 %v790, 16
        %v796 = vrot.slane %v794, 1
        %v797 = vor.u32 %v792, %v796
        %798 = vrot.lane.b32.xlu0 %v797, 96
        %v799 = vpop.permute.xlu0 %798
        %v801 = vsel %vm347, %v632, %v785
        %v803 = vsel %vm351, %v801, %v787
        %v805 = vsel %vm354, %v803, %v799
        %v806 = vshrl.u32 %v805, 16
        %v808 = vshll.u32 %v805, 16
        %v810 = vrot.slane %v808, 1
        %v811 = vor.u32 %v806, %v810
        %v829 = vunpack.c.l.b16 %v281
        %v830 = vunpack.c.l.b16 %v282
        %v831 = vunpack.c.l.b16 %v283
        %v832 = vunpack.c.l.b16 %v284
        %v833 = vunpack.c.l.b16 %v285
        %v834 = vunpack.c.l.b16 %v286
        %v835 = vunpack.c.l.b16 %v287
        %v836 = vunpack.c.l.b16 %v288
        %v837 = vunpack.c.l.b16 %v289
        %v838 = vunpack.c.l.b16 %v290
        %v839 = vunpack.c.l.b16 %v291
        %v840 = vunpack.c.l.b16 %v292
        %v841 = vunpack.c.l.b16 %v293
        %v842 = vunpack.c.l.b16 %v294
        %v843 = vunpack.c.l.b16 %v295
        %v844 = vunpack.c.l.b16 %v296
        %v845 = vpack.c.b16 %v830, %v829
        %v846 = vpack.c.b16 %v832, %v831
        %v847 = vpack.c.b16 %v834, %v833
        %v848 = vpack.c.b16 %v836, %v835
        %v849 = vpack.c.b16 %v838, %v837
        %v850 = vpack.c.b16 %v840, %v839
        %v851 = vpack.c.b16 %v842, %v841
        %v852 = vpack.c.b16 %v844, %v843
        %861 = vmatprep.subr.bf16.mxu0 0
        %862 = vmatpush1.bf16.msra.mxu0 %v845
        %863 = vmatprep.subr.bf16.mxu0 0
        %864 = vmatpush1.bf16.msra.mxu0 %v846
        %865 = vmatprep.subr.bf16.mxu0 0
        %866 = vmatpush1.bf16.msra.mxu0 %v847
        %867 = vmatprep.subr.bf16.mxu0 0
        %868 = vmatpush1.bf16.msra.mxu0 %v848
        %869 = vmatprep.subr.bf16.mxu0 0
        %870 = vmatpush1.bf16.msra.mxu0 %v849
        %871 = vmatprep.subr.bf16.mxu0 0
        %872 = vmatpush1.bf16.msra.mxu0 %v850
        %873 = vmatprep.subr.bf16.mxu0 0
        %874 = vmatpush1.bf16.msra.mxu0 %v851
        %875 = vmatprep.subr.bf16.mxu0 0
        %876 = vmatpush1.bf16.msra.mxu0 %v852
        %877 = vmatprep.subr.bf16.mxu0 0
        %878 = vmatpush1.bf16.msra.mxu0 0
        %879 = vmatprep.subr.bf16.mxu0 0
        %880 = vmatpush1.bf16.msra.mxu0 0
        %881 = vmatprep.subr.bf16.mxu0 0
        %882 = vmatpush1.bf16.msra.mxu0 0
        %883 = vmatprep.subr.bf16.mxu0 0
        %884 = vmatpush1.bf16.msra.mxu0 0
        %885 = vmatprep.subr.bf16.mxu0 0
        %886 = vmatpush1.bf16.msra.mxu0 0
        %887 = vmatprep.subr.bf16.mxu0 0
        %888 = vmatpush1.bf16.msra.mxu0 0
        %889 = vmatprep.subr.bf16.mxu0 0
        %890 = vmatpush1.bf16.msra.mxu0 0
        %891 = vmatprep.subr.bf16.mxu0 0
        %892 = vmatpush1.bf16.msra.mxu0 0
        %893 = vmatprep.mubr.bf16.mxu0 0
        %894 = vmatmul.mubr.bf16.gmra.mrb[0].mxu0 %v811
        %v895 = vpop.f32.mrb[0].mxu0
        %v896 = vadd.f32 0.0, %v895
        %v897 = vpop.f32.mrb[0].mxu0
        %v898 = vpop.f32.mrb[0].mxu0
        %v899 = vpop.f32.mrb[0].mxu0
        %900 = vdwg.mxu0
        %v901 = vsel %vm446, %v896, 0.0
        %v902 = vrot.slane %v901, 4
        %v903 = vadd.f32 %v901, %v902
        %v904 = vrot.slane %v903, 2
        %v905 = vadd.f32 %v903, %v904
        %v906 = vrot.slane %v905, 1
        %v907 = vadd.f32 %v905, %v906
        %v908 = vadd.f32 %v762, %v907
        %v909 = vmul.f32 %v896, %v896
        %v910 = vsel %vm446, %v909, 0.0
        %v911 = vrot.slane %v910, 4
        %v912 = vadd.f32 %v910, %v911
        %v913 = vrot.slane %v912, 2
        %v914 = vadd.f32 %v912, %v913
        %v915 = vrot.slane %v914, 1
        %v916 = vadd.f32 %v914, %v915
        %v917 = vadd.f32 %v771, %v916
        %919 = vrot.lane.b32.xlu0 %v896, 8
        %v920 = vpop.permute.xlu0 %919
        %v922 = vsel %vm446, %v750, %v920
        %v923 = vpack.c.bf16 %v922, %v922
        %s924 = sadd.s32 1, %s305
        %s925 = smul.addr %s924, 4
        %s926 = scalar_lea.vmem %s220, %s925
        %927 = vst.msk [vmem:[%s926] sm:$0xf] %vm618, %v923
      $region33: #{custom_unet_generator.14} parent=27 // loop_footer
        %s302 = sadd.s32 1, %s298
      $region34: #{custom_unet_generator.14} parent=27 // loop_footer_branch
        %297 = sbr.rel target = $region30
      $region35: #{custom_unet_generator.14} parent=27 // loop_exit
        _
      %vm928 = vcmask 1040384
      %v929 = vsel %vm928, %v303, %v304
      %vm930 = vcmask 58368
      %931 = vst.msk [vmem:[%s228] sm:$0x3] %vm930, %v929
      %s932 = smul.u32 8, %s20
      %p933 = scmp.lt.s32.totalorder %s19, 1
      %s934 = scalar_select %p933, %s19, 1
      %p935 = scmp.lt.s32.totalorder %s932, 7
      %s936 = scalar_select %p935, %s932, 7
      %s937 = smul.addr %s936, 2
      %s938 = smul.addr %s934, 16
      %s939 = sadd.s32 %s937, %s938
      %s940 = smul.addr %s939, 4
      %s941 = scalar_lea.vmem %s2, %s940
      %p942 = scmp.lt.s32.totalorder %s19, 1
      %s943 = scalar_select %p942, %s19, 1
      %p944 = scmp.lt.s32.totalorder %s20, 0
      %s945 = scalar_select %p944, %s20, 0
      %s946 = sadd.s32 %s945, %s943
      %s947 = smul.addr %s946, 2
      %s948 = scalar_lea.vmem %s3, %s947
      // Predicated region
      $region36: #{custom_unet_generator.14} parent=27 // pred_check
        %p949 = pneg %p96
      $region37: #{custom_unet_generator.14} parent=27 // pred_check_branch
        %951 = sbr.rel (%p949) target = $region39
      $region38: #{custom_unet_generator.14} parent=27 // pred_region
        %s952 = smul.u32 8, %s20
      $region39: #{custom_unet_generator.14} parent=27 // pred_fallthru
        _
      // Predicated region
      $region40: #{custom_unet_generator.14} parent=27 // pred_check
        %p953 = pneg %p124
      $region41: #{custom_unet_generator.14} parent=27 // pred_check_branch
        %955 = sbr.rel (%p953) target = $region43
      $region42: #{custom_unet_generator.14} parent=27 // pred_region
        _
      $region43: #{custom_unet_generator.14} parent=27 // pred_fallthru
        _
    $region28: #{custom_unet_generator.14} parent=5 // pred_fallthru
      _
    %p956 = scmp.le.s32.totalorder 2, %s10
    // Predicated region
    $region44: #{custom_unet_generator.14} parent=5 // pred_check
      %p957 = pneg %p956
    $region45: #{custom_unet_generator.14} parent=5 // pred_check_branch
      %959 = sbr.rel (%p957) target = $region47
    $region46: #{custom_unet_generator.14} parent=5 // pred_region
      %s960 = ssub.s32 %s10, 2
      // Predicated region
      $region48: #{custom_unet_generator.14} parent=46 // pred_check
        %p961 = pneg %p102
      $region49: #{custom_unet_generator.14} parent=46 // pred_check_branch
        %963 = sbr.rel (%p961) target = $region51
      $region50: #{custom_unet_generator.14} parent=46 // pred_region
        %s964 = smul.u32 8, %s22
        %p965 = scmp.lt.s32.totalorder %s21, 1
        %s966 = scalar_select %p965, %s21, 1
        %p967 = scmp.lt.s32.totalorder %s964, 7
        %s968 = scalar_select %p967, %s964, 7
        %s969 = smul.addr %s968, 2
        %s970 = smul.addr %s966, 16
        %s971 = sadd.s32 %s969, %s970
        %s972 = smul.addr %s971, 4
        %s973 = scalar_lea.vmem %s2, %s972
      $region51: #{custom_unet_generator.14} parent=46 // pred_fallthru
        _
      // Predicated region
      $region52: #{custom_unet_generator.14} parent=46 // pred_check
        %p974 = pneg %p130
      $region53: #{custom_unet_generator.14} parent=46 // pred_check_branch
        %976 = sbr.rel (%p974) target = $region55
      $region54: #{custom_unet_generator.14} parent=46 // pred_region
        %p977 = scmp.lt.s32.totalorder %s21, 1
        %s978 = scalar_select %p977, %s21, 1
        %p979 = scmp.lt.s32.totalorder %s22, 0
        %s980 = scalar_select %p979, %s22, 0
        %s981 = sadd.s32 %s980, %s978
        %s982 = smul.addr %s981, 2
        %s983 = scalar_lea.vmem %s3, %s982
      $region55: #{custom_unet_generator.14} parent=46 // pred_fallthru
        _
    $region47: #{custom_unet_generator.14} parent=5 // pred_fallthru
      _
  $region6: #{custom_unet_generator.14} parent=0 // loop_footer
    %s14 = sadd.s32 1, %s10
  $region7: #{custom_unet_generator.14} parent=0 // loop_footer_branch
    %9 = sbr.rel target = $region3
  $region8: #{custom_unet_generator.14} parent=0 // loop_exit
    _

// kernel: custom_unet_generator.15
$region0: #{custom_unet_generator.15}
  #allocation0 [shape = 'u32[]', space=smem, size = 0x4, offset = 0x4, fixed_abs, tag = 'smem constant byte address 0x4 - core index']
  #allocation1 [shape = 'u32[144,128]{1,0:T(1,128)}', space=vmem, size = 0x12000, scoped, tag = 'internal scratch']
  %s0 = inlined_call_operand.vmem [shape: f32[1,16], index: 0, kind: input, shape index: {}]
  %s1 = inlined_call_operand.vmem [shape: f32[1,16], index: 1, kind: input, shape index: {}]
  %s2 = inlined_call_operand.vmem [shape: bf16[512,16], index: 2, kind: input, shape index: {}]
  %s3 = inlined_call_operand.vmem [shape: bf16[16,128], index: 3, kind: input, shape index: {}]
  %s4 = inlined_call_operand.vmem [shape: f32[1,128], index: 4, kind: input, shape index: {}]
  %s5 = inlined_call_operand.vmem [shape: f32[512,128], index: 5, kind: output, shape index: {}]
  %s6 = sld [smem:[#allocation0]]
  $region30: #{custom_unet_generator.15} parent=0
    _
  %s8 = ssub.s32 1, %s6
  %s9 = scalar_select 0, %s8, %s6
  // Predicated region
  $region2: #{custom_unet_generator.15} parent=0 // pred_check
    _
  $region3: #{custom_unet_generator.15} parent=0 // pred_check_branch
    %11 = sbr.rel (0) target = $region5
  $region4: #{custom_unet_generator.15} parent=0 // pred_region
    _
  $region5: #{custom_unet_generator.15} parent=0 // pred_fallthru
    _
  // Predicated region
  $region6: #{custom_unet_generator.15} parent=0 // pred_check
    _
  $region7: #{custom_unet_generator.15} parent=0 // pred_check_branch
    %13 = sbr.rel (0) target = $region9
  $region8: #{custom_unet_generator.15} parent=0 // pred_region
    _
  $region9: #{custom_unet_generator.15} parent=0 // pred_fallthru
    _
  // Predicated region
  $region10: #{custom_unet_generator.15} parent=0 // pred_check
    _
  $region11: #{custom_unet_generator.15} parent=0 // pred_check_branch
    %15 = sbr.rel (0) target = $region13
  $region12: #{custom_unet_generator.15} parent=0 // pred_region
    _
  $region13: #{custom_unet_generator.15} parent=0 // pred_fallthru
    _
  // Predicated region
  $region14: #{custom_unet_generator.15} parent=0 // pred_check
    _
  $region15: #{custom_unet_generator.15} parent=0 // pred_check_branch
    %17 = sbr.rel (0) target = $region17
  $region16: #{custom_unet_generator.15} parent=0 // pred_region
    _
  $region17: #{custom_unet_generator.15} parent=0 // pred_fallthru
    _
  // Predicated region
  $region18: #{custom_unet_generator.15} parent=0 // pred_check
    _
  $region19: #{custom_unet_generator.15} parent=0 // pred_check_branch
    %19 = sbr.rel (0) target = $region21
  $region20: #{custom_unet_generator.15} parent=0 // pred_region
    _
  $region21: #{custom_unet_generator.15} parent=0 // pred_fallthru
    _
  %v21 = vld [vmem:[%s2] sm:$0xf]
  %v22 = vld [vmem:[%s2 + $0x4] sm:$0xf]
  %v23 = vld [vmem:[%s2 + $0x8] sm:$0xf]
  %v24 = vld [vmem:[%s2 + $0xc] sm:$0xf]
  %v25 = vld [vmem:[%s2 + $0x10] sm:$0xf]
  %v26 = vld [vmem:[%s2 + $0x14] sm:$0xf]
  %v27 = vld [vmem:[%s2 + $0x18] sm:$0xf]
  %v28 = vld [vmem:[%s2 + $0x1c] sm:$0xf]
  %v29 = vld [vmem:[%s2 + $0x20] sm:$0xf]
  %v30 = vld [vmem:[%s2 + $0x24] sm:$0xf]
  %v31 = vld [vmem:[%s2 + $0x28] sm:$0xf]
  %v32 = vld [vmem:[%s2 + $0x2c] sm:$0xf]
  %v33 = vld [vmem:[%s2 + $0x30] sm:$0xf]
  %v34 = vld [vmem:[%s2 + $0x34] sm:$0xf]
  %v35 = vld [vmem:[%s2 + $0x38] sm:$0xf]
  %v36 = vld [vmem:[%s2 + $0x3c] sm:$0xf]
  %v37 = vld [vmem:[%s2 + $0x40] sm:$0xf]
  %v38 = vld [vmem:[%s2 + $0x44] sm:$0xf]
  %v39 = vld [vmem:[%s2 + $0x48] sm:$0xf]
  %v40 = vld [vmem:[%s2 + $0x4c] sm:$0xf]
  %v41 = vld [vmem:[%s2 + $0x50] sm:$0xf]
  %v42 = vld [vmem:[%s2 + $0x54] sm:$0xf]
  %v43 = vld [vmem:[%s2 + $0x58] sm:$0xf]
  %v44 = vld [vmem:[%s2 + $0x5c] sm:$0xf]
  %v45 = vld [vmem:[%s2 + $0x60] sm:$0xf]
  %v46 = vld [vmem:[%s2 + $0x64] sm:$0xf]
  %v47 = vld [vmem:[%s2 + $0x68] sm:$0xf]
  %v48 = vld [vmem:[%s2 + $0x6c] sm:$0xf]
  %v49 = vld [vmem:[%s2 + $0x70] sm:$0xf]
  %v50 = vld [vmem:[%s2 + $0x74] sm:$0xf]
  %v51 = vld [vmem:[%s2 + $0x78] sm:$0xf]
  %v52 = vld [vmem:[%s2 + $0x7c] sm:$0xf]
  %v53 = vld [vmem:[%s2 + $0x80] sm:$0xf]
  %v54 = vld [vmem:[%s2 + $0x84] sm:$0xf]
  %v55 = vld [vmem:[%s2 + $0x88] sm:$0xf]
  %v56 = vld [vmem:[%s2 + $0x8c] sm:$0xf]
  %v57 = vld [vmem:[%s2 + $0x90] sm:$0xf]
  %v58 = vld [vmem:[%s2 + $0x94] sm:$0xf]
  %v59 = vld [vmem:[%s2 + $0x98] sm:$0xf]
  %v60 = vld [vmem:[%s2 + $0x9c] sm:$0xf]
  %v61 = vld [vmem:[%s2 + $0xa0] sm:$0xf]
  %v62 = vld [vmem:[%s2 + $0xa4] sm:$0xf]
  %v63 = vld [vmem:[%s2 + $0xa8] sm:$0xf]
  %v64 = vld [vmem:[%s2 + $0xac] sm:$0xf]
  %v65 = vld [vmem:[%s2 + $0xb0] sm:$0xf]
  %v66 = vld [vmem:[%s2 + $0xb4] sm:$0xf]
  %v67 = vld [vmem:[%s2 + $0xb8] sm:$0xf]
  %v68 = vld [vmem:[%s2 + $0xbc] sm:$0xf]
  %v69 = vld [vmem:[%s2 + $0xc0] sm:$0xf]
  %v70 = vld [vmem:[%s2 + $0xc4] sm:$0xf]
  %v71 = vld [vmem:[%s2 + $0xc8] sm:$0xf]
  %v72 = vld [vmem:[%s2 + $0xcc] sm:$0xf]
  %v73 = vld [vmem:[%s2 + $0xd0] sm:$0xf]
  %v74 = vld [vmem:[%s2 + $0xd4] sm:$0xf]
  %v75 = vld [vmem:[%s2 + $0xd8] sm:$0xf]
  %v76 = vld [vmem:[%s2 + $0xdc] sm:$0xf]
  %v77 = vld [vmem:[%s2 + $0xe0] sm:$0xf]
  %v78 = vld [vmem:[%s2 + $0xe4] sm:$0xf]
  %v79 = vld [vmem:[%s2 + $0xe8] sm:$0xf]
  %v80 = vld [vmem:[%s2 + $0xec] sm:$0xf]
  %v81 = vld [vmem:[%s2 + $0xf0] sm:$0xf]
  %v82 = vld [vmem:[%s2 + $0xf4] sm:$0xf]
  %v83 = vld [vmem:[%s2 + $0xf8] sm:$0xf]
  %v84 = vld [vmem:[%s2 + $0xfc] sm:$0xf]
  %v85 = vunpack.c.l.bf16 %v21
  %v86 = vunpack.c.l.bf16 %v22
  %v87 = vunpack.c.l.bf16 %v23
  %v88 = vunpack.c.l.bf16 %v24
  %v89 = vunpack.c.l.bf16 %v25
  %v90 = vunpack.c.l.bf16 %v26
  %v91 = vunpack.c.l.bf16 %v27
  %v92 = vunpack.c.l.bf16 %v28
  %v93 = vunpack.c.l.bf16 %v29
  %v94 = vunpack.c.l.bf16 %v30
  %v95 = vunpack.c.l.bf16 %v31
  %v96 = vunpack.c.l.bf16 %v32
  %v97 = vunpack.c.l.bf16 %v33
  %v98 = vunpack.c.l.bf16 %v34
  %v99 = vunpack.c.l.bf16 %v35
  %v100 = vunpack.c.l.bf16 %v36
  %v101 = vunpack.c.l.bf16 %v37
  %v102 = vunpack.c.l.bf16 %v38
  %v103 = vunpack.c.l.bf16 %v39
  %v104 = vunpack.c.l.bf16 %v40
  %v105 = vunpack.c.l.bf16 %v41
  %v106 = vunpack.c.l.bf16 %v42
  %v107 = vunpack.c.l.bf16 %v43
  %v108 = vunpack.c.l.bf16 %v44
  %v109 = vunpack.c.l.bf16 %v45
  %v110 = vunpack.c.l.bf16 %v46
  %v111 = vunpack.c.l.bf16 %v47
  %v112 = vunpack.c.l.bf16 %v48
  %v113 = vunpack.c.l.bf16 %v49
  %v114 = vunpack.c.l.bf16 %v50
  %v115 = vunpack.c.l.bf16 %v51
  %v116 = vunpack.c.l.bf16 %v52
  %v117 = vunpack.c.l.bf16 %v53
  %v118 = vunpack.c.l.bf16 %v54
  %v119 = vunpack.c.l.bf16 %v55
  %v120 = vunpack.c.l.bf16 %v56
  %v121 = vunpack.c.l.bf16 %v57
  %v122 = vunpack.c.l.bf16 %v58
  %v123 = vunpack.c.l.bf16 %v59
  %v124 = vunpack.c.l.bf16 %v60
  %v125 = vunpack.c.l.bf16 %v61
  %v126 = vunpack.c.l.bf16 %v62
  %v127 = vunpack.c.l.bf16 %v63
  %v128 = vunpack.c.l.bf16 %v64
  %v129 = vunpack.c.l.bf16 %v65
  %v130 = vunpack.c.l.bf16 %v66
  %v131 = vunpack.c.l.bf16 %v67
  %v132 = vunpack.c.l.bf16 %v68
  %v133 = vunpack.c.l.bf16 %v69
  %v134 = vunpack.c.l.bf16 %v70
  %v135 = vunpack.c.l.bf16 %v71
  %v136 = vunpack.c.l.bf16 %v72
  %v137 = vunpack.c.l.bf16 %v73
  %v138 = vunpack.c.l.bf16 %v74
  %v139 = vunpack.c.l.bf16 %v75
  %v140 = vunpack.c.l.bf16 %v76
  %v141 = vunpack.c.l.bf16 %v77
  %v142 = vunpack.c.l.bf16 %v78
  %v143 = vunpack.c.l.bf16 %v79
  %v144 = vunpack.c.l.bf16 %v80
  %v145 = vunpack.c.l.bf16 %v81
  %v146 = vunpack.c.l.bf16 %v82
  %v147 = vunpack.c.l.bf16 %v83
  %v148 = vunpack.c.l.bf16 %v84
  %v149 = vld [vmem:[%s0] sm:$0x1]
  %v151 = vlaneseq
  %v152 = vshrl.u32 %v151, 7
  %v153 = vsub.s32 0, %v152
  %v154 = vrot.slane %v149, %v153
  %v156 = vmul.f32 %v85, %v154
  %v157 = vmul.f32 %v86, %v154
  %v158 = vmul.f32 %v87, %v154
  %v159 = vmul.f32 %v88, %v154
  %v160 = vmul.f32 %v89, %v154
  %v161 = vmul.f32 %v90, %v154
  %v162 = vmul.f32 %v91, %v154
  %v163 = vmul.f32 %v92, %v154
  %v164 = vmul.f32 %v93, %v154
  %v165 = vmul.f32 %v94, %v154
  %v166 = vmul.f32 %v95, %v154
  %v167 = vmul.f32 %v96, %v154
  %v168 = vmul.f32 %v97, %v154
  %v169 = vmul.f32 %v98, %v154
  %v170 = vmul.f32 %v99, %v154
  %v171 = vmul.f32 %v100, %v154
  %v172 = vmul.f32 %v101, %v154
  %v173 = vmul.f32 %v102, %v154
  %v174 = vmul.f32 %v103, %v154
  %v175 = vmul.f32 %v104, %v154
  %v176 = vmul.f32 %v105, %v154
  %v177 = vmul.f32 %v106, %v154
  %v178 = vmul.f32 %v107, %v154
  %v179 = vmul.f32 %v108, %v154
  %v180 = vmul.f32 %v109, %v154
  %v181 = vmul.f32 %v110, %v154
  %v182 = vmul.f32 %v111, %v154
  %v183 = vmul.f32 %v112, %v154
  %v184 = vmul.f32 %v113, %v154
  %v185 = vmul.f32 %v114, %v154
  %v186 = vmul.f32 %v115, %v154
  %v187 = vmul.f32 %v116, %v154
  %v188 = vmul.f32 %v117, %v154
  %v189 = vmul.f32 %v118, %v154
  %v190 = vmul.f32 %v119, %v154
  %v191 = vmul.f32 %v120, %v154
  %v192 = vmul.f32 %v121, %v154
  %v193 = vmul.f32 %v122, %v154
  %v194 = vmul.f32 %v123, %v154
  %v195 = vmul.f32 %v124, %v154
  %v196 = vmul.f32 %v125, %v154
  %v197 = vmul.f32 %v126, %v154
  %v198 = vmul.f32 %v127, %v154
  %v199 = vmul.f32 %v128, %v154
  %v200 = vmul.f32 %v129, %v154
  %v201 = vmul.f32 %v130, %v154
  %v202 = vmul.f32 %v131, %v154
  %v203 = vmul.f32 %v132, %v154
  %v204 = vmul.f32 %v133, %v154
  %v205 = vmul.f32 %v134, %v154
  %v206 = vmul.f32 %v135, %v154
  %v207 = vmul.f32 %v136, %v154
  %v208 = vmul.f32 %v137, %v154
  %v209 = vmul.f32 %v138, %v154
  %v210 = vmul.f32 %v139, %v154
  %v211 = vmul.f32 %v140, %v154
  %v212 = vmul.f32 %v141, %v154
  %v213 = vmul.f32 %v142, %v154
  %v214 = vmul.f32 %v143, %v154
  %v215 = vmul.f32 %v144, %v154
  %v216 = vmul.f32 %v145, %v154
  %v217 = vmul.f32 %v146, %v154
  %v218 = vmul.f32 %v147, %v154
  %v219 = vmul.f32 %v148, %v154
  %v220 = vld [vmem:[%s1] sm:$0x1]
  %v222 = vlaneseq
  %v223 = vshrl.u32 %v222, 7
  %v224 = vsub.s32 0, %v223
  %v225 = vrot.slane %v220, %v224
  %v227 = vadd.f32 %v156, %v225
  %v228 = vadd.f32 %v157, %v225
  %v229 = vadd.f32 %v158, %v225
  %v230 = vadd.f32 %v159, %v225
  %v231 = vadd.f32 %v160, %v225
  %v232 = vadd.f32 %v161, %v225
  %v233 = vadd.f32 %v162, %v225
  %v234 = vadd.f32 %v163, %v225
  %v235 = vadd.f32 %v164, %v225
  %v236 = vadd.f32 %v165, %v225
  %v237 = vadd.f32 %v166, %v225
  %v238 = vadd.f32 %v167, %v225
  %v239 = vadd.f32 %v168, %v225
  %v240 = vadd.f32 %v169, %v225
  %v241 = vadd.f32 %v170, %v225
  %v242 = vadd.f32 %v171, %v225
  %v243 = vadd.f32 %v172, %v225
  %v244 = vadd.f32 %v173, %v225
  %v245 = vadd.f32 %v174, %v225
  %v246 = vadd.f32 %v175, %v225
  %v247 = vadd.f32 %v176, %v225
  %v248 = vadd.f32 %v177, %v225
  %v249 = vadd.f32 %v178, %v225
  %v250 = vadd.f32 %v179, %v225
  %v251 = vadd.f32 %v180, %v225
  %v252 = vadd.f32 %v181, %v225
  %v253 = vadd.f32 %v182, %v225
  %v254 = vadd.f32 %v183, %v225
  %v255 = vadd.f32 %v184, %v225
  %v256 = vadd.f32 %v185, %v225
  %v257 = vadd.f32 %v186, %v225
  %v258 = vadd.f32 %v187, %v225
  %v259 = vadd.f32 %v188, %v225
  %v260 = vadd.f32 %v189, %v225
  %v261 = vadd.f32 %v190, %v225
  %v262 = vadd.f32 %v191, %v225
  %v263 = vadd.f32 %v192, %v225
  %v264 = vadd.f32 %v193, %v225
  %v265 = vadd.f32 %v194, %v225
  %v266 = vadd.f32 %v195, %v225
  %v267 = vadd.f32 %v196, %v225
  %v268 = vadd.f32 %v197, %v225
  %v269 = vadd.f32 %v198, %v225
  %v270 = vadd.f32 %v199, %v225
  %v271 = vadd.f32 %v200, %v225
  %v272 = vadd.f32 %v201, %v225
  %v273 = vadd.f32 %v202, %v225
  %v274 = vadd.f32 %v203, %v225
  %v275 = vadd.f32 %v204, %v225
  %v276 = vadd.f32 %v205, %v225
  %v277 = vadd.f32 %v206, %v225
  %v278 = vadd.f32 %v207, %v225
  %v279 = vadd.f32 %v208, %v225
  %v280 = vadd.f32 %v209, %v225
  %v281 = vadd.f32 %v210, %v225
  %v282 = vadd.f32 %v211, %v225
  %v283 = vadd.f32 %v212, %v225
  %v284 = vadd.f32 %v213, %v225
  %v285 = vadd.f32 %v214, %v225
  %v286 = vadd.f32 %v215, %v225
  %v287 = vadd.f32 %v216, %v225
  %v288 = vadd.f32 %v217, %v225
  %v289 = vadd.f32 %v218, %v225
  %v290 = vadd.f32 %v219, %v225
  %v291 = vmax.f32 %v227, 0.0
  %v292 = vmax.f32 %v228, 0.0
  %v293 = vmax.f32 %v229, 0.0
  %v294 = vmax.f32 %v230, 0.0
  %v295 = vmax.f32 %v231, 0.0
  %v296 = vmax.f32 %v232, 0.0
  %v297 = vmax.f32 %v233, 0.0
  %v298 = vmax.f32 %v234, 0.0
  %v299 = vmax.f32 %v235, 0.0
  %v300 = vmax.f32 %v236, 0.0
  %v301 = vmax.f32 %v237, 0.0
  %v302 = vmax.f32 %v238, 0.0
  %v303 = vmax.f32 %v239, 0.0
  %v304 = vmax.f32 %v240, 0.0
  %v305 = vmax.f32 %v241, 0.0
  %v306 = vmax.f32 %v242, 0.0
  %v307 = vmax.f32 %v243, 0.0
  %v308 = vmax.f32 %v244, 0.0
  %v309 = vmax.f32 %v245, 0.0
  %v310 = vmax.f32 %v246, 0.0
  %v311 = vmax.f32 %v247, 0.0
  %v312 = vmax.f32 %v248, 0.0
  %v313 = vmax.f32 %v249, 0.0
  %v314 = vmax.f32 %v250, 0.0
  %v315 = vmax.f32 %v251, 0.0
  %v316 = vmax.f32 %v252, 0.0
  %v317 = vmax.f32 %v253, 0.0
  %v318 = vmax.f32 %v254, 0.0
  %v319 = vmax.f32 %v255, 0.0
  %v320 = vmax.f32 %v256, 0.0
  %v321 = vmax.f32 %v257, 0.0
  %v322 = vmax.f32 %v258, 0.0
  %v323 = vmax.f32 %v259, 0.0
  %v324 = vmax.f32 %v260, 0.0
  %v325 = vmax.f32 %v261, 0.0
  %v326 = vmax.f32 %v262, 0.0
  %v327 = vmax.f32 %v263, 0.0
  %v328 = vmax.f32 %v264, 0.0
  %v329 = vmax.f32 %v265, 0.0
  %v330 = vmax.f32 %v266, 0.0
  %v331 = vmax.f32 %v267, 0.0
  %v332 = vmax.f32 %v268, 0.0
  %v333 = vmax.f32 %v269, 0.0
  %v334 = vmax.f32 %v270, 0.0
  %v335 = vmax.f32 %v271, 0.0
  %v336 = vmax.f32 %v272, 0.0
  %v337 = vmax.f32 %v273, 0.0
  %v338 = vmax.f32 %v274, 0.0
  %v339 = vmax.f32 %v275, 0.0
  %v340 = vmax.f32 %v276, 0.0
  %v341 = vmax.f32 %v277, 0.0
  %v342 = vmax.f32 %v278, 0.0
  %v343 = vmax.f32 %v279, 0.0
  %v344 = vmax.f32 %v280, 0.0
  %v345 = vmax.f32 %v281, 0.0
  %v346 = vmax.f32 %v282, 0.0
  %v347 = vmax.f32 %v283, 0.0
  %v348 = vmax.f32 %v284, 0.0
  %v349 = vmax.f32 %v285, 0.0
  %v350 = vmax.f32 %v286, 0.0
  %v351 = vmax.f32 %v287, 0.0
  %v352 = vmax.f32 %v288, 0.0
  %v353 = vmax.f32 %v289, 0.0
  %v354 = vmax.f32 %v290, 0.0
  %v355 = vpack.c.bf16 %v292, %v291
  %v356 = vpack.c.bf16 %v294, %v293
  %v357 = vpack.c.bf16 %v296, %v295
  %v358 = vpack.c.bf16 %v298, %v297
  %v359 = vpack.c.bf16 %v300, %v299
  %v360 = vpack.c.bf16 %v302, %v301
  %v361 = vpack.c.bf16 %v304, %v303
  %v362 = vpack.c.bf16 %v306, %v305
  %v363 = vpack.c.bf16 %v308, %v307
  %v364 = vpack.c.bf16 %v310, %v309
  %v365 = vpack.c.bf16 %v312, %v311
  %v366 = vpack.c.bf16 %v314, %v313
  %v367 = vpack.c.bf16 %v316, %v315
  %v368 = vpack.c.bf16 %v318, %v317
  %v369 = vpack.c.bf16 %v320, %v319
  %v370 = vpack.c.bf16 %v322, %v321
  %v371 = vpack.c.bf16 %v324, %v323
  %v372 = vpack.c.bf16 %v326, %v325
  %v373 = vpack.c.bf16 %v328, %v327
  %v374 = vpack.c.bf16 %v330, %v329
  %v375 = vpack.c.bf16 %v332, %v331
  %v376 = vpack.c.bf16 %v334, %v333
  %v377 = vpack.c.bf16 %v336, %v335
  %v378 = vpack.c.bf16 %v338, %v337
  %v379 = vpack.c.bf16 %v340, %v339
  %v380 = vpack.c.bf16 %v342, %v341
  %v381 = vpack.c.bf16 %v344, %v343
  %v382 = vpack.c.bf16 %v346, %v345
  %v383 = vpack.c.bf16 %v348, %v347
  %v384 = vpack.c.bf16 %v350, %v349
  %v385 = vpack.c.bf16 %v352, %v351
  %v386 = vpack.c.bf16 %v354, %v353
  %v387 = vld [vmem:[%s3] sm:$0xf]
  %v388 = vld [vmem:[%s3 + $0x4] sm:$0xf]
  %v389 = vld [vmem:[%s4] sm:$0x1]
  %v391 = vlaneseq
  %v392 = vshrl.u32 %v391, 7
  %v393 = vsub.s32 0, %v392
  %v394 = vrot.slane %v389, %v393
  %v398 = vunpack.c.l.b16 %v387
  %v399 = vunpack.c.l.b16 %v388
  %v400 = vpack.c.b16 %v399, %v398
  %vm402 = vcmask 130048
  %v404 = vsel %vm402, %v355, 0
  %v407 = vsel %vm402, %v356, 0
  %v410 = vsel %vm402, %v357, 0
  %v413 = vsel %vm402, %v358, 0
  %v416 = vsel %vm402, %v359, 0
  %v419 = vsel %vm402, %v360, 0
  %v422 = vsel %vm402, %v361, 0
  %v425 = vsel %vm402, %v362, 0
  %v428 = vsel %vm402, %v363, 0
  %v431 = vsel %vm402, %v364, 0
  %v434 = vsel %vm402, %v365, 0
  %v437 = vsel %vm402, %v366, 0
  %v440 = vsel %vm402, %v367, 0
  %v443 = vsel %vm402, %v368, 0
  %v446 = vsel %vm402, %v369, 0
  %v449 = vsel %vm402, %v370, 0
  %v452 = vsel %vm402, %v371, 0
  %v455 = vsel %vm402, %v372, 0
  %v458 = vsel %vm402, %v373, 0
  %v461 = vsel %vm402, %v374, 0
  %v464 = vsel %vm402, %v375, 0
  %v467 = vsel %vm402, %v376, 0
  %v470 = vsel %vm402, %v377, 0
  %v473 = vsel %vm402, %v378, 0
  %v476 = vsel %vm402, %v379, 0
  %v479 = vsel %vm402, %v380, 0
  %v482 = vsel %vm402, %v381, 0
  %v485 = vsel %vm402, %v382, 0
  %v488 = vsel %vm402, %v383, 0
  %v491 = vsel %vm402, %v384, 0
  %v494 = vsel %vm402, %v385, 0
  %v497 = vsel %vm402, %v386, 0
  %499 = vmatprep.subr.bf16.mxu0 0
  %500 = vmatpush1.bf16.msra.mxu0 %v400
  %501 = vmatprep.subr.bf16.mxu0 0
  %502 = vmatpush1.bf16.msra.mxu0 0
  %503 = vmatprep.subr.bf16.mxu0 0
  %504 = vmatpush1.bf16.msra.mxu0 0
  %505 = vmatprep.subr.bf16.mxu0 0
  %506 = vmatpush1.bf16.msra.mxu0 0
  %507 = vmatprep.subr.bf16.mxu0 0
  %508 = vmatpush1.bf16.msra.mxu0 0
  %509 = vmatprep.subr.bf16.mxu0 0
  %510 = vmatpush1.bf16.msra.mxu0 0
  %511 = vmatprep.subr.bf16.mxu0 0
  %512 = vmatpush1.bf16.msra.mxu0 0
  %513 = vmatprep.subr.bf16.mxu0 0
  %514 = vmatpush1.bf16.msra.mxu0 0
  %515 = vmatprep.subr.bf16.mxu0 0
  %516 = vmatpush1.bf16.msra.mxu0 0
  %517 = vmatprep.subr.bf16.mxu0 0
  %518 = vmatpush1.bf16.msra.mxu0 0
  %519 = vmatprep.subr.bf16.mxu0 0
  %520 = vmatpush1.bf16.msra.mxu0 0
  %521 = vmatprep.subr.bf16.mxu0 0
  %522 = vmatpush1.bf16.msra.mxu0 0
  %523 = vmatprep.subr.bf16.mxu0 0
  %524 = vmatpush1.bf16.msra.mxu0 0
  %525 = vmatprep.subr.bf16.mxu0 0
  %526 = vmatpush1.bf16.msra.mxu0 0
  %527 = vmatprep.subr.bf16.mxu0 0
  %528 = vmatpush1.bf16.msra.mxu0 0
  %529 = vmatprep.subr.bf16.mxu0 0
  %530 = vmatpush1.bf16.msra.mxu0 0
  %531 = vmatprep.mubr.bf16.mxu0 0
  %532 = vmatmul.mubr.bf16.gmra.mrb[0].mxu0 %v404
  %v533 = vpop.f32.mrb[0].mxu0
  %v534 = vadd.f32 %v394, %v533
  %v535 = vpop.f32.mrb[0].mxu0
  %v536 = vpop.f32.mrb[0].mxu0
  %v537 = vadd.f32 %v394, %v536
  %v538 = vpop.f32.mrb[0].mxu0
  %539 = vmatprep.mubr.bf16.mxu0 0
  %540 = vmatmul.mubr.bf16.gmra.mrb[0].mxu0 %v407
  %v541 = vpop.f32.mrb[0].mxu0
  %v542 = vadd.f32 %v394, %v541
  %v543 = vpop.f32.mrb[0].mxu0
  %v544 = vpop.f32.mrb[0].mxu0
  %v545 = vadd.f32 %v394, %v544
  %v546 = vpop.f32.mrb[0].mxu0
  %547 = vmatprep.mubr.bf16.mxu0 0
  %548 = vmatmul.mubr.bf16.gmra.mrb[0].mxu0 %v410
  %v549 = vpop.f32.mrb[0].mxu0
  %v550 = vadd.f32 %v394, %v549
  %v551 = vpop.f32.mrb[0].mxu0
  %v552 = vpop.f32.mrb[0].mxu0
  %v553 = vadd.f32 %v394, %v552
  %v554 = vpop.f32.mrb[0].mxu0
  %555 = vmatprep.mubr.bf16.mxu0 0
  %556 = vmatmul.mubr.bf16.gmra.mrb[0].mxu0 %v413
  %v557 = vpop.f32.mrb[0].mxu0
  %v558 = vadd.f32 %v394, %v557
  %v559 = vpop.f32.mrb[0].mxu0
  %v560 = vpop.f32.mrb[0].mxu0
  %v561 = vadd.f32 %v394, %v560
  %v562 = vpop.f32.mrb[0].mxu0
  %563 = vmatprep.mubr.bf16.mxu0 0
  %564 = vmatmul.mubr.bf16.gmra.mrb[0].mxu0 %v416
  %v565 = vpop.f32.mrb[0].mxu0
  %v566 = vadd.f32 %v394, %v565
  %v567 = vpop.f32.mrb[0].mxu0
  %v568 = vpop.f32.mrb[0].mxu0
  %v569 = vadd.f32 %v394, %v568
  %v570 = vpop.f32.mrb[0].mxu0
  %571 = vmatprep.mubr.bf16.mxu0 0
  %572 = vmatmul.mubr.bf16.gmra.mrb[0].mxu0 %v419
  %v573 = vpop.f32.mrb[0].mxu0
  %v574 = vadd.f32 %v394, %v573
  %v575 = vpop.f32.mrb[0].mxu0
  %v576 = vpop.f32.mrb[0].mxu0
  %v577 = vadd.f32 %v394, %v576
  %v578 = vpop.f32.mrb[0].mxu0
  %579 = vmatprep.mubr.bf16.mxu0 0
  %580 = vmatmul.mubr.bf16.gmra.mrb[0].mxu0 %v422
  %v581 = vpop.f32.mrb[0].mxu0
  %v582 = vadd.f32 %v394, %v581
  %v583 = vpop.f32.mrb[0].mxu0
  %v584 = vpop.f32.mrb[0].mxu0
  %v585 = vadd.f32 %v394, %v584
  %v586 = vpop.f32.mrb[0].mxu0
  %587 = vmatprep.mubr.bf16.mxu0 0
  %588 = vmatmul.mubr.bf16.gmra.mrb[0].mxu0 %v425
  %v589 = vpop.f32.mrb[0].mxu0
  %v590 = vadd.f32 %v394, %v589
  %v591 = vpop.f32.mrb[0].mxu0
  %v592 = vpop.f32.mrb[0].mxu0
  %v593 = vadd.f32 %v394, %v592
  %v594 = vpop.f32.mrb[0].mxu0
  %595 = vmatprep.mubr.bf16.mxu0 0
  %596 = vmatmul.mubr.bf16.gmra.mrb[0].mxu0 %v428
  %v597 = vpop.f32.mrb[0].mxu0
  %v598 = vadd.f32 %v394, %v597
  %v599 = vpop.f32.mrb[0].mxu0
  %v600 = vpop.f32.mrb[0].mxu0
  %v601 = vadd.f32 %v394, %v600
  %v602 = vpop.f32.mrb[0].mxu0
  %603 = vmatprep.mubr.bf16.mxu0 0
  %604 = vmatmul.mubr.bf16.gmra.mrb[0].mxu0 %v431
  %v605 = vpop.f32.mrb[0].mxu0
  %v606 = vadd.f32 %v394, %v605
  %v607 = vpop.f32.mrb[0].mxu0
  %v608 = vpop.f32.mrb[0].mxu0
  %v609 = vadd.f32 %v394, %v608
  %v610 = vpop.f32.mrb[0].mxu0
  %611 = vmatprep.mubr.bf16.mxu0 0
  %612 = vmatmul.mubr.bf16.gmra.mrb[0].mxu0 %v434
  %v613 = vpop.f32.mrb[0].mxu0
  %v614 = vadd.f32 %v394, %v613
  %v615 = vpop.f32.mrb[0].mxu0
  %v616 = vpop.f32.mrb[0].mxu0
  %v617 = vadd.f32 %v394, %v616
  %v618 = vpop.f32.mrb[0].mxu0
  %619 = vmatprep.mubr.bf16.mxu0 0
  %620 = vmatmul.mubr.bf16.gmra.mrb[0].mxu0 %v437
  %v621 = vpop.f32.mrb[0].mxu0
  %v622 = vadd.f32 %v394, %v621
  %v623 = vpop.f32.mrb[0].mxu0
  %v624 = vpop.f32.mrb[0].mxu0
  %v625 = vadd.f32 %v394, %v624
  %v626 = vpop.f32.mrb[0].mxu0
  %627 = vmatprep.mubr.bf16.mxu0 0
  %628 = vmatmul.mubr.bf16.gmra.mrb[0].mxu0 %v440
  %v629 = vpop.f32.mrb[0].mxu0
  %v630 = vadd.f32 %v394, %v629
  %v631 = vpop.f32.mrb[0].mxu0
  %v632 = vpop.f32.mrb[0].mxu0
  %v633 = vadd.f32 %v394, %v632
  %v634 = vpop.f32.mrb[0].mxu0
  %635 = vmatprep.mubr.bf16.mxu0 0
  %636 = vmatmul.mubr.bf16.gmra.mrb[0].mxu0 %v443
  %v637 = vpop.f32.mrb[0].mxu0
  %v638 = vadd.f32 %v394, %v637
  %v639 = vpop.f32.mrb[0].mxu0
  %v640 = vpop.f32.mrb[0].mxu0
  %v641 = vadd.f32 %v394, %v640
  %v642 = vpop.f32.mrb[0].mxu0
  %643 = vmatprep.mubr.bf16.mxu0 0
  %644 = vmatmul.mubr.bf16.gmra.mrb[0].mxu0 %v446
  %v645 = vpop.f32.mrb[0].mxu0
  %v646 = vadd.f32 %v394, %v645
  %v647 = vpop.f32.mrb[0].mxu0
  %v648 = vpop.f32.mrb[0].mxu0
  %v649 = vadd.f32 %v394, %v648
  %v650 = vpop.f32.mrb[0].mxu0
  %651 = vmatprep.mubr.bf16.mxu0 0
  %652 = vmatmul.mubr.bf16.gmra.mrb[0].mxu0 %v449
  %v653 = vpop.f32.mrb[0].mxu0
  %v654 = vadd.f32 %v394, %v653
  %v655 = vpop.f32.mrb[0].mxu0
  %v656 = vpop.f32.mrb[0].mxu0
  %v657 = vadd.f32 %v394, %v656
  %v658 = vpop.f32.mrb[0].mxu0
  %659 = vmatprep.mubr.bf16.mxu0 0
  %660 = vmatmul.mubr.bf16.gmra.mrb[0].mxu0 %v452
  %v661 = vpop.f32.mrb[0].mxu0
  %v662 = vadd.f32 %v394, %v661
  %v663 = vpop.f32.mrb[0].mxu0
  %v664 = vpop.f32.mrb[0].mxu0
  %v665 = vadd.f32 %v394, %v664
  %v666 = vpop.f32.mrb[0].mxu0
  %667 = vmatprep.mubr.bf16.mxu0 0
  %668 = vmatmul.mubr.bf16.gmra.mrb[0].mxu0 %v455
  %v669 = vpop.f32.mrb[0].mxu0
  %v670 = vadd.f32 %v394, %v669
  %v671 = vpop.f32.mrb[0].mxu0
  %v672 = vpop.f32.mrb[0].mxu0
  %v673 = vadd.f32 %v394, %v672
  %v674 = vpop.f32.mrb[0].mxu0
  %675 = vmatprep.mubr.bf16.mxu0 0
  %676 = vmatmul.mubr.bf16.gmra.mrb[0].mxu0 %v458
  %v677 = vpop.f32.mrb[0].mxu0
  %v678 = vadd.f32 %v394, %v677
  %v679 = vpop.f32.mrb[0].mxu0
  %v680 = vpop.f32.mrb[0].mxu0
  %v681 = vadd.f32 %v394, %v680
  %v682 = vpop.f32.mrb[0].mxu0
  %683 = vmatprep.mubr.bf16.mxu0 0
  %684 = vmatmul.mubr.bf16.gmra.mrb[0].mxu0 %v461
  %v685 = vpop.f32.mrb[0].mxu0
  %v686 = vadd.f32 %v394, %v685
  %v687 = vpop.f32.mrb[0].mxu0
  %v688 = vpop.f32.mrb[0].mxu0
  %v689 = vadd.f32 %v394, %v688
  %v690 = vpop.f32.mrb[0].mxu0
  %691 = vmatprep.mubr.bf16.mxu0 0
  %692 = vmatmul.mubr.bf16.gmra.mrb[0].mxu0 %v464
  %v693 = vpop.f32.mrb[0].mxu0
  %v694 = vadd.f32 %v394, %v693
  %v695 = vpop.f32.mrb[0].mxu0
  %v696 = vpop.f32.mrb[0].mxu0
  %v697 = vadd.f32 %v394, %v696
  %v698 = vpop.f32.mrb[0].mxu0
  %699 = vmatprep.mubr.bf16.mxu0 0
  %700 = vmatmul.mubr.bf16.gmra.mrb[0].mxu0 %v467
  %v701 = vpop.f32.mrb[0].mxu0
  %v702 = vadd.f32 %v394, %v701
  %v703 = vpop.f32.mrb[0].mxu0
  %v704 = vpop.f32.mrb[0].mxu0
  %v705 = vadd.f32 %v394, %v704
  %v706 = vpop.f32.mrb[0].mxu0
  %707 = vmatprep.mubr.bf16.mxu0 0
  %708 = vmatmul.mubr.bf16.gmra.mrb[0].mxu0 %v470
  %v709 = vpop.f32.mrb[0].mxu0
  %v710 = vadd.f32 %v394, %v709
  %v711 = vpop.f32.mrb[0].mxu0
  %v712 = vpop.f32.mrb[0].mxu0
  %v713 = vadd.f32 %v394, %v712
  %v714 = vpop.f32.mrb[0].mxu0
  %715 = vmatprep.mubr.bf16.mxu0 0
  %716 = vmatmul.mubr.bf16.gmra.mrb[0].mxu0 %v473
  %v717 = vpop.f32.mrb[0].mxu0
  %v718 = vadd.f32 %v394, %v717
  %v719 = vpop.f32.mrb[0].mxu0
  %v720 = vpop.f32.mrb[0].mxu0
  %v721 = vadd.f32 %v394, %v720
  %v722 = vpop.f32.mrb[0].mxu0
  %723 = vmatprep.mubr.bf16.mxu0 0
  %724 = vmatmul.mubr.bf16.gmra.mrb[0].mxu0 %v476
  %v725 = vpop.f32.mrb[0].mxu0
  %v726 = vadd.f32 %v394, %v725
  %v727 = vpop.f32.mrb[0].mxu0
  %v728 = vpop.f32.mrb[0].mxu0
  %v729 = vadd.f32 %v394, %v728
  %v730 = vpop.f32.mrb[0].mxu0
  %731 = vmatprep.mubr.bf16.mxu0 0
  %732 = vmatmul.mubr.bf16.gmra.mrb[0].mxu0 %v479
  %v733 = vpop.f32.mrb[0].mxu0
  %v734 = vadd.f32 %v394, %v733
  %v735 = vpop.f32.mrb[0].mxu0
  %v736 = vpop.f32.mrb[0].mxu0
  %v737 = vadd.f32 %v394, %v736
  %v738 = vpop.f32.mrb[0].mxu0
  %739 = vmatprep.mubr.bf16.mxu0 0
  %740 = vmatmul.mubr.bf16.gmra.mrb[0].mxu0 %v482
  %v741 = vpop.f32.mrb[0].mxu0
  %v742 = vadd.f32 %v394, %v741
  %v743 = vpop.f32.mrb[0].mxu0
  %v744 = vpop.f32.mrb[0].mxu0
  %v745 = vadd.f32 %v394, %v744
  %v746 = vpop.f32.mrb[0].mxu0
  %747 = vmatprep.mubr.bf16.mxu0 0
  %748 = vmatmul.mubr.bf16.gmra.mrb[0].mxu0 %v485
  %v749 = vpop.f32.mrb[0].mxu0
  %v750 = vadd.f32 %v394, %v749
  %v751 = vpop.f32.mrb[0].mxu0
  %v752 = vpop.f32.mrb[0].mxu0
  %v753 = vadd.f32 %v394, %v752
  %v754 = vpop.f32.mrb[0].mxu0
  %755 = vmatprep.mubr.bf16.mxu0 0
  %756 = vmatmul.mubr.bf16.gmra.mrb[0].mxu0 %v488
  %v757 = vpop.f32.mrb[0].mxu0
  %v758 = vadd.f32 %v394, %v757
  %v759 = vpop.f32.mrb[0].mxu0
  %v760 = vpop.f32.mrb[0].mxu0
  %v761 = vadd.f32 %v394, %v760
  %v762 = vpop.f32.mrb[0].mxu0
  %763 = vmatprep.mubr.bf16.mxu0 0
  %764 = vmatmul.mubr.bf16.gmra.mrb[0].mxu0 %v491
  %v765 = vpop.f32.mrb[0].mxu0
  %v766 = vadd.f32 %v394, %v765
  %v767 = vpop.f32.mrb[0].mxu0
  %v768 = vpop.f32.mrb[0].mxu0
  %v769 = vadd.f32 %v394, %v768
  %v770 = vpop.f32.mrb[0].mxu0
  %771 = vmatprep.mubr.bf16.mxu0 0
  %772 = vmatmul.mubr.bf16.gmra.mrb[0].mxu0 %v494
  %v773 = vpop.f32.mrb[0].mxu0
  %v774 = vadd.f32 %v394, %v773
  %v775 = vpop.f32.mrb[0].mxu0
  %v776 = vpop.f32.mrb[0].mxu0
  %v777 = vadd.f32 %v394, %v776
  %v778 = vpop.f32.mrb[0].mxu0
  %779 = vmatprep.mubr.bf16.mxu0 0
  %780 = vmatmul.mubr.bf16.gmra.mrb[0].mxu0 %v497
  %v781 = vpop.f32.mrb[0].mxu0
  %v782 = vadd.f32 %v394, %v781
  %v783 = vpop.f32.mrb[0].mxu0
  %v784 = vpop.f32.mrb[0].mxu0
  %v785 = vadd.f32 %v394, %v784
  %v786 = vpop.f32.mrb[0].mxu0
  %787 = vdwg.mxu0
  %v788 = vand.u32 2147483647, %v534
  %v789 = vand.u32 2147483647, %v537
  %v790 = vand.u32 2147483647, %v542
  %v791 = vand.u32 2147483647, %v545
  %v792 = vand.u32 2147483647, %v550
  %v793 = vand.u32 2147483647, %v553
  %v794 = vand.u32 2147483647, %v558
  %v795 = vand.u32 2147483647, %v561
  %v796 = vand.u32 2147483647, %v566
  %v797 = vand.u32 2147483647, %v569
  %v798 = vand.u32 2147483647, %v574
  %v799 = vand.u32 2147483647, %v577
  %v800 = vand.u32 2147483647, %v582
  %v801 = vand.u32 2147483647, %v585
  %v802 = vand.u32 2147483647, %v590
  %v803 = vand.u32 2147483647, %v593
  %v804 = vand.u32 2147483647, %v598
  %v805 = vand.u32 2147483647, %v601
  %v806 = vand.u32 2147483647, %v606
  %v807 = vand.u32 2147483647, %v609
  %v808 = vand.u32 2147483647, %v614
  %v809 = vand.u32 2147483647, %v617
  %v810 = vand.u32 2147483647, %v622
  %v811 = vand.u32 2147483647, %v625
  %v812 = vand.u32 2147483647, %v630
  %v813 = vand.u32 2147483647, %v633
  %v814 = vand.u32 2147483647, %v638
  %v815 = vand.u32 2147483647, %v641
  %v816 = vand.u32 2147483647, %v646
  %v817 = vand.u32 2147483647, %v649
  %v818 = vand.u32 2147483647, %v654
  %v819 = vand.u32 2147483647, %v657
  %v820 = vand.u32 2147483647, %v662
  %v821 = vand.u32 2147483647, %v665
  %v822 = vand.u32 2147483647, %v670
  %v823 = vand.u32 2147483647, %v673
  %v824 = vand.u32 2147483647, %v678
  %v825 = vand.u32 2147483647, %v681
  %v826 = vand.u32 2147483647, %v686
  %v827 = vand.u32 2147483647, %v689
  %v828 = vand.u32 2147483647, %v694
  %v829 = vand.u32 2147483647, %v697
  %v830 = vand.u32 2147483647, %v702
  %v831 = vand.u32 2147483647, %v705
  %v832 = vand.u32 2147483647, %v710
  %v833 = vand.u32 2147483647, %v713
  %v834 = vand.u32 2147483647, %v718
  %v835 = vand.u32 2147483647, %v721
  %v836 = vand.u32 2147483647, %v726
  %v837 = vand.u32 2147483647, %v729
  %v838 = vand.u32 2147483647, %v734
  %v839 = vand.u32 2147483647, %v737
  %v840 = vand.u32 2147483647, %v742
  %v841 = vand.u32 2147483647, %v745
  %v842 = vand.u32 2147483647, %v750
  %v843 = vand.u32 2147483647, %v753
  %v844 = vand.u32 2147483647, %v758
  %v845 = vand.u32 2147483647, %v761
  %v846 = vand.u32 2147483647, %v766
  %v847 = vand.u32 2147483647, %v769
  %v848 = vand.u32 2147483647, %v774
  %v849 = vand.u32 2147483647, %v777
  %v850 = vand.u32 2147483647, %v782
  %v851 = vand.u32 2147483647, %v785
  %v852 = vsub.f32 0.0, %v788
  %v853 = vsub.f32 0.0, %v789
  %v854 = vsub.f32 0.0, %v790
  %v855 = vsub.f32 0.0, %v791
  %v856 = vsub.f32 0.0, %v792
  %v857 = vsub.f32 0.0, %v793
  %v858 = vsub.f32 0.0, %v794
  %v859 = vsub.f32 0.0, %v795
  %v860 = vsub.f32 0.0, %v796
  %v861 = vsub.f32 0.0, %v797
  %v862 = vsub.f32 0.0, %v798
  %v863 = vsub.f32 0.0, %v799
  %v864 = vsub.f32 0.0, %v800
  %v865 = vsub.f32 0.0, %v801
  %v866 = vsub.f32 0.0, %v802
  %v867 = vsub.f32 0.0, %v803
  %v868 = vsub.f32 0.0, %v804
  %v869 = vsub.f32 0.0, %v805
  %v870 = vsub.f32 0.0, %v806
  %v871 = vsub.f32 0.0, %v807
  %v872 = vsub.f32 0.0, %v808
  %v873 = vsub.f32 0.0, %v809
  %v874 = vsub.f32 0.0, %v810
  %v875 = vsub.f32 0.0, %v811
  %v876 = vsub.f32 0.0, %v812
  %v877 = vsub.f32 0.0, %v813
  %v878 = vsub.f32 0.0, %v814
  %v879 = vsub.f32 0.0, %v815
  %v880 = vsub.f32 0.0, %v816
  %v881 = vsub.f32 0.0, %v817
  %v882 = vsub.f32 0.0, %v818
  %v883 = vsub.f32 0.0, %v819
  %v884 = vsub.f32 0.0, %v820
  %v885 = vsub.f32 0.0, %v821
  %v886 = vsub.f32 0.0, %v822
  %v887 = vsub.f32 0.0, %v823
  %v888 = vsub.f32 0.0, %v824
  %v889 = vsub.f32 0.0, %v825
  %v890 = vsub.f32 0.0, %v826
  %v891 = vsub.f32 0.0, %v827
  %v892 = vsub.f32 0.0, %v828
  %v893 = vsub.f32 0.0, %v829
  %v894 = vsub.f32 0.0, %v830
  %v895 = vsub.f32 0.0, %v831
  %v896 = vsub.f32 0.0, %v832
  %v897 = vsub.f32 0.0, %v833
  %v898 = vsub.f32 0.0, %v834
  %v899 = vsub.f32 0.0, %v835
  %v900 = vsub.f32 0.0, %v836
  %v901 = vsub.f32 0.0, %v837
  %v902 = vsub.f32 0.0, %v838
  %v903 = vsub.f32 0.0, %v839
  %v904 = vsub.f32 0.0, %v840
  %v905 = vsub.f32 0.0, %v841
  %v906 = vsub.f32 0.0, %v842
  %v907 = vsub.f32 0.0, %v843
  %v908 = vsub.f32 0.0, %v844
  %v909 = vsub.f32 0.0, %v845
  %v910 = vsub.f32 0.0, %v846
  %v911 = vsub.f32 0.0, %v847
  %v912 = vsub.f32 0.0, %v848
  %v913 = vsub.f32 0.0, %v849
  %v914 = vsub.f32 0.0, %v850
  %v915 = vsub.f32 0.0, %v851
  %v916 = vmul.f32 %v852, 1.442695
  %v917 = vpow.pop %v916
  %v918 = vmul.f32 %v853, 1.442695
  %v919 = vpow.pop %v918
  %v920 = vmul.f32 %v854, 1.442695
  %v921 = vpow.pop %v920
  %v922 = vmul.f32 %v855, 1.442695
  %v923 = vpow.pop %v922
  %v924 = vmul.f32 %v856, 1.442695
  %v925 = vpow.pop %v924
  %v926 = vmul.f32 %v857, 1.442695
  %v927 = vpow.pop %v926
  %v928 = vmul.f32 %v858, 1.442695
  %v929 = vpow.pop %v928
  %v930 = vmul.f32 %v859, 1.442695
  %v931 = vpow.pop %v930
  %v932 = vmul.f32 %v860, 1.442695
  %v933 = vpow.pop %v932
  %v934 = vmul.f32 %v861, 1.442695
  %v935 = vpow.pop %v934
  %v936 = vmul.f32 %v862, 1.442695
  %v937 = vpow.pop %v936
  %v938 = vmul.f32 %v863, 1.442695
  %v939 = vpow.pop %v938
  %v940 = vmul.f32 %v864, 1.442695
  %v941 = vpow.pop %v940
  %v942 = vmul.f32 %v865, 1.442695
  %v943 = vpow.pop %v942
  %v944 = vmul.f32 %v866, 1.442695
  %v945 = vpow.pop %v944
  %v946 = vmul.f32 %v867, 1.442695
  %v947 = vpow.pop %v946
  %v948 = vmul.f32 %v868, 1.442695
  %v949 = vpow.pop %v948
  %v950 = vmul.f32 %v869, 1.442695
  %v951 = vpow.pop %v950
  %v952 = vmul.f32 %v870, 1.442695
  %v953 = vpow.pop %v952
  %v954 = vmul.f32 %v871, 1.442695
  %v955 = vpow.pop %v954
  %v956 = vmul.f32 %v872, 1.442695
  %v957 = vpow.pop %v956
  %v958 = vmul.f32 %v873, 1.442695
  %v959 = vpow.pop %v958
  %v960 = vmul.f32 %v874, 1.442695
  %v961 = vpow.pop %v960
  %v962 = vmul.f32 %v875, 1.442695
  %v963 = vpow.pop %v962
  %v964 = vmul.f32 %v876, 1.442695
  %v965 = vpow.pop %v964
  %v966 = vmul.f32 %v877, 1.442695
  %v967 = vpow.pop %v966
  %v968 = vmul.f32 %v878, 1.442695
  %v969 = vpow.pop %v968
  %v970 = vmul.f32 %v879, 1.442695
  %v971 = vpow.pop %v970
  %v972 = vmul.f32 %v880, 1.442695
  %v973 = vpow.pop %v972
  %v974 = vmul.f32 %v881, 1.442695
  %v975 = vpow.pop %v974
  %v976 = vmul.f32 %v882, 1.442695
  %v977 = vpow.pop %v976
  %v978 = vmul.f32 %v883, 1.442695
  %v979 = vpow.pop %v978
  %v980 = vmul.f32 %v884, 1.442695
  %v981 = vpow.pop %v980
  %v982 = vmul.f32 %v885, 1.442695
  %v983 = vpow.pop %v982
  %v984 = vmul.f32 %v886, 1.442695
  %v985 = vpow.pop %v984
  %v986 = vmul.f32 %v887, 1.442695
  %v987 = vpow.pop %v986
  %v988 = vmul.f32 %v888, 1.442695
  %v989 = vpow.pop %v988
  %v990 = vmul.f32 %v889, 1.442695
  %v991 = vpow.pop %v990
  %v992 = vmul.f32 %v890, 1.442695
  %v993 = vpow.pop %v992
  %v994 = vmul.f32 %v891, 1.442695
  %v995 = vpow.pop %v994
  %v996 = vmul.f32 %v892, 1.442695
  %v997 = vpow.pop %v996
  %v998 = vmul.f32 %v893, 1.442695
  %v999 = vpow.pop %v998
  %v1000 = vmul.f32 %v894, 1.442695
  %v1001 = vpow.pop %v1000
  %v1002 = vmul.f32 %v895, 1.442695
  %v1003 = vpow.pop %v1002
  %v1004 = vmul.f32 %v896, 1.442695
  %v1005 = vpow.pop %v1004
  %v1006 = vmul.f32 %v897, 1.442695
  %v1007 = vpow.pop %v1006
  %v1008 = vmul.f32 %v898, 1.442695
  %v1009 = vpow.pop %v1008
  %v1010 = vmul.f32 %v899, 1.442695
  %v1011 = vpow.pop %v1010
  %v1012 = vmul.f32 %v900, 1.442695
  %v1013 = vpow.pop %v1012
  %v1014 = vmul.f32 %v901, 1.442695
  %v1015 = vpow.pop %v1014
  %v1016 = vmul.f32 %v902, 1.442695
  %v1017 = vpow.pop %v1016
  %v1018 = vmul.f32 %v903, 1.442695
  %v1019 = vpow.pop %v1018
  %v1020 = vmul.f32 %v904, 1.442695
  %v1021 = vpow.pop %v1020
  %v1022 = vmul.f32 %v905, 1.442695
  %v1023 = vpow.pop %v1022
  %v1024 = vmul.f32 %v906, 1.442695
  %v1025 = vpow.pop %v1024
  %v1026 = vmul.f32 %v907, 1.442695
  %v1027 = vpow.pop %v1026
  %v1028 = vmul.f32 %v908, 1.442695
  %v1029 = vpow.pop %v1028
  %v1030 = vmul.f32 %v909, 1.442695
  %v1031 = vpow.pop %v1030
  %v1032 = vmul.f32 %v910, 1.442695
  %v1033 = vpow.pop %v1032
  %v1034 = vmul.f32 %v911, 1.442695
  %v1035 = vpow.pop %v1034
  %v1036 = vmul.f32 %v912, 1.442695
  %v1037 = vpow.pop %v1036
  %v1038 = vmul.f32 %v913, 1.442695
  %v1039 = vpow.pop %v1038
  %v1040 = vmul.f32 %v914, 1.442695
  %v1041 = vpow.pop %v1040
  %v1042 = vmul.f32 %v915, 1.442695
  %v1043 = vpow.pop %v1042
  %v1044 = vadd.f32 %v917, 1.0
  %v1045 = vadd.f32 %v919, 1.0
  %v1046 = vadd.f32 %v921, 1.0
  %v1047 = vadd.f32 %v923, 1.0
  %v1048 = vadd.f32 %v925, 1.0
  %v1049 = vadd.f32 %v927, 1.0
  %v1050 = vadd.f32 %v929, 1.0
  %v1051 = vadd.f32 %v931, 1.0
  %v1052 = vadd.f32 %v933, 1.0
  %v1053 = vadd.f32 %v935, 1.0
  %v1054 = vadd.f32 %v937, 1.0
  %v1055 = vadd.f32 %v939, 1.0
  %v1056 = vadd.f32 %v941, 1.0
  %v1057 = vadd.f32 %v943, 1.0
  %v1058 = vadd.f32 %v945, 1.0
  %v1059 = vadd.f32 %v947, 1.0
  %v1060 = vadd.f32 %v949, 1.0
  %v1061 = vadd.f32 %v951, 1.0
  %v1062 = vadd.f32 %v953, 1.0
  %v1063 = vadd.f32 %v955, 1.0
  %v1064 = vadd.f32 %v957, 1.0
  %v1065 = vadd.f32 %v959, 1.0
  %v1066 = vadd.f32 %v961, 1.0
  %v1067 = vadd.f32 %v963, 1.0
  %v1068 = vadd.f32 %v965, 1.0
  %v1069 = vadd.f32 %v967, 1.0
  %v1070 = vadd.f32 %v969, 1.0
  %v1071 = vadd.f32 %v971, 1.0
  %v1072 = vadd.f32 %v973, 1.0
  %v1073 = vadd.f32 %v975, 1.0
  %v1074 = vadd.f32 %v977, 1.0
  %v1075 = vadd.f32 %v979, 1.0
  %v1076 = vadd.f32 %v981, 1.0
  %v1077 = vadd.f32 %v983, 1.0
  %v1078 = vadd.f32 %v985, 1.0
  %v1079 = vadd.f32 %v987, 1.0
  %v1080 = vadd.f32 %v989, 1.0
  %v1081 = vadd.f32 %v991, 1.0
  %v1082 = vadd.f32 %v993, 1.0
  %v1083 = vadd.f32 %v995, 1.0
  %v1084 = vadd.f32 %v997, 1.0
  %v1085 = vadd.f32 %v999, 1.0
  %v1086 = vadd.f32 %v1001, 1.0
  %v1087 = vadd.f32 %v1003, 1.0
  %v1088 = vadd.f32 %v1005, 1.0
  %v1089 = vadd.f32 %v1007, 1.0
  %v1090 = vadd.f32 %v1009, 1.0
  %v1091 = vadd.f32 %v1011, 1.0
  %v1092 = vadd.f32 %v1013, 1.0
  %v1093 = vadd.f32 %v1015, 1.0
  %v1094 = vadd.f32 %v1017, 1.0
  %v1095 = vadd.f32 %v1019, 1.0
  %v1096 = vadd.f32 %v1021, 1.0
  %v1097 = vadd.f32 %v1023, 1.0
  %v1098 = vadd.f32 %v1025, 1.0
  %v1099 = vadd.f32 %v1027, 1.0
  %v1100 = vadd.f32 %v1029, 1.0
  %v1101 = vadd.f32 %v1031, 1.0
  %v1102 = vadd.f32 %v1033, 1.0
  %v1103 = vadd.f32 %v1035, 1.0
  %v1104 = vadd.f32 %v1037, 1.0
  %v1105 = vadd.f32 %v1039, 1.0
  %v1106 = vadd.f32 %v1041, 1.0
  %v1107 = vadd.f32 %v1043, 1.0
  %v1108 = vrcp.pop %v1044
  %v1109 = vrcp.pop %v1045
  %v1110 = vrcp.pop %v1046
  %v1111 = vrcp.pop %v1047
  %v1112 = vrcp.pop %v1048
  %v1113 = vrcp.pop %v1049
  %v1114 = vrcp.pop %v1050
  %v1115 = vrcp.pop %v1051
  %v1116 = vrcp.pop %v1052
  %v1117 = vrcp.pop %v1053
  %v1118 = vrcp.pop %v1054
  %v1119 = vrcp.pop %v1055
  %v1120 = vrcp.pop %v1056
  %v1121 = vrcp.pop %v1057
  %v1122 = vrcp.pop %v1058
  %v1123 = vrcp.pop %v1059
  %v1124 = vrcp.pop %v1060
  %v1125 = vrcp.pop %v1061
  %v1126 = vrcp.pop %v1062
  %v1127 = vrcp.pop %v1063
  %v1128 = vrcp.pop %v1064
  %v1129 = vrcp.pop %v1065
  %v1130 = vrcp.pop %v1066
  %v1131 = vrcp.pop %v1067
  %v1132 = vrcp.pop %v1068
  %v1133 = vrcp.pop %v1069
  %v1134 = vrcp.pop %v1070
  %v1135 = vrcp.pop %v1071
  %v1136 = vrcp.pop %v1072
  %v1137 = vrcp.pop %v1073
  %v1138 = vrcp.pop %v1074
  %v1139 = vrcp.pop %v1075
  %v1140 = vrcp.pop %v1076
  %v1141 = vrcp.pop %v1077
  %v1142 = vrcp.pop %v1078
  %v1143 = vrcp.pop %v1079
  %v1144 = vrcp.pop %v1080
  %v1145 = vrcp.pop %v1081
  %v1146 = vrcp.pop %v1082
  %v1147 = vrcp.pop %v1083
  %v1148 = vrcp.pop %v1084
  %v1149 = vrcp.pop %v1085
  %v1150 = vrcp.pop %v1086
  %v1151 = vrcp.pop %v1087
  %v1152 = vrcp.pop %v1088
  %v1153 = vrcp.pop %v1089
  %v1154 = vrcp.pop %v1090
  %v1155 = vrcp.pop %v1091
  %v1156 = vrcp.pop %v1092
  %v1157 = vrcp.pop %v1093
  %v1158 = vrcp.pop %v1094
  %v1159 = vrcp.pop %v1095
  %v1160 = vrcp.pop %v1096
  %v1161 = vrcp.pop %v1097
  %v1162 = vrcp.pop %v1098
  %v1163 = vrcp.pop %v1099
  %v1164 = vrcp.pop %v1100
  %v1165 = vrcp.pop %v1101
  %v1166 = vrcp.pop %v1102
  %v1167 = vrcp.pop %v1103
  %v1168 = vrcp.pop %v1104
  %v1169 = vrcp.pop %v1105
  %v1170 = vrcp.pop %v1106
  %v1171 = vrcp.pop %v1107
  %vm1172 = vcmp.ge.f32.partialorder %v534, 0.0
  %vm1173 = vcmp.ge.f32.partialorder %v537, 0.0
  %vm1174 = vcmp.ge.f32.partialorder %v542, 0.0
  %vm1175 = vcmp.ge.f32.partialorder %v545, 0.0
  %vm1176 = vcmp.ge.f32.partialorder %v550, 0.0
  %vm1177 = vcmp.ge.f32.partialorder %v553, 0.0
  %vm1178 = vcmp.ge.f32.partialorder %v558, 0.0
  %vm1179 = vcmp.ge.f32.partialorder %v561, 0.0
  %vm1180 = vcmp.ge.f32.partialorder %v566, 0.0
  %vm1181 = vcmp.ge.f32.partialorder %v569, 0.0
  %vm1182 = vcmp.ge.f32.partialorder %v574, 0.0
  %vm1183 = vcmp.ge.f32.partialorder %v577, 0.0
  %vm1184 = vcmp.ge.f32.partialorder %v582, 0.0
  %vm1185 = vcmp.ge.f32.partialorder %v585, 0.0
  %vm1186 = vcmp.ge.f32.partialorder %v590, 0.0
  %vm1187 = vcmp.ge.f32.partialorder %v593, 0.0
  %vm1188 = vcmp.ge.f32.partialorder %v598, 0.0
  %vm1189 = vcmp.ge.f32.partialorder %v601, 0.0
  %vm1190 = vcmp.ge.f32.partialorder %v606, 0.0
  %vm1191 = vcmp.ge.f32.partialorder %v609, 0.0
  %vm1192 = vcmp.ge.f32.partialorder %v614, 0.0
  %vm1193 = vcmp.ge.f32.partialorder %v617, 0.0
  %vm1194 = vcmp.ge.f32.partialorder %v622, 0.0
  %vm1195 = vcmp.ge.f32.partialorder %v625, 0.0
  %vm1196 = vcmp.ge.f32.partialorder %v630, 0.0
  %vm1197 = vcmp.ge.f32.partialorder %v633, 0.0
  %vm1198 = vcmp.ge.f32.partialorder %v638, 0.0
  %vm1199 = vcmp.ge.f32.partialorder %v641, 0.0
  %vm1200 = vcmp.ge.f32.partialorder %v646, 0.0
  %vm1201 = vcmp.ge.f32.partialorder %v649, 0.0
  %vm1202 = vcmp.ge.f32.partialorder %v654, 0.0
  %vm1203 = vcmp.ge.f32.partialorder %v657, 0.0
  %vm1204 = vcmp.ge.f32.partialorder %v662, 0.0
  %vm1205 = vcmp.ge.f32.partialorder %v665, 0.0
  %vm1206 = vcmp.ge.f32.partialorder %v670, 0.0
  %vm1207 = vcmp.ge.f32.partialorder %v673, 0.0
  %vm1208 = vcmp.ge.f32.partialorder %v678, 0.0
  %vm1209 = vcmp.ge.f32.partialorder %v681, 0.0
  %vm1210 = vcmp.ge.f32.partialorder %v686, 0.0
  %vm1211 = vcmp.ge.f32.partialorder %v689, 0.0
  %vm1212 = vcmp.ge.f32.partialorder %v694, 0.0
  %vm1213 = vcmp.ge.f32.partialorder %v697, 0.0
  %vm1214 = vcmp.ge.f32.partialorder %v702, 0.0
  %vm1215 = vcmp.ge.f32.partialorder %v705, 0.0
  %vm1216 = vcmp.ge.f32.partialorder %v710, 0.0
  %vm1217 = vcmp.ge.f32.partialorder %v713, 0.0
  %vm1218 = vcmp.ge.f32.partialorder %v718, 0.0
  %vm1219 = vcmp.ge.f32.partialorder %v721, 0.0
  %vm1220 = vcmp.ge.f32.partialorder %v726, 0.0
  %vm1221 = vcmp.ge.f32.partialorder %v729, 0.0
  %vm1222 = vcmp.ge.f32.partialorder %v734, 0.0
  %vm1223 = vcmp.ge.f32.partialorder %v737, 0.0
  %vm1224 = vcmp.ge.f32.partialorder %v742, 0.0
  %vm1225 = vcmp.ge.f32.partialorder %v745, 0.0
  %vm1226 = vcmp.ge.f32.partialorder %v750, 0.0
  %vm1227 = vcmp.ge.f32.partialorder %v753, 0.0
  %vm1228 = vcmp.ge.f32.partialorder %v758, 0.0
  %vm1229 = vcmp.ge.f32.partialorder %v761, 0.0
  %vm1230 = vcmp.ge.f32.partialorder %v766, 0.0
  %vm1231 = vcmp.ge.f32.partialorder %v769, 0.0
  %vm1232 = vcmp.ge.f32.partialorder %v774, 0.0
  %vm1233 = vcmp.ge.f32.partialorder %v777, 0.0
  %vm1234 = vcmp.ge.f32.partialorder %v782, 0.0
  %vm1235 = vcmp.ge.f32.partialorder %v785, 0.0
  %v1236 = vsub.f32 1.0, %v1108
  %v1237 = vsub.f32 1.0, %v1109
  %v1238 = vsub.f32 1.0, %v1110
  %v1239 = vsub.f32 1.0, %v1111
  %v1240 = vsub.f32 1.0, %v1112
  %v1241 = vsub.f32 1.0, %v1113
  %v1242 = vsub.f32 1.0, %v1114
  %v1243 = vsub.f32 1.0, %v1115
  %v1244 = vsub.f32 1.0, %v1116
  %v1245 = vsub.f32 1.0, %v1117
  %v1246 = vsub.f32 1.0, %v1118
  %v1247 = vsub.f32 1.0, %v1119
  %v1248 = vsub.f32 1.0, %v1120
  %v1249 = vsub.f32 1.0, %v1121
  %v1250 = vsub.f32 1.0, %v1122
  %v1251 = vsub.f32 1.0, %v1123
  %v1252 = vsub.f32 1.0, %v1124
  %v1253 = vsub.f32 1.0, %v1125
  %v1254 = vsub.f32 1.0, %v1126
  %v1255 = vsub.f32 1.0, %v1127
  %v1256 = vsub.f32 1.0, %v1128
  %v1257 = vsub.f32 1.0, %v1129
  %v1258 = vsub.f32 1.0, %v1130
  %v1259 = vsub.f32 1.0, %v1131
  %v1260 = vsub.f32 1.0, %v1132
  %v1261 = vsub.f32 1.0, %v1133
  %v1262 = vsub.f32 1.0, %v1134
  %v1263 = vsub.f32 1.0, %v1135
  %v1264 = vsub.f32 1.0, %v1136
  %v1265 = vsub.f32 1.0, %v1137
  %v1266 = vsub.f32 1.0, %v1138
  %v1267 = vsub.f32 1.0, %v1139
  %v1268 = vsub.f32 1.0, %v1140
  %v1269 = vsub.f32 1.0, %v1141
  %v1270 = vsub.f32 1.0, %v1142
  %v1271 = vsub.f32 1.0, %v1143
  %v1272 = vsub.f32 1.0, %v1144
  %v1273 = vsub.f32 1.0, %v1145
  %v1274 = vsub.f32 1.0, %v1146
  %v1275 = vsub.f32 1.0, %v1147
  %v1276 = vsub.f32 1.0, %v1148
  %v1277 = vsub.f32 1.0, %v1149
  %v1278 = vsub.f32 1.0, %v1150
  %v1279 = vsub.f32 1.0, %v1151
  %v1280 = vsub.f32 1.0, %v1152
  %v1281 = vsub.f32 1.0, %v1153
  %v1282 = vsub.f32 1.0, %v1154
  %v1283 = vsub.f32 1.0, %v1155
  %v1284 = vsub.f32 1.0, %v1156
  %v1285 = vsub.f32 1.0, %v1157
  %v1286 = vsub.f32 1.0, %v1158
  %v1287 = vsub.f32 1.0, %v1159
  %v1288 = vsub.f32 1.0, %v1160
  %v1289 = vsub.f32 1.0, %v1161
  %v1290 = vsub.f32 1.0, %v1162
  %v1291 = vsub.f32 1.0, %v1163
  %v1292 = vsub.f32 1.0, %v1164
  %v1293 = vsub.f32 1.0, %v1165
  %v1294 = vsub.f32 1.0, %v1166
  %v1295 = vsub.f32 1.0, %v1167
  %v1296 = vsub.f32 1.0, %v1168
  %v1297 = vsub.f32 1.0, %v1169
  %v1298 = vsub.f32 1.0, %v1170
  %v1299 = vsub.f32 1.0, %v1171
  %v1300 = vsel %vm1172, %v1108, %v1236
  %v1301 = vsel %vm1173, %v1109, %v1237
  %v1302 = vsel %vm1174, %v1110, %v1238
  %v1303 = vsel %vm1175, %v1111, %v1239
  %v1304 = vsel %vm1176, %v1112, %v1240
  %v1305 = vsel %vm1177, %v1113, %v1241
  %v1306 = vsel %vm1178, %v1114, %v1242
  %v1307 = vsel %vm1179, %v1115, %v1243
  %v1308 = vsel %vm1180, %v1116, %v1244
  %v1309 = vsel %vm1181, %v1117, %v1245
  %v1310 = vsel %vm1182, %v1118, %v1246
  %v1311 = vsel %vm1183, %v1119, %v1247
  %v1312 = vsel %vm1184, %v1120, %v1248
  %v1313 = vsel %vm1185, %v1121, %v1249
  %v1314 = vsel %vm1186, %v1122, %v1250
  %v1315 = vsel %vm1187, %v1123, %v1251
  %v1316 = vsel %vm1188, %v1124, %v1252
  %v1317 = vsel %vm1189, %v1125, %v1253
  %v1318 = vsel %vm1190, %v1126, %v1254
  %v1319 = vsel %vm1191, %v1127, %v1255
  %v1320 = vsel %vm1192, %v1128, %v1256
  %v1321 = vsel %vm1193, %v1129, %v1257
  %v1322 = vsel %vm1194, %v1130, %v1258
  %v1323 = vsel %vm1195, %v1131, %v1259
  %v1324 = vsel %vm1196, %v1132, %v1260
  %v1325 = vsel %vm1197, %v1133, %v1261
  %v1326 = vsel %vm1198, %v1134, %v1262
  %v1327 = vsel %vm1199, %v1135, %v1263
  %v1328 = vsel %vm1200, %v1136, %v1264
  %v1329 = vsel %vm1201, %v1137, %v1265
  %v1330 = vsel %vm1202, %v1138, %v1266
  %v1331 = vsel %vm1203, %v1139, %v1267
  %v1332 = vsel %vm1204, %v1140, %v1268
  %v1333 = vsel %vm1205, %v1141, %v1269
  %v1334 = vsel %vm1206, %v1142, %v1270
  %v1335 = vsel %vm1207, %v1143, %v1271
  %v1336 = vsel %vm1208, %v1144, %v1272
  %v1337 = vsel %vm1209, %v1145, %v1273
  %v1338 = vsel %vm1210, %v1146, %v1274
  %v1339 = vsel %vm1211, %v1147, %v1275
  %v1340 = vsel %vm1212, %v1148, %v1276
  %v1341 = vsel %vm1213, %v1149, %v1277
  %v1342 = vsel %vm1214, %v1150, %v1278
  %v1343 = vsel %vm1215, %v1151, %v1279
  %v1344 = vsel %vm1216, %v1152, %v1280
  %v1345 = vsel %vm1217, %v1153, %v1281
  %v1346 = vsel %vm1218, %v1154, %v1282
  %v1347 = vsel %vm1219, %v1155, %v1283
  %v1348 = vsel %vm1220, %v1156, %v1284
  %v1349 = vsel %vm1221, %v1157, %v1285
  %v1350 = vsel %vm1222, %v1158, %v1286
  %v1351 = vsel %vm1223, %v1159, %v1287
  %v1352 = vsel %vm1224, %v1160, %v1288
  %v1353 = vsel %vm1225, %v1161, %v1289
  %v1354 = vsel %vm1226, %v1162, %v1290
  %v1355 = vsel %vm1227, %v1163, %v1291
  %v1356 = vsel %vm1228, %v1164, %v1292
  %v1357 = vsel %vm1229, %v1165, %v1293
  %v1358 = vsel %vm1230, %v1166, %v1294
  %v1359 = vsel %vm1231, %v1167, %v1295
  %v1360 = vsel %vm1232, %v1168, %v1296
  %v1361 = vsel %vm1233, %v1169, %v1297
  %v1362 = vsel %vm1234, %v1170, %v1298
  %v1363 = vsel %vm1235, %v1171, %v1299
  %1364 = vst [vmem:[%s5] sm:$0xff] %v1300
  %1365 = vst [vmem:[%s5 + $0x8] sm:$0xff] %v1301
  %1366 = vst [vmem:[%s5 + $0x10] sm:$0xff] %v1302
  %1367 = vst [vmem:[%s5 + $0x18] sm:$0xff] %v1303
  %1368 = vst [vmem:[%s5 + $0x20] sm:$0xff] %v1304
  %1369 = vst [vmem:[%s5 + $0x28] sm:$0xff] %v1305
  %1370 = vst [vmem:[%s5 + $0x30] sm:$0xff] %v1306
  %1371 = vst [vmem:[%s5 + $0x38] sm:$0xff] %v1307
  %1372 = vst [vmem:[%s5 + $0x40] sm:$0xff] %v1308
  %1373 = vst [vmem:[%s5 + $0x48] sm:$0xff] %v1309
  %1374 = vst [vmem:[%s5 + $0x50] sm:$0xff] %v1310
  %1375 = vst [vmem:[%s5 + $0x58] sm:$0xff] %v1311
  %1376 = vst [vmem:[%s5 + $0x60] sm:$0xff] %v1312
  %1377 = vst [vmem:[%s5 + $0x68] sm:$0xff] %v1313
  %1378 = vst [vmem:[%s5 + $0x70] sm:$0xff] %v1314
  %1379 = vst [vmem:[%s5 + $0x78] sm:$0xff] %v1315
  %1380 = vst [vmem:[%s5 + $0x80] sm:$0xff] %v1316
  %1381 = vst [vmem:[%s5 + $0x88] sm:$0xff] %v1317
  %1382 = vst [vmem:[%s5 + $0x90] sm:$0xff] %v1318
  %1383 = vst [vmem:[%s5 + $0x98] sm:$0xff] %v1319
  %1384 = vst [vmem:[%s5 + $0xa0] sm:$0xff] %v1320
  %1385 = vst [vmem:[%s5 + $0xa8] sm:$0xff] %v1321
  %1386 = vst [vmem:[%s5 + $0xb0] sm:$0xff] %v1322
  %1387 = vst [vmem:[%s5 + $0xb8] sm:$0xff] %v1323
  %1388 = vst [vmem:[%s5 + $0xc0] sm:$0xff] %v1324
  %1389 = vst [vmem:[%s5 + $0xc8] sm:$0xff] %v1325
  %1390 = vst [vmem:[%s5 + $0xd0] sm:$0xff] %v1326
  %1391 = vst [vmem:[%s5 + $0xd8] sm:$0xff] %v1327
  %1392 = vst [vmem:[%s5 + $0xe0] sm:$0xff] %v1328
  %1393 = vst [vmem:[%s5 + $0xe8] sm:$0xff] %v1329
  %1394 = vst [vmem:[%s5 + $0xf0] sm:$0xff] %v1330
  %1395 = vst [vmem:[%s5 + $0xf8] sm:$0xff] %v1331
  %1396 = vst [vmem:[%s5 + $0x100] sm:$0xff] %v1332
  %1397 = vst [vmem:[%s5 + $0x108] sm:$0xff] %v1333
  %1398 = vst [vmem:[%s5 + $0x110] sm:$0xff] %v1334
  %1399 = vst [vmem:[%s5 + $0x118] sm:$0xff] %v1335
  %1400 = vst [vmem:[%s5 + $0x120] sm:$0xff] %v1336
  %1401 = vst [vmem:[%s5 + $0x128] sm:$0xff] %v1337
  %1402 = vst [vmem:[%s5 + $0x130] sm:$0xff] %v1338
  %1403 = vst [vmem:[%s5 + $0x138] sm:$0xff] %v1339
  %1404 = vst [vmem:[%s5 + $0x140] sm:$0xff] %v1340
  %1405 = vst [vmem:[%s5 + $0x148] sm:$0xff] %v1341
  %1406 = vst [vmem:[%s5 + $0x150] sm:$0xff] %v1342
  %1407 = vst [vmem:[%s5 + $0x158] sm:$0xff] %v1343
  %1408 = vst [vmem:[%s5 + $0x160] sm:$0xff] %v1344
  %1409 = vst [vmem:[%s5 + $0x168] sm:$0xff] %v1345
  %1410 = vst [vmem:[%s5 + $0x170] sm:$0xff] %v1346
  %1411 = vst [vmem:[%s5 + $0x178] sm:$0xff] %v1347
  %1412 = vst [vmem:[%s5 + $0x180] sm:$0xff] %v1348
  %1413 = vst [vmem:[%s5 + $0x188] sm:$0xff] %v1349
  %1414 = vst [vmem:[%s5 + $0x190] sm:$0xff] %v1350
  %1415 = vst [vmem:[%s5 + $0x198] sm:$0xff] %v1351
  %1416 = vst [vmem:[%s5 + $0x1a0] sm:$0xff] %v1352
  %1417 = vst [vmem:[%s5 + $0x1a8] sm:$0xff] %v1353
  %1418 = vst [vmem:[%s5 + $0x1b0] sm:$0xff] %v1354
  %1419 = vst [vmem:[%s5 + $0x1b8] sm:$0xff] %v1355
  %1420 = vst [vmem:[%s5 + $0x1c0] sm:$0xff] %v1356
  %1421 = vst [vmem:[%s5 + $0x1c8] sm:$0xff] %v1357
  %1422 = vst [vmem:[%s5 + $0x1d0] sm:$0xff] %v1358
  %1423 = vst [vmem:[%s5 + $0x1d8] sm:$0xff] %v1359
  %1424 = vst [vmem:[%s5 + $0x1e0] sm:$0xff] %v1360
  %1425 = vst [vmem:[%s5 + $0x1e8] sm:$0xff] %v1361
  %1426 = vst [vmem:[%s5 + $0x1f0] sm:$0xff] %v1362
  %1427 = vst [vmem:[%s5 + $0x1f8] sm:$0xff] %v1363
  // Predicated region
  $region22: #{custom_unet_generator.15} parent=0 // pred_check
    _
  $region23: #{custom_unet_generator.15} parent=0 // pred_check_branch
    %1429 = sbr.rel (0) target = $region25
  $region24: #{custom_unet_generator.15} parent=0 // pred_region
    _
  $region25: #{custom_unet_generator.15} parent=0 // pred_fallthru
    _
  // Predicated region
  $region26: #{custom_unet_generator.15} parent=0 // pred_check
    _
  $region27: #{custom_unet_generator.15} parent=0 // pred_check_branch
    %1431 = sbr.rel (0) target = $region29
  $region28: #{custom_unet_generator.15} parent=0 // pred_region
    _
  $region29: #{custom_unet_generator.15} parent=0 // pred_fallthru
    _

</llo_original>
